<compile_context>
chip_gen: v5e
topology: v5e:2x2
jax: 0.10.0
libtpu: 0.0.40
codegen_flags: <defaults>
</compile_context>

<pallas_src>
import jax
import jax.numpy as jnp
from jax.experimental import pallas as pl
from jax.experimental.pallas import tpu as pltpu

_EPS = 1e-5

# Packed scale/bias table layout (lane offsets, all multiples of 128).
_SB_WIDTH = 1792
_SB_OFFS = dict(c71=0, c72=128, c11=256, c12=384, c21=640, c22=768,
                se1_b1=1024, se1_b2=1152, se2_b1=1408, se2_b2=1536)


# --------------------------------------------------------------------------
# Kernel A: fused conv stem + two conv/SE/max-pool branches, lane-dense
# (L, C) layout, one batch element per grid step.
# --------------------------------------------------------------------------

def _conv_se_kernel(x_ref, w16_ref, w64_ref, w256_ref,
                    s1w1_ref, s1w2_ref, s2w1_ref, s2w2_ref, sb_ref,
                    out_ref, pad_ref, col_ref):
    # Left-pad row (row 0) is never written by any layer: clear it once.
    pad_ref[0:1, :] = jnp.zeros((1, pad_ref.shape[1]), jnp.float32)

    def conv_bn_relu(x, w, off, cout, pad=1):
        """x: (L, Cin) f32 value; w: (K*Cin, Cout) bf16 value.
        Returns ReLU(conv * scale + bias) as (Lout, Cout) f32."""
        L, cin = x.shape
        kc = w.shape[0]
        k = kc // cin
        lout = L + 2 * pad - k + 1
        # Stage the input; only the (single) right-pad row needs clearing
        # (a longer previous layer may have left stale data there).
        pad_ref[1:1 + L, 0:cin] = x
        pad_ref[1 + L:2 + L, 0:cin] = jnp.zeros((1, cin), jnp.float32)

        if cin == 1:
            # Degenerate contraction depth: VPU outer-product path.
            wf = w.astype(jnp.float32)
            acc = jnp.zeros((lout, cout), jnp.float32)
            for kk in range(k):                         # static unroll
                acc = acc + pad_ref[kk:kk + lout, 0:1] * wf[kk:kk + 1, :]
            y = acc
        else:
            # Build the bf16 im2col operand once, then a single MXU dot.
            for kk in range(k):                         # static unroll
                col_ref[0:lout, kk * cin:(kk + 1) * cin] = (
                    pad_ref[kk:kk + lout, 0:cin].astype(jnp.bfloat16))
            y = jnp.dot(col_ref[0:lout, 0:kc], w,
                        preferred_element_type=jnp.float32)

        s = sb_ref[0:1, off:off + cout]                 # (1, Cout) folded BN
        b = sb_ref[1:2, off:off + cout]
        return jnp.maximum(y * s + b, 0.0)

    def se_maxpool(y, w1t, b1, w2t, b2):
        """SELayer + adaptive_max_pool1d(1).  y: (L, C) -> (1, C)."""
        l = y.shape[0]
        mean = jnp.sum(y, axis=0, keepdims=True) * (1.0 / l)        # (1, C)
        h = jnp.dot(mean, w1t, preferred_element_type=jnp.float32) + b1
        h = jnp.maximum(h, 0.0)                                      # (1, Cr)
        g = jnp.dot(h, w2t, preferred_element_type=jnp.float32) + b2
        g = jax.nn.sigmoid(g)                                        # (1, C)
        return jnp.max(y * g, axis=0, keepdims=True)                 # (1, C)

    x = x_ref[...]                                                   # (64, 1)

    # Shared stem.
    t = conv_bn_relu(x, w16_ref[0:7, :], _SB_OFFS["c71"], 16)        # (60, 16)
    t = conv_bn_relu(t, w16_ref[8:120, :], _SB_OFFS["c72"], 16)      # (56, 16)

    # Branch 1 (k=3 convs) + SE + max pool.
    y = conv_bn_relu(t, w64_ref[0:48, :], _SB_OFFS["c11"], 64)       # (56, 64)
    y = conv_bn_relu(y, w256_ref[0:192, :], _SB_OFFS["c12"], 256)    # (56, 256)
    out_ref[0:1, 0:256] = se_maxpool(
        y, s1w1_ref[...], sb_ref[1:2, 1024:1040],
        s1w2_ref[...], sb_ref[1:2, 1152:1408])

    # Branch 2 (k=5 convs) + SE + max pool.
    y = conv_bn_relu(t, w64_ref[48:128, :], _SB_OFFS["c21"], 64)     # (54, 64)
    y = conv_bn_relu(y, w256_ref[192:512, :], _SB_OFFS["c22"], 256)  # (52, 256)
    out_ref[0:1, 256:512] = se_maxpool(
        y, s2w1_ref[...], sb_ref[1:2, 1408:1424],
        s2w2_ref[...], sb_ref[1:2, 1536:1792])


def _conv_se_pallas(x_t, prep):
    B, L, _ = x_t.shape
    consts = prep["conv_consts"]
    in_specs = [pl.BlockSpec((None, L, 1), lambda b: (b, 0, 0))]
    in_specs += [pl.BlockSpec(a.shape, lambda b: (0, 0)) for a in consts]
    return pl.pallas_call(
        _conv_se_kernel,
        out_shape=jax.ShapeDtypeStruct((B, 1, 512), jnp.float32),
        grid=(B,),
        in_specs=in_specs,
        out_specs=pl.BlockSpec((None, 1, 512), lambda b: (b, 0, 0)),
        scratch_shapes=[pltpu.VMEM((72, 128), jnp.float32),      # padded input
                        pltpu.VMEM((64, 320), jnp.bfloat16)],    # im2col cols
        compiler_params=pltpu.CompilerParams(
            dimension_semantics=("parallel",)),
    )(x_t, *consts)


# --------------------------------------------------------------------------
# Kernel B: fused fc1 -> fc2 -> fc3 with the fc weight stream chunked over an
# "arbitrary" accumulation grid (h2 accumulated in VMEM, logits at last step).
# --------------------------------------------------------------------------

_FC_CHUNKS = 8


def _fc_kernel(x_ref, w1_ref, b1_ref, w2_ref, w3_ref, b2_ref, b3_ref,
               o_ref, h2_ref):
    j = pl.program_id(0)

    @pl.when(j == 0)
    def _():
        h2_ref[...] = jnp.zeros(h2_ref.shape, jnp.float32)

    x = x_ref[...].astype(jnp.bfloat16)                              # (B, 512)
    h1 = jnp.dot(x, w1_ref[...],
                 preferred_element_type=jnp.float32) + b1_ref[...]   # (B, ch)
    h2_ref[...] += jnp.dot(h1.astype(jnp.bfloat16), w2_ref[...],
                           preferred_element_type=jnp.float32)       # (B, 1024)

    @pl.when(j == pl.num_programs(0) - 1)
    def _():
        h2 = (h2_ref[...] + b2_ref[...]).astype(jnp.bfloat16)
        o_ref[...] = jnp.dot(h2, w3_ref[...],
                             preferred_element_type=jnp.float32) + b3_ref[...]


def _fc_pallas(x3, prep):
    B = x3.shape[0]
    w1t, b1 = prep["w1t"], prep["b1"]          # (512, 4096) bf16, (1, 4096)
    w2t, b2 = prep["w2t"], prep["b2"]          # (4096, 1024) bf16, (1, 1024)
    w3t, b3 = prep["w3t"], prep["b3"]          # (1024, 6) bf16,   (1, 6)
    K1, N1 = w1t.shape
    _, N2 = w2t.shape
    K3, N3 = w3t.shape
    ch = N1 // _FC_CHUNKS                      # 512-wide fc1-output chunks

    return pl.pallas_call(
        _fc_kernel,
        out_shape=jax.ShapeDtypeStruct((B, N3), jnp.float32),
        grid=(_FC_CHUNKS,),
        in_specs=[
            pl.BlockSpec((B, K1), lambda j: (0, 0)),     # x (resident)
            pl.BlockSpec((K1, ch), lambda j: (0, j)),    # fc1 weight chunk
            pl.BlockSpec((1, ch), lambda j: (0, j)),     # fc1 bias chunk
            pl.BlockSpec((ch, N2), lambda j: (j, 0)),    # fc2 weight chunk
            pl.BlockSpec((K3, N3), lambda j: (0, 0)),    # fc3 weight (resident)
            pl.BlockSpec((1, N2), lambda j: (0, 0)),     # fc2 bias
            pl.BlockSpec((1, N3), lambda j: (0, 0)),     # fc3 bias
        ],
        out_specs=pl.BlockSpec((B, N3), lambda j: (0, 0)),
        scratch_shapes=[pltpu.VMEM((B, N2), jnp.float32)],
        compiler_params=pltpu.CompilerParams(
            dimension_semantics=("arbitrary",)),
    )(x3, w1t, b1, w2t, w3t, b2, b3)


# --------------------------------------------------------------------------
# Parameter preparation (done once, outside the jitted forward) and forward.
# --------------------------------------------------------------------------

def prepare_params(P):
    """Fold BN into per-channel scale/bias, build transposed (K*Cin, Cout)
    bf16 conv weight slabs, pack scale/bias/SE-bias into one table, transpose
    + bf16-cast the fc weights."""
    def fold_conv(p):
        w = p["w"]                               # (Cout, Cin, K)
        Cout, Cin, K = w.shape
        # wt[k*Cin + c, cout] = w[cout, c, k]  (matches kernel's im2col order)
        wt = jnp.transpose(w, (2, 1, 0)).reshape(K * Cin, Cout).astype(jnp.bfloat16)
        s = p["gamma"] / jnp.sqrt(p["var"] + _EPS)
        bias = (p["b"] - p["mean"]) * s + p["beta"]
        return wt, s, bias

    wt71, s71, b71 = fold_conv(P["conv7_1"])
    wt72, s72, b72 = fold_conv(P["conv7_2"])
    wt11, s11, b11 = fold_conv(P["conv1_1"])
    wt12, s12, b12 = fold_conv(P["conv1_2"])
    wt21, s21, b21 = fold_conv(P["conv2_1"])
    wt22, s22, b22 = fold_conv(P["conv2_2"])

    # Weight slabs (sublane offsets padded to multiples of 8).
    w16 = jnp.concatenate([wt71, jnp.zeros((1, 16), jnp.bfloat16), wt72], axis=0)  # (120, 16)
    w64 = jnp.concatenate([wt11, wt21], axis=0)                                    # (128, 64)
    w256 = jnp.concatenate([wt12, wt22], axis=0)                                   # (512, 256)

    # Packed scale/bias table (row 0 = scale, row 1 = bias / SE biases).
    sb = jnp.zeros((2, _SB_WIDTH), jnp.float32)

    def put(tbl, key, s, b):
        off = _SB_OFFS[key]
        tbl = tbl.at[0, off:off + s.shape[0]].set(s)
        return tbl.at[1, off:off + b.shape[0]].set(b)

    sb = put(sb, "c71", s71, b71)
    sb = put(sb, "c72", s72, b72)
    sb = put(sb, "c11", s11, b11)
    sb = put(sb, "c12", s12, b12)
    sb = put(sb, "c21", s21, b21)
    sb = put(sb, "c22", s22, b22)
    sb = sb.at[1, 1024:1040].set(P["se1"]["b1"])
    sb = sb.at[1, 1152:1408].set(P["se1"]["b2"])
    sb = sb.at[1, 1408:1424].set(P["se2"]["b1"])
    sb = sb.at[1, 1536:1792].set(P["se2"]["b2"])

    conv_consts = [
        w16, w64, w256,
        P["se1"]["w1"].T, P["se1"]["w2"].T,      # (256,16) / (16,256) f32
        P["se2"]["w1"].T, P["se2"]["w2"].T,
        sb,
    ]
    return dict(
        conv_consts=conv_consts,
        w1t=P["fc1"]["w"].T.astype(jnp.bfloat16),
        b1=P["fc1"]["b"].reshape(1, -1),
        w2t=P["fc2"]["w"].T.astype(jnp.bfloat16),
        b2=P["fc2"]["b"].reshape(1, -1),
        w3t=P["fc3"]["w"].T.astype(jnp.bfloat16),
        b3=P["fc3"]["b"].reshape(1, -1),
    )


def blnet_forward(x, prep):
    """x: (B, 1, L) float32 -> (B, 6) float32.  Two pallas_call launches."""
    B, _, L = x.shape
    x_t = x.reshape(B, L, 1)                     # Cin == 1: transpose == reshape
    feat = _conv_se_pallas(x_t, prep)            # (B, 1, 512) lane-dense
    x3 = feat.reshape(B, 512)                    # cat + flatten
    # nn.Dropout(0.5) is the identity at inference (eval mode).
    return _fc_pallas(x3, prep)                  # (B, 6)


# --------------------------------------------------------------------------
# Params init + pure-JAX reference.
# --------------------------------------------------------------------------

def init_params(key):
    ks = iter(jax.random.split(key, 64))

    def nrm(shape, std=0.05):
        return std * jax.random.normal(next(ks), shape, jnp.float32)

    def conv_bn(cin, cout, k):
        return dict(
            w=nrm((cout, cin, k)),
            b=nrm((cout,)),
            gamma=1.0 + nrm((cout,)),
            beta=nrm((cout,)),
            mean=nrm((cout,)),
            var=1.0 + 0.1 * jax.random.uniform(next(ks), (cout,), jnp.float32),
        )

    def se(c, r=16):
        return dict(w1=nrm((c // r, c)), b1=nrm((c // r,)),
                    w2=nrm((c, c // r)), b2=nrm((c,)))

    def lin(cin, cout):
        return dict(w=nrm((cout, cin)), b=nrm((cout,)))

    return dict(
        conv7_1=conv_bn(1, 16, 7), conv7_2=conv_bn(16, 16, 7),
        conv1_1=conv_bn(16, 64, 3), conv1_2=conv_bn(64, 256, 3), se1=se(256),
        conv2_1=conv_bn(16, 64, 5), conv2_2=conv_bn(64, 256, 5), se2=se(256),
        fc1=lin(512, 4096), fc2=lin(4096, 1024), fc3=lin(1024, 6),
    )


def ref_forward(x, P):
    """Pure-JAX reference (same math, XLA ops)."""
    def cbr(x, p, pad):
        y = jax.lax.conv_general_dilated(
            x, p["w"], (1,), [(pad, pad)], dimension_numbers=("NCH", "OIH", "NCH"))
        y = y + p["b"][None, :, None]
        s = p["gamma"] / jnp.sqrt(p["var"] + _EPS)
        y = y * s[None, :, None] + (p["beta"] - p["mean"] * s)[None, :, None]
        return jnp.maximum(y, 0.0)

    def se_mp(x, p):
        m = jnp.mean(x, axis=2)                               # (B, C)
        h = jnp.maximum(m @ p["w1"].T + p["b1"], 0.0)
        y = jax.nn.sigmoid(h @ p["w2"].T + p["b2"])
        return jnp.max(x * y[:, :, None], axis=2)             # (B, C)

    x = cbr(x, P["conv7_1"], 1)
    x = cbr(x, P["conv7_2"], 1)
    x1 = cbr(x, P["conv1_1"], 1); x1 = cbr(x1, P["conv1_2"], 1); p1 = se_mp(x1, P["se1"])
    x2 = cbr(x, P["conv2_1"], 1); x2 = cbr(x2, P["conv2_2"], 1); p2 = se_mp(x2, P["se2"])
    x3 = jnp.concatenate([p1, p2], axis=1)                    # (B, 512)
    h = x3 @ P["fc1"]["w"].T + P["fc1"]["b"]
    h = h @ P["fc2"]["w"].T + P["fc2"]["b"]
    h = h @ P["fc3"]["w"].T + P["fc3"]["b"]
    return h


# --------------------------------------------------------------------------

if __name__ == "__main__":
    B, L = 2, 64
    key = jax.random.PRNGKey(0)
    kp, kx = jax.random.split(key)
    params = init_params(kp)
    x = jax.random.normal(kx, (B, 1, L), jnp.float32)

    prep = prepare_params(params)                 # one-time weight prep
    fwd = jax.jit(blnet_forward)
    out = jax.block_until_ready(fwd(x, prep))
    assert out.shape == (B, 6), out.shape

    with jax.default_matmul_precision("highest"):
        ref = ref_forward(x, params)
    ref = jax.block_until_ready(ref)

    # bf16 conv/fc weight streaming (f32 accumulation) => <~1% error vs f32 ref.
    if not jnp.allclose(out, ref, rtol=2e-2, atol=2e-2):
        raise SystemExit(f"mismatch: max abs diff {jnp.max(jnp.abs(out - ref))}")

    print("KERNEL_OK")
</pallas_src>

<mosaic_0001>
module attributes {stable_mosaic.version = 11 : i64} {
  func.func @_fc_kernel(%arg0: i32, %arg1: memref<2x512xf32, #tpu.memory_space<vmem>>, %arg2: memref<512x512xbf16, #tpu.memory_space<vmem>>, %arg3: memref<1x512xf32, #tpu.memory_space<vmem>>, %arg4: memref<512x1024xbf16, #tpu.memory_space<vmem>>, %arg5: memref<1024x6xbf16, #tpu.memory_space<vmem>>, %arg6: memref<1x1024xf32, #tpu.memory_space<vmem>>, %arg7: memref<1x6xf32, #tpu.memory_space<vmem>>, %arg8: memref<2x6xf32, #tpu.memory_space<vmem>>, %arg9: memref<2x1024xf32, #tpu.memory_space<vmem>>) attributes {dimension_semantics = [#tpu.dimension_semantics<arbitrary>], iteration_bounds = array<i64: 8>, scalar_prefetch = 0 : i64, scratch_operands = 1 : i64, tpu.core_type = #tpu.core_type<tc>, window_params = [{pipeline_mode = #tpu.pipeline_mode<synchronous>, transform_indices = @transform_0, window_bounds = array<i64: 2, 512>}, {transform_indices = @transform_1, window_bounds = array<i64: 512, 512>}, {transform_indices = @transform_2, window_bounds = array<i64: 1, 512>}, {transform_indices = @transform_3, window_bounds = array<i64: 512, 1024>}, {pipeline_mode = #tpu.pipeline_mode<synchronous>, transform_indices = @transform_4, window_bounds = array<i64: 1024, 6>}, {pipeline_mode = #tpu.pipeline_mode<synchronous>, transform_indices = @transform_5, window_bounds = array<i64: 1, 1024>}, {pipeline_mode = #tpu.pipeline_mode<synchronous>, transform_indices = @transform_6, window_bounds = array<i64: 1, 6>}, {pipeline_mode = #tpu.pipeline_mode<synchronous>, transform_indices = @transform_7, window_bounds = array<i64: 2, 6>}]} {
    %c0_i32 = arith.constant 0 : i32
    %0 = arith.cmpi eq, %arg0, %c0_i32 : i32
    %1 = arith.extui %0 : i1 to i32
    %c0_i32_0 = arith.constant 0 : i32
    %2 = arith.cmpi ne, %1, %c0_i32_0 : i32
    scf.if %2 {
      %cst_14 = arith.constant 0.000000e+00 : f32
      %19 = vector.broadcast %cst_14 : f32 to vector<2x1024xf32>
      %c0_15 = arith.constant 0 : index
      %c0_16 = arith.constant 0 : index
      %20 = vector.load %arg9[%c0_15, %c0_16] : memref<2x1024xf32, #tpu.memory_space<vmem>>, vector<2x1024xf32>
      tpu.vector_store %arg9[%c0_15, %c0_16], %19 {strides = array<i32>} : memref<2x1024xf32, #tpu.memory_space<vmem>>, vector<2x1024xf32>,
    } else {
    }
    %c0 = arith.constant 0 : index
    %c0_1 = arith.constant 0 : index
    %3 = vector.load %arg1[%c0, %c0_1] : memref<2x512xf32, #tpu.memory_space<vmem>>, vector<2x512xf32>
    %4 = arith.truncf %3 : vector<2x512xf32> to vector<2x512xbf16>
    %c0_2 = arith.constant 0 : index
    %c0_3 = arith.constant 0 : index
    %5 = vector.load %arg2[%c0_2, %c0_3] : memref<512x512xbf16, #tpu.memory_space<vmem>>, vector<512x512xbf16>
    %cst = arith.constant dense<0.000000e+00> : vector<2x512xf32>
    %6 = tpu.matmul %4, %5, %cst {dimension_numbers = #tpu.dot_dimension_numbers<[1], [0], [0], [1], [0, 0, 1, 1], [], []>} : vector<2x512xbf16>, vector<512x512xbf16>, vector<2x512xf32> -> vector<2x512xf32>
    %c0_4 = arith.constant 0 : index
    %c0_5 = arith.constant 0 : index
    %7 = vector.load %arg3[%c0_4, %c0_5] : memref<1x512xf32, #tpu.memory_space<vmem>>, vector<1x512xf32>
    %8 = vector.broadcast %7 : vector<1x512xf32> to vector<2x512xf32>
    %9 = arith.addf %6, %8 : vector<2x512xf32>
    %c0_6 = arith.constant 0 : index
    %c0_7 = arith.constant 0 : index
    %10 = vector.load %arg9[%c0_6, %c0_7] : memref<2x1024xf32, #tpu.memory_space<vmem>>, vector<2x1024xf32>
    %11 = arith.truncf %9 : vector<2x512xf32> to vector<2x512xbf16>
    %c0_8 = arith.constant 0 : index
    %c0_9 = arith.constant 0 : index
    %12 = vector.load %arg4[%c0_8, %c0_9] : memref<512x1024xbf16, #tpu.memory_space<vmem>>, vector<512x1024xbf16>
    %cst_10 = arith.constant dense<0.000000e+00> : vector<2x1024xf32>
    %13 = tpu.matmul %11, %12, %cst_10 {dimension_numbers = #tpu.dot_dimension_numbers<[1], [0], [0], [1], [0, 0, 1, 1], [], []>} : vector<2x512xbf16>, vector<512x1024xbf16>, vector<2x1024xf32> -> vector<2x1024xf32>
    %14 = arith.addf %10, %13 : vector<2x1024xf32>
    %c0_11 = arith.constant 0 : index
    %c0_12 = arith.constant 0 : index
    %15 = vector.load %arg9[%c0_11, %c0_12] : memref<2x1024xf32, #tpu.memory_space<vmem>>, vector<2x1024xf32>
    tpu.vector_store %arg9[%c0_11, %c0_12], %14 {strides = array<i32>} : memref<2x1024xf32, #tpu.memory_space<vmem>>, vector<2x1024xf32>,
    %c7_i32 = arith.constant 7 : i32
    %16 = arith.cmpi eq, %arg0, %c7_i32 : i32
    %17 = arith.extui %16 : i1 to i32
    %c0_i32_13 = arith.constant 0 : i32
    %18 = arith.cmpi ne, %17, %c0_i32_13 : i32
    scf.if %18 {
      %c0_14 = arith.constant 0 : index
      %c0_15 = arith.constant 0 : index
      %19 = vector.load %arg9[%c0_14, %c0_15] : memref<2x1024xf32, #tpu.memory_space<vmem>>, vector<2x1024xf32>
      %c0_16 = arith.constant 0 : index
      %c0_17 = arith.constant 0 : index
      %20 = vector.load %arg6[%c0_16, %c0_17] : memref<1x1024xf32, #tpu.memory_space<vmem>>, vector<1x1024xf32>
      %21 = vector.broadcast %20 : vector<1x1024xf32> to vector<2x1024xf32>
      %22 = arith.addf %19, %21 : vector<2x1024xf32>
      %23 = arith.truncf %22 : vector<2x1024xf32> to vector<2x1024xbf16>
      %c0_18 = arith.constant 0 : index
      %c0_19 = arith.constant 0 : index
      %24 = vector.load %arg5[%c0_18, %c0_19] : memref<1024x6xbf16, #tpu.memory_space<vmem>>, vector<1024x6xbf16>
      %cst_20 = arith.constant dense<0.000000e+00> : vector<2x6xf32>
      %25 = tpu.matmul %23, %24, %cst_20 {dimension_numbers = #tpu.dot_dimension_numbers<[1], [0], [0], [1], [0, 0, 1, 1], [], []>} : vector<2x1024xbf16>, vector<1024x6xbf16>, vector<2x6xf32> -> vector<2x6xf32>
      %c0_21 = arith.constant 0 : index
      %c0_22 = arith.constant 0 : index
      %26 = vector.load %arg7[%c0_21, %c0_22] : memref<1x6xf32, #tpu.memory_space<vmem>>, vector<1x6xf32>
      %27 = vector.broadcast %26 : vector<1x6xf32> to vector<2x6xf32>
      %28 = arith.addf %25, %27 : vector<2x6xf32>
      %c0_23 = arith.constant 0 : index
      %c0_24 = arith.constant 0 : index
      %29 = vector.load %arg8[%c0_23, %c0_24] : memref<2x6xf32, #tpu.memory_space<vmem>>, vector<2x6xf32>
      tpu.vector_store %arg8[%c0_23, %c0_24], %28 {strides = array<i32>} : memref<2x6xf32, #tpu.memory_space<vmem>>, vector<2x6xf32>,
    } else {
    }
    return
  }
  func.func @transform_0(%arg0: i32) -> (i32, i32) {
    %c0_i32 = arith.constant 0 : i32
    %c0_i32_0 = arith.constant 0 : i32
    %c0_i32_1 = arith.constant 0 : i32
    return %c0_i32, %c0_i32_0 : i32, i32
  }
  func.func @transform_1(%arg0: i32) -> (i32, i32) {
    %c0_i32 = arith.constant 0 : i32
    %c0_i32_0 = arith.constant 0 : i32
    return %c0_i32, %arg0 : i32, i32
  }
  func.func @transform_2(%arg0: i32) -> (i32, i32) {
    %c0_i32 = arith.constant 0 : i32
    %c0_i32_0 = arith.constant 0 : i32
    return %c0_i32, %arg0 : i32, i32
  }
  func.func @transform_3(%arg0: i32) -> (i32, i32) {
    %c0_i32 = arith.constant 0 : i32
    %c0_i32_0 = arith.constant 0 : i32
    return %arg0, %c0_i32 : i32, i32
  }
  func.func @transform_4(%arg0: i32) -> (i32, i32) {
    %c0_i32 = arith.constant 0 : i32
    %c0_i32_0 = arith.constant 0 : i32
    %c0_i32_1 = arith.constant 0 : i32
    return %c0_i32, %c0_i32_0 : i32, i32
  }
  func.func @transform_5(%arg0: i32) -> (i32, i32) {
    %c0_i32 = arith.constant 0 : i32
    %c0_i32_0 = arith.constant 0 : i32
    %c0_i32_1 = arith.constant 0 : i32
    return %c0_i32, %c0_i32_0 : i32, i32
  }
  func.func @transform_6(%arg0: i32) -> (i32, i32) {
    %c0_i32 = arith.constant 0 : i32
    %c0_i32_0 = arith.constant 0 : i32
    %c0_i32_1 = arith.constant 0 : i32
    return %c0_i32, %c0_i32_0 : i32, i32
  }
  func.func @transform_7(%arg0: i32) -> (i32, i32) {
    %c0_i32 = arith.constant 0 : i32
    %c0_i32_0 = arith.constant 0 : i32
    %c0_i32_1 = arith.constant 0 : i32
    return %c0_i32, %c0_i32_0 : i32, i32
  }
}

module attributes {stable_mosaic.version = 11 : i64} {
  func.func @_conv_se_kernel(%arg0: i32, %arg1: memref<1x64x1xf32, #tpu.memory_space<vmem>>, %arg2: memref<120x16xbf16, #tpu.memory_space<vmem>>, %arg3: memref<128x64xbf16, #tpu.memory_space<vmem>>, %arg4: memref<512x256xbf16, #tpu.memory_space<vmem>>, %arg5: memref<256x16xf32, #tpu.memory_space<vmem>>, %arg6: memref<16x256xf32, #tpu.memory_space<vmem>>, %arg7: memref<256x16xf32, #tpu.memory_space<vmem>>, %arg8: memref<16x256xf32, #tpu.memory_space<vmem>>, %arg9: memref<2x1792xf32, #tpu.memory_space<vmem>>, %arg10: memref<1x1x512xf32, #tpu.memory_space<vmem>>, %arg11: memref<72x128xf32, #tpu.memory_space<vmem>>, %arg12: memref<64x320xbf16, #tpu.memory_space<vmem>>) attributes {dimension_semantics = [#tpu.dimension_semantics<parallel>], iteration_bounds = array<i64: 2>, scalar_prefetch = 0 : i64, scratch_operands = 2 : i64, tpu.core_type = #tpu.core_type<tc>, window_params = [{transform_indices = @transform_0, window_bounds = array<i64: 1, 64, 1>}, {pipeline_mode = #tpu.pipeline_mode<synchronous>, transform_indices = @transform_1, window_bounds = array<i64: 120, 16>}, {pipeline_mode = #tpu.pipeline_mode<synchronous>, transform_indices = @transform_2, window_bounds = array<i64: 128, 64>}, {pipeline_mode = #tpu.pipeline_mode<synchronous>, transform_indices = @transform_3, window_bounds = array<i64: 512, 256>}, {pipeline_mode = #tpu.pipeline_mode<synchronous>, transform_indices = @transform_4, window_bounds = array<i64: 256, 16>}, {pipeline_mode = #tpu.pipeline_mode<synchronous>, transform_indices = @transform_5, window_bounds = array<i64: 16, 256>}, {pipeline_mode = #tpu.pipeline_mode<synchronous>, transform_indices = @transform_6, window_bounds = array<i64: 256, 16>}, {pipeline_mode = #tpu.pipeline_mode<synchronous>, transform_indices = @transform_7, window_bounds = array<i64: 16, 256>}, {pipeline_mode = #tpu.pipeline_mode<synchronous>, transform_indices = @transform_8, window_bounds = array<i64: 2, 1792>}, {transform_indices = @transform_9, window_bounds = array<i64: 1, 1, 512>}]} {
    %cst = arith.constant 0.000000e+00 : f32
    %0 = vector.broadcast %cst : f32 to vector<1x128xf32>
    %c0 = arith.constant 0 : index
    %c0_0 = arith.constant 0 : index
    %1 = vector.load %arg11[%c0, %c0_0] : memref<72x128xf32, #tpu.memory_space<vmem>>, vector<1x128xf32>
    tpu.vector_store %arg11[%c0, %c0_0], %0 {strides = array<i32>} : memref<72x128xf32, #tpu.memory_space<vmem>>, vector<1x128xf32>,
    %c0_1 = arith.constant 0 : index
    %c0_2 = arith.constant 0 : index
    %c0_3 = arith.constant 0 : index
    %2 = vector.load %arg1[%c0_1, %c0_2, %c0_3] : memref<1x64x1xf32, #tpu.memory_space<vmem>>, vector<1x64x1xf32>
    %3 = vector.shape_cast %2 : vector<1x64x1xf32> to vector<64x1xf32>
    %c0_4 = arith.constant 0 : index
    %c0_5 = arith.constant 0 : index
    %4 = vector.load %arg2[%c0_4, %c0_5] : memref<120x16xbf16, #tpu.memory_space<vmem>>, vector<7x16xbf16>
    %c1 = arith.constant 1 : index
    %c0_6 = arith.constant 0 : index
    %5 = vector.load %arg11[%c1, %c0_6] : memref<72x128xf32, #tpu.memory_space<vmem>>, vector<64x1xf32>
    tpu.vector_store %arg11[%c1, %c0_6], %3 {strides = array<i32>} : memref<72x128xf32, #tpu.memory_space<vmem>>, vector<64x1xf32>,
    %cst_7 = arith.constant 0.000000e+00 : f32
    %6 = vector.broadcast %cst_7 : f32 to vector<1x1xf32>
    %c65 = arith.constant 65 : index
    %c0_8 = arith.constant 0 : index
    %7 = vector.load %arg11[%c65, %c0_8] : memref<72x128xf32, #tpu.memory_space<vmem>>, vector<1x1xf32>
    tpu.vector_store %arg11[%c65, %c0_8], %6 {strides = array<i32>} : memref<72x128xf32, #tpu.memory_space<vmem>>, vector<1x1xf32>,
    %8 = arith.extf %4 : vector<7x16xbf16> to vector<7x16xf32>
    %cst_9 = arith.constant 0.000000e+00 : f32
    %9 = vector.broadcast %cst_9 : f32 to vector<60x16xf32>
    %c0_10 = arith.constant 0 : index
    %c0_11 = arith.constant 0 : index
    %10 = vector.load %arg11[%c0_10, %c0_11] : memref<72x128xf32, #tpu.memory_space<vmem>>, vector<60x1xf32>
    %11 = vector.extract_strided_slice %8 {offsets = [0, 0], sizes = [1, 16], strides = [1, 1]} : vector<7x16xf32> to vector<1x16xf32>
    %12 = vector.broadcast %10 : vector<60x1xf32> to vector<60x16xf32>
    %13 = vector.broadcast %11 : vector<1x16xf32> to vector<60x16xf32>
    %14 = arith.mulf %12, %13 : vector<60x16xf32>
    %15 = arith.addf %9, %14 : vector<60x16xf32>
    %c1_12 = arith.constant 1 : index
    %c0_13 = arith.constant 0 : index
    %16 = vector.load %arg11[%c1_12, %c0_13] : memref<72x128xf32, #tpu.memory_space<vmem>>, vector<60x1xf32>
    %17 = vector.extract_strided_slice %8 {offsets = [1, 0], sizes = [1, 16], strides = [1, 1]} : vector<7x16xf32> to vector<1x16xf32>
    %18 = vector.broadcast %16 : vector<60x1xf32> to vector<60x16xf32>
    %19 = vector.broadcast %17 : vector<1x16xf32> to vector<60x16xf32>
    %20 = arith.mulf %18, %19 : vector<60x16xf32>
    %21 = arith.addf %15, %20 : vector<60x16xf32>
    %c2 = arith.constant 2 : index
    %c0_14 = arith.constant 0 : index
    %22 = vector.load %arg11[%c2, %c0_14] : memref<72x128xf32, #tpu.memory_space<vmem>>, vector<60x1xf32>
    %23 = vector.extract_strided_slice %8 {offsets = [2, 0], sizes = [1, 16], strides = [1, 1]} : vector<7x16xf32> to vector<1x16xf32>
    %24 = vector.broadcast %22 : vector<60x1xf32> to vector<60x16xf32>
    %25 = vector.broadcast %23 : vector<1x16xf32> to vector<60x16xf32>
    %26 = arith.mulf %24, %25 : vector<60x16xf32>
    %27 = arith.addf %21, %26 : vector<60x16xf32>
    %c3 = arith.constant 3 : index
    %c0_15 = arith.constant 0 : index
    %28 = vector.load %arg11[%c3, %c0_15] : memref<72x128xf32, #tpu.memory_space<vmem>>, vector<60x1xf32>
    %29 = vector.extract_strided_slice %8 {offsets = [3, 0], sizes = [1, 16], strides = [1, 1]} : vector<7x16xf32> to vector<1x16xf32>
    %30 = vector.broadcast %28 : vector<60x1xf32> to vector<60x16xf32>
    %31 = vector.broadcast %29 : vector<1x16xf32> to vector<60x16xf32>
    %32 = arith.mulf %30, %31 : vector<60x16xf32>
    %33 = arith.addf %27, %32 : vector<60x16xf32>
    %c4 = arith.constant 4 : index
    %c0_16 = arith.constant 0 : index
    %34 = vector.load %arg11[%c4, %c0_16] : memref<72x128xf32, #tpu.memory_space<vmem>>, vector<60x1xf32>
    %35 = vector.extract_strided_slice %8 {offsets = [4, 0], sizes = [1, 16], strides = [1, 1]} : vector<7x16xf32> to vector<1x16xf32>
    %36 = vector.broadcast %34 : vector<60x1xf32> to vector<60x16xf32>
    %37 = vector.broadcast %35 : vector<1x16xf32> to vector<60x16xf32>
    %38 = arith.mulf %36, %37 : vector<60x16xf32>
    %39 = arith.addf %33, %38 : vector<60x16xf32>
    %c5 = arith.constant 5 : index
    %c0_17 = arith.constant 0 : index
    %40 = vector.load %arg11[%c5, %c0_17] : memref<72x128xf32, #tpu.memory_space<vmem>>, vector<60x1xf32>
    %41 = vector.extract_strided_slice %8 {offsets = [5, 0], sizes = [1, 16], strides = [1, 1]} : vector<7x16xf32> to vector<1x16xf32>
    %42 = vector.broadcast %40 : vector<60x1xf32> to vector<60x16xf32>
    %43 = vector.broadcast %41 : vector<1x16xf32> to vector<60x16xf32>
    %44 = arith.mulf %42, %43 : vector<60x16xf32>
    %45 = arith.addf %39, %44 : vector<60x16xf32>
    %c6 = arith.constant 6 : index
    %c0_18 = arith.constant 0 : index
    %46 = vector.load %arg11[%c6, %c0_18] : memref<72x128xf32, #tpu.memory_space<vmem>>, vector<60x1xf32>
    %47 = vector.extract_strided_slice %8 {offsets = [6, 0], sizes = [1, 16], strides = [1, 1]} : vector<7x16xf32> to vector<1x16xf32>
    %48 = vector.broadcast %46 : vector<60x1xf32> to vector<60x16xf32>
    %49 = vector.broadcast %47 : vector<1x16xf32> to vector<60x16xf32>
    %50 = arith.mulf %48, %49 : vector<60x16xf32>
    %51 = arith.addf %45, %50 : vector<60x16xf32>
    %c0_19 = arith.constant 0 : index
    %c0_20 = arith.constant 0 : index
    %52 = vector.load %arg9[%c0_19, %c0_20] : memref<2x1792xf32, #tpu.memory_space<vmem>>, vector<1x16xf32>
    %c1_21 = arith.constant 1 : index
    %c0_22 = arith.constant 0 : index
    %53 = vector.load %arg9[%c1_21, %c0_22] : memref<2x1792xf32, #tpu.memory_space<vmem>>, vector<1x16xf32>
    %54 = vector.broadcast %52 : vector<1x16xf32> to vector<60x16xf32>
    %55 = arith.mulf %51, %54 : vector<60x16xf32>
    %56 = vector.broadcast %53 : vector<1x16xf32> to vector<60x16xf32>
    %57 = arith.addf %55, %56 : vector<60x16xf32>
    %cst_23 = arith.constant 0.000000e+00 : f32
    %58 = vector.broadcast %cst_23 : f32 to vector<60x16xf32>
    %59 = arith.maximumf %57, %58 : vector<60x16xf32>
    %c8 = arith.constant 8 : index
    %c0_24 = arith.constant 0 : index
    %60 = vector.load %arg2[%c8, %c0_24] : memref<120x16xbf16, #tpu.memory_space<vmem>>, vector<112x16xbf16>
    %c1_25 = arith.constant 1 : index
    %c0_26 = arith.constant 0 : index
    %61 = vector.load %arg11[%c1_25, %c0_26] : memref<72x128xf32, #tpu.memory_space<vmem>>, vector<60x16xf32>
    tpu.vector_store %arg11[%c1_25, %c0_26], %59 {strides = array<i32>} : memref<72x128xf32, #tpu.memory_space<vmem>>, vector<60x16xf32>,
    %cst_27 = arith.constant 0.000000e+00 : f32
    %62 = vector.broadcast %cst_27 : f32 to vector<1x16xf32>
    %c61 = arith.constant 61 : index
    %c0_28 = arith.constant 0 : index
    %63 = vector.load %arg11[%c61, %c0_28] : memref<72x128xf32, #tpu.memory_space<vmem>>, vector<1x16xf32>
    tpu.vector_store %arg11[%c61, %c0_28], %62 {strides = array<i32>} : memref<72x128xf32, #tpu.memory_space<vmem>>, vector<1x16xf32>,
    %c0_29 = arith.constant 0 : index
    %c0_30 = arith.constant 0 : index
    %64 = vector.load %arg11[%c0_29, %c0_30] : memref<72x128xf32, #tpu.memory_space<vmem>>, vector<56x16xf32>
    %65 = arith.truncf %64 : vector<56x16xf32> to vector<56x16xbf16>
    %c0_31 = arith.constant 0 : index
    %c0_32 = arith.constant 0 : index
    %66 = vector.load %arg12[%c0_31, %c0_32] : memref<64x320xbf16, #tpu.memory_space<vmem>>, vector<56x16xbf16>
    tpu.vector_store %arg12[%c0_31, %c0_32], %65 {strides = array<i32>} : memref<64x320xbf16, #tpu.memory_space<vmem>>, vector<56x16xbf16>,
    %c1_33 = arith.constant 1 : index
    %c0_34 = arith.constant 0 : index
    %67 = vector.load %arg11[%c1_33, %c0_34] : memref<72x128xf32, #tpu.memory_space<vmem>>, vector<56x16xf32>
    %68 = arith.truncf %67 : vector<56x16xf32> to vector<56x16xbf16>
    %c0_35 = arith.constant 0 : index
    %c16 = arith.constant 16 : index
    %69 = vector.load %arg12[%c0_35, %c16] : memref<64x320xbf16, #tpu.memory_space<vmem>>, vector<56x16xbf16>
    tpu.vector_store %arg12[%c0_35, %c16], %68 {strides = array<i32>} : memref<64x320xbf16, #tpu.memory_space<vmem>>, vector<56x16xbf16>,
    %c2_36 = arith.constant 2 : index
    %c0_37 = arith.constant 0 : index
    %70 = vector.load %arg11[%c2_36, %c0_37] : memref<72x128xf32, #tpu.memory_space<vmem>>, vector<56x16xf32>
    %71 = arith.truncf %70 : vector<56x16xf32> to vector<56x16xbf16>
    %c0_38 = arith.constant 0 : index
    %c32 = arith.constant 32 : index
    %72 = vector.load %arg12[%c0_38, %c32] : memref<64x320xbf16, #tpu.memory_space<vmem>>, vector<56x16xbf16>
    tpu.vector_store %arg12[%c0_38, %c32], %71 {strides = array<i32>} : memref<64x320xbf16, #tpu.memory_space<vmem>>, vector<56x16xbf16>,
    %c3_39 = arith.constant 3 : index
    %c0_40 = arith.constant 0 : index
    %73 = vector.load %arg11[%c3_39, %c0_40] : memref<72x128xf32, #tpu.memory_space<vmem>>, vector<56x16xf32>
    %74 = arith.truncf %73 : vector<56x16xf32> to vector<56x16xbf16>
    %c0_41 = arith.constant 0 : index
    %c48 = arith.constant 48 : index
    %75 = vector.load %arg12[%c0_41, %c48] : memref<64x320xbf16, #tpu.memory_space<vmem>>, vector<56x16xbf16>
    tpu.vector_store %arg12[%c0_41, %c48], %74 {strides = array<i32>} : memref<64x320xbf16, #tpu.memory_space<vmem>>, vector<56x16xbf16>,
    %c4_42 = arith.constant 4 : index
    %c0_43 = arith.constant 0 : index
    %76 = vector.load %arg11[%c4_42, %c0_43] : memref<72x128xf32, #tpu.memory_space<vmem>>, vector<56x16xf32>
    %77 = arith.truncf %76 : vector<56x16xf32> to vector<56x16xbf16>
    %c0_44 = arith.constant 0 : index
    %c64 = arith.constant 64 : index
    %78 = vector.load %arg12[%c0_44, %c64] : memref<64x320xbf16, #tpu.memory_space<vmem>>, vector<56x16xbf16>
    tpu.vector_store %arg12[%c0_44, %c64], %77 {strides = array<i32>} : memref<64x320xbf16, #tpu.memory_space<vmem>>, vector<56x16xbf16>,
    %c5_45 = arith.constant 5 : index
    %c0_46 = arith.constant 0 : index
    %79 = vector.load %arg11[%c5_45, %c0_46] : memref<72x128xf32, #tpu.memory_space<vmem>>, vector<56x16xf32>
    %80 = arith.truncf %79 : vector<56x16xf32> to vector<56x16xbf16>
    %c0_47 = arith.constant 0 : index
    %c80 = arith.constant 80 : index
    %81 = vector.load %arg12[%c0_47, %c80] : memref<64x320xbf16, #tpu.memory_space<vmem>>, vector<56x16xbf16>
    tpu.vector_store %arg12[%c0_47, %c80], %80 {strides = array<i32>} : memref<64x320xbf16, #tpu.memory_space<vmem>>, vector<56x16xbf16>,
    %c6_48 = arith.constant 6 : index
    %c0_49 = arith.constant 0 : index
    %82 = vector.load %arg11[%c6_48, %c0_49] : memref<72x128xf32, #tpu.memory_space<vmem>>, vector<56x16xf32>
    %83 = arith.truncf %82 : vector<56x16xf32> to vector<56x16xbf16>
    %c0_50 = arith.constant 0 : index
    %c96 = arith.constant 96 : index
    %84 = vector.load %arg12[%c0_50, %c96] : memref<64x320xbf16, #tpu.memory_space<vmem>>, vector<56x16xbf16>
    tpu.vector_store %arg12[%c0_50, %c96], %83 {strides = array<i32>} : memref<64x320xbf16, #tpu.memory_space<vmem>>, vector<56x16xbf16>,
    %c0_51 = arith.constant 0 : index
    %c0_52 = arith.constant 0 : index
    %85 = vector.load %arg12[%c0_51, %c0_52] : memref<64x320xbf16, #tpu.memory_space<vmem>>, vector<56x112xbf16>
    %cst_53 = arith.constant dense<0.000000e+00> : vector<56x16xf32>
    %86 = tpu.matmul %85, %60, %cst_53 {dimension_numbers = #tpu.dot_dimension_numbers<[1], [0], [0], [1], [0, 0, 1, 1], [], []>} : vector<56x112xbf16>, vector<112x16xbf16>, vector<56x16xf32> -> vector<56x16xf32>
    %c0_54 = arith.constant 0 : index
    %c128 = arith.constant 128 : index
    %87 = vector.load %arg9[%c0_54, %c128] : memref<2x1792xf32, #tpu.memory_space<vmem>>, vector<1x16xf32>
    %c1_55 = arith.constant 1 : index
    %c128_56 = arith.constant 128 : index
    %88 = vector.load %arg9[%c1_55, %c128_56] : memref<2x1792xf32, #tpu.memory_space<vmem>>, vector<1x16xf32>
    %89 = vector.broadcast %87 : vector<1x16xf32> to vector<56x16xf32>
    %90 = arith.mulf %86, %89 : vector<56x16xf32>
    %91 = vector.broadcast %88 : vector<1x16xf32> to vector<56x16xf32>
    %92 = arith.addf %90, %91 : vector<56x16xf32>
    %cst_57 = arith.constant 0.000000e+00 : f32
    %93 = vector.broadcast %cst_57 : f32 to vector<56x16xf32>
    %94 = arith.maximumf %92, %93 : vector<56x16xf32>
    %c0_58 = arith.constant 0 : index
    %c0_59 = arith.constant 0 : index
    %95 = vector.load %arg3[%c0_58, %c0_59] : memref<128x64xbf16, #tpu.memory_space<vmem>>, vector<48x64xbf16>
    %c1_60 = arith.constant 1 : index
    %c0_61 = arith.constant 0 : index
    %96 = vector.load %arg11[%c1_60, %c0_61] : memref<72x128xf32, #tpu.memory_space<vmem>>, vector<56x16xf32>
    tpu.vector_store %arg11[%c1_60, %c0_61], %94 {strides = array<i32>} : memref<72x128xf32, #tpu.memory_space<vmem>>, vector<56x16xf32>,
    %cst_62 = arith.constant 0.000000e+00 : f32
    %97 = vector.broadcast %cst_62 : f32 to vector<1x16xf32>
    %c57 = arith.constant 57 : index
    %c0_63 = arith.constant 0 : index
    %98 = vector.load %arg11[%c57, %c0_63] : memref<72x128xf32, #tpu.memory_space<vmem>>, vector<1x16xf32>
    tpu.vector_store %arg11[%c57, %c0_63], %97 {strides = array<i32>} : memref<72x128xf32, #tpu.memory_space<vmem>>, vector<1x16xf32>,
    %c0_64 = arith.constant 0 : index
    %c0_65 = arith.constant 0 : index
    %99 = vector.load %arg11[%c0_64, %c0_65] : memref<72x128xf32, #tpu.memory_space<vmem>>, vector<56x16xf32>
    %100 = arith.truncf %99 : vector<56x16xf32> to vector<56x16xbf16>
    %c0_66 = arith.constant 0 : index
    %c0_67 = arith.constant 0 : index
    %101 = vector.load %arg12[%c0_66, %c0_67] : memref<64x320xbf16, #tpu.memory_space<vmem>>, vector<56x16xbf16>
    tpu.vector_store %arg12[%c0_66, %c0_67], %100 {strides = array<i32>} : memref<64x320xbf16, #tpu.memory_space<vmem>>, vector<56x16xbf16>,
    %c1_68 = arith.constant 1 : index
    %c0_69 = arith.constant 0 : index
    %102 = vector.load %arg11[%c1_68, %c0_69] : memref<72x128xf32, #tpu.memory_space<vmem>>, vector<56x16xf32>
    %103 = arith.truncf %102 : vector<56x16xf32> to vector<56x16xbf16>
    %c0_70 = arith.constant 0 : index
    %c16_71 = arith.constant 16 : index
    %104 = vector.load %arg12[%c0_70, %c16_71] : memref<64x320xbf16, #tpu.memory_space<vmem>>, vector<56x16xbf16>
    tpu.vector_store %arg12[%c0_70, %c16_71], %103 {strides = array<i32>} : memref<64x320xbf16, #tpu.memory_space<vmem>>, vector<56x16xbf16>,
    %c2_72 = arith.constant 2 : index
    %c0_73 = arith.constant 0 : index
    %105 = vector.load %arg11[%c2_72, %c0_73] : memref<72x128xf32, #tpu.memory_space<vmem>>, vector<56x16xf32>
    %106 = arith.truncf %105 : vector<56x16xf32> to vector<56x16xbf16>
    %c0_74 = arith.constant 0 : index
    %c32_75 = arith.constant 32 : index
    %107 = vector.load %arg12[%c0_74, %c32_75] : memref<64x320xbf16, #tpu.memory_space<vmem>>, vector<56x16xbf16>
    tpu.vector_store %arg12[%c0_74, %c32_75], %106 {strides = array<i32>} : memref<64x320xbf16, #tpu.memory_space<vmem>>, vector<56x16xbf16>,
    %c0_76 = arith.constant 0 : index
    %c0_77 = arith.constant 0 : index
    %108 = vector.load %arg12[%c0_76, %c0_77] : memref<64x320xbf16, #tpu.memory_space<vmem>>, vector<56x48xbf16>
    %cst_78 = arith.constant dense<0.000000e+00> : vector<56x64xf32>
    %109 = tpu.matmul %108, %95, %cst_78 {dimension_numbers = #tpu.dot_dimension_numbers<[1], [0], [0], [1], [0, 0, 1, 1], [], []>} : vector<56x48xbf16>, vector<48x64xbf16>, vector<56x64xf32> -> vector<56x64xf32>
    %c0_79 = arith.constant 0 : index
    %c256 = arith.constant 256 : index
    %110 = vector.load %arg9[%c0_79, %c256] : memref<2x1792xf32, #tpu.memory_space<vmem>>, vector<1x64xf32>
    %c1_80 = arith.constant 1 : index
    %c256_81 = arith.constant 256 : index
    %111 = vector.load %arg9[%c1_80, %c256_81] : memref<2x1792xf32, #tpu.memory_space<vmem>>, vector<1x64xf32>
    %112 = vector.broadcast %110 : vector<1x64xf32> to vector<56x64xf32>
    %113 = arith.mulf %109, %112 : vector<56x64xf32>
    %114 = vector.broadcast %111 : vector<1x64xf32> to vector<56x64xf32>
    %115 = arith.addf %113, %114 : vector<56x64xf32>
    %cst_82 = arith.constant 0.000000e+00 : f32
    %116 = vector.broadcast %cst_82 : f32 to vector<56x64xf32>
    %117 = arith.maximumf %115, %116 : vector<56x64xf32>
    %c0_83 = arith.constant 0 : index
    %c0_84 = arith.constant 0 : index
    %118 = vector.load %arg4[%c0_83, %c0_84] : memref<512x256xbf16, #tpu.memory_space<vmem>>, vector<192x256xbf16>
    %c1_85 = arith.constant 1 : index
    %c0_86 = arith.constant 0 : index
    %119 = vector.load %arg11[%c1_85, %c0_86] : memref<72x128xf32, #tpu.memory_space<vmem>>, vector<56x64xf32>
    tpu.vector_store %arg11[%c1_85, %c0_86], %117 {strides = array<i32>} : memref<72x128xf32, #tpu.memory_space<vmem>>, vector<56x64xf32>,
    %cst_87 = arith.constant 0.000000e+00 : f32
    %120 = vector.broadcast %cst_87 : f32 to vector<1x64xf32>
    %c57_88 = arith.constant 57 : index
    %c0_89 = arith.constant 0 : index
    %121 = vector.load %arg11[%c57_88, %c0_89] : memref<72x128xf32, #tpu.memory_space<vmem>>, vector<1x64xf32>
    tpu.vector_store %arg11[%c57_88, %c0_89], %120 {strides = array<i32>} : memref<72x128xf32, #tpu.memory_space<vmem>>, vector<1x64xf32>,
    %c0_90 = arith.constant 0 : index
    %c0_91 = arith.constant 0 : index
    %122 = vector.load %arg11[%c0_90, %c0_91] : memref<72x128xf32, #tpu.memory_space<vmem>>, vector<56x64xf32>
    %123 = arith.truncf %122 : vector<56x64xf32> to vector<56x64xbf16>
    %c0_92 = arith.constant 0 : index
    %c0_93 = arith.constant 0 : index
    %124 = vector.load %arg12[%c0_92, %c0_93] : memref<64x320xbf16, #tpu.memory_space<vmem>>, vector<56x64xbf16>
    tpu.vector_store %arg12[%c0_92, %c0_93], %123 {strides = array<i32>} : memref<64x320xbf16, #tpu.memory_space<vmem>>, vector<56x64xbf16>,
    %c1_94 = arith.constant 1 : index
    %c0_95 = arith.constant 0 : index
    %125 = vector.load %arg11[%c1_94, %c0_95] : memref<72x128xf32, #tpu.memory_space<vmem>>, vector<56x64xf32>
    %126 = arith.truncf %125 : vector<56x64xf32> to vector<56x64xbf16>
    %c0_96 = arith.constant 0 : index
    %c64_97 = arith.constant 64 : index
    %127 = vector.load %arg12[%c0_96, %c64_97] : memref<64x320xbf16, #tpu.memory_space<vmem>>, vector<56x64xbf16>
    tpu.vector_store %arg12[%c0_96, %c64_97], %126 {strides = array<i32>} : memref<64x320xbf16, #tpu.memory_space<vmem>>, vector<56x64xbf16>,
    %c2_98 = arith.constant 2 : index
    %c0_99 = arith.constant 0 : index
    %128 = vector.load %arg11[%c2_98, %c0_99] : memref<72x128xf32, #tpu.memory_space<vmem>>, vector<56x64xf32>
    %129 = arith.truncf %128 : vector<56x64xf32> to vector<56x64xbf16>
    %c0_100 = arith.constant 0 : index
    %c128_101 = arith.constant 128 : index
    %130 = vector.load %arg12[%c0_100, %c128_101] : memref<64x320xbf16, #tpu.memory_space<vmem>>, vector<56x64xbf16>
    tpu.vector_store %arg12[%c0_100, %c128_101], %129 {strides = array<i32>} : memref<64x320xbf16, #tpu.memory_space<vmem>>, vector<56x64xbf16>,
    %c0_102 = arith.constant 0 : index
    %c0_103 = arith.constant 0 : index
    %131 = vector.load %arg12[%c0_102, %c0_103] : memref<64x320xbf16, #tpu.memory_space<vmem>>, vector<56x192xbf16>
    %cst_104 = arith.constant dense<0.000000e+00> : vector<56x256xf32>
    %132 = tpu.matmul %131, %118, %cst_104 {dimension_numbers = #tpu.dot_dimension_numbers<[1], [0], [0], [1], [0, 0, 1, 1], [], []>} : vector<56x192xbf16>, vector<192x256xbf16>, vector<56x256xf32> -> vector<56x256xf32>
    %c0_105 = arith.constant 0 : index
    %c384 = arith.constant 384 : index
    %133 = vector.load %arg9[%c0_105, %c384] : memref<2x1792xf32, #tpu.memory_space<vmem>>, vector<1x256xf32>
    %c1_106 = arith.constant 1 : index
    %c384_107 = arith.constant 384 : index
    %134 = vector.load %arg9[%c1_106, %c384_107] : memref<2x1792xf32, #tpu.memory_space<vmem>>, vector<1x256xf32>
    %135 = vector.broadcast %133 : vector<1x256xf32> to vector<56x256xf32>
    %136 = arith.mulf %132, %135 : vector<56x256xf32>
    %137 = vector.broadcast %134 : vector<1x256xf32> to vector<56x256xf32>
    %138 = arith.addf %136, %137 : vector<56x256xf32>
    %cst_108 = arith.constant 0.000000e+00 : f32
    %139 = vector.broadcast %cst_108 : f32 to vector<56x256xf32>
    %140 = arith.maximumf %138, %139 : vector<56x256xf32>
    %c0_109 = arith.constant 0 : index
    %c0_110 = arith.constant 0 : index
    %141 = vector.load %arg5[%c0_109, %c0_110] : memref<256x16xf32, #tpu.memory_space<vmem>>, vector<256x16xf32>
    %c1_111 = arith.constant 1 : index
    %c1024 = arith.constant 1024 : index
    %142 = vector.load %arg9[%c1_111, %c1024] : memref<2x1792xf32, #tpu.memory_space<vmem>>, vector<1x16xf32>
    %c0_112 = arith.constant 0 : index
    %c0_113 = arith.constant 0 : index
    %143 = vector.load %arg6[%c0_112, %c0_113] : memref<16x256xf32, #tpu.memory_space<vmem>>, vector<16x256xf32>
    %c1_114 = arith.constant 1 : index
    %c1152 = arith.constant 1152 : index
    %144 = vector.load %arg9[%c1_114, %c1152] : memref<2x1792xf32, #tpu.memory_space<vmem>>, vector<1x256xf32>
    %cst_115 = arith.constant dense<0.000000e+00> : vector<256xf32>
    %145 = vector.multi_reduction <add>, %140, %cst_115 [0] : vector<56x256xf32> to vector<256xf32>
    %146 = vector.shape_cast %145 : vector<256xf32> to vector<1x256xf32>
    %cst_116 = arith.constant 0.0178571437 : f32
    %147 = vector.broadcast %cst_116 : f32 to vector<1x256xf32>
    %148 = arith.mulf %146, %147 : vector<1x256xf32>
    %cst_117 = arith.constant dense<0.000000e+00> : vector<1x16xf32>
    %149 = tpu.matmul %148, %141, %cst_117 {dimension_numbers = #tpu.dot_dimension_numbers<[1], [0], [0], [1], [0, 0, 1, 1], [], []>} : vector<1x256xf32>, vector<256x16xf32>, vector<1x16xf32> -> vector<1x16xf32>
    %150 = arith.addf %149, %142 : vector<1x16xf32>
    %cst_118 = arith.constant 0.000000e+00 : f32
    %151 = vector.broadcast %cst_118 : f32 to vector<1x16xf32>
    %152 = arith.maximumf %150, %151 : vector<1x16xf32>
    %cst_119 = arith.constant dense<0.000000e+00> : vector<1x256xf32>
    %153 = tpu.matmul %152, %143, %cst_119 {dimension_numbers = #tpu.dot_dimension_numbers<[1], [0], [0], [1], [0, 0, 1, 1], [], []>} : vector<1x16xf32>, vector<16x256xf32>, vector<1x256xf32> -> vector<1x256xf32>
    %154 = arith.addf %153, %144 : vector<1x256xf32>
    %155 = arith.negf %154 : vector<1x256xf32>
    %156 = math.exp %155 : vector<1x256xf32>
    %cst_120 = arith.constant 1.000000e+00 : f32
    %157 = vector.broadcast %cst_120 : f32 to vector<1x256xf32>
    %158 = arith.addf %157, %156 : vector<1x256xf32>
    %159 = arith.divf %157, %158 : vector<1x256xf32>
    %160 = vector.broadcast %159 : vector<1x256xf32> to vector<56x256xf32>
    %161 = arith.mulf %140, %160 : vector<56x256xf32>
    %cst_121 = arith.constant dense<0xFF800000> : vector<256xf32>
    %162 = vector.multi_reduction <maximumf>, %161, %cst_121 [0] : vector<56x256xf32> to vector<256xf32>
    %163 = vector.shape_cast %162 : vector<256xf32> to vector<1x256xf32>
    %c0_122 = arith.constant 0 : index
    %c0_123 = arith.constant 0 : index
    %c0_124 = arith.constant 0 : index
    %164 = vector.load %arg10[%c0_122, %c0_123, %c0_124] : memref<1x1x512xf32, #tpu.memory_space<vmem>>, vector<1x1x256xf32>
    %165 = vector.shape_cast %164 : vector<1x1x256xf32> to vector<1x256xf32>
    %166 = vector.shape_cast %163 : vector<1x256xf32> to vector<1x1x256xf32>
    tpu.vector_store %arg10[%c0_122, %c0_123, %c0_124], %166 {strides = array<i32>} : memref<1x1x512xf32, #tpu.memory_space<vmem>>, vector<1x1x256xf32>,
    %c48_125 = arith.constant 48 : index
    %c0_126 = arith.constant 0 : index
    %167 = vector.load %arg3[%c48_125, %c0_126] : memref<128x64xbf16, #tpu.memory_space<vmem>>, vector<80x64xbf16>
    %c1_127 = arith.constant 1 : index
    %c0_128 = arith.constant 0 : index
    %168 = vector.load %arg11[%c1_127, %c0_128] : memref<72x128xf32, #tpu.memory_space<vmem>>, vector<56x16xf32>
    tpu.vector_store %arg11[%c1_127, %c0_128], %94 {strides = array<i32>} : memref<72x128xf32, #tpu.memory_space<vmem>>, vector<56x16xf32>,
    %cst_129 = arith.constant 0.000000e+00 : f32
    %169 = vector.broadcast %cst_129 : f32 to vector<1x16xf32>
    %c57_130 = arith.constant 57 : index
    %c0_131 = arith.constant 0 : index
    %170 = vector.load %arg11[%c57_130, %c0_131] : memref<72x128xf32, #tpu.memory_space<vmem>>, vector<1x16xf32>
    tpu.vector_store %arg11[%c57_130, %c0_131], %169 {strides = array<i32>} : memref<72x128xf32, #tpu.memory_space<vmem>>, vector<1x16xf32>,
    %c0_132 = arith.constant 0 : index
    %c0_133 = arith.constant 0 : index
    %171 = vector.load %arg11[%c0_132, %c0_133] : memref<72x128xf32, #tpu.memory_space<vmem>>, vector<54x16xf32>
    %172 = arith.truncf %171 : vector<54x16xf32> to vector<54x16xbf16>
    %c0_134 = arith.constant 0 : index
    %c0_135 = arith.constant 0 : index
    %173 = vector.load %arg12[%c0_134, %c0_135] : memref<64x320xbf16, #tpu.memory_space<vmem>>, vector<54x16xbf16>
    tpu.vector_store %arg12[%c0_134, %c0_135], %172 {strides = array<i32>} : memref<64x320xbf16, #tpu.memory_space<vmem>>, vector<54x16xbf16>,
    %c1_136 = arith.constant 1 : index
    %c0_137 = arith.constant 0 : index
    %174 = vector.load %arg11[%c1_136, %c0_137] : memref<72x128xf32, #tpu.memory_space<vmem>>, vector<54x16xf32>
    %175 = arith.truncf %174 : vector<54x16xf32> to vector<54x16xbf16>
    %c0_138 = arith.constant 0 : index
    %c16_139 = arith.constant 16 : index
    %176 = vector.load %arg12[%c0_138, %c16_139] : memref<64x320xbf16, #tpu.memory_space<vmem>>, vector<54x16xbf16>
    tpu.vector_store %arg12[%c0_138, %c16_139], %175 {strides = array<i32>} : memref<64x320xbf16, #tpu.memory_space<vmem>>, vector<54x16xbf16>,
    %c2_140 = arith.constant 2 : index
    %c0_141 = arith.constant 0 : index
    %177 = vector.load %arg11[%c2_140, %c0_141] : memref<72x128xf32, #tpu.memory_space<vmem>>, vector<54x16xf32>
    %178 = arith.truncf %177 : vector<54x16xf32> to vector<54x16xbf16>
    %c0_142 = arith.constant 0 : index
    %c32_143 = arith.constant 32 : index
    %179 = vector.load %arg12[%c0_142, %c32_143] : memref<64x320xbf16, #tpu.memory_space<vmem>>, vector<54x16xbf16>
    tpu.vector_store %arg12[%c0_142, %c32_143], %178 {strides = array<i32>} : memref<64x320xbf16, #tpu.memory_space<vmem>>, vector<54x16xbf16>,
    %c3_144 = arith.constant 3 : index
    %c0_145 = arith.constant 0 : index
    %180 = vector.load %arg11[%c3_144, %c0_145] : memref<72x128xf32, #tpu.memory_space<vmem>>, vector<54x16xf32>
    %181 = arith.truncf %180 : vector<54x16xf32> to vector<54x16xbf16>
    %c0_146 = arith.constant 0 : index
    %c48_147 = arith.constant 48 : index
    %182 = vector.load %arg12[%c0_146, %c48_147] : memref<64x320xbf16, #tpu.memory_space<vmem>>, vector<54x16xbf16>
    tpu.vector_store %arg12[%c0_146, %c48_147], %181 {strides = array<i32>} : memref<64x320xbf16, #tpu.memory_space<vmem>>, vector<54x16xbf16>,
    %c4_148 = arith.constant 4 : index
    %c0_149 = arith.constant 0 : index
    %183 = vector.load %arg11[%c4_148, %c0_149] : memref<72x128xf32, #tpu.memory_space<vmem>>, vector<54x16xf32>
    %184 = arith.truncf %183 : vector<54x16xf32> to vector<54x16xbf16>
    %c0_150 = arith.constant 0 : index
    %c64_151 = arith.constant 64 : index
    %185 = vector.load %arg12[%c0_150, %c64_151] : memref<64x320xbf16, #tpu.memory_space<vmem>>, vector<54x16xbf16>
    tpu.vector_store %arg12[%c0_150, %c64_151], %184 {strides = array<i32>} : memref<64x320xbf16, #tpu.memory_space<vmem>>, vector<54x16xbf16>,
    %c0_152 = arith.constant 0 : index
    %c0_153 = arith.constant 0 : index
    %186 = vector.load %arg12[%c0_152, %c0_153] : memref<64x320xbf16, #tpu.memory_space<vmem>>, vector<54x80xbf16>
    %cst_154 = arith.constant dense<0.000000e+00> : vector<54x64xf32>
    %187 = tpu.matmul %186, %167, %cst_154 {dimension_numbers = #tpu.dot_dimension_numbers<[1], [0], [0], [1], [0, 0, 1, 1], [], []>} : vector<54x80xbf16>, vector<80x64xbf16>, vector<54x64xf32> -> vector<54x64xf32>
    %c0_155 = arith.constant 0 : index
    %c640 = arith.constant 640 : index
    %188 = vector.load %arg9[%c0_155, %c640] : memref<2x1792xf32, #tpu.memory_space<vmem>>, vector<1x64xf32>
    %c1_156 = arith.constant 1 : index
    %c640_157 = arith.constant 640 : index
    %189 = vector.load %arg9[%c1_156, %c640_157] : memref<2x1792xf32, #tpu.memory_space<vmem>>, vector<1x64xf32>
    %190 = vector.broadcast %188 : vector<1x64xf32> to vector<54x64xf32>
    %191 = arith.mulf %187, %190 : vector<54x64xf32>
    %192 = vector.broadcast %189 : vector<1x64xf32> to vector<54x64xf32>
    %193 = arith.addf %191, %192 : vector<54x64xf32>
    %cst_158 = arith.constant 0.000000e+00 : f32
    %194 = vector.broadcast %cst_158 : f32 to vector<54x64xf32>
    %195 = arith.maximumf %193, %194 : vector<54x64xf32>
    %c192 = arith.constant 192 : index
    %c0_159 = arith.constant 0 : index
    %196 = vector.load %arg4[%c192, %c0_159] : memref<512x256xbf16, #tpu.memory_space<vmem>>, vector<320x256xbf16>
    %c1_160 = arith.constant 1 : index
    %c0_161 = arith.constant 0 : index
    %197 = vector.load %arg11[%c1_160, %c0_161] : memref<72x128xf32, #tpu.memory_space<vmem>>, vector<54x64xf32>
    tpu.vector_store %arg11[%c1_160, %c0_161], %195 {strides = array<i32>} : memref<72x128xf32, #tpu.memory_space<vmem>>, vector<54x64xf32>,
    %cst_162 = arith.constant 0.000000e+00 : f32
    %198 = vector.broadcast %cst_162 : f32 to vector<1x64xf32>
    %c55 = arith.constant 55 : index
    %c0_163 = arith.constant 0 : index
    %199 = vector.load %arg11[%c55, %c0_163] : memref<72x128xf32, #tpu.memory_space<vmem>>, vector<1x64xf32>
    tpu.vector_store %arg11[%c55, %c0_163], %198 {strides = array<i32>} : memref<72x128xf32, #tpu.memory_space<vmem>>, vector<1x64xf32>,
    %c0_164 = arith.constant 0 : index
    %c0_165 = arith.constant 0 : index
    %200 = vector.load %arg11[%c0_164, %c0_165] : memref<72x128xf32, #tpu.memory_space<vmem>>, vector<52x64xf32>
    %201 = arith.truncf %200 : vector<52x64xf32> to vector<52x64xbf16>
    %c0_166 = arith.constant 0 : index
    %c0_167 = arith.constant 0 : index
    %202 = vector.load %arg12[%c0_166, %c0_167] : memref<64x320xbf16, #tpu.memory_space<vmem>>, vector<52x64xbf16>
    tpu.vector_store %arg12[%c0_166, %c0_167], %201 {strides = array<i32>} : memref<64x320xbf16, #tpu.memory_space<vmem>>, vector<52x64xbf16>,
    %c1_168 = arith.constant 1 : index
    %c0_169 = arith.constant 0 : index
    %203 = vector.load %arg11[%c1_168, %c0_169] : memref<72x128xf32, #tpu.memory_space<vmem>>, vector<52x64xf32>
    %204 = arith.truncf %203 : vector<52x64xf32> to vector<52x64xbf16>
    %c0_170 = arith.constant 0 : index
    %c64_171 = arith.constant 64 : index
    %205 = vector.load %arg12[%c0_170, %c64_171] : memref<64x320xbf16, #tpu.memory_space<vmem>>, vector<52x64xbf16>
    tpu.vector_store %arg12[%c0_170, %c64_171], %204 {strides = array<i32>} : memref<64x320xbf16, #tpu.memory_space<vmem>>, vector<52x64xbf16>,
    %c2_172 = arith.constant 2 : index
    %c0_173 = arith.constant 0 : index
    %206 = vector.load %arg11[%c2_172, %c0_173] : memref<72x128xf32, #tpu.memory_space<vmem>>, vector<52x64xf32>
    %207 = arith.truncf %206 : vector<52x64xf32> to vector<52x64xbf16>
    %c0_174 = arith.constant 0 : index
    %c128_175 = arith.constant 128 : index
    %208 = vector.load %arg12[%c0_174, %c128_175] : memref<64x320xbf16, #tpu.memory_space<vmem>>, vector<52x64xbf16>
    tpu.vector_store %arg12[%c0_174, %c128_175], %207 {strides = array<i32>} : memref<64x320xbf16, #tpu.memory_space<vmem>>, vector<52x64xbf16>,
    %c3_176 = arith.constant 3 : index
    %c0_177 = arith.constant 0 : index
    %209 = vector.load %arg11[%c3_176, %c0_177] : memref<72x128xf32, #tpu.memory_space<vmem>>, vector<52x64xf32>
    %210 = arith.truncf %209 : vector<52x64xf32> to vector<52x64xbf16>
    %c0_178 = arith.constant 0 : index
    %c192_179 = arith.constant 192 : index
    %211 = vector.load %arg12[%c0_178, %c192_179] : memref<64x320xbf16, #tpu.memory_space<vmem>>, vector<52x64xbf16>
    tpu.vector_store %arg12[%c0_178, %c192_179], %210 {strides = array<i32>} : memref<64x320xbf16, #tpu.memory_space<vmem>>, vector<52x64xbf16>,
    %c4_180 = arith.constant 4 : index
    %c0_181 = arith.constant 0 : index
    %212 = vector.load %arg11[%c4_180, %c0_181] : memref<72x128xf32, #tpu.memory_space<vmem>>, vector<52x64xf32>
    %213 = arith.truncf %212 : vector<52x64xf32> to vector<52x64xbf16>
    %c0_182 = arith.constant 0 : index
    %c256_183 = arith.constant 256 : index
    %214 = vector.load %arg12[%c0_182, %c256_183] : memref<64x320xbf16, #tpu.memory_space<vmem>>, vector<52x64xbf16>
    tpu.vector_store %arg12[%c0_182, %c256_183], %213 {strides = array<i32>} : memref<64x320xbf16, #tpu.memory_space<vmem>>, vector<52x64xbf16>,
    %c0_184 = arith.constant 0 : index
    %c0_185 = arith.constant 0 : index
    %215 = vector.load %arg12[%c0_184, %c0_185] : memref<64x320xbf16, #tpu.memory_space<vmem>>, vector<52x320xbf16>
    %cst_186 = arith.constant dense<0.000000e+00> : vector<52x256xf32>
    %216 = tpu.matmul %215, %196, %cst_186 {dimension_numbers = #tpu.dot_dimension_numbers<[1], [0], [0], [1], [0, 0, 1, 1], [], []>} : vector<52x320xbf16>, vector<320x256xbf16>, vector<52x256xf32> -> vector<52x256xf32>
    %c0_187 = arith.constant 0 : index
    %c768 = arith.constant 768 : index
    %217 = vector.load %arg9[%c0_187, %c768] : memref<2x1792xf32, #tpu.memory_space<vmem>>, vector<1x256xf32>
    %c1_188 = arith.constant 1 : index
    %c768_189 = arith.constant 768 : index
    %218 = vector.load %arg9[%c1_188, %c768_189] : memref<2x1792xf32, #tpu.memory_space<vmem>>, vector<1x256xf32>
    %219 = vector.broadcast %217 : vector<1x256xf32> to vector<52x256xf32>
    %220 = arith.mulf %216, %219 : vector<52x256xf32>
    %221 = vector.broadcast %218 : vector<1x256xf32> to vector<52x256xf32>
    %222 = arith.addf %220, %221 : vector<52x256xf32>
    %cst_190 = arith.constant 0.000000e+00 : f32
    %223 = vector.broadcast %cst_190 : f32 to vector<52x256xf32>
    %224 = arith.maximumf %222, %223 : vector<52x256xf32>
    %c0_191 = arith.constant 0 : index
    %c0_192 = arith.constant 0 : index
    %225 = vector.load %arg7[%c0_191, %c0_192] : memref<256x16xf32, #tpu.memory_space<vmem>>, vector<256x16xf32>
    %c1_193 = arith.constant 1 : index
    %c1408 = arith.constant 1408 : index
    %226 = vector.load %arg9[%c1_193, %c1408] : memref<2x1792xf32, #tpu.memory_space<vmem>>, vector<1x16xf32>
    %c0_194 = arith.constant 0 : index
    %c0_195 = arith.constant 0 : index
    %227 = vector.load %arg8[%c0_194, %c0_195] : memref<16x256xf32, #tpu.memory_space<vmem>>, vector<16x256xf32>
    %c1_196 = arith.constant 1 : index
    %c1536 = arith.constant 1536 : index
    %228 = vector.load %arg9[%c1_196, %c1536] : memref<2x1792xf32, #tpu.memory_space<vmem>>, vector<1x256xf32>
    %cst_197 = arith.constant dense<0.000000e+00> : vector<256xf32>
    %229 = vector.multi_reduction <add>, %224, %cst_197 [0] : vector<52x256xf32> to vector<256xf32>
    %230 = vector.shape_cast %229 : vector<256xf32> to vector<1x256xf32>
    %cst_198 = arith.constant 0.0192307699 : f32
    %231 = vector.broadcast %cst_198 : f32 to vector<1x256xf32>
    %232 = arith.mulf %230, %231 : vector<1x256xf32>
    %cst_199 = arith.constant dense<0.000000e+00> : vector<1x16xf32>
    %233 = tpu.matmul %232, %225, %cst_199 {dimension_numbers = #tpu.dot_dimension_numbers<[1], [0], [0], [1], [0, 0, 1, 1], [], []>} : vector<1x256xf32>, vector<256x16xf32>, vector<1x16xf32> -> vector<1x16xf32>
    %234 = arith.addf %233, %226 : vector<1x16xf32>
    %cst_200 = arith.constant 0.000000e+00 : f32
    %235 = vector.broadcast %cst_200 : f32 to vector<1x16xf32>
    %236 = arith.maximumf %234, %235 : vector<1x16xf32>
    %cst_201 = arith.constant dense<0.000000e+00> : vector<1x256xf32>
    %237 = tpu.matmul %236, %227, %cst_201 {dimension_numbers = #tpu.dot_dimension_numbers<[1], [0], [0], [1], [0, 0, 1, 1], [], []>} : vector<1x16xf32>, vector<16x256xf32>, vector<1x256xf32> -> vector<1x256xf32>
    %238 = arith.addf %237, %228 : vector<1x256xf32>
    %239 = arith.negf %238 : vector<1x256xf32>
    %240 = math.exp %239 : vector<1x256xf32>
    %cst_202 = arith.constant 1.000000e+00 : f32
    %241 = vector.broadcast %cst_202 : f32 to vector<1x256xf32>
    %242 = arith.addf %241, %240 : vector<1x256xf32>
    %243 = arith.divf %241, %242 : vector<1x256xf32>
    %244 = vector.broadcast %243 : vector<1x256xf32> to vector<52x256xf32>
    %245 = arith.mulf %224, %244 : vector<52x256xf32>
    %cst_203 = arith.constant dense<0xFF800000> : vector<256xf32>
    %246 = vector.multi_reduction <maximumf>, %245, %cst_203 [0] : vector<52x256xf32> to vector<256xf32>
    %247 = vector.shape_cast %246 : vector<256xf32> to vector<1x256xf32>
    %c0_204 = arith.constant 0 : index
    %c0_205 = arith.constant 0 : index
    %c256_206 = arith.constant 256 : index
    %248 = vector.load %arg10[%c0_204, %c0_205, %c256_206] : memref<1x1x512xf32, #tpu.memory_space<vmem>>, vector<1x1x256xf32>
    %249 = vector.shape_cast %248 : vector<1x1x256xf32> to vector<1x256xf32>
    %250 = vector.shape_cast %247 : vector<1x256xf32> to vector<1x1x256xf32>
    tpu.vector_store %arg10[%c0_204, %c0_205, %c256_206], %250 {strides = array<i32>} : memref<1x1x512xf32, #tpu.memory_space<vmem>>, vector<1x1x256xf32>,
    return
  }
  func.func @transform_0(%arg0: i32) -> (i32, i32, i32) {
    %c0_i32 = arith.constant 0 : i32
    %c0_i32_0 = arith.constant 0 : i32
    %c0_i32_1 = arith.constant 0 : i32
    return %arg0, %c0_i32, %c0_i32_0 : i32, i32, i32
  }
  func.func @transform_1(%arg0: i32) -> (i32, i32) {
    %c0_i32 = arith.constant 0 : i32
    %c0_i32_0 = arith.constant 0 : i32
    %c0_i32_1 = arith.constant 0 : i32
    return %c0_i32, %c0_i32_0 : i32, i32
  }
  func.func @transform_2(%arg0: i32) -> (i32, i32) {
    %c0_i32 = arith.constant 0 : i32
    %c0_i32_0 = arith.constant 0 : i32
    %c0_i32_1 = arith.constant 0 : i32
    return %c0_i32, %c0_i32_0 : i32, i32
  }
  func.func @transform_3(%arg0: i32) -> (i32, i32) {
    %c0_i32 = arith.constant 0 : i32
    %c0_i32_0 = arith.constant 0 : i32
    %c0_i32_1 = arith.constant 0 : i32
    return %c0_i32, %c0_i32_0 : i32, i32
  }
  func.func @transform_4(%arg0: i32) -> (i32, i32) {
    %c0_i32 = arith.constant 0 : i32
    %c0_i32_0 = arith.constant 0 : i32
    %c0_i32_1 = arith.constant 0 : i32
    return %c0_i32, %c0_i32_0 : i32, i32
  }
  func.func @transform_5(%arg0: i32) -> (i32, i32) {
    %c0_i32 = arith.constant 0 : i32
    %c0_i32_0 = arith.constant 0 : i32
    %c0_i32_1 = arith.constant 0 : i32
    return %c0_i32, %c0_i32_0 : i32, i32
  }
  func.func @transform_6(%arg0: i32) -> (i32, i32) {
    %c0_i32 = arith.constant 0 : i32
    %c0_i32_0 = arith.constant 0 : i32
    %c0_i32_1 = arith.constant 0 : i32
    return %c0_i32, %c0_i32_0 : i32, i32
  }
  func.func @transform_7(%arg0: i32) -> (i32, i32) {
    %c0_i32 = arith.constant 0 : i32
    %c0_i32_0 = arith.constant 0 : i32
    %c0_i32_1 = arith.constant 0 : i32
    return %c0_i32, %c0_i32_0 : i32, i32
  }
  func.func @transform_8(%arg0: i32) -> (i32, i32) {
    %c0_i32 = arith.constant 0 : i32
    %c0_i32_0 = arith.constant 0 : i32
    %c0_i32_1 = arith.constant 0 : i32
    return %c0_i32, %c0_i32_0 : i32, i32
  }
  func.func @transform_9(%arg0: i32) -> (i32, i32, i32) {
    %c0_i32 = arith.constant 0 : i32
    %c0_i32_0 = arith.constant 0 : i32
    %c0_i32_1 = arith.constant 0 : i32
    return %arg0, %c0_i32, %c0_i32_0 : i32, i32, i32
  }
}

</mosaic_0001>

<llo_original>
// kernel: blnet_forward.2
$region0: #{blnet_forward.2}
  #allocation0 [shape = 'u32[]', space=smem, size = 0x4, offset = 0x4, fixed_abs, tag = 'smem constant byte address 0x4 - core index']
  #allocation1 [shape = 'u32[72,128]{1,0:T(1,128)}', space=vmem, size = 0x9000, scoped, tag = 'internal scratch']
  #allocation2 [shape = 'f32[72,128]{1,0:T(8,128)}', space=vmem, size = 0x9000, scoped, tag = 'scratch operand']
  #allocation3 [shape = 'bf16[64,320]{1,0:T(8,128)(2,1)}', space=vmem, size = 0xc000, scoped, tag = 'scratch operand']
  %s0 = inlined_call_operand.vmem [shape: f32[2,64,1], index: 0, kind: input, shape index: {}]
  %s1 = inlined_call_operand.vmem [shape: bf16[120,16], index: 1, kind: input, shape index: {}]
  %s2 = inlined_call_operand.vmem [shape: bf16[128,64], index: 2, kind: input, shape index: {}]
  %s3 = inlined_call_operand.hbm [shape: bf16[512,256], index: 3, kind: input, shape index: {}]
  %s4 = inlined_call_operand.vmem [shape: f32[256,16], index: 4, kind: input, shape index: {}]
  %s5 = inlined_call_operand.hbm [shape: f32[16,256], index: 5, kind: input, shape index: {}]
  %s6 = inlined_call_operand.vmem [shape: f32[256,16], index: 6, kind: input, shape index: {}]
  %s7 = inlined_call_operand.hbm [shape: f32[16,256], index: 7, kind: input, shape index: {}]
  %s8 = inlined_call_operand.hbm [shape: f32[2,1792], index: 8, kind: input, shape index: {}]
  %s9 = inlined_call_operand.vmem [shape: f32[2,1,512], index: 9, kind: output, shape index: {}]
  %s10 = sld [smem:[#allocation0]]
  $region85: #{blnet_forward.2} parent=0
    _
  %s12 = ssub.s32 1, %s10
  %s13 = scalar_select 0, %s12, %s10
  $region1: #{blnet_forward.2} parent=0
    #allocation4 [shape = 'u8[262144]{0}', space=vmem, size = 0x40000, scoped, tag = 'input window, operand 3, single buffered']
    #allocation5 [shape = 's32[2]{0}', space=sflag, size = 0x8, scoped, tag = 'scoped memory for blnet_forward.2']
    #allocation6 [shape = 'u8[16384]{0}', space=vmem, size = 0x4000, scoped, tag = 'input window, operand 5, single buffered']
    #allocation7 [shape = 's32[1]{0}', space=sflag, size = 0x4, scoped, tag = 'scoped memory for blnet_forward.2']
    #allocation8 [shape = 'u8[16384]{0}', space=vmem, size = 0x4000, scoped, tag = 'input window, operand 7, single buffered']
    #allocation9 [shape = 'u8[14336]{0}', space=vmem, size = 0x3800, scoped, tag = 'input window, operand 8, single buffered']
    #allocation10 [shape = 's32[1]{0}', space=sflag, size = 0x4, scoped, tag = 'scoped memory for blnet_forward.2']
    %14 = vsyncpa [#allocation5], 0
    %15 = vsyncpa [#allocation7], 0
    %16 = vsyncpa [#allocation10], 0
    loop: start=0, step=1, limit=4
    $region2: #{blnet_forward.2} parent=1 // loop_pre_header
      _
    $region3: #{blnet_forward.2} parent=1 // loop_header
      %s18 = sphi 0, %s22
      %p19 = scmp.ge.s32.totalorder %s18, 4
      %s28 = sphi 0, %s30
      %s31 = sphi 0, %s28
      %s32 = sphi 0, %s31
      %s48 = sphi 0, %s32
      %s52 = sphi 0, %s52
      %s54 = sphi 0, %s52
      %s55 = sphi 0, %s54
      %s69 = sphi 0, %s55
      %s73 = sphi 0, %s73
      %s75 = sphi 0, %s73
      %s76 = sphi 0, %s75
      %s90 = sphi 0, %s76
      %s94 = sphi 0, %s94
      %s96 = sphi 0, %s94
      %s97 = sphi 0, %s96
      %s111 = sphi 0, %s97
      %s115 = sphi 0, %s115
      %s117 = sphi 0, %s115
      %s118 = sphi 0, %s117
      %s132 = sphi 0, %s118
      %s136 = sphi 0, %s136
      %s138 = sphi 0, %s136
      %s139 = sphi 0, %s138
      %s153 = sphi 0, %s139
      %s157 = sphi 0, %s157
      %s159 = sphi 0, %s157
      %s160 = sphi 0, %s159
      %s174 = sphi 0, %s160
      %s178 = sphi 0, %s178
      %s180 = sphi 0, %s178
      %s181 = sphi 0, %s180
      %s195 = sphi 0, %s181
      %s199 = sphi 0, %s199
      %s201 = sphi 0, %s199
      %s202 = sphi 0, %s201
      %s216 = sphi 0, %s202
      %s222 = sphi 0, %s224
      %s225 = sphi 0, %s222
      %s226 = sphi 0, %s225
      %s242 = sphi 0, %s226
    $region4: #{blnet_forward.2} parent=1 // loop_header_branch
      %21 = sbr.rel (%p19) target = $region8
    $region5: #{blnet_forward.2} parent=1 // loop_body
      %s23 = ssub.s32 %s18, 1
      %s24 = ssub.s32 %s18, 2
      %s25 = sadd.s32 %s18, 1
      %s26 = ssub.s32 %s18, %s25
      %p27 = scmp.eq.s32.totalorder %s26, 0
      %s29 = sadd.s32 %s28, 1
      %s30 = scalar_select %p27, %s28, %s29
      %p33 = pneg %p27
      %p34 = scmp.eq.s32.totalorder %s18, 1
      %p35 = por %p33, %p34
      %p36 = scmp.ne.s32.totalorder %s28, %s31
      %p37 = scmp.eq.s32.totalorder %s18, 0
      %p38 = por %p36, %p37
      %p39 = scmp.ne.s32.totalorder %s28, %s31
      %p40 = scmp.eq.s32.totalorder %s23, 1
      %p41 = por %p39, %p40
      %p42 = scmp.ne.s32.totalorder %s31, %s32
      %p43 = scmp.eq.s32.totalorder %s23, 0
      %p44 = por %p42, %p43
      %p45 = scmp.ne.s32.totalorder %s31, %s32
      %p46 = scmp.eq.s32.totalorder %s24, 1
      %p47 = por %p45, %p46
      %p49 = scmp.ne.s32.totalorder %s32, %s48
      %p50 = scmp.eq.s32.totalorder %s24, 0
      %p51 = por %p49, %p50
      %s53 = sadd.s32 %s52, 1
      %p56 = scmp.eq.s32.totalorder %s18, 1
      %p57 = scmp.ne.s32.totalorder %s52, %s54
      %p58 = scmp.eq.s32.totalorder %s18, 0
      %p59 = por %p57, %p58
      %p60 = scmp.ne.s32.totalorder %s52, %s54
      %p61 = scmp.eq.s32.totalorder %s23, 1
      %p62 = por %p60, %p61
      %p63 = scmp.ne.s32.totalorder %s54, %s55
      %p64 = scmp.eq.s32.totalorder %s23, 0
      %p65 = por %p63, %p64
      %p66 = scmp.ne.s32.totalorder %s54, %s55
      %p67 = scmp.eq.s32.totalorder %s24, 1
      %p68 = por %p66, %p67
      %p70 = scmp.ne.s32.totalorder %s55, %s69
      %p71 = scmp.eq.s32.totalorder %s24, 0
      %p72 = por %p70, %p71
      %s74 = sadd.s32 %s73, 1
      %p77 = scmp.eq.s32.totalorder %s18, 1
      %p78 = scmp.ne.s32.totalorder %s73, %s75
      %p79 = scmp.eq.s32.totalorder %s18, 0
      %p80 = por %p78, %p79
      %p81 = scmp.ne.s32.totalorder %s73, %s75
      %p82 = scmp.eq.s32.totalorder %s23, 1
      %p83 = por %p81, %p82
      %p84 = scmp.ne.s32.totalorder %s75, %s76
      %p85 = scmp.eq.s32.totalorder %s23, 0
      %p86 = por %p84, %p85
      %p87 = scmp.ne.s32.totalorder %s75, %s76
      %p88 = scmp.eq.s32.totalorder %s24, 1
      %p89 = por %p87, %p88
      %p91 = scmp.ne.s32.totalorder %s76, %s90
      %p92 = scmp.eq.s32.totalorder %s24, 0
      %p93 = por %p91, %p92
      %s95 = sadd.s32 %s94, 1
      %p98 = scmp.eq.s32.totalorder %s18, 1
      %p99 = scmp.ne.s32.totalorder %s94, %s96
      %p100 = scmp.eq.s32.totalorder %s18, 0
      %p101 = por %p99, %p100
      %p102 = scmp.ne.s32.totalorder %s94, %s96
      %p103 = scmp.eq.s32.totalorder %s23, 1
      %p104 = por %p102, %p103
      %p105 = scmp.ne.s32.totalorder %s96, %s97
      %p106 = scmp.eq.s32.totalorder %s23, 0
      %p107 = por %p105, %p106
      %p108 = scmp.ne.s32.totalorder %s96, %s97
      %p109 = scmp.eq.s32.totalorder %s24, 1
      %p110 = por %p108, %p109
      %p112 = scmp.ne.s32.totalorder %s97, %s111
      %p113 = scmp.eq.s32.totalorder %s24, 0
      %p114 = por %p112, %p113
      %s116 = sadd.s32 %s115, 1
      %p119 = scmp.eq.s32.totalorder %s18, 1
      %p120 = scmp.ne.s32.totalorder %s115, %s117
      %p121 = scmp.eq.s32.totalorder %s18, 0
      %p122 = por %p120, %p121
      %p123 = scmp.ne.s32.totalorder %s115, %s117
      %p124 = scmp.eq.s32.totalorder %s23, 1
      %p125 = por %p123, %p124
      %p126 = scmp.ne.s32.totalorder %s117, %s118
      %p127 = scmp.eq.s32.totalorder %s23, 0
      %p128 = por %p126, %p127
      %p129 = scmp.ne.s32.totalorder %s117, %s118
      %p130 = scmp.eq.s32.totalorder %s24, 1
      %p131 = por %p129, %p130
      %p133 = scmp.ne.s32.totalorder %s118, %s132
      %p134 = scmp.eq.s32.totalorder %s24, 0
      %p135 = por %p133, %p134
      %s137 = sadd.s32 %s136, 1
      %p140 = scmp.eq.s32.totalorder %s18, 1
      %p141 = scmp.ne.s32.totalorder %s136, %s138
      %p142 = scmp.eq.s32.totalorder %s18, 0
      %p143 = por %p141, %p142
      %p144 = scmp.ne.s32.totalorder %s136, %s138
      %p145 = scmp.eq.s32.totalorder %s23, 1
      %p146 = por %p144, %p145
      %p147 = scmp.ne.s32.totalorder %s138, %s139
      %p148 = scmp.eq.s32.totalorder %s23, 0
      %p149 = por %p147, %p148
      %p150 = scmp.ne.s32.totalorder %s138, %s139
      %p151 = scmp.eq.s32.totalorder %s24, 1
      %p152 = por %p150, %p151
      %p154 = scmp.ne.s32.totalorder %s139, %s153
      %p155 = scmp.eq.s32.totalorder %s24, 0
      %p156 = por %p154, %p155
      %s158 = sadd.s32 %s157, 1
      %p161 = scmp.eq.s32.totalorder %s18, 1
      %p162 = scmp.ne.s32.totalorder %s157, %s159
      %p163 = scmp.eq.s32.totalorder %s18, 0
      %p164 = por %p162, %p163
      %p165 = scmp.ne.s32.totalorder %s157, %s159
      %p166 = scmp.eq.s32.totalorder %s23, 1
      %p167 = por %p165, %p166
      %p168 = scmp.ne.s32.totalorder %s159, %s160
      %p169 = scmp.eq.s32.totalorder %s23, 0
      %p170 = por %p168, %p169
      %p171 = scmp.ne.s32.totalorder %s159, %s160
      %p172 = scmp.eq.s32.totalorder %s24, 1
      %p173 = por %p171, %p172
      %p175 = scmp.ne.s32.totalorder %s160, %s174
      %p176 = scmp.eq.s32.totalorder %s24, 0
      %p177 = por %p175, %p176
      %s179 = sadd.s32 %s178, 1
      %p182 = scmp.eq.s32.totalorder %s18, 1
      %p183 = scmp.ne.s32.totalorder %s178, %s180
      %p184 = scmp.eq.s32.totalorder %s18, 0
      %p185 = por %p183, %p184
      %p186 = scmp.ne.s32.totalorder %s178, %s180
      %p187 = scmp.eq.s32.totalorder %s23, 1
      %p188 = por %p186, %p187
      %p189 = scmp.ne.s32.totalorder %s180, %s181
      %p190 = scmp.eq.s32.totalorder %s23, 0
      %p191 = por %p189, %p190
      %p192 = scmp.ne.s32.totalorder %s180, %s181
      %p193 = scmp.eq.s32.totalorder %s24, 1
      %p194 = por %p192, %p193
      %p196 = scmp.ne.s32.totalorder %s181, %s195
      %p197 = scmp.eq.s32.totalorder %s24, 0
      %p198 = por %p196, %p197
      %s200 = sadd.s32 %s199, 1
      %p203 = scmp.eq.s32.totalorder %s18, 1
      %p204 = scmp.ne.s32.totalorder %s199, %s201
      %p205 = scmp.eq.s32.totalorder %s18, 0
      %p206 = por %p204, %p205
      %p207 = scmp.ne.s32.totalorder %s199, %s201
      %p208 = scmp.eq.s32.totalorder %s23, 1
      %p209 = por %p207, %p208
      %p210 = scmp.ne.s32.totalorder %s201, %s202
      %p211 = scmp.eq.s32.totalorder %s23, 0
      %p212 = por %p210, %p211
      %p213 = scmp.ne.s32.totalorder %s201, %s202
      %p214 = scmp.eq.s32.totalorder %s24, 1
      %p215 = por %p213, %p214
      %p217 = scmp.ne.s32.totalorder %s202, %s216
      %p218 = scmp.eq.s32.totalorder %s24, 0
      %p219 = por %p217, %p218
      %s220 = ssub.s32 %s18, %s25
      %p221 = scmp.eq.s32.totalorder %s220, 0
      %s223 = sadd.s32 %s222, 1
      %s224 = scalar_select %p221, %s222, %s223
      %p227 = pneg %p221
      %p228 = scmp.eq.s32.totalorder %s18, 1
      %p229 = por %p227, %p228
      %p230 = scmp.ne.s32.totalorder %s222, %s225
      %p231 = scmp.eq.s32.totalorder %s18, 0
      %p232 = por %p230, %p231
      %p233 = scmp.ne.s32.totalorder %s222, %s225
      %p234 = scmp.eq.s32.totalorder %s23, 1
      %p235 = por %p233, %p234
      %p236 = scmp.ne.s32.totalorder %s225, %s226
      %p237 = scmp.eq.s32.totalorder %s23, 0
      %p238 = por %p236, %p237
      %p239 = scmp.ne.s32.totalorder %s225, %s226
      %p240 = scmp.eq.s32.totalorder %s24, 1
      %p241 = por %p239, %p240
      %p243 = scmp.ne.s32.totalorder %s226, %s242
      %p244 = scmp.eq.s32.totalorder %s24, 0
      %p245 = por %p243, %p244
      %p246 = scmp.le.s32.totalorder 1, %s18
      %p247 = scmp.lt.s32.totalorder %s18, 3
      %p248 = pnand %p246, %p247
      %p249 = pneg %p248
      // Predicated region
      $region9: #{blnet_forward.2} parent=5 // pred_check
        _
      $region10: #{blnet_forward.2} parent=5 // pred_check_branch
        %251 = sbr.rel (%p248) target = $region12
      $region11: #{blnet_forward.2} parent=5 // pred_region
        %s252 = ssub.s32 %s18, 1
        // Predicated region
        $region13: #{blnet_forward.2} parent=11 // pred_check
          %p253 = pneg %p65
        $region14: #{blnet_forward.2} parent=11 // pred_check_branch
          %255 = sbr.rel (%p253) target = $region16
        $region15: #{blnet_forward.2} parent=11 // pred_region
          _
        $region16: #{blnet_forward.2} parent=11 // pred_fallthru
          _
        // Predicated region
        $region17: #{blnet_forward.2} parent=11 // pred_check
          %p256 = pneg %p86
        $region18: #{blnet_forward.2} parent=11 // pred_check_branch
          %258 = sbr.rel (%p256) target = $region20
        $region19: #{blnet_forward.2} parent=11 // pred_region
          _
        $region20: #{blnet_forward.2} parent=11 // pred_fallthru
          _
        // Predicated region
        $region21: #{blnet_forward.2} parent=11 // pred_check
          %p259 = pneg %p107
        $region22: #{blnet_forward.2} parent=11 // pred_check_branch
          %261 = sbr.rel (%p259) target = $region24
        $region23: #{blnet_forward.2} parent=11 // pred_region
          %263 = vsyncadd [#allocation5], 0
          %s264 = sshll.u32 %s3, 4
          %s265 = int_to_ptr.hbm [resolvable:$true] %s264
          %s266 = sshll.u32 [#allocation4], 4
          %s267 = int_to_ptr.vmem [resolvable:$true] %s266
          %272 = dma.hbm_to_vmem [thread:$0]  %s265, 8192, %s267, [#allocation5], 128, 128, 8
        $region24: #{blnet_forward.2} parent=11 // pred_fallthru
          _
        // Predicated region
        $region25: #{blnet_forward.2} parent=11 // pred_check
          %p273 = pneg %p128
        $region26: #{blnet_forward.2} parent=11 // pred_check_branch
          %275 = sbr.rel (%p273) target = $region28
        $region27: #{blnet_forward.2} parent=11 // pred_region
          _
        $region28: #{blnet_forward.2} parent=11 // pred_fallthru
          _
        // Predicated region
        $region29: #{blnet_forward.2} parent=11 // pred_check
          %p276 = pneg %p149
        $region30: #{blnet_forward.2} parent=11 // pred_check_branch
          %278 = sbr.rel (%p276) target = $region32
        $region31: #{blnet_forward.2} parent=11 // pred_region
          %280 = vsyncadd [#allocation7], 0
          %s281 = sshll.u32 %s5, 4
          %s282 = int_to_ptr.hbm [resolvable:$true] %s281
          %s283 = sshll.u32 [#allocation6], 4
          %s284 = int_to_ptr.vmem [resolvable:$true] %s283
          %289 = dma.hbm_to_vmem [thread:$0]  %s282, 512, %s284, [#allocation7], 256, 256, 16
        $region32: #{blnet_forward.2} parent=11 // pred_fallthru
          _
        // Predicated region
        $region33: #{blnet_forward.2} parent=11 // pred_check
          %p290 = pneg %p170
        $region34: #{blnet_forward.2} parent=11 // pred_check_branch
          %292 = sbr.rel (%p290) target = $region36
        $region35: #{blnet_forward.2} parent=11 // pred_region
          _
        $region36: #{blnet_forward.2} parent=11 // pred_fallthru
          _
        // Predicated region
        $region37: #{blnet_forward.2} parent=11 // pred_check
          %p293 = pneg %p191
        $region38: #{blnet_forward.2} parent=11 // pred_check_branch
          %295 = sbr.rel (%p293) target = $region40
        $region39: #{blnet_forward.2} parent=11 // pred_region
          %297 = vsyncadd [#allocation7], 0
          %s298 = sshll.u32 %s7, 4
          %s299 = int_to_ptr.hbm [resolvable:$true] %s298
          %s300 = sshll.u32 [#allocation8], 4
          %s301 = int_to_ptr.vmem [resolvable:$true] %s300
          %306 = dma.hbm_to_vmem [thread:$0]  %s299, 512, %s301, [#allocation7], 256, 256, 16
        $region40: #{blnet_forward.2} parent=11 // pred_fallthru
          _
        // Predicated region
        $region41: #{blnet_forward.2} parent=11 // pred_check
          %p307 = pneg %p212
        $region42: #{blnet_forward.2} parent=11 // pred_check_branch
          %309 = sbr.rel (%p307) target = $region44
        $region43: #{blnet_forward.2} parent=11 // pred_region
          %311 = vsyncadd [#allocation10], 0
          %s313 = sshll.u32 %s8, 4
          %s314 = int_to_ptr.hbm [resolvable:$true] %s313
          %s315 = sshll.u32 [#allocation9], 4
          %s316 = int_to_ptr.vmem [resolvable:$true] %s315
          %318 = dma.hbm_to_vmem [thread:$0]  %s314, 448, %s316, [#allocation10]
        $region44: #{blnet_forward.2} parent=11 // pred_fallthru
          _
      $region12: #{blnet_forward.2} parent=5 // pred_fallthru
        _
      %p319 = scmp.lt.s32.totalorder %s18, 2
      // Predicated region
      $region45: #{blnet_forward.2} parent=5 // pred_check
        %p320 = pneg %p319
      $region46: #{blnet_forward.2} parent=5 // pred_check_branch
        %322 = sbr.rel (%p320) target = $region48
      $region47: #{blnet_forward.2} parent=5 // pred_region
        // Predicated region
        $region49: #{blnet_forward.2} parent=47 // pred_check
          %p323 = pneg %p38
        $region50: #{blnet_forward.2} parent=47 // pred_check_branch
          %325 = sbr.rel (%p323) target = $region52
        $region51: #{blnet_forward.2} parent=47 // pred_region
          %p326 = scmp.lt.s32.totalorder %s18, 1
          %s327 = scalar_select %p326, %s18, 1
          %s328 = smul.addr %s327, 8
          %s329 = smul.addr %s328, 8
          %s330 = scalar_lea.vmem %s0, %s329
        $region52: #{blnet_forward.2} parent=47 // pred_fallthru
          _
      $region48: #{blnet_forward.2} parent=5 // pred_fallthru
        _
      %p331 = scmp.le.s32.totalorder 1, %s18
      %p332 = scmp.lt.s32.totalorder %s18, 3
      %p333 = pnand %p331, %p332
      %p334 = pneg %p333
      // Predicated region
      $region53: #{blnet_forward.2} parent=5 // pred_check
        _
      $region54: #{blnet_forward.2} parent=5 // pred_check_branch
        %336 = sbr.rel (%p333) target = $region56
      $region55: #{blnet_forward.2} parent=5 // pred_region
        %s337 = ssub.s32 %s18, 1
        // Predicated region
        $region57: #{blnet_forward.2} parent=55 // pred_check
          %p338 = pneg %p107
        $region58: #{blnet_forward.2} parent=55 // pred_check_branch
          %340 = sbr.rel (%p338) target = $region60
        $region59: #{blnet_forward.2} parent=55 // pred_region
          %342 = dma.done [#allocation5], 8192
        $region60: #{blnet_forward.2} parent=55 // pred_fallthru
          _
        // Predicated region
        $region61: #{blnet_forward.2} parent=55 // pred_check
          %p343 = pneg %p149
        $region62: #{blnet_forward.2} parent=55 // pred_check_branch
          %345 = sbr.rel (%p343) target = $region64
        $region63: #{blnet_forward.2} parent=55 // pred_region
          %347 = dma.done [#allocation7], 512
        $region64: #{blnet_forward.2} parent=55 // pred_fallthru
          _
        // Predicated region
        $region65: #{blnet_forward.2} parent=55 // pred_check
          %p348 = pneg %p191
        $region66: #{blnet_forward.2} parent=55 // pred_check_branch
          %350 = sbr.rel (%p348) target = $region68
        $region67: #{blnet_forward.2} parent=55 // pred_region
          %352 = dma.done [#allocation7], 512
        $region68: #{blnet_forward.2} parent=55 // pred_fallthru
          _
        // Predicated region
        $region69: #{blnet_forward.2} parent=55 // pred_check
          %p353 = pneg %p212
        $region70: #{blnet_forward.2} parent=55 // pred_check_branch
          %355 = sbr.rel (%p353) target = $region72
        $region71: #{blnet_forward.2} parent=55 // pred_region
          %357 = dma.done [#allocation10], 448
        $region72: #{blnet_forward.2} parent=55 // pred_fallthru
          _
        %p358 = scmp.lt.s32.totalorder %s23, 1
        %s359 = scalar_select %p358, %s23, 1
        %s360 = smul.addr %s359, 8
        %s361 = smul.addr %s360, 8
        %s362 = scalar_lea.vmem %s0, %s361
        %p363 = pneg %p44
        %p364 = pneg %p41
        %p365 = pneg %p65
        %p366 = pneg %p62
        %p367 = pneg %p86
        %p368 = pneg %p83
        %p369 = pneg %p107
        %p370 = pneg %p104
        %p371 = pneg %p128
        %p372 = pneg %p125
        %p373 = pneg %p149
        %p374 = pneg %p146
        %p375 = pneg %p170
        %p376 = pneg %p167
        %p377 = pneg %p191
        %p378 = pneg %p188
        %p379 = pneg %p212
        %p380 = pneg %p209
        %p381 = pneg %p238
        %p382 = pneg %p235
        %p383 = scmp.lt.s32.totalorder %s23, 1
        %s384 = scalar_select %p383, %s23, 1
        %s385 = smul.addr %s384, 4
        %s386 = scalar_lea.vmem %s9, %s385
        %p387 = scmp.lt.s32.totalorder %s23, 1
        %s388 = scalar_select %p387, %s23, 1
        %s389 = smul.addr %s388, 8
        %s390 = smul.addr %s389, 8
        %s391 = scalar_lea.vmem %s0, %s390
        %p392 = scmp.lt.s32.totalorder %s23, 1
        %s393 = scalar_select %p392, %s23, 1
        %s394 = smul.addr %s393, 4
        %s395 = scalar_lea.vmem %s9, %s394
        %397 = vst [vmem:[#allocation2] sm:$0x1] 0.0
        %v398 = vld [vmem:[%s391] sm:$0xff]
        %v399 = vld [vmem:[%s391 + $0x8] sm:$0xff]
        %v400 = vld [vmem:[%s391 + $0x10] sm:$0xff]
        %v401 = vld [vmem:[%s391 + $0x18] sm:$0xff]
        %v402 = vld [vmem:[%s391 + $0x20] sm:$0xff]
        %v403 = vld [vmem:[%s391 + $0x28] sm:$0xff]
        %v404 = vld [vmem:[%s391 + $0x30] sm:$0xff]
        %v405 = vld [vmem:[%s391 + $0x38] sm:$0xff]
        %v406 = vld [vmem:[%s1] sm:$0xf]
        %vm407 = vcmask 7168
        %408 = vst.msk [vmem:[#allocation2 + $0x1] sm:$0xff] %vm407, %v398
        %409 = vst.msk [vmem:[#allocation2 + $0x9] sm:$0xff] %vm407, %v399
        %410 = vst.msk [vmem:[#allocation2 + $0x11] sm:$0xff] %vm407, %v400
        %411 = vst.msk [vmem:[#allocation2 + $0x19] sm:$0xff] %vm407, %v401
        %412 = vst.msk [vmem:[#allocation2 + $0x21] sm:$0xff] %vm407, %v402
        %413 = vst.msk [vmem:[#allocation2 + $0x29] sm:$0xff] %vm407, %v403
        %414 = vst.msk [vmem:[#allocation2 + $0x31] sm:$0xff] %vm407, %v404
        %415 = vst.msk [vmem:[#allocation2 + $0x39] sm:$0xff] %vm407, %v405
        %vm416 = vcmask 0
        %417 = vst.msk [vmem:[#allocation2 + $0x41] sm:$0x1] %vm416, 0.0
        %v418 = vunpack.c.l.bf16 %v406
        %v419 = vld [vmem:[#allocation2] sm:$0xff]
        %v420 = vld [vmem:[#allocation2 + $0x8] sm:$0xff]
        %v421 = vld [vmem:[#allocation2 + $0x10] sm:$0xff]
        %v422 = vld [vmem:[#allocation2 + $0x18] sm:$0xff]
        %v423 = vld [vmem:[#allocation2 + $0x20] sm:$0xff]
        %v424 = vld [vmem:[#allocation2 + $0x28] sm:$0xff]
        %v425 = vld [vmem:[#allocation2 + $0x30] sm:$0xff]
        %v426 = vld [vmem:[#allocation2 + $0x38] sm:$0xf]
        %428 = vset.pattern.permute.xlu0 0
        %429 = vperm.xlu0 %428, %v419
        %v430 = vpop.permute.xlu0 %429
        %433 = vset.pattern.permute.xlu0 0
        %434 = vperm.xlu0 %433, %v420
        %v435 = vpop.permute.xlu0 %434
        %438 = vset.pattern.permute.xlu0 0
        %439 = vperm.xlu0 %438, %v421
        %v440 = vpop.permute.xlu0 %439
        %443 = vset.pattern.permute.xlu0 0
        %444 = vperm.xlu0 %443, %v422
        %v445 = vpop.permute.xlu0 %444
        %448 = vset.pattern.permute.xlu0 0
        %449 = vperm.xlu0 %448, %v423
        %v450 = vpop.permute.xlu0 %449
        %453 = vset.pattern.permute.xlu0 0
        %454 = vperm.xlu0 %453, %v424
        %v455 = vpop.permute.xlu0 %454
        %458 = vset.pattern.permute.xlu0 0
        %459 = vperm.xlu0 %458, %v425
        %v460 = vpop.permute.xlu0 %459
        %463 = vset.pattern.permute.xlu0 0
        %464 = vperm.xlu0 %463, %v426
        %v465 = vpop.permute.xlu0 %464
        %v467 = vperm.slane %v418, 0
        %v468 = vmul.f32 %v430, %v467
        %v469 = vmul.f32 %v435, %v467
        %v470 = vmul.f32 %v440, %v467
        %v471 = vmul.f32 %v445, %v467
        %v472 = vmul.f32 %v450, %v467
        %v473 = vmul.f32 %v455, %v467
        %v474 = vmul.f32 %v460, %v467
        %v475 = vmul.f32 %v465, %v467
        %v476 = vadd.f32 %v468, 0.0
        %v477 = vadd.f32 %v469, 0.0
        %v478 = vadd.f32 %v470, 0.0
        %v479 = vadd.f32 %v471, 0.0
        %v480 = vadd.f32 %v472, 0.0
        %v481 = vadd.f32 %v473, 0.0
        %v482 = vadd.f32 %v474, 0.0
        %v483 = vadd.f32 %v475, 0.0
        %v484 = vld [vmem:[#allocation2 + $0x1] sm:$0xff]
        %v485 = vld [vmem:[#allocation2 + $0x9] sm:$0xff]
        %v486 = vld [vmem:[#allocation2 + $0x11] sm:$0xff]
        %v487 = vld [vmem:[#allocation2 + $0x19] sm:$0xff]
        %v488 = vld [vmem:[#allocation2 + $0x21] sm:$0xff]
        %v489 = vld [vmem:[#allocation2 + $0x29] sm:$0xff]
        %v490 = vld [vmem:[#allocation2 + $0x31] sm:$0xff]
        %v491 = vld [vmem:[#allocation2 + $0x39] sm:$0xf]
        %493 = vset.pattern.permute.xlu0 0
        %494 = vperm.xlu0 %493, %v484
        %v495 = vpop.permute.xlu0 %494
        %498 = vset.pattern.permute.xlu0 0
        %499 = vperm.xlu0 %498, %v485
        %v500 = vpop.permute.xlu0 %499
        %503 = vset.pattern.permute.xlu0 0
        %504 = vperm.xlu0 %503, %v486
        %v505 = vpop.permute.xlu0 %504
        %508 = vset.pattern.permute.xlu0 0
        %509 = vperm.xlu0 %508, %v487
        %v510 = vpop.permute.xlu0 %509
        %513 = vset.pattern.permute.xlu0 0
        %514 = vperm.xlu0 %513, %v488
        %v515 = vpop.permute.xlu0 %514
        %518 = vset.pattern.permute.xlu0 0
        %519 = vperm.xlu0 %518, %v489
        %v520 = vpop.permute.xlu0 %519
        %523 = vset.pattern.permute.xlu0 0
        %524 = vperm.xlu0 %523, %v490
        %v525 = vpop.permute.xlu0 %524
        %528 = vset.pattern.permute.xlu0 0
        %529 = vperm.xlu0 %528, %v491
        %v530 = vpop.permute.xlu0 %529
        %v532 = vperm.slane %v418, 1
        %v533 = vmul.f32 %v495, %v532
        %v534 = vmul.f32 %v500, %v532
        %v535 = vmul.f32 %v505, %v532
        %v536 = vmul.f32 %v510, %v532
        %v537 = vmul.f32 %v515, %v532
        %v538 = vmul.f32 %v520, %v532
        %v539 = vmul.f32 %v525, %v532
        %v540 = vmul.f32 %v530, %v532
        %v541 = vadd.f32 %v476, %v533
        %v542 = vadd.f32 %v477, %v534
        %v543 = vadd.f32 %v478, %v535
        %v544 = vadd.f32 %v479, %v536
        %v545 = vadd.f32 %v480, %v537
        %v546 = vadd.f32 %v481, %v538
        %v547 = vadd.f32 %v482, %v539
        %v548 = vadd.f32 %v483, %v540
        %v549 = vld [vmem:[#allocation2 + $0x2] sm:$0xff]
        %v550 = vld [vmem:[#allocation2 + $0xa] sm:$0xff]
        %v551 = vld [vmem:[#allocation2 + $0x12] sm:$0xff]
        %v552 = vld [vmem:[#allocation2 + $0x1a] sm:$0xff]
        %v553 = vld [vmem:[#allocation2 + $0x22] sm:$0xff]
        %v554 = vld [vmem:[#allocation2 + $0x2a] sm:$0xff]
        %v555 = vld [vmem:[#allocation2 + $0x32] sm:$0xff]
        %v556 = vld [vmem:[#allocation2 + $0x3a] sm:$0xf]
        %558 = vset.pattern.permute.xlu0 0
        %559 = vperm.xlu0 %558, %v549
        %v560 = vpop.permute.xlu0 %559
        %563 = vset.pattern.permute.xlu0 0
        %564 = vperm.xlu0 %563, %v550
        %v565 = vpop.permute.xlu0 %564
        %568 = vset.pattern.permute.xlu0 0
        %569 = vperm.xlu0 %568, %v551
        %v570 = vpop.permute.xlu0 %569
        %573 = vset.pattern.permute.xlu0 0
        %574 = vperm.xlu0 %573, %v552
        %v575 = vpop.permute.xlu0 %574
        %578 = vset.pattern.permute.xlu0 0
        %579 = vperm.xlu0 %578, %v553
        %v580 = vpop.permute.xlu0 %579
        %583 = vset.pattern.permute.xlu0 0
        %584 = vperm.xlu0 %583, %v554
        %v585 = vpop.permute.xlu0 %584
        %588 = vset.pattern.permute.xlu0 0
        %589 = vperm.xlu0 %588, %v555
        %v590 = vpop.permute.xlu0 %589
        %593 = vset.pattern.permute.xlu0 0
        %594 = vperm.xlu0 %593, %v556
        %v595 = vpop.permute.xlu0 %594
        %v597 = vperm.slane %v418, 2
        %v598 = vmul.f32 %v560, %v597
        %v599 = vmul.f32 %v565, %v597
        %v600 = vmul.f32 %v570, %v597
        %v601 = vmul.f32 %v575, %v597
        %v602 = vmul.f32 %v580, %v597
        %v603 = vmul.f32 %v585, %v597
        %v604 = vmul.f32 %v590, %v597
        %v605 = vmul.f32 %v595, %v597
        %v606 = vadd.f32 %v541, %v598
        %v607 = vadd.f32 %v542, %v599
        %v608 = vadd.f32 %v543, %v600
        %v609 = vadd.f32 %v544, %v601
        %v610 = vadd.f32 %v545, %v602
        %v611 = vadd.f32 %v546, %v603
        %v612 = vadd.f32 %v547, %v604
        %v613 = vadd.f32 %v548, %v605
        %v614 = vld [vmem:[#allocation2 + $0x3] sm:$0xff]
        %v615 = vld [vmem:[#allocation2 + $0xb] sm:$0xff]
        %v616 = vld [vmem:[#allocation2 + $0x13] sm:$0xff]
        %v617 = vld [vmem:[#allocation2 + $0x1b] sm:$0xff]
        %v618 = vld [vmem:[#allocation2 + $0x23] sm:$0xff]
        %v619 = vld [vmem:[#allocation2 + $0x2b] sm:$0xff]
        %v620 = vld [vmem:[#allocation2 + $0x33] sm:$0xff]
        %v621 = vld [vmem:[#allocation2 + $0x3b] sm:$0xf]
        %623 = vset.pattern.permute.xlu0 0
        %624 = vperm.xlu0 %623, %v614
        %v625 = vpop.permute.xlu0 %624
        %628 = vset.pattern.permute.xlu0 0
        %629 = vperm.xlu0 %628, %v615
        %v630 = vpop.permute.xlu0 %629
        %633 = vset.pattern.permute.xlu0 0
        %634 = vperm.xlu0 %633, %v616
        %v635 = vpop.permute.xlu0 %634
        %638 = vset.pattern.permute.xlu0 0
        %639 = vperm.xlu0 %638, %v617
        %v640 = vpop.permute.xlu0 %639
        %643 = vset.pattern.permute.xlu0 0
        %644 = vperm.xlu0 %643, %v618
        %v645 = vpop.permute.xlu0 %644
        %648 = vset.pattern.permute.xlu0 0
        %649 = vperm.xlu0 %648, %v619
        %v650 = vpop.permute.xlu0 %649
        %653 = vset.pattern.permute.xlu0 0
        %654 = vperm.xlu0 %653, %v620
        %v655 = vpop.permute.xlu0 %654
        %658 = vset.pattern.permute.xlu0 0
        %659 = vperm.xlu0 %658, %v621
        %v660 = vpop.permute.xlu0 %659
        %v662 = vperm.slane %v418, 3
        %v663 = vmul.f32 %v625, %v662
        %v664 = vmul.f32 %v630, %v662
        %v665 = vmul.f32 %v635, %v662
        %v666 = vmul.f32 %v640, %v662
        %v667 = vmul.f32 %v645, %v662
        %v668 = vmul.f32 %v650, %v662
        %v669 = vmul.f32 %v655, %v662
        %v670 = vmul.f32 %v660, %v662
        %v671 = vadd.f32 %v606, %v663
        %v672 = vadd.f32 %v607, %v664
        %v673 = vadd.f32 %v608, %v665
        %v674 = vadd.f32 %v609, %v666
        %v675 = vadd.f32 %v610, %v667
        %v676 = vadd.f32 %v611, %v668
        %v677 = vadd.f32 %v612, %v669
        %v678 = vadd.f32 %v613, %v670
        %v679 = vld [vmem:[#allocation2 + $0x4] sm:$0xff]
        %v680 = vld [vmem:[#allocation2 + $0xc] sm:$0xff]
        %v681 = vld [vmem:[#allocation2 + $0x14] sm:$0xff]
        %v682 = vld [vmem:[#allocation2 + $0x1c] sm:$0xff]
        %v683 = vld [vmem:[#allocation2 + $0x24] sm:$0xff]
        %v684 = vld [vmem:[#allocation2 + $0x2c] sm:$0xff]
        %v685 = vld [vmem:[#allocation2 + $0x34] sm:$0xff]
        %v686 = vld [vmem:[#allocation2 + $0x3c] sm:$0xf]
        %688 = vset.pattern.permute.xlu0 0
        %689 = vperm.xlu0 %688, %v679
        %v690 = vpop.permute.xlu0 %689
        %693 = vset.pattern.permute.xlu0 0
        %694 = vperm.xlu0 %693, %v680
        %v695 = vpop.permute.xlu0 %694
        %698 = vset.pattern.permute.xlu0 0
        %699 = vperm.xlu0 %698, %v681
        %v700 = vpop.permute.xlu0 %699
        %703 = vset.pattern.permute.xlu0 0
        %704 = vperm.xlu0 %703, %v682
        %v705 = vpop.permute.xlu0 %704
        %708 = vset.pattern.permute.xlu0 0
        %709 = vperm.xlu0 %708, %v683
        %v710 = vpop.permute.xlu0 %709
        %713 = vset.pattern.permute.xlu0 0
        %714 = vperm.xlu0 %713, %v684
        %v715 = vpop.permute.xlu0 %714
        %718 = vset.pattern.permute.xlu0 0
        %719 = vperm.xlu0 %718, %v685
        %v720 = vpop.permute.xlu0 %719
        %723 = vset.pattern.permute.xlu0 0
        %724 = vperm.xlu0 %723, %v686
        %v725 = vpop.permute.xlu0 %724
        %v727 = vperm.slane %v418, 4
        %v728 = vmul.f32 %v690, %v727
        %v729 = vmul.f32 %v695, %v727
        %v730 = vmul.f32 %v700, %v727
        %v731 = vmul.f32 %v705, %v727
        %v732 = vmul.f32 %v710, %v727
        %v733 = vmul.f32 %v715, %v727
        %v734 = vmul.f32 %v720, %v727
        %v735 = vmul.f32 %v725, %v727
        %v736 = vadd.f32 %v671, %v728
        %v737 = vadd.f32 %v672, %v729
        %v738 = vadd.f32 %v673, %v730
        %v739 = vadd.f32 %v674, %v731
        %v740 = vadd.f32 %v675, %v732
        %v741 = vadd.f32 %v676, %v733
        %v742 = vadd.f32 %v677, %v734
        %v743 = vadd.f32 %v678, %v735
        %v744 = vld [vmem:[#allocation2 + $0x5] sm:$0xff]
        %v745 = vld [vmem:[#allocation2 + $0xd] sm:$0xff]
        %v746 = vld [vmem:[#allocation2 + $0x15] sm:$0xff]
        %v747 = vld [vmem:[#allocation2 + $0x1d] sm:$0xff]
        %v748 = vld [vmem:[#allocation2 + $0x25] sm:$0xff]
        %v749 = vld [vmem:[#allocation2 + $0x2d] sm:$0xff]
        %v750 = vld [vmem:[#allocation2 + $0x35] sm:$0xff]
        %v751 = vld [vmem:[#allocation2 + $0x3d] sm:$0xf]
        %753 = vset.pattern.permute.xlu0 0
        %754 = vperm.xlu0 %753, %v744
        %v755 = vpop.permute.xlu0 %754
        %758 = vset.pattern.permute.xlu0 0
        %759 = vperm.xlu0 %758, %v745
        %v760 = vpop.permute.xlu0 %759
        %763 = vset.pattern.permute.xlu0 0
        %764 = vperm.xlu0 %763, %v746
        %v765 = vpop.permute.xlu0 %764
        %768 = vset.pattern.permute.xlu0 0
        %769 = vperm.xlu0 %768, %v747
        %v770 = vpop.permute.xlu0 %769
        %773 = vset.pattern.permute.xlu0 0
        %774 = vperm.xlu0 %773, %v748
        %v775 = vpop.permute.xlu0 %774
        %778 = vset.pattern.permute.xlu0 0
        %779 = vperm.xlu0 %778, %v749
        %v780 = vpop.permute.xlu0 %779
        %783 = vset.pattern.permute.xlu0 0
        %784 = vperm.xlu0 %783, %v750
        %v785 = vpop.permute.xlu0 %784
        %788 = vset.pattern.permute.xlu0 0
        %789 = vperm.xlu0 %788, %v751
        %v790 = vpop.permute.xlu0 %789
        %v792 = vperm.slane %v418, 5
        %v793 = vmul.f32 %v755, %v792
        %v794 = vmul.f32 %v760, %v792
        %v795 = vmul.f32 %v765, %v792
        %v796 = vmul.f32 %v770, %v792
        %v797 = vmul.f32 %v775, %v792
        %v798 = vmul.f32 %v780, %v792
        %v799 = vmul.f32 %v785, %v792
        %v800 = vmul.f32 %v790, %v792
        %v801 = vadd.f32 %v736, %v793
        %v802 = vadd.f32 %v737, %v794
        %v803 = vadd.f32 %v738, %v795
        %v804 = vadd.f32 %v739, %v796
        %v805 = vadd.f32 %v740, %v797
        %v806 = vadd.f32 %v741, %v798
        %v807 = vadd.f32 %v742, %v799
        %v808 = vadd.f32 %v743, %v800
        %v809 = vld [vmem:[#allocation2 + $0x6] sm:$0xff]
        %v810 = vld [vmem:[#allocation2 + $0xe] sm:$0xff]
        %v811 = vld [vmem:[#allocation2 + $0x16] sm:$0xff]
        %v812 = vld [vmem:[#allocation2 + $0x1e] sm:$0xff]
        %v813 = vld [vmem:[#allocation2 + $0x26] sm:$0xff]
        %v814 = vld [vmem:[#allocation2 + $0x2e] sm:$0xff]
        %v815 = vld [vmem:[#allocation2 + $0x36] sm:$0xff]
        %v816 = vld [vmem:[#allocation2 + $0x3e] sm:$0xf]
        %818 = vset.pattern.permute.xlu0 0
        %819 = vperm.xlu0 %818, %v809
        %v820 = vpop.permute.xlu0 %819
        %823 = vset.pattern.permute.xlu0 0
        %824 = vperm.xlu0 %823, %v810
        %v825 = vpop.permute.xlu0 %824
        %828 = vset.pattern.permute.xlu0 0
        %829 = vperm.xlu0 %828, %v811
        %v830 = vpop.permute.xlu0 %829
        %833 = vset.pattern.permute.xlu0 0
        %834 = vperm.xlu0 %833, %v812
        %v835 = vpop.permute.xlu0 %834
        %838 = vset.pattern.permute.xlu0 0
        %839 = vperm.xlu0 %838, %v813
        %v840 = vpop.permute.xlu0 %839
        %843 = vset.pattern.permute.xlu0 0
        %844 = vperm.xlu0 %843, %v814
        %v845 = vpop.permute.xlu0 %844
        %848 = vset.pattern.permute.xlu0 0
        %849 = vperm.xlu0 %848, %v815
        %v850 = vpop.permute.xlu0 %849
        %853 = vset.pattern.permute.xlu0 0
        %854 = vperm.xlu0 %853, %v816
        %v855 = vpop.permute.xlu0 %854
        %v857 = vperm.slane %v418, 6
        %v858 = vmul.f32 %v820, %v857
        %v859 = vmul.f32 %v825, %v857
        %v860 = vmul.f32 %v830, %v857
        %v861 = vmul.f32 %v835, %v857
        %v862 = vmul.f32 %v840, %v857
        %v863 = vmul.f32 %v845, %v857
        %v864 = vmul.f32 %v850, %v857
        %v865 = vmul.f32 %v855, %v857
        %v866 = vadd.f32 %v801, %v858
        %v867 = vadd.f32 %v802, %v859
        %v868 = vadd.f32 %v803, %v860
        %v869 = vadd.f32 %v804, %v861
        %v870 = vadd.f32 %v805, %v862
        %v871 = vadd.f32 %v806, %v863
        %v872 = vadd.f32 %v807, %v864
        %v873 = vadd.f32 %v808, %v865
        %v874 = vld [vmem:[#allocation9] sm:$0x1]
        %v875 = vld [vmem:[#allocation9 + $0x1] sm:$0x1]
        %v876 = vperm.slane %v874, 0
        %v877 = vmul.f32 %v866, %v876
        %v878 = vmul.f32 %v867, %v876
        %v879 = vmul.f32 %v868, %v876
        %v880 = vmul.f32 %v869, %v876
        %v881 = vmul.f32 %v870, %v876
        %v882 = vmul.f32 %v871, %v876
        %v883 = vmul.f32 %v872, %v876
        %v884 = vmul.f32 %v873, %v876
        %v885 = vperm.slane %v875, 0
        %v886 = vadd.f32 %v877, %v885
        %v887 = vadd.f32 %v878, %v885
        %v888 = vadd.f32 %v879, %v885
        %v889 = vadd.f32 %v880, %v885
        %v890 = vadd.f32 %v881, %v885
        %v891 = vadd.f32 %v882, %v885
        %v892 = vadd.f32 %v883, %v885
        %v893 = vadd.f32 %v884, %v885
        %v894 = vmax.f32 %v886, 0.0
        %v895 = vmax.f32 %v887, 0.0
        %v896 = vmax.f32 %v888, 0.0
        %v897 = vmax.f32 %v889, 0.0
        %v898 = vmax.f32 %v890, 0.0
        %v899 = vmax.f32 %v891, 0.0
        %v900 = vmax.f32 %v892, 0.0
        %v901 = vmax.f32 %v893, 0.0
        %v902 = vld [vmem:[%s1 + $0x4] sm:$0xf]
        %v903 = vld [vmem:[%s1 + $0x8] sm:$0xf]
        %v904 = vld [vmem:[%s1 + $0xc] sm:$0xf]
        %v905 = vld [vmem:[%s1 + $0x10] sm:$0xf]
        %v906 = vld [vmem:[%s1 + $0x14] sm:$0xf]
        %v907 = vld [vmem:[%s1 + $0x18] sm:$0xf]
        %v908 = vld [vmem:[%s1 + $0x1c] sm:$0xf]
        %v909 = vld [vmem:[%s1 + $0x20] sm:$0xf]
        %v910 = vld [vmem:[%s1 + $0x24] sm:$0xf]
        %v911 = vld [vmem:[%s1 + $0x28] sm:$0xf]
        %v912 = vld [vmem:[%s1 + $0x2c] sm:$0xf]
        %v913 = vld [vmem:[%s1 + $0x30] sm:$0xf]
        %v914 = vld [vmem:[%s1 + $0x34] sm:$0xf]
        %v915 = vld [vmem:[%s1 + $0x38] sm:$0xf]
        %vm916 = vcmask 130048
        %917 = vst.msk [vmem:[#allocation2 + $0x1] sm:$0xff] %vm916, %v894
        %918 = vst.msk [vmem:[#allocation2 + $0x9] sm:$0xff] %vm916, %v895
        %919 = vst.msk [vmem:[#allocation2 + $0x11] sm:$0xff] %vm916, %v896
        %920 = vst.msk [vmem:[#allocation2 + $0x19] sm:$0xff] %vm916, %v897
        %921 = vst.msk [vmem:[#allocation2 + $0x21] sm:$0xff] %vm916, %v898
        %922 = vst.msk [vmem:[#allocation2 + $0x29] sm:$0xff] %vm916, %v899
        %923 = vst.msk [vmem:[#allocation2 + $0x31] sm:$0xff] %vm916, %v900
        %vm924 = vcmask 125952
        %925 = vst.msk [vmem:[#allocation2 + $0x39] sm:$0xf] %vm924, %v901
        %vm926 = vcmask 122880
        %927 = vst.msk [vmem:[#allocation2 + $0x3d] sm:$0x1] %vm926, 0.0
        %v928 = vld [vmem:[#allocation2] sm:$0xff]
        %v929 = vld [vmem:[#allocation2 + $0x8] sm:$0xff]
        %v930 = vld [vmem:[#allocation2 + $0x10] sm:$0xff]
        %v931 = vld [vmem:[#allocation2 + $0x18] sm:$0xff]
        %v932 = vld [vmem:[#allocation2 + $0x20] sm:$0xff]
        %v933 = vld [vmem:[#allocation2 + $0x28] sm:$0xff]
        %v934 = vld [vmem:[#allocation2 + $0x30] sm:$0xff]
        %v935 = vpack.c.bf16 %v928, %v928
        %v936 = vpack.c.bf16 %v929, %v929
        %v937 = vpack.c.bf16 %v930, %v930
        %v938 = vpack.c.bf16 %v931, %v931
        %v939 = vpack.c.bf16 %v932, %v932
        %v940 = vpack.c.bf16 %v933, %v933
        %v941 = vpack.c.bf16 %v934, %v934
        %942 = vst.msk [vmem:[#allocation3] sm:$0xf] %vm924, %v935
        %943 = vst.msk [vmem:[#allocation3 + $0xc] sm:$0xf] %vm924, %v936
        %944 = vst.msk [vmem:[#allocation3 + $0x18] sm:$0xf] %vm924, %v937
        %945 = vst.msk [vmem:[#allocation3 + $0x24] sm:$0xf] %vm924, %v938
        %946 = vst.msk [vmem:[#allocation3 + $0x30] sm:$0xf] %vm924, %v939
        %947 = vst.msk [vmem:[#allocation3 + $0x3c] sm:$0xf] %vm924, %v940
        %948 = vst.msk [vmem:[#allocation3 + $0x48] sm:$0xf] %vm924, %v941
        %v949 = vld [vmem:[#allocation2 + $0x1] sm:$0xff]
        %v950 = vld [vmem:[#allocation2 + $0x9] sm:$0xff]
        %v951 = vld [vmem:[#allocation2 + $0x11] sm:$0xff]
        %v952 = vld [vmem:[#allocation2 + $0x19] sm:$0xff]
        %v953 = vld [vmem:[#allocation2 + $0x21] sm:$0xff]
        %v954 = vld [vmem:[#allocation2 + $0x29] sm:$0xff]
        %v955 = vld [vmem:[#allocation2 + $0x31] sm:$0xff]
        %v956 = vpack.c.bf16 %v949, %v949
        %v957 = vpack.c.bf16 %v950, %v950
        %v958 = vpack.c.bf16 %v951, %v951
        %v959 = vpack.c.bf16 %v952, %v952
        %v960 = vpack.c.bf16 %v953, %v953
        %v961 = vpack.c.bf16 %v954, %v954
        %v962 = vpack.c.bf16 %v955, %v955
        %970 = vrot.lane.b32.xlu0 %v956, 16
        %v971 = vpop.permute.xlu0 %970
        %972 = vrot.lane.b32.xlu0 %v957, 16
        %v973 = vpop.permute.xlu0 %972
        %974 = vrot.lane.b32.xlu0 %v958, 16
        %v975 = vpop.permute.xlu0 %974
        %976 = vrot.lane.b32.xlu0 %v959, 16
        %v977 = vpop.permute.xlu0 %976
        %978 = vrot.lane.b32.xlu0 %v960, 16
        %v979 = vpop.permute.xlu0 %978
        %980 = vrot.lane.b32.xlu0 %v961, 16
        %v981 = vpop.permute.xlu0 %980
        %982 = vrot.lane.b32.xlu0 %v962, 16
        %v983 = vpop.permute.xlu0 %982
        %vm991 = vcmask 257152
        %992 = vst.msk [vmem:[#allocation3] sm:$0xf] %vm991, %v971
        %993 = vst.msk [vmem:[#allocation3 + $0xc] sm:$0xf] %vm991, %v973
        %994 = vst.msk [vmem:[#allocation3 + $0x18] sm:$0xf] %vm991, %v975
        %995 = vst.msk [vmem:[#allocation3 + $0x24] sm:$0xf] %vm991, %v977
        %996 = vst.msk [vmem:[#allocation3 + $0x30] sm:$0xf] %vm991, %v979
        %997 = vst.msk [vmem:[#allocation3 + $0x3c] sm:$0xf] %vm991, %v981
        %998 = vst.msk [vmem:[#allocation3 + $0x48] sm:$0xf] %vm991, %v983
        %v999 = vld [vmem:[#allocation2 + $0x2] sm:$0xff]
        %v1000 = vld [vmem:[#allocation2 + $0xa] sm:$0xff]
        %v1001 = vld [vmem:[#allocation2 + $0x12] sm:$0xff]
        %v1002 = vld [vmem:[#allocation2 + $0x1a] sm:$0xff]
        %v1003 = vld [vmem:[#allocation2 + $0x22] sm:$0xff]
        %v1004 = vld [vmem:[#allocation2 + $0x2a] sm:$0xff]
        %v1005 = vld [vmem:[#allocation2 + $0x32] sm:$0xff]
        %v1006 = vpack.c.bf16 %v999, %v999
        %v1007 = vpack.c.bf16 %v1000, %v1000
        %v1008 = vpack.c.bf16 %v1001, %v1001
        %v1009 = vpack.c.bf16 %v1002, %v1002
        %v1010 = vpack.c.bf16 %v1003, %v1003
        %v1011 = vpack.c.bf16 %v1004, %v1004
        %v1012 = vpack.c.bf16 %v1005, %v1005
        %1020 = vrot.lane.b32.xlu0 %v1006, 32
        %v1021 = vpop.permute.xlu0 %1020
        %1022 = vrot.lane.b32.xlu0 %v1007, 32
        %v1023 = vpop.permute.xlu0 %1022
        %1024 = vrot.lane.b32.xlu0 %v1008, 32
        %v1025 = vpop.permute.xlu0 %1024
        %1026 = vrot.lane.b32.xlu0 %v1009, 32
        %v1027 = vpop.permute.xlu0 %1026
        %1028 = vrot.lane.b32.xlu0 %v1010, 32
        %v1029 = vpop.permute.xlu0 %1028
        %1030 = vrot.lane.b32.xlu0 %v1011, 32
        %v1031 = vpop.permute.xlu0 %1030
        %1032 = vrot.lane.b32.xlu0 %v1012, 32
        %v1033 = vpop.permute.xlu0 %1032
        %vm1041 = vcmask 388352
        %1042 = vst.msk [vmem:[#allocation3] sm:$0xf] %vm1041, %v1021
        %1043 = vst.msk [vmem:[#allocation3 + $0xc] sm:$0xf] %vm1041, %v1023
        %1044 = vst.msk [vmem:[#allocation3 + $0x18] sm:$0xf] %vm1041, %v1025
        %1045 = vst.msk [vmem:[#allocation3 + $0x24] sm:$0xf] %vm1041, %v1027
        %1046 = vst.msk [vmem:[#allocation3 + $0x30] sm:$0xf] %vm1041, %v1029
        %1047 = vst.msk [vmem:[#allocation3 + $0x3c] sm:$0xf] %vm1041, %v1031
        %1048 = vst.msk [vmem:[#allocation3 + $0x48] sm:$0xf] %vm1041, %v1033
        %v1049 = vld [vmem:[#allocation2 + $0x3] sm:$0xff]
        %v1050 = vld [vmem:[#allocation2 + $0xb] sm:$0xff]
        %v1051 = vld [vmem:[#allocation2 + $0x13] sm:$0xff]
        %v1052 = vld [vmem:[#allocation2 + $0x1b] sm:$0xff]
        %v1053 = vld [vmem:[#allocation2 + $0x23] sm:$0xff]
        %v1054 = vld [vmem:[#allocation2 + $0x2b] sm:$0xff]
        %v1055 = vld [vmem:[#allocation2 + $0x33] sm:$0xff]
        %v1056 = vpack.c.bf16 %v1049, %v1049
        %v1057 = vpack.c.bf16 %v1050, %v1050
        %v1058 = vpack.c.bf16 %v1051, %v1051
        %v1059 = vpack.c.bf16 %v1052, %v1052
        %v1060 = vpack.c.bf16 %v1053, %v1053
        %v1061 = vpack.c.bf16 %v1054, %v1054
        %v1062 = vpack.c.bf16 %v1055, %v1055
        %1070 = vrot.lane.b32.xlu0 %v1056, 48
        %v1071 = vpop.permute.xlu0 %1070
        %1072 = vrot.lane.b32.xlu0 %v1057, 48
        %v1073 = vpop.permute.xlu0 %1072
        %1074 = vrot.lane.b32.xlu0 %v1058, 48
        %v1075 = vpop.permute.xlu0 %1074
        %1076 = vrot.lane.b32.xlu0 %v1059, 48
        %v1077 = vpop.permute.xlu0 %1076
        %1078 = vrot.lane.b32.xlu0 %v1060, 48
        %v1079 = vpop.permute.xlu0 %1078
        %1080 = vrot.lane.b32.xlu0 %v1061, 48
        %v1081 = vpop.permute.xlu0 %1080
        %1082 = vrot.lane.b32.xlu0 %v1062, 48
        %v1083 = vpop.permute.xlu0 %1082
        %vm1091 = vcmask 519552
        %1092 = vst.msk [vmem:[#allocation3] sm:$0xf] %vm1091, %v1071
        %1093 = vst.msk [vmem:[#allocation3 + $0xc] sm:$0xf] %vm1091, %v1073
        %1094 = vst.msk [vmem:[#allocation3 + $0x18] sm:$0xf] %vm1091, %v1075
        %1095 = vst.msk [vmem:[#allocation3 + $0x24] sm:$0xf] %vm1091, %v1077
        %1096 = vst.msk [vmem:[#allocation3 + $0x30] sm:$0xf] %vm1091, %v1079
        %1097 = vst.msk [vmem:[#allocation3 + $0x3c] sm:$0xf] %vm1091, %v1081
        %1098 = vst.msk [vmem:[#allocation3 + $0x48] sm:$0xf] %vm1091, %v1083
        %v1099 = vld [vmem:[#allocation2 + $0x4] sm:$0xff]
        %v1100 = vld [vmem:[#allocation2 + $0xc] sm:$0xff]
        %v1101 = vld [vmem:[#allocation2 + $0x14] sm:$0xff]
        %v1102 = vld [vmem:[#allocation2 + $0x1c] sm:$0xff]
        %v1103 = vld [vmem:[#allocation2 + $0x24] sm:$0xff]
        %v1104 = vld [vmem:[#allocation2 + $0x2c] sm:$0xff]
        %v1105 = vld [vmem:[#allocation2 + $0x34] sm:$0xff]
        %v1106 = vpack.c.bf16 %v1099, %v1099
        %v1107 = vpack.c.bf16 %v1100, %v1100
        %v1108 = vpack.c.bf16 %v1101, %v1101
        %v1109 = vpack.c.bf16 %v1102, %v1102
        %v1110 = vpack.c.bf16 %v1103, %v1103
        %v1111 = vpack.c.bf16 %v1104, %v1104
        %v1112 = vpack.c.bf16 %v1105, %v1105
        %1120 = vrot.lane.b32.xlu0 %v1106, 64
        %v1121 = vpop.permute.xlu0 %1120
        %1122 = vrot.lane.b32.xlu0 %v1107, 64
        %v1123 = vpop.permute.xlu0 %1122
        %1124 = vrot.lane.b32.xlu0 %v1108, 64
        %v1125 = vpop.permute.xlu0 %1124
        %1126 = vrot.lane.b32.xlu0 %v1109, 64
        %v1127 = vpop.permute.xlu0 %1126
        %1128 = vrot.lane.b32.xlu0 %v1110, 64
        %v1129 = vpop.permute.xlu0 %1128
        %1130 = vrot.lane.b32.xlu0 %v1111, 64
        %v1131 = vpop.permute.xlu0 %1130
        %1132 = vrot.lane.b32.xlu0 %v1112, 64
        %v1133 = vpop.permute.xlu0 %1132
        %vm1141 = vcmask 650752
        %1142 = vst.msk [vmem:[#allocation3] sm:$0xf] %vm1141, %v1121
        %1143 = vst.msk [vmem:[#allocation3 + $0xc] sm:$0xf] %vm1141, %v1123
        %1144 = vst.msk [vmem:[#allocation3 + $0x18] sm:$0xf] %vm1141, %v1125
        %1145 = vst.msk [vmem:[#allocation3 + $0x24] sm:$0xf] %vm1141, %v1127
        %1146 = vst.msk [vmem:[#allocation3 + $0x30] sm:$0xf] %vm1141, %v1129
        %1147 = vst.msk [vmem:[#allocation3 + $0x3c] sm:$0xf] %vm1141, %v1131
        %1148 = vst.msk [vmem:[#allocation3 + $0x48] sm:$0xf] %vm1141, %v1133
        %v1149 = vld [vmem:[#allocation2 + $0x5] sm:$0xff]
        %v1150 = vld [vmem:[#allocation2 + $0xd] sm:$0xff]
        %v1151 = vld [vmem:[#allocation2 + $0x15] sm:$0xff]
        %v1152 = vld [vmem:[#allocation2 + $0x1d] sm:$0xff]
        %v1153 = vld [vmem:[#allocation2 + $0x25] sm:$0xff]
        %v1154 = vld [vmem:[#allocation2 + $0x2d] sm:$0xff]
        %v1155 = vld [vmem:[#allocation2 + $0x35] sm:$0xff]
        %v1156 = vpack.c.bf16 %v1149, %v1149
        %v1157 = vpack.c.bf16 %v1150, %v1150
        %v1158 = vpack.c.bf16 %v1151, %v1151
        %v1159 = vpack.c.bf16 %v1152, %v1152
        %v1160 = vpack.c.bf16 %v1153, %v1153
        %v1161 = vpack.c.bf16 %v1154, %v1154
        %v1162 = vpack.c.bf16 %v1155, %v1155
        %1170 = vrot.lane.b32.xlu0 %v1156, 80
        %v1171 = vpop.permute.xlu0 %1170
        %1172 = vrot.lane.b32.xlu0 %v1157, 80
        %v1173 = vpop.permute.xlu0 %1172
        %1174 = vrot.lane.b32.xlu0 %v1158, 80
        %v1175 = vpop.permute.xlu0 %1174
        %1176 = vrot.lane.b32.xlu0 %v1159, 80
        %v1177 = vpop.permute.xlu0 %1176
        %1178 = vrot.lane.b32.xlu0 %v1160, 80
        %v1179 = vpop.permute.xlu0 %1178
        %1180 = vrot.lane.b32.xlu0 %v1161, 80
        %v1181 = vpop.permute.xlu0 %1180
        %1182 = vrot.lane.b32.xlu0 %v1162, 80
        %v1183 = vpop.permute.xlu0 %1182
        %vm1191 = vcmask 781952
        %1192 = vst.msk [vmem:[#allocation3] sm:$0xf] %vm1191, %v1171
        %1193 = vst.msk [vmem:[#allocation3 + $0xc] sm:$0xf] %vm1191, %v1173
        %1194 = vst.msk [vmem:[#allocation3 + $0x18] sm:$0xf] %vm1191, %v1175
        %1195 = vst.msk [vmem:[#allocation3 + $0x24] sm:$0xf] %vm1191, %v1177
        %1196 = vst.msk [vmem:[#allocation3 + $0x30] sm:$0xf] %vm1191, %v1179
        %1197 = vst.msk [vmem:[#allocation3 + $0x3c] sm:$0xf] %vm1191, %v1181
        %1198 = vst.msk [vmem:[#allocation3 + $0x48] sm:$0xf] %vm1191, %v1183
        %v1199 = vld [vmem:[#allocation2 + $0x6] sm:$0xff]
        %v1200 = vld [vmem:[#allocation2 + $0xe] sm:$0xff]
        %v1201 = vld [vmem:[#allocation2 + $0x16] sm:$0xff]
        %v1202 = vld [vmem:[#allocation2 + $0x1e] sm:$0xff]
        %v1203 = vld [vmem:[#allocation2 + $0x26] sm:$0xff]
        %v1204 = vld [vmem:[#allocation2 + $0x2e] sm:$0xff]
        %v1205 = vld [vmem:[#allocation2 + $0x36] sm:$0xff]
        %v1206 = vpack.c.bf16 %v1199, %v1199
        %v1207 = vpack.c.bf16 %v1200, %v1200
        %v1208 = vpack.c.bf16 %v1201, %v1201
        %v1209 = vpack.c.bf16 %v1202, %v1202
        %v1210 = vpack.c.bf16 %v1203, %v1203
        %v1211 = vpack.c.bf16 %v1204, %v1204
        %v1212 = vpack.c.bf16 %v1205, %v1205
        %1220 = vrot.lane.b32.xlu0 %v1206, 96
        %v1221 = vpop.permute.xlu0 %1220
        %1222 = vrot.lane.b32.xlu0 %v1207, 96
        %v1223 = vpop.permute.xlu0 %1222
        %1224 = vrot.lane.b32.xlu0 %v1208, 96
        %v1225 = vpop.permute.xlu0 %1224
        %1226 = vrot.lane.b32.xlu0 %v1209, 96
        %v1227 = vpop.permute.xlu0 %1226
        %1228 = vrot.lane.b32.xlu0 %v1210, 96
        %v1229 = vpop.permute.xlu0 %1228
        %1230 = vrot.lane.b32.xlu0 %v1211, 96
        %v1231 = vpop.permute.xlu0 %1230
        %1232 = vrot.lane.b32.xlu0 %v1212, 96
        %v1233 = vpop.permute.xlu0 %1232
        %vm1241 = vcmask 913152
        %1242 = vst.msk [vmem:[#allocation3] sm:$0xf] %vm1241, %v1221
        %1243 = vst.msk [vmem:[#allocation3 + $0xc] sm:$0xf] %vm1241, %v1223
        %1244 = vst.msk [vmem:[#allocation3 + $0x18] sm:$0xf] %vm1241, %v1225
        %1245 = vst.msk [vmem:[#allocation3 + $0x24] sm:$0xf] %vm1241, %v1227
        %1246 = vst.msk [vmem:[#allocation3 + $0x30] sm:$0xf] %vm1241, %v1229
        %1247 = vst.msk [vmem:[#allocation3 + $0x3c] sm:$0xf] %vm1241, %v1231
        %1248 = vst.msk [vmem:[#allocation3 + $0x48] sm:$0xf] %vm1241, %v1233
        %v1249 = vld [vmem:[#allocation3] sm:$0xf]
        %v1250 = vld [vmem:[#allocation3 + $0xc] sm:$0xf]
        %v1251 = vld [vmem:[#allocation3 + $0x18] sm:$0xf]
        %v1252 = vld [vmem:[#allocation3 + $0x24] sm:$0xf]
        %v1253 = vld [vmem:[#allocation3 + $0x30] sm:$0xf]
        %v1254 = vld [vmem:[#allocation3 + $0x3c] sm:$0xf]
        %v1255 = vld [vmem:[#allocation3 + $0x48] sm:$0xf]
        %v1263 = vunpack.c.l.b16 %v1249
        %v1264 = vunpack.c.l.b16 %v1250
        %v1265 = vunpack.c.l.b16 %v1251
        %v1266 = vunpack.c.l.b16 %v1252
        %v1267 = vunpack.c.l.b16 %v1253
        %v1268 = vunpack.c.l.b16 %v1254
        %v1269 = vunpack.c.l.b16 %v1255
        %v1270 = vpack.c.b16 %v1264, %v1263
        %v1271 = vpack.c.b16 %v1266, %v1265
        %v1272 = vpack.c.b16 %v1268, %v1267
        %v1273 = vpack.c.b16 %v1269, %v1269
        %v1288 = vunpack.c.l.b16 %v902
        %v1289 = vunpack.c.l.b16 %v903
        %v1290 = vunpack.c.l.b16 %v904
        %v1291 = vunpack.c.l.b16 %v905
        %v1292 = vunpack.c.l.b16 %v906
        %v1293 = vunpack.c.l.b16 %v907
        %v1294 = vunpack.c.l.b16 %v908
        %v1295 = vunpack.c.l.b16 %v909
        %v1296 = vunpack.c.l.b16 %v910
        %v1297 = vunpack.c.l.b16 %v911
        %v1298 = vunpack.c.l.b16 %v912
        %v1299 = vunpack.c.l.b16 %v913
        %v1300 = vunpack.c.l.b16 %v914
        %v1301 = vunpack.c.l.b16 %v915
        %v1302 = vpack.c.b16 %v1289, %v1288
        %v1303 = vpack.c.b16 %v1291, %v1290
        %v1304 = vpack.c.b16 %v1293, %v1292
        %v1305 = vpack.c.b16 %v1295, %v1294
        %v1306 = vpack.c.b16 %v1297, %v1296
        %v1307 = vpack.c.b16 %v1299, %v1298
        %v1308 = vpack.c.b16 %v1301, %v1300
        %vm1316 = vcmask 916480
        %v1318 = vsel %vm1316, %v1270, 0
        %v1321 = vsel %vm1316, %v1271, 0
        %v1324 = vsel %vm1316, %v1272, 0
        %v1327 = vsel %vm1316, %v1273, 0
        %1329 = vmatpush.bf16.msra.mxu0 0
        %1330 = vmatpush.bf16.msra.mxu0 %v1308
        %1331 = vmatpush.bf16.msra.mxu0 %v1307
        %1332 = vmatpush.bf16.msra.mxu0 %v1306
        %1333 = vmatpush.bf16.msra.mxu0 %v1305
        %1334 = vmatpush.bf16.msra.mxu0 %v1304
        %1335 = vmatpush.bf16.msra.mxu0 %v1303
        %1336 = vmatpush.bf16.msra.mxu0 %v1302
        %1337 = vmatmul.bf16.gmra.mxu0 %v1318
        %v1338 = vpop.f32.mrf.mxu0
        %v1339 = vadd.f32 0.0, %v1338
        %v1340 = vpop.f32.mrf.mxu0
        %v1341 = vadd.f32 0.0, %v1340
        %1342 = vmatmul.bf16.gmra.mxu0 %v1321
        %v1343 = vpop.f32.mrf.mxu0
        %v1344 = vadd.f32 0.0, %v1343
        %v1345 = vpop.f32.mrf.mxu0
        %v1346 = vadd.f32 0.0, %v1345
        %1347 = vmatmul.bf16.gmra.mxu0 %v1324
        %v1348 = vpop.f32.mrf.mxu0
        %v1349 = vadd.f32 0.0, %v1348
        %v1350 = vpop.f32.mrf.mxu0
        %v1351 = vadd.f32 0.0, %v1350
        %1352 = vmatmul.bf16.gmra.mxu0 %v1327
        %v1353 = vpop.f32.mrf.mxu0
        %v1354 = vadd.f32 0.0, %v1353
        %v1355 = vpop.f32.mrf.mxu0
        %1356 = vdwg.mxu0
        %v1357 = vld [vmem:[#allocation9 + $0x2] sm:$0x1]
        %v1358 = vld [vmem:[#allocation9 + $0x3] sm:$0x1]
        %v1359 = vperm.slane %v1357, 0
        %v1360 = vmul.f32 %v1339, %v1359
        %v1361 = vmul.f32 %v1341, %v1359
        %v1362 = vmul.f32 %v1344, %v1359
        %v1363 = vmul.f32 %v1346, %v1359
        %v1364 = vmul.f32 %v1349, %v1359
        %v1365 = vmul.f32 %v1351, %v1359
        %v1366 = vmul.f32 %v1354, %v1359
        %v1367 = vperm.slane %v1358, 0
        %v1368 = vadd.f32 %v1360, %v1367
        %v1369 = vadd.f32 %v1361, %v1367
        %v1370 = vadd.f32 %v1362, %v1367
        %v1371 = vadd.f32 %v1363, %v1367
        %v1372 = vadd.f32 %v1364, %v1367
        %v1373 = vadd.f32 %v1365, %v1367
        %v1374 = vadd.f32 %v1366, %v1367
        %v1375 = vmax.f32 %v1368, 0.0
        %v1376 = vmax.f32 %v1369, 0.0
        %v1377 = vmax.f32 %v1370, 0.0
        %v1378 = vmax.f32 %v1371, 0.0
        %v1379 = vmax.f32 %v1372, 0.0
        %v1380 = vmax.f32 %v1373, 0.0
        %v1381 = vmax.f32 %v1374, 0.0
        %v1382 = vld [vmem:[%s2] sm:$0xf]
        %v1383 = vld [vmem:[%s2 + $0x4] sm:$0xf]
        %v1384 = vld [vmem:[%s2 + $0x8] sm:$0xf]
        %v1385 = vld [vmem:[%s2 + $0xc] sm:$0xf]
        %v1386 = vld [vmem:[%s2 + $0x10] sm:$0xf]
        %v1387 = vld [vmem:[%s2 + $0x14] sm:$0xf]
        %1388 = vst.msk [vmem:[#allocation2 + $0x1] sm:$0xff] %vm916, %v1375
        %1389 = vst.msk [vmem:[#allocation2 + $0x9] sm:$0xff] %vm916, %v1376
        %1390 = vst.msk [vmem:[#allocation2 + $0x11] sm:$0xff] %vm916, %v1377
        %1391 = vst.msk [vmem:[#allocation2 + $0x19] sm:$0xff] %vm916, %v1378
        %1392 = vst.msk [vmem:[#allocation2 + $0x21] sm:$0xff] %vm916, %v1379
        %1393 = vst.msk [vmem:[#allocation2 + $0x29] sm:$0xff] %vm916, %v1380
        %1394 = vst.msk [vmem:[#allocation2 + $0x31] sm:$0xff] %vm916, %v1381
        %1395 = vst.msk [vmem:[#allocation2 + $0x39] sm:$0x1] %vm926, 0.0
        %v1396 = vld [vmem:[#allocation2] sm:$0xff]
        %v1397 = vld [vmem:[#allocation2 + $0x8] sm:$0xff]
        %v1398 = vld [vmem:[#allocation2 + $0x10] sm:$0xff]
        %v1399 = vld [vmem:[#allocation2 + $0x18] sm:$0xff]
        %v1400 = vld [vmem:[#allocation2 + $0x20] sm:$0xff]
        %v1401 = vld [vmem:[#allocation2 + $0x28] sm:$0xff]
        %v1402 = vld [vmem:[#allocation2 + $0x30] sm:$0xff]
        %v1403 = vpack.c.bf16 %v1396, %v1396
        %v1404 = vpack.c.bf16 %v1397, %v1397
        %v1405 = vpack.c.bf16 %v1398, %v1398
        %v1406 = vpack.c.bf16 %v1399, %v1399
        %v1407 = vpack.c.bf16 %v1400, %v1400
        %v1408 = vpack.c.bf16 %v1401, %v1401
        %v1409 = vpack.c.bf16 %v1402, %v1402
        %1410 = vst.msk [vmem:[#allocation3] sm:$0xf] %vm924, %v1403
        %1411 = vst.msk [vmem:[#allocation3 + $0xc] sm:$0xf] %vm924, %v1404
        %1412 = vst.msk [vmem:[#allocation3 + $0x18] sm:$0xf] %vm924, %v1405
        %1413 = vst.msk [vmem:[#allocation3 + $0x24] sm:$0xf] %vm924, %v1406
        %1414 = vst.msk [vmem:[#allocation3 + $0x30] sm:$0xf] %vm924, %v1407
        %1415 = vst.msk [vmem:[#allocation3 + $0x3c] sm:$0xf] %vm924, %v1408
        %1416 = vst.msk [vmem:[#allocation3 + $0x48] sm:$0xf] %vm924, %v1409
        %v1417 = vld [vmem:[#allocation2 + $0x1] sm:$0xff]
        %v1418 = vld [vmem:[#allocation2 + $0x9] sm:$0xff]
        %v1419 = vld [vmem:[#allocation2 + $0x11] sm:$0xff]
        %v1420 = vld [vmem:[#allocation2 + $0x19] sm:$0xff]
        %v1421 = vld [vmem:[#allocation2 + $0x21] sm:$0xff]
        %v1422 = vld [vmem:[#allocation2 + $0x29] sm:$0xff]
        %v1423 = vld [vmem:[#allocation2 + $0x31] sm:$0xff]
        %v1424 = vpack.c.bf16 %v1417, %v1417
        %v1425 = vpack.c.bf16 %v1418, %v1418
        %v1426 = vpack.c.bf16 %v1419, %v1419
        %v1427 = vpack.c.bf16 %v1420, %v1420
        %v1428 = vpack.c.bf16 %v1421, %v1421
        %v1429 = vpack.c.bf16 %v1422, %v1422
        %v1430 = vpack.c.bf16 %v1423, %v1423
        %1438 = vrot.lane.b32.xlu0 %v1424, 16
        %v1439 = vpop.permute.xlu0 %1438
        %1440 = vrot.lane.b32.xlu0 %v1425, 16
        %v1441 = vpop.permute.xlu0 %1440
        %1442 = vrot.lane.b32.xlu0 %v1426, 16
        %v1443 = vpop.permute.xlu0 %1442
        %1444 = vrot.lane.b32.xlu0 %v1427, 16
        %v1445 = vpop.permute.xlu0 %1444
        %1446 = vrot.lane.b32.xlu0 %v1428, 16
        %v1447 = vpop.permute.xlu0 %1446
        %1448 = vrot.lane.b32.xlu0 %v1429, 16
        %v1449 = vpop.permute.xlu0 %1448
        %1450 = vrot.lane.b32.xlu0 %v1430, 16
        %v1451 = vpop.permute.xlu0 %1450
        %1459 = vst.msk [vmem:[#allocation3] sm:$0xf] %vm991, %v1439
        %1460 = vst.msk [vmem:[#allocation3 + $0xc] sm:$0xf] %vm991, %v1441
        %1461 = vst.msk [vmem:[#allocation3 + $0x18] sm:$0xf] %vm991, %v1443
        %1462 = vst.msk [vmem:[#allocation3 + $0x24] sm:$0xf] %vm991, %v1445
        %1463 = vst.msk [vmem:[#allocation3 + $0x30] sm:$0xf] %vm991, %v1447
        %1464 = vst.msk [vmem:[#allocation3 + $0x3c] sm:$0xf] %vm991, %v1449
        %1465 = vst.msk [vmem:[#allocation3 + $0x48] sm:$0xf] %vm991, %v1451
        %v1466 = vld [vmem:[#allocation2 + $0x2] sm:$0xff]
        %v1467 = vld [vmem:[#allocation2 + $0xa] sm:$0xff]
        %v1468 = vld [vmem:[#allocation2 + $0x12] sm:$0xff]
        %v1469 = vld [vmem:[#allocation2 + $0x1a] sm:$0xff]
        %v1470 = vld [vmem:[#allocation2 + $0x22] sm:$0xff]
        %v1471 = vld [vmem:[#allocation2 + $0x2a] sm:$0xff]
        %v1472 = vld [vmem:[#allocation2 + $0x32] sm:$0xff]
        %v1473 = vpack.c.bf16 %v1466, %v1466
        %v1474 = vpack.c.bf16 %v1467, %v1467
        %v1475 = vpack.c.bf16 %v1468, %v1468
        %v1476 = vpack.c.bf16 %v1469, %v1469
        %v1477 = vpack.c.bf16 %v1470, %v1470
        %v1478 = vpack.c.bf16 %v1471, %v1471
        %v1479 = vpack.c.bf16 %v1472, %v1472
        %1487 = vrot.lane.b32.xlu0 %v1473, 32
        %v1488 = vpop.permute.xlu0 %1487
        %1489 = vrot.lane.b32.xlu0 %v1474, 32
        %v1490 = vpop.permute.xlu0 %1489
        %1491 = vrot.lane.b32.xlu0 %v1475, 32
        %v1492 = vpop.permute.xlu0 %1491
        %1493 = vrot.lane.b32.xlu0 %v1476, 32
        %v1494 = vpop.permute.xlu0 %1493
        %1495 = vrot.lane.b32.xlu0 %v1477, 32
        %v1496 = vpop.permute.xlu0 %1495
        %1497 = vrot.lane.b32.xlu0 %v1478, 32
        %v1498 = vpop.permute.xlu0 %1497
        %1499 = vrot.lane.b32.xlu0 %v1479, 32
        %v1500 = vpop.permute.xlu0 %1499
        %1508 = vst.msk [vmem:[#allocation3] sm:$0xf] %vm1041, %v1488
        %1509 = vst.msk [vmem:[#allocation3 + $0xc] sm:$0xf] %vm1041, %v1490
        %1510 = vst.msk [vmem:[#allocation3 + $0x18] sm:$0xf] %vm1041, %v1492
        %1511 = vst.msk [vmem:[#allocation3 + $0x24] sm:$0xf] %vm1041, %v1494
        %1512 = vst.msk [vmem:[#allocation3 + $0x30] sm:$0xf] %vm1041, %v1496
        %1513 = vst.msk [vmem:[#allocation3 + $0x3c] sm:$0xf] %vm1041, %v1498
        %1514 = vst.msk [vmem:[#allocation3 + $0x48] sm:$0xf] %vm1041, %v1500
        %v1515 = vld [vmem:[#allocation3] sm:$0xf]
        %v1516 = vld [vmem:[#allocation3 + $0xc] sm:$0xf]
        %v1517 = vld [vmem:[#allocation3 + $0x18] sm:$0xf]
        %v1518 = vld [vmem:[#allocation3 + $0x24] sm:$0xf]
        %v1519 = vld [vmem:[#allocation3 + $0x30] sm:$0xf]
        %v1520 = vld [vmem:[#allocation3 + $0x3c] sm:$0xf]
        %v1521 = vld [vmem:[#allocation3 + $0x48] sm:$0xf]
        %v1529 = vunpack.c.l.b16 %v1515
        %v1530 = vunpack.c.l.b16 %v1516
        %v1531 = vunpack.c.l.b16 %v1517
        %v1532 = vunpack.c.l.b16 %v1518
        %v1533 = vunpack.c.l.b16 %v1519
        %v1534 = vunpack.c.l.b16 %v1520
        %v1535 = vunpack.c.l.b16 %v1521
        %v1536 = vpack.c.b16 %v1530, %v1529
        %v1537 = vpack.c.b16 %v1532, %v1531
        %v1538 = vpack.c.b16 %v1534, %v1533
        %v1539 = vpack.c.b16 %v1535, %v1535
        %v1546 = vunpack.c.l.b16 %v1382
        %v1547 = vunpack.c.l.b16 %v1383
        %v1548 = vunpack.c.l.b16 %v1384
        %v1549 = vunpack.c.l.b16 %v1385
        %v1550 = vunpack.c.l.b16 %v1386
        %v1551 = vunpack.c.l.b16 %v1387
        %v1552 = vpack.c.b16 %v1547, %v1546
        %v1553 = vpack.c.b16 %v1549, %v1548
        %v1554 = vpack.c.b16 %v1551, %v1550
        %vm1558 = vcmask 392192
        %v1560 = vsel %vm1558, %v1536, 0
        %v1563 = vsel %vm1558, %v1537, 0
        %v1566 = vsel %vm1558, %v1538, 0
        %v1569 = vsel %vm1558, %v1539, 0
        %1571 = vmatpush.bf16.msra.mxu0 0
        %1572 = vmatpush.bf16.msra.mxu0 0
        %1573 = vmatpush.bf16.msra.mxu0 0
        %1574 = vmatpush.bf16.msra.mxu0 0
        %1575 = vmatpush.bf16.msra.mxu0 0
        %1576 = vmatpush.bf16.msra.mxu0 %v1554
        %1577 = vmatpush.bf16.msra.mxu0 %v1553
        %1578 = vmatpush.bf16.msra.mxu0 %v1552
        %1579 = vmatmul.bf16.gmra.mxu0 %v1560
        %v1580 = vpop.f32.mrf.mxu0
        %v1581 = vadd.f32 0.0, %v1580
        %v1582 = vpop.f32.mrf.mxu0
        %v1583 = vadd.f32 0.0, %v1582
        %1584 = vmatmul.bf16.gmra.mxu0 %v1563
        %v1585 = vpop.f32.mrf.mxu0
        %v1586 = vadd.f32 0.0, %v1585
        %v1587 = vpop.f32.mrf.mxu0
        %v1588 = vadd.f32 0.0, %v1587
        %1589 = vmatmul.bf16.gmra.mxu0 %v1566
        %v1590 = vpop.f32.mrf.mxu0
        %v1591 = vadd.f32 0.0, %v1590
        %v1592 = vpop.f32.mrf.mxu0
        %v1593 = vadd.f32 0.0, %v1592
        %1594 = vmatmul.bf16.gmra.mxu0 %v1569
        %v1595 = vpop.f32.mrf.mxu0
        %v1596 = vadd.f32 0.0, %v1595
        %v1597 = vpop.f32.mrf.mxu0
        %1598 = vdwg.mxu0
        %v1599 = vld [vmem:[#allocation9 + $0x4] sm:$0x1]
        %v1600 = vld [vmem:[#allocation9 + $0x5] sm:$0x1]
        %v1601 = vperm.slane %v1599, 0
        %v1602 = vmul.f32 %v1581, %v1601
        %v1603 = vmul.f32 %v1583, %v1601
        %v1604 = vmul.f32 %v1586, %v1601
        %v1605 = vmul.f32 %v1588, %v1601
        %v1606 = vmul.f32 %v1591, %v1601
        %v1607 = vmul.f32 %v1593, %v1601
        %v1608 = vmul.f32 %v1596, %v1601
        %v1609 = vperm.slane %v1600, 0
        %v1610 = vadd.f32 %v1602, %v1609
        %v1611 = vadd.f32 %v1603, %v1609
        %v1612 = vadd.f32 %v1604, %v1609
        %v1613 = vadd.f32 %v1605, %v1609
        %v1614 = vadd.f32 %v1606, %v1609
        %v1615 = vadd.f32 %v1607, %v1609
        %v1616 = vadd.f32 %v1608, %v1609
        %v1617 = vmax.f32 %v1610, 0.0
        %v1618 = vmax.f32 %v1611, 0.0
        %v1619 = vmax.f32 %v1612, 0.0
        %v1620 = vmax.f32 %v1613, 0.0
        %v1621 = vmax.f32 %v1614, 0.0
        %v1622 = vmax.f32 %v1615, 0.0
        %v1623 = vmax.f32 %v1616, 0.0
        %v1624 = vld [vmem:[#allocation4] sm:$0xff]
        %v1625 = vld [vmem:[#allocation4 + $0x8] sm:$0xff]
        %v1626 = vld [vmem:[#allocation4 + $0x10] sm:$0xff]
        %v1627 = vld [vmem:[#allocation4 + $0x18] sm:$0xff]
        %v1628 = vld [vmem:[#allocation4 + $0x20] sm:$0xff]
        %v1629 = vld [vmem:[#allocation4 + $0x28] sm:$0xff]
        %v1630 = vld [vmem:[#allocation4 + $0x30] sm:$0xff]
        %v1631 = vld [vmem:[#allocation4 + $0x38] sm:$0xff]
        %v1632 = vld [vmem:[#allocation4 + $0x40] sm:$0xff]
        %v1633 = vld [vmem:[#allocation4 + $0x48] sm:$0xff]
        %v1634 = vld [vmem:[#allocation4 + $0x50] sm:$0xff]
        %v1635 = vld [vmem:[#allocation4 + $0x58] sm:$0xff]
        %v1636 = vld [vmem:[#allocation4 + $0x60] sm:$0xff]
        %v1637 = vld [vmem:[#allocation4 + $0x68] sm:$0xff]
        %v1638 = vld [vmem:[#allocation4 + $0x70] sm:$0xff]
        %v1639 = vld [vmem:[#allocation4 + $0x78] sm:$0xff]
        %v1640 = vld [vmem:[#allocation4 + $0x80] sm:$0xff]
        %v1641 = vld [vmem:[#allocation4 + $0x88] sm:$0xff]
        %v1642 = vld [vmem:[#allocation4 + $0x90] sm:$0xff]
        %v1643 = vld [vmem:[#allocation4 + $0x98] sm:$0xff]
        %v1644 = vld [vmem:[#allocation4 + $0xa0] sm:$0xff]
        %v1645 = vld [vmem:[#allocation4 + $0xa8] sm:$0xff]
        %v1646 = vld [vmem:[#allocation4 + $0xb0] sm:$0xff]
        %v1647 = vld [vmem:[#allocation4 + $0xb8] sm:$0xff]
        %vm1648 = vcmask 523264
        %1649 = vst.msk [vmem:[#allocation2 + $0x1] sm:$0xff] %vm1648, %v1617
        %1650 = vst.msk [vmem:[#allocation2 + $0x9] sm:$0xff] %vm1648, %v1618
        %1651 = vst.msk [vmem:[#allocation2 + $0x11] sm:$0xff] %vm1648, %v1619
        %1652 = vst.msk [vmem:[#allocation2 + $0x19] sm:$0xff] %vm1648, %v1620
        %1653 = vst.msk [vmem:[#allocation2 + $0x21] sm:$0xff] %vm1648, %v1621
        %1654 = vst.msk [vmem:[#allocation2 + $0x29] sm:$0xff] %vm1648, %v1622
        %1655 = vst.msk [vmem:[#allocation2 + $0x31] sm:$0xff] %vm1648, %v1623
        %vm1656 = vcmask 516096
        %1657 = vst.msk [vmem:[#allocation2 + $0x39] sm:$0x1] %vm1656, 0.0
        %v1658 = vld [vmem:[#allocation2] sm:$0xff]
        %v1659 = vld [vmem:[#allocation2 + $0x8] sm:$0xff]
        %v1660 = vld [vmem:[#allocation2 + $0x10] sm:$0xff]
        %v1661 = vld [vmem:[#allocation2 + $0x18] sm:$0xff]
        %v1662 = vld [vmem:[#allocation2 + $0x20] sm:$0xff]
        %v1663 = vld [vmem:[#allocation2 + $0x28] sm:$0xff]
        %v1664 = vld [vmem:[#allocation2 + $0x30] sm:$0xff]
        %v1665 = vpack.c.bf16 %v1658, %v1658
        %v1666 = vpack.c.bf16 %v1659, %v1659
        %v1667 = vpack.c.bf16 %v1660, %v1660
        %v1668 = vpack.c.bf16 %v1661, %v1661
        %v1669 = vpack.c.bf16 %v1662, %v1662
        %v1670 = vpack.c.bf16 %v1663, %v1663
        %v1671 = vpack.c.bf16 %v1664, %v1664
        %vm1672 = vcmask 519168
        %1673 = vst.msk [vmem:[#allocation3] sm:$0xf] %vm1672, %v1665
        %1674 = vst.msk [vmem:[#allocation3 + $0xc] sm:$0xf] %vm1672, %v1666
        %1675 = vst.msk [vmem:[#allocation3 + $0x18] sm:$0xf] %vm1672, %v1667
        %1676 = vst.msk [vmem:[#allocation3 + $0x24] sm:$0xf] %vm1672, %v1668
        %1677 = vst.msk [vmem:[#allocation3 + $0x30] sm:$0xf] %vm1672, %v1669
        %1678 = vst.msk [vmem:[#allocation3 + $0x3c] sm:$0xf] %vm1672, %v1670
        %1679 = vst.msk [vmem:[#allocation3 + $0x48] sm:$0xf] %vm1672, %v1671
        %v1680 = vld [vmem:[#allocation2 + $0x1] sm:$0xff]
        %v1681 = vld [vmem:[#allocation2 + $0x9] sm:$0xff]
        %v1682 = vld [vmem:[#allocation2 + $0x11] sm:$0xff]
        %v1683 = vld [vmem:[#allocation2 + $0x19] sm:$0xff]
        %v1684 = vld [vmem:[#allocation2 + $0x21] sm:$0xff]
        %v1685 = vld [vmem:[#allocation2 + $0x29] sm:$0xff]
        %v1686 = vld [vmem:[#allocation2 + $0x31] sm:$0xff]
        %v1687 = vpack.c.bf16 %v1680, %v1680
        %v1688 = vpack.c.bf16 %v1681, %v1681
        %v1689 = vpack.c.bf16 %v1682, %v1682
        %v1690 = vpack.c.bf16 %v1683, %v1683
        %v1691 = vpack.c.bf16 %v1684, %v1684
        %v1692 = vpack.c.bf16 %v1685, %v1685
        %v1693 = vpack.c.bf16 %v1686, %v1686
        %1701 = vrot.lane.b32.xlu0 %v1687, 64
        %v1702 = vpop.permute.xlu0 %1701
        %1703 = vrot.lane.b32.xlu0 %v1688, 64
        %v1704 = vpop.permute.xlu0 %1703
        %1705 = vrot.lane.b32.xlu0 %v1689, 64
        %v1706 = vpop.permute.xlu0 %1705
        %1707 = vrot.lane.b32.xlu0 %v1690, 64
        %v1708 = vpop.permute.xlu0 %1707
        %1709 = vrot.lane.b32.xlu0 %v1691, 64
        %v1710 = vpop.permute.xlu0 %1709
        %1711 = vrot.lane.b32.xlu0 %v1692, 64
        %v1712 = vpop.permute.xlu0 %1711
        %1713 = vrot.lane.b32.xlu0 %v1693, 64
        %v1714 = vpop.permute.xlu0 %1713
        %vm1722 = vcmask 1043968
        %1723 = vst.msk [vmem:[#allocation3] sm:$0xf] %vm1722, %v1702
        %1724 = vst.msk [vmem:[#allocation3 + $0xc] sm:$0xf] %vm1722, %v1704
        %1725 = vst.msk [vmem:[#allocation3 + $0x18] sm:$0xf] %vm1722, %v1706
        %1726 = vst.msk [vmem:[#allocation3 + $0x24] sm:$0xf] %vm1722, %v1708
        %1727 = vst.msk [vmem:[#allocation3 + $0x30] sm:$0xf] %vm1722, %v1710
        %1728 = vst.msk [vmem:[#allocation3 + $0x3c] sm:$0xf] %vm1722, %v1712
        %1729 = vst.msk [vmem:[#allocation3 + $0x48] sm:$0xf] %vm1722, %v1714
        %v1730 = vld [vmem:[#allocation2 + $0x2] sm:$0xff]
        %v1731 = vld [vmem:[#allocation2 + $0xa] sm:$0xff]
        %v1732 = vld [vmem:[#allocation2 + $0x12] sm:$0xff]
        %v1733 = vld [vmem:[#allocation2 + $0x1a] sm:$0xff]
        %v1734 = vld [vmem:[#allocation2 + $0x22] sm:$0xff]
        %v1735 = vld [vmem:[#allocation2 + $0x2a] sm:$0xff]
        %v1736 = vld [vmem:[#allocation2 + $0x32] sm:$0xff]
        %v1737 = vpack.c.bf16 %v1730, %v1730
        %v1738 = vpack.c.bf16 %v1731, %v1731
        %v1739 = vpack.c.bf16 %v1732, %v1732
        %v1740 = vpack.c.bf16 %v1733, %v1733
        %v1741 = vpack.c.bf16 %v1734, %v1734
        %v1742 = vpack.c.bf16 %v1735, %v1735
        %v1743 = vpack.c.bf16 %v1736, %v1736
        %1744 = vst.msk [vmem:[#allocation3 + $0x4] sm:$0xf] %vm1672, %v1737
        %1745 = vst.msk [vmem:[#allocation3 + $0x10] sm:$0xf] %vm1672, %v1738
        %1746 = vst.msk [vmem:[#allocation3 + $0x1c] sm:$0xf] %vm1672, %v1739
        %1747 = vst.msk [vmem:[#allocation3 + $0x28] sm:$0xf] %vm1672, %v1740
        %1748 = vst.msk [vmem:[#allocation3 + $0x34] sm:$0xf] %vm1672, %v1741
        %1749 = vst.msk [vmem:[#allocation3 + $0x40] sm:$0xf] %vm1672, %v1742
        %1750 = vst.msk [vmem:[#allocation3 + $0x4c] sm:$0xf] %vm1672, %v1743
        %v1751 = vld [vmem:[#allocation3] sm:$0xff]
        %v1752 = vld [vmem:[#allocation3 + $0xc] sm:$0xff]
        %v1753 = vld [vmem:[#allocation3 + $0x18] sm:$0xff]
        %v1754 = vld [vmem:[#allocation3 + $0x24] sm:$0xff]
        %v1755 = vld [vmem:[#allocation3 + $0x30] sm:$0xff]
        %v1756 = vld [vmem:[#allocation3 + $0x3c] sm:$0xff]
        %v1757 = vld [vmem:[#allocation3 + $0x48] sm:$0xff]
        %v1765 = vunpack.c.l.b16 %v1751
        %v1766 = vunpack.c.h.b16 %v1751
        %v1767 = vunpack.c.l.b16 %v1752
        %v1768 = vunpack.c.h.b16 %v1752
        %v1769 = vunpack.c.l.b16 %v1753
        %v1770 = vunpack.c.h.b16 %v1753
        %v1771 = vunpack.c.l.b16 %v1754
        %v1772 = vunpack.c.h.b16 %v1754
        %v1773 = vunpack.c.l.b16 %v1755
        %v1774 = vunpack.c.h.b16 %v1755
        %v1775 = vunpack.c.l.b16 %v1756
        %v1776 = vunpack.c.h.b16 %v1756
        %v1777 = vunpack.c.l.b16 %v1757
        %v1778 = vunpack.c.h.b16 %v1757
        %v1779 = vpack.c.b16 %v1767, %v1765
        %v1780 = vpack.c.b16 %v1768, %v1766
        %v1781 = vpack.c.b16 %v1771, %v1769
        %v1782 = vpack.c.b16 %v1772, %v1770
        %v1783 = vpack.c.b16 %v1775, %v1773
        %v1784 = vpack.c.b16 %v1776, %v1774
        %v1785 = vpack.c.b16 %v1777, %v1777
        %v1786 = vpack.c.b16 %v1778, %v1778
        %v1815 = vunpack.c.l.b16 %v1624
        %v1816 = vunpack.c.h.b16 %v1624
        %v1817 = vunpack.c.l.b16 %v1625
        %v1818 = vunpack.c.h.b16 %v1625
        %v1819 = vunpack.c.l.b16 %v1626
        %v1820 = vunpack.c.h.b16 %v1626
        %v1821 = vunpack.c.l.b16 %v1627
        %v1822 = vunpack.c.h.b16 %v1627
        %v1823 = vunpack.c.l.b16 %v1628
        %v1824 = vunpack.c.h.b16 %v1628
        %v1825 = vunpack.c.l.b16 %v1629
        %v1826 = vunpack.c.h.b16 %v1629
        %v1827 = vunpack.c.l.b16 %v1630
        %v1828 = vunpack.c.h.b16 %v1630
        %v1829 = vunpack.c.l.b16 %v1631
        %v1830 = vunpack.c.h.b16 %v1631
        %v1831 = vunpack.c.l.b16 %v1632
        %v1832 = vunpack.c.h.b16 %v1632
        %v1833 = vunpack.c.l.b16 %v1633
        %v1834 = vunpack.c.h.b16 %v1633
        %v1835 = vunpack.c.l.b16 %v1634
        %v1836 = vunpack.c.h.b16 %v1634
        %v1837 = vunpack.c.l.b16 %v1635
        %v1838 = vunpack.c.h.b16 %v1635
        %v1839 = vunpack.c.l.b16 %v1636
        %v1840 = vunpack.c.h.b16 %v1636
        %v1841 = vunpack.c.l.b16 %v1637
        %v1842 = vunpack.c.h.b16 %v1637
        %v1843 = vunpack.c.l.b16 %v1638
        %v1844 = vunpack.c.h.b16 %v1638
        %v1845 = vunpack.c.l.b16 %v1639
        %v1846 = vunpack.c.h.b16 %v1639
        %v1847 = vunpack.c.l.b16 %v1640
        %v1848 = vunpack.c.h.b16 %v1640
        %v1849 = vunpack.c.l.b16 %v1641
        %v1850 = vunpack.c.h.b16 %v1641
        %v1851 = vunpack.c.l.b16 %v1642
        %v1852 = vunpack.c.h.b16 %v1642
        %v1853 = vunpack.c.l.b16 %v1643
        %v1854 = vunpack.c.h.b16 %v1643
        %v1855 = vunpack.c.l.b16 %v1644
        %v1856 = vunpack.c.h.b16 %v1644
        %v1857 = vunpack.c.l.b16 %v1645
        %v1858 = vunpack.c.h.b16 %v1645
        %v1859 = vunpack.c.l.b16 %v1646
        %v1860 = vunpack.c.h.b16 %v1646
        %v1861 = vunpack.c.l.b16 %v1647
        %v1862 = vunpack.c.h.b16 %v1647
        %v1863 = vpack.c.b16 %v1817, %v1815
        %v1864 = vpack.c.b16 %v1818, %v1816
        %v1865 = vpack.c.b16 %v1821, %v1819
        %v1866 = vpack.c.b16 %v1822, %v1820
        %v1867 = vpack.c.b16 %v1825, %v1823
        %v1868 = vpack.c.b16 %v1826, %v1824
        %v1869 = vpack.c.b16 %v1829, %v1827
        %v1870 = vpack.c.b16 %v1830, %v1828
        %v1871 = vpack.c.b16 %v1833, %v1831
        %v1872 = vpack.c.b16 %v1834, %v1832
        %v1873 = vpack.c.b16 %v1837, %v1835
        %v1874 = vpack.c.b16 %v1838, %v1836
        %v1875 = vpack.c.b16 %v1841, %v1839
        %v1876 = vpack.c.b16 %v1842, %v1840
        %v1877 = vpack.c.b16 %v1845, %v1843
        %v1878 = vpack.c.b16 %v1846, %v1844
        %v1879 = vpack.c.b16 %v1849, %v1847
        %v1880 = vpack.c.b16 %v1850, %v1848
        %v1881 = vpack.c.b16 %v1853, %v1851
        %v1882 = vpack.c.b16 %v1854, %v1852
        %v1883 = vpack.c.b16 %v1857, %v1855
        %v1884 = vpack.c.b16 %v1858, %v1856
        %v1885 = vpack.c.b16 %v1861, %v1859
        %v1886 = vpack.c.b16 %v1862, %v1860
        %v1912 = vsel %vm1648, %v1780, 0
        %v1915 = vsel %vm1648, %v1782, 0
        %v1918 = vsel %vm1648, %v1784, 0
        %v1921 = vsel %vm1648, %v1786, 0
        %1923 = vmatpush.bf16.msra.mxu0 %v1877
        %1924 = vmatpush.bf16.msra.mxu0 %v1875
        %1925 = vmatpush.bf16.msra.mxu0 %v1873
        %1926 = vmatpush.bf16.msra.mxu0 %v1871
        %1927 = vmatpush.bf16.msra.mxu0 %v1869
        %1928 = vmatpush.bf16.msra.mxu0 %v1867
        %1929 = vmatpush.bf16.msra.mxu0 %v1865
        %1930 = vmatpush.bf16.msra.mxu0 %v1863
        %1931 = vmatmul.bf16.gmra.mxu0 %v1779
        %v1932 = vpop.f32.mrf.mxu0
        %v1933 = vadd.f32 0.0, %v1932
        %v1934 = vpop.f32.mrf.mxu0
        %v1935 = vadd.f32 0.0, %v1934
        %1936 = vmatmul.bf16.gmra.mxu0 %v1781
        %v1937 = vpop.f32.mrf.mxu0
        %v1938 = vadd.f32 0.0, %v1937
        %v1939 = vpop.f32.mrf.mxu0
        %v1940 = vadd.f32 0.0, %v1939
        %1941 = vmatmul.bf16.gmra.mxu0 %v1783
        %v1942 = vpop.f32.mrf.mxu0
        %v1943 = vadd.f32 0.0, %v1942
        %v1944 = vpop.f32.mrf.mxu0
        %v1945 = vadd.f32 0.0, %v1944
        %1946 = vmatmul.bf16.gmra.mxu0 %v1785
        %v1947 = vpop.f32.mrf.mxu0
        %v1948 = vadd.f32 0.0, %v1947
        %v1949 = vpop.f32.mrf.mxu0
        %1950 = vdwg.mxu0
        %1951 = vmatpush.bf16.msra.mxu0 0
        %1952 = vmatpush.bf16.msra.mxu0 0
        %1953 = vmatpush.bf16.msra.mxu0 0
        %1954 = vmatpush.bf16.msra.mxu0 0
        %1955 = vmatpush.bf16.msra.mxu0 %v1885
        %1956 = vmatpush.bf16.msra.mxu0 %v1883
        %1957 = vmatpush.bf16.msra.mxu0 %v1881
        %1958 = vmatpush.bf16.msra.mxu0 %v1879
        %1959 = vmatmul.bf16.gmra.mxu0 %v1912
        %v1960 = vpop.f32.mrf.mxu0
        %v1961 = vadd.f32 %v1933, %v1960
        %v1962 = vpop.f32.mrf.mxu0
        %v1963 = vadd.f32 %v1935, %v1962
        %1964 = vmatmul.bf16.gmra.mxu0 %v1915
        %v1965 = vpop.f32.mrf.mxu0
        %v1966 = vadd.f32 %v1938, %v1965
        %v1967 = vpop.f32.mrf.mxu0
        %v1968 = vadd.f32 %v1940, %v1967
        %1969 = vmatmul.bf16.gmra.mxu0 %v1918
        %v1970 = vpop.f32.mrf.mxu0
        %v1971 = vadd.f32 %v1943, %v1970
        %v1972 = vpop.f32.mrf.mxu0
        %v1973 = vadd.f32 %v1945, %v1972
        %1974 = vmatmul.bf16.gmra.mxu0 %v1921
        %v1975 = vpop.f32.mrf.mxu0
        %v1976 = vadd.f32 %v1948, %v1975
        %v1977 = vpop.f32.mrf.mxu0
        %1978 = vdwg.mxu0
        %1979 = vmatpush.bf16.msra.mxu0 %v1878
        %1980 = vmatpush.bf16.msra.mxu0 %v1876
        %1981 = vmatpush.bf16.msra.mxu0 %v1874
        %1982 = vmatpush.bf16.msra.mxu0 %v1872
        %1983 = vmatpush.bf16.msra.mxu0 %v1870
        %1984 = vmatpush.bf16.msra.mxu0 %v1868
        %1985 = vmatpush.bf16.msra.mxu0 %v1866
        %1986 = vmatpush.bf16.msra.mxu0 %v1864
        %1987 = vmatmul.bf16.gmra.mxu0 %v1779
        %v1988 = vpop.f32.mrf.mxu0
        %v1989 = vadd.f32 0.0, %v1988
        %v1990 = vpop.f32.mrf.mxu0
        %v1991 = vadd.f32 0.0, %v1990
        %1992 = vmatmul.bf16.gmra.mxu0 %v1781
        %v1993 = vpop.f32.mrf.mxu0
        %v1994 = vadd.f32 0.0, %v1993
        %v1995 = vpop.f32.mrf.mxu0
        %v1996 = vadd.f32 0.0, %v1995
        %1997 = vmatmul.bf16.gmra.mxu0 %v1783
        %v1998 = vpop.f32.mrf.mxu0
        %v1999 = vadd.f32 0.0, %v1998
        %v2000 = vpop.f32.mrf.mxu0
        %v2001 = vadd.f32 0.0, %v2000
        %2002 = vmatmul.bf16.gmra.mxu0 %v1785
        %v2003 = vpop.f32.mrf.mxu0
        %v2004 = vadd.f32 0.0, %v2003
        %v2005 = vpop.f32.mrf.mxu0
        %2006 = vdwg.mxu0
        %2007 = vmatpush.bf16.msra.mxu0 0
        %2008 = vmatpush.bf16.msra.mxu0 0
        %2009 = vmatpush.bf16.msra.mxu0 0
        %2010 = vmatpush.bf16.msra.mxu0 0
        %2011 = vmatpush.bf16.msra.mxu0 %v1886
        %2012 = vmatpush.bf16.msra.mxu0 %v1884
        %2013 = vmatpush.bf16.msra.mxu0 %v1882
        %2014 = vmatpush.bf16.msra.mxu0 %v1880
        %2015 = vmatmul.bf16.gmra.mxu0 %v1912
        %v2016 = vpop.f32.mrf.mxu0
        %v2017 = vadd.f32 %v1989, %v2016
        %v2018 = vpop.f32.mrf.mxu0
        %v2019 = vadd.f32 %v1991, %v2018
        %2020 = vmatmul.bf16.gmra.mxu0 %v1915
        %v2021 = vpop.f32.mrf.mxu0
        %v2022 = vadd.f32 %v1994, %v2021
        %v2023 = vpop.f32.mrf.mxu0
        %v2024 = vadd.f32 %v1996, %v2023
        %2025 = vmatmul.bf16.gmra.mxu0 %v1918
        %v2026 = vpop.f32.mrf.mxu0
        %v2027 = vadd.f32 %v1999, %v2026
        %v2028 = vpop.f32.mrf.mxu0
        %v2029 = vadd.f32 %v2001, %v2028
        %2030 = vmatmul.bf16.gmra.mxu0 %v1921
        %v2031 = vpop.f32.mrf.mxu0
        %v2032 = vadd.f32 %v2004, %v2031
        %v2033 = vpop.f32.mrf.mxu0
        %2034 = vdwg.mxu0
        %s2035 = scalar_lea.vmem [#allocation9], 6
        %v2036 = vld [vmem:[%s2035] ss:$2 sm:$0x3]
        %s2037 = scalar_lea.vmem [#allocation9], 7
        %v2038 = vld [vmem:[%s2037] ss:$2 sm:$0x3]
        %v2040 = vperm.slane %v2036, 0
        %v2041 = vperm.slane %v2036, 1
        %v2044 = vmul.f32 %v1961, %v2040
        %v2045 = vmul.f32 %v2017, %v2041
        %v2046 = vmul.f32 %v1963, %v2040
        %v2047 = vmul.f32 %v2019, %v2041
        %v2048 = vmul.f32 %v1966, %v2040
        %v2049 = vmul.f32 %v2022, %v2041
        %v2050 = vmul.f32 %v1968, %v2040
        %v2051 = vmul.f32 %v2024, %v2041
        %v2052 = vmul.f32 %v1971, %v2040
        %v2053 = vmul.f32 %v2027, %v2041
        %v2054 = vmul.f32 %v1973, %v2040
        %v2055 = vmul.f32 %v2029, %v2041
        %v2056 = vmul.f32 %v1976, %v2040
        %v2057 = vmul.f32 %v2032, %v2041
        %v2059 = vperm.slane %v2038, 0
        %v2060 = vperm.slane %v2038, 1
        %v2063 = vadd.f32 %v2044, %v2059
        %v2064 = vadd.f32 %v2045, %v2060
        %v2065 = vadd.f32 %v2046, %v2059
        %v2066 = vadd.f32 %v2047, %v2060
        %v2067 = vadd.f32 %v2048, %v2059
        %v2068 = vadd.f32 %v2049, %v2060
        %v2069 = vadd.f32 %v2050, %v2059
        %v2070 = vadd.f32 %v2051, %v2060
        %v2071 = vadd.f32 %v2052, %v2059
        %v2072 = vadd.f32 %v2053, %v2060
        %v2073 = vadd.f32 %v2054, %v2059
        %v2074 = vadd.f32 %v2055, %v2060
        %v2075 = vadd.f32 %v2056, %v2059
        %v2076 = vadd.f32 %v2057, %v2060
        %v2077 = vmax.f32 %v2063, 0.0
        %v2078 = vmax.f32 %v2064, 0.0
        %v2079 = vmax.f32 %v2065, 0.0
        %v2080 = vmax.f32 %v2066, 0.0
        %v2081 = vmax.f32 %v2067, 0.0
        %v2082 = vmax.f32 %v2068, 0.0
        %v2083 = vmax.f32 %v2069, 0.0
        %v2084 = vmax.f32 %v2070, 0.0
        %v2085 = vmax.f32 %v2071, 0.0
        %v2086 = vmax.f32 %v2072, 0.0
        %v2087 = vmax.f32 %v2073, 0.0
        %v2088 = vmax.f32 %v2074, 0.0
        %v2089 = vmax.f32 %v2075, 0.0
        %v2090 = vmax.f32 %v2076, 0.0
        %v2091 = vld [vmem:[%s4] sm:$0xff]
        %v2092 = vld [vmem:[%s4 + $0x8] sm:$0xff]
        %v2093 = vld [vmem:[%s4 + $0x10] sm:$0xff]
        %v2094 = vld [vmem:[%s4 + $0x18] sm:$0xff]
        %v2095 = vld [vmem:[%s4 + $0x20] sm:$0xff]
        %v2096 = vld [vmem:[%s4 + $0x28] sm:$0xff]
        %v2097 = vld [vmem:[%s4 + $0x30] sm:$0xff]
        %v2098 = vld [vmem:[%s4 + $0x38] sm:$0xff]
        %v2099 = vld [vmem:[%s4 + $0x40] sm:$0xff]
        %v2100 = vld [vmem:[%s4 + $0x48] sm:$0xff]
        %v2101 = vld [vmem:[%s4 + $0x50] sm:$0xff]
        %v2102 = vld [vmem:[%s4 + $0x58] sm:$0xff]
        %v2103 = vld [vmem:[%s4 + $0x60] sm:$0xff]
        %v2104 = vld [vmem:[%s4 + $0x68] sm:$0xff]
        %v2105 = vld [vmem:[%s4 + $0x70] sm:$0xff]
        %v2106 = vld [vmem:[%s4 + $0x78] sm:$0xff]
        %v2107 = vld [vmem:[%s4 + $0x80] sm:$0xff]
        %v2108 = vld [vmem:[%s4 + $0x88] sm:$0xff]
        %v2109 = vld [vmem:[%s4 + $0x90] sm:$0xff]
        %v2110 = vld [vmem:[%s4 + $0x98] sm:$0xff]
        %v2111 = vld [vmem:[%s4 + $0xa0] sm:$0xff]
        %v2112 = vld [vmem:[%s4 + $0xa8] sm:$0xff]
        %v2113 = vld [vmem:[%s4 + $0xb0] sm:$0xff]
        %v2114 = vld [vmem:[%s4 + $0xb8] sm:$0xff]
        %v2115 = vld [vmem:[%s4 + $0xc0] sm:$0xff]
        %v2116 = vld [vmem:[%s4 + $0xc8] sm:$0xff]
        %v2117 = vld [vmem:[%s4 + $0xd0] sm:$0xff]
        %v2118 = vld [vmem:[%s4 + $0xd8] sm:$0xff]
        %v2119 = vld [vmem:[%s4 + $0xe0] sm:$0xff]
        %v2120 = vld [vmem:[%s4 + $0xe8] sm:$0xff]
        %v2121 = vld [vmem:[%s4 + $0xf0] sm:$0xff]
        %v2122 = vld [vmem:[%s4 + $0xf8] sm:$0xff]
        %v2123 = vld [vmem:[#allocation9 + $0x11] sm:$0x1]
        %v2124 = vld [vmem:[#allocation6] sm:$0xff]
        %v2125 = vld [vmem:[#allocation6 + $0x8] sm:$0xff]
        %v2126 = vld [vmem:[#allocation6 + $0x10] sm:$0xff]
        %v2127 = vld [vmem:[#allocation6 + $0x18] sm:$0xff]
        %s2128 = scalar_lea.vmem [#allocation9], 19
        %v2129 = vld [vmem:[%s2128] ss:$2 sm:$0x3]
        %v2130 = vadd.f32 %v2077, %v2079
        %v2131 = vadd.f32 %v2130, %v2081
        %v2132 = vadd.f32 %v2131, %v2083
        %v2133 = vadd.f32 %v2132, %v2085
        %v2134 = vadd.f32 %v2133, %v2087
        %v2135 = vadd.f32 %v2134, %v2089
        %v2136 = vrot.slane %v2135, 4
        %v2137 = vadd.f32 %v2135, %v2136
        %v2138 = vrot.slane %v2137, 2
        %v2139 = vadd.f32 %v2137, %v2138
        %v2140 = vrot.slane %v2139, 1
        %v2141 = vadd.f32 %v2139, %v2140
        %v2142 = vadd.f32 %v2078, %v2080
        %v2143 = vadd.f32 %v2142, %v2082
        %v2144 = vadd.f32 %v2143, %v2084
        %v2145 = vadd.f32 %v2144, %v2086
        %v2146 = vadd.f32 %v2145, %v2088
        %v2147 = vadd.f32 %v2146, %v2090
        %v2148 = vrot.slane %v2147, 4
        %v2149 = vadd.f32 %v2147, %v2148
        %v2150 = vrot.slane %v2149, 2
        %v2151 = vadd.f32 %v2149, %v2150
        %v2152 = vrot.slane %v2151, 1
        %v2153 = vadd.f32 %v2151, %v2152
        %v2154 = vmul.f32 %v2141, 0.017857144
        %v2155 = vmul.f32 %v2153, 0.017857144
        %2156 = vmatpush.msra.mxu0 %v2106
        %2157 = vmatpush.msra.mxu0 %v2105
        %2158 = vmatpush.msra.mxu0 %v2104
        %2159 = vmatpush.msra.mxu0 %v2103
        %2160 = vmatpush.msra.mxu0 %v2102
        %2161 = vmatpush.msra.mxu0 %v2101
        %2162 = vmatpush.msra.mxu0 %v2100
        %2163 = vmatpush.msra.mxu0 %v2099
        %2164 = vmatpush.msra.mxu0 %v2098
        %2165 = vmatpush.msra.mxu0 %v2097
        %2166 = vmatpush.msra.mxu0 %v2096
        %2167 = vmatpush.msra.mxu0 %v2095
        %2168 = vmatpush.msra.mxu0 %v2094
        %2169 = vmatpush.msra.mxu0 %v2093
        %2170 = vmatpush.msra.mxu0 %v2092
        %2171 = vmatpush.msra.mxu0 %v2091
        %2172 = vmatmul.f32.gmra.mxu0 %v2154
        %v2173 = vpop.f32.mrf.mxu0
        %v2174 = vadd.f32 %v2123, %v2173
        %2175 = vdwg.mxu0
        %2176 = vmatpush.msra.mxu0 %v2122
        %2177 = vmatpush.msra.mxu0 %v2121
        %2178 = vmatpush.msra.mxu0 %v2120
        %2179 = vmatpush.msra.mxu0 %v2119
        %2180 = vmatpush.msra.mxu0 %v2118
        %2181 = vmatpush.msra.mxu0 %v2117
        %2182 = vmatpush.msra.mxu0 %v2116
        %2183 = vmatpush.msra.mxu0 %v2115
        %2184 = vmatpush.msra.mxu0 %v2114
        %2185 = vmatpush.msra.mxu0 %v2113
        %2186 = vmatpush.msra.mxu0 %v2112
        %2187 = vmatpush.msra.mxu0 %v2111
        %2188 = vmatpush.msra.mxu0 %v2110
        %2189 = vmatpush.msra.mxu0 %v2109
        %2190 = vmatpush.msra.mxu0 %v2108
        %2191 = vmatpush.msra.mxu0 %v2107
        %2192 = vmatmul.f32.gmra.mxu0 %v2155
        %v2193 = vpop.f32.mrf.mxu0
        %v2194 = vadd.f32 %v2174, %v2193
        %2195 = vdwg.mxu0
        %v2196 = vmax.f32 %v2194, 0.0
        %v2198 = vperm.slane %v2129, 0
        %v2199 = vperm.slane %v2129, 1
        %v2203 = vsel %vm916, %v2196, 0
        %2205 = vmatpush.msra.mxu0 0.0
        %2206 = vmatpush.msra.mxu0 0.0
        %2207 = vmatpush.msra.mxu0 0.0
        %2208 = vmatpush.msra.mxu0 0.0
        %2209 = vmatpush.msra.mxu0 0.0
        %2210 = vmatpush.msra.mxu0 0.0
        %2211 = vmatpush.msra.mxu0 0.0
        %2212 = vmatpush.msra.mxu0 0.0
        %2213 = vmatpush.msra.mxu0 0.0
        %2214 = vmatpush.msra.mxu0 0.0
        %2215 = vmatpush.msra.mxu0 0.0
        %2216 = vmatpush.msra.mxu0 0.0
        %2217 = vmatpush.msra.mxu0 0.0
        %2218 = vmatpush.msra.mxu0 0.0
        %2219 = vmatpush.msra.mxu0 %v2126
        %2220 = vmatpush.msra.mxu0 %v2124
        %2221 = vmatmul.f32.gmra.mxu0 %v2203
        %v2222 = vpop.f32.mrf.mxu0
        %v2223 = vadd.f32 %v2198, %v2222
        %2224 = vdwg.mxu0
        %2225 = vmatpush.msra.mxu0 0.0
        %2226 = vmatpush.msra.mxu0 0.0
        %2227 = vmatpush.msra.mxu0 0.0
        %2228 = vmatpush.msra.mxu0 0.0
        %2229 = vmatpush.msra.mxu0 0.0
        %2230 = vmatpush.msra.mxu0 0.0
        %2231 = vmatpush.msra.mxu0 0.0
        %2232 = vmatpush.msra.mxu0 0.0
        %2233 = vmatpush.msra.mxu0 0.0
        %2234 = vmatpush.msra.mxu0 0.0
        %2235 = vmatpush.msra.mxu0 0.0
        %2236 = vmatpush.msra.mxu0 0.0
        %2237 = vmatpush.msra.mxu0 0.0
        %2238 = vmatpush.msra.mxu0 0.0
        %2239 = vmatpush.msra.mxu0 %v2127
        %2240 = vmatpush.msra.mxu0 %v2125
        %2241 = vmatmul.f32.gmra.mxu0 %v2203
        %v2242 = vpop.f32.mrf.mxu0
        %v2243 = vadd.f32 %v2199, %v2242
        %2244 = vdwg.mxu0
        %v2245 = vxor.u32 %v2223, 2147483648
        %v2246 = vxor.u32 %v2243, 2147483648
        %v2247 = vmul.f32 %v2245, 1.442695
        %v2248 = vpow.pop %v2247
        %v2249 = vmul.f32 %v2246, 1.442695
        %v2250 = vpow.pop %v2249
        %v2251 = vadd.f32 %v2248, 1.0
        %v2252 = vadd.f32 %v2250, 1.0
        %v2253 = vrcp.pop %v2251
        %v2254 = vmul.f32 %v2251, %v2253
        %v2255 = vsub.f32 1.0, %v2254
        %v2256 = vmul.f32 %v2253, %v2255
        %v2257 = vadd.f32 %v2253, %v2256
        %vm2258 = vweird.f32 %v2251
        %vm2259 = vweird.f32 %v2253
        %vm2260 = vmor %vm2258, %vm2259
        %v2261 = vsel %vm2260, %v2253, %v2257
        %v2262 = vand.u32 2147483647, %v2251
        %vm2263 = vcmp.eq.f32.partialorder %v2262, 8.507059e+37
        %v2264 = vand.u32 %v2251, 2147483648
        %v2265 = vor.u32 1.1754944e-38, %v2264
        %v2266 = vsel %vm2263, %v2265, %v2261
        %v2267 = vmul.f32 1.0, %v2266
        %v2268 = vrcp.pop %v2252
        %v2269 = vmul.f32 %v2252, %v2268
        %v2270 = vsub.f32 1.0, %v2269
        %v2271 = vmul.f32 %v2268, %v2270
        %v2272 = vadd.f32 %v2268, %v2271
        %vm2273 = vweird.f32 %v2252
        %vm2274 = vweird.f32 %v2268
        %vm2275 = vmor %vm2273, %vm2274
        %v2276 = vsel %vm2275, %v2268, %v2272
        %v2277 = vand.u32 2147483647, %v2252
        %vm2278 = vcmp.eq.f32.partialorder %v2277, 8.507059e+37
        %v2279 = vand.u32 %v2252, 2147483648
        %v2280 = vor.u32 1.1754944e-38, %v2279
        %v2281 = vsel %vm2278, %v2280, %v2276
        %v2282 = vmul.f32 1.0, %v2281
        %v2283 = vperm.slane %v2267, 0
        %v2284 = vperm.slane %v2282, 0
        %v2285 = vmul.f32 %v2077, %v2283
        %v2286 = vmul.f32 %v2078, %v2284
        %v2287 = vmul.f32 %v2079, %v2283
        %v2288 = vmul.f32 %v2080, %v2284
        %v2289 = vmul.f32 %v2081, %v2283
        %v2290 = vmul.f32 %v2082, %v2284
        %v2291 = vmul.f32 %v2083, %v2283
        %v2292 = vmul.f32 %v2084, %v2284
        %v2293 = vmul.f32 %v2085, %v2283
        %v2294 = vmul.f32 %v2086, %v2284
        %v2295 = vmul.f32 %v2087, %v2283
        %v2296 = vmul.f32 %v2088, %v2284
        %v2297 = vmul.f32 %v2089, %v2283
        %v2298 = vmul.f32 %v2090, %v2284
        %v2299 = vmax.f32 %v2285, %v2289
        %v2300 = vmax.f32 %v2287, %v2291
        %v2301 = vmax.f32 %v2299, %v2293
        %v2302 = vmax.f32 %v2300, %v2295
        %v2303 = vmax.f32 %v2301, %v2297
        %v2304 = vmax.f32 %v2303, %v2302
        %v2305 = vrot.slane %v2304, 4
        %v2306 = vmax.f32 %v2304, %v2305
        %v2307 = vrot.slane %v2306, 2
        %v2308 = vmax.f32 %v2306, %v2307
        %v2309 = vrot.slane %v2308, 1
        %v2310 = vmax.f32 %v2308, %v2309
        %v2311 = vmax.f32 %v2286, %v2290
        %v2312 = vmax.f32 %v2288, %v2292
        %v2313 = vmax.f32 %v2311, %v2294
        %v2314 = vmax.f32 %v2312, %v2296
        %v2315 = vmax.f32 %v2313, %v2298
        %v2316 = vmax.f32 %v2315, %v2314
        %v2317 = vrot.slane %v2316, 4
        %v2318 = vmax.f32 %v2316, %v2317
        %v2319 = vrot.slane %v2318, 2
        %v2320 = vmax.f32 %v2318, %v2319
        %v2321 = vrot.slane %v2320, 1
        %v2322 = vmax.f32 %v2320, %v2321
        %v2325 = vrot.slane %v2322, 7
        %vm2326 = vcmask 1040384
        %v2327 = vsel %vm2326, %v2310, %v2325
        %v2329 = vlaneseq
        %vm2330 = vcmp.ge.s32.totalorder %v2329, 0
        %vm2331 = vcmp.lt.s32.totalorder %v2329, 256
        %vm2332 = vmand %vm2330, %vm2331
        %2333 = vst.msk [vmem:[%s395] sm:$0x3] %vm2332, %v2327
        %v2334 = vld [vmem:[%s2 + $0x18] sm:$0xf]
        %v2335 = vld [vmem:[%s2 + $0x1c] sm:$0xf]
        %v2336 = vld [vmem:[%s2 + $0x20] sm:$0xf]
        %v2337 = vld [vmem:[%s2 + $0x24] sm:$0xf]
        %v2338 = vld [vmem:[%s2 + $0x28] sm:$0xf]
        %v2339 = vld [vmem:[%s2 + $0x2c] sm:$0xf]
        %v2340 = vld [vmem:[%s2 + $0x30] sm:$0xf]
        %v2341 = vld [vmem:[%s2 + $0x34] sm:$0xf]
        %v2342 = vld [vmem:[%s2 + $0x38] sm:$0xf]
        %v2343 = vld [vmem:[%s2 + $0x3c] sm:$0xf]
        %2344 = vst.msk [vmem:[#allocation2 + $0x1] sm:$0xff] %vm916, %v1375
        %2345 = vst.msk [vmem:[#allocation2 + $0x9] sm:$0xff] %vm916, %v1376
        %2346 = vst.msk [vmem:[#allocation2 + $0x11] sm:$0xff] %vm916, %v1377
        %2347 = vst.msk [vmem:[#allocation2 + $0x19] sm:$0xff] %vm916, %v1378
        %2348 = vst.msk [vmem:[#allocation2 + $0x21] sm:$0xff] %vm916, %v1379
        %2349 = vst.msk [vmem:[#allocation2 + $0x29] sm:$0xff] %vm916, %v1380
        %2350 = vst.msk [vmem:[#allocation2 + $0x31] sm:$0xff] %vm916, %v1381
        %2351 = vst.msk [vmem:[#allocation2 + $0x39] sm:$0x1] %vm926, 0.0
        %v2352 = vld [vmem:[#allocation2] sm:$0xff]
        %v2353 = vld [vmem:[#allocation2 + $0x8] sm:$0xff]
        %v2354 = vld [vmem:[#allocation2 + $0x10] sm:$0xff]
        %v2355 = vld [vmem:[#allocation2 + $0x18] sm:$0xff]
        %v2356 = vld [vmem:[#allocation2 + $0x20] sm:$0xff]
        %v2357 = vld [vmem:[#allocation2 + $0x28] sm:$0xff]
        %v2358 = vld [vmem:[#allocation2 + $0x30] sm:$0x3f]
        %v2359 = vpack.c.bf16 %v2352, %v2352
        %v2360 = vpack.c.bf16 %v2353, %v2353
        %v2361 = vpack.c.bf16 %v2354, %v2354
        %v2362 = vpack.c.bf16 %v2355, %v2355
        %v2363 = vpack.c.bf16 %v2356, %v2356
        %v2364 = vpack.c.bf16 %v2357, %v2357
        %v2365 = vpack.c.bf16 %v2358, %v2358
        %2366 = vst.msk [vmem:[#allocation3] sm:$0xf] %vm924, %v2359
        %2367 = vst.msk [vmem:[#allocation3 + $0xc] sm:$0xf] %vm924, %v2360
        %2368 = vst.msk [vmem:[#allocation3 + $0x18] sm:$0xf] %vm924, %v2361
        %2369 = vst.msk [vmem:[#allocation3 + $0x24] sm:$0xf] %vm924, %v2362
        %2370 = vst.msk [vmem:[#allocation3 + $0x30] sm:$0xf] %vm924, %v2363
        %2371 = vst.msk [vmem:[#allocation3 + $0x3c] sm:$0xf] %vm924, %v2364
        %vm2372 = vcmask 124928
        %2373 = vst.msk [vmem:[#allocation3 + $0x48] sm:$0x7] %vm2372, %v2365
        %v2374 = vld [vmem:[#allocation2 + $0x1] sm:$0xff]
        %v2375 = vld [vmem:[#allocation2 + $0x9] sm:$0xff]
        %v2376 = vld [vmem:[#allocation2 + $0x11] sm:$0xff]
        %v2377 = vld [vmem:[#allocation2 + $0x19] sm:$0xff]
        %v2378 = vld [vmem:[#allocation2 + $0x21] sm:$0xff]
        %v2379 = vld [vmem:[#allocation2 + $0x29] sm:$0xff]
        %v2380 = vld [vmem:[#allocation2 + $0x31] sm:$0x3f]
        %v2381 = vpack.c.bf16 %v2374, %v2374
        %v2382 = vpack.c.bf16 %v2375, %v2375
        %v2383 = vpack.c.bf16 %v2376, %v2376
        %v2384 = vpack.c.bf16 %v2377, %v2377
        %v2385 = vpack.c.bf16 %v2378, %v2378
        %v2386 = vpack.c.bf16 %v2379, %v2379
        %v2387 = vpack.c.bf16 %v2380, %v2380
        %2395 = vrot.lane.b32.xlu0 %v2381, 16
        %v2396 = vpop.permute.xlu0 %2395
        %2397 = vrot.lane.b32.xlu0 %v2382, 16
        %v2398 = vpop.permute.xlu0 %2397
        %2399 = vrot.lane.b32.xlu0 %v2383, 16
        %v2400 = vpop.permute.xlu0 %2399
        %2401 = vrot.lane.b32.xlu0 %v2384, 16
        %v2402 = vpop.permute.xlu0 %2401
        %2403 = vrot.lane.b32.xlu0 %v2385, 16
        %v2404 = vpop.permute.xlu0 %2403
        %2405 = vrot.lane.b32.xlu0 %v2386, 16
        %v2406 = vpop.permute.xlu0 %2405
        %2407 = vrot.lane.b32.xlu0 %v2387, 16
        %v2408 = vpop.permute.xlu0 %2407
        %2416 = vst.msk [vmem:[#allocation3] sm:$0xf] %vm991, %v2396
        %2417 = vst.msk [vmem:[#allocation3 + $0xc] sm:$0xf] %vm991, %v2398
        %2418 = vst.msk [vmem:[#allocation3 + $0x18] sm:$0xf] %vm991, %v2400
        %2419 = vst.msk [vmem:[#allocation3 + $0x24] sm:$0xf] %vm991, %v2402
        %2420 = vst.msk [vmem:[#allocation3 + $0x30] sm:$0xf] %vm991, %v2404
        %2421 = vst.msk [vmem:[#allocation3 + $0x3c] sm:$0xf] %vm991, %v2406
        %vm2422 = vcmask 256128
        %2423 = vst.msk [vmem:[#allocation3 + $0x48] sm:$0x7] %vm2422, %v2408
        %v2424 = vld [vmem:[#allocation2 + $0x2] sm:$0xff]
        %v2425 = vld [vmem:[#allocation2 + $0xa] sm:$0xff]
        %v2426 = vld [vmem:[#allocation2 + $0x12] sm:$0xff]
        %v2427 = vld [vmem:[#allocation2 + $0x1a] sm:$0xff]
        %v2428 = vld [vmem:[#allocation2 + $0x22] sm:$0xff]
        %v2429 = vld [vmem:[#allocation2 + $0x2a] sm:$0xff]
        %v2430 = vld [vmem:[#allocation2 + $0x32] sm:$0x3f]
        %v2431 = vpack.c.bf16 %v2424, %v2424
        %v2432 = vpack.c.bf16 %v2425, %v2425
        %v2433 = vpack.c.bf16 %v2426, %v2426
        %v2434 = vpack.c.bf16 %v2427, %v2427
        %v2435 = vpack.c.bf16 %v2428, %v2428
        %v2436 = vpack.c.bf16 %v2429, %v2429
        %v2437 = vpack.c.bf16 %v2430, %v2430
        %2445 = vrot.lane.b32.xlu0 %v2431, 32
        %v2446 = vpop.permute.xlu0 %2445
        %2447 = vrot.lane.b32.xlu0 %v2432, 32
        %v2448 = vpop.permute.xlu0 %2447
        %2449 = vrot.lane.b32.xlu0 %v2433, 32
        %v2450 = vpop.permute.xlu0 %2449
        %2451 = vrot.lane.b32.xlu0 %v2434, 32
        %v2452 = vpop.permute.xlu0 %2451
        %2453 = vrot.lane.b32.xlu0 %v2435, 32
        %v2454 = vpop.permute.xlu0 %2453
        %2455 = vrot.lane.b32.xlu0 %v2436, 32
        %v2456 = vpop.permute.xlu0 %2455
        %2457 = vrot.lane.b32.xlu0 %v2437, 32
        %v2458 = vpop.permute.xlu0 %2457
        %2466 = vst.msk [vmem:[#allocation3] sm:$0xf] %vm1041, %v2446
        %2467 = vst.msk [vmem:[#allocation3 + $0xc] sm:$0xf] %vm1041, %v2448
        %2468 = vst.msk [vmem:[#allocation3 + $0x18] sm:$0xf] %vm1041, %v2450
        %2469 = vst.msk [vmem:[#allocation3 + $0x24] sm:$0xf] %vm1041, %v2452
        %2470 = vst.msk [vmem:[#allocation3 + $0x30] sm:$0xf] %vm1041, %v2454
        %2471 = vst.msk [vmem:[#allocation3 + $0x3c] sm:$0xf] %vm1041, %v2456
        %vm2472 = vcmask 387328
        %2473 = vst.msk [vmem:[#allocation3 + $0x48] sm:$0x7] %vm2472, %v2458
        %v2474 = vld [vmem:[#allocation2 + $0x3] sm:$0xff]
        %v2475 = vld [vmem:[#allocation2 + $0xb] sm:$0xff]
        %v2476 = vld [vmem:[#allocation2 + $0x13] sm:$0xff]
        %v2477 = vld [vmem:[#allocation2 + $0x1b] sm:$0xff]
        %v2478 = vld [vmem:[#allocation2 + $0x23] sm:$0xff]
        %v2479 = vld [vmem:[#allocation2 + $0x2b] sm:$0xff]
        %v2480 = vld [vmem:[#allocation2 + $0x33] sm:$0x3f]
        %v2481 = vpack.c.bf16 %v2474, %v2474
        %v2482 = vpack.c.bf16 %v2475, %v2475
        %v2483 = vpack.c.bf16 %v2476, %v2476
        %v2484 = vpack.c.bf16 %v2477, %v2477
        %v2485 = vpack.c.bf16 %v2478, %v2478
        %v2486 = vpack.c.bf16 %v2479, %v2479
        %v2487 = vpack.c.bf16 %v2480, %v2480
        %2495 = vrot.lane.b32.xlu0 %v2481, 48
        %v2496 = vpop.permute.xlu0 %2495
        %2497 = vrot.lane.b32.xlu0 %v2482, 48
        %v2498 = vpop.permute.xlu0 %2497
        %2499 = vrot.lane.b32.xlu0 %v2483, 48
        %v2500 = vpop.permute.xlu0 %2499
        %2501 = vrot.lane.b32.xlu0 %v2484, 48
        %v2502 = vpop.permute.xlu0 %2501
        %2503 = vrot.lane.b32.xlu0 %v2485, 48
        %v2504 = vpop.permute.xlu0 %2503
        %2505 = vrot.lane.b32.xlu0 %v2486, 48
        %v2506 = vpop.permute.xlu0 %2505
        %2507 = vrot.lane.b32.xlu0 %v2487, 48
        %v2508 = vpop.permute.xlu0 %2507
        %2516 = vst.msk [vmem:[#allocation3] sm:$0xf] %vm1091, %v2496
        %2517 = vst.msk [vmem:[#allocation3 + $0xc] sm:$0xf] %vm1091, %v2498
        %2518 = vst.msk [vmem:[#allocation3 + $0x18] sm:$0xf] %vm1091, %v2500
        %2519 = vst.msk [vmem:[#allocation3 + $0x24] sm:$0xf] %vm1091, %v2502
        %2520 = vst.msk [vmem:[#allocation3 + $0x30] sm:$0xf] %vm1091, %v2504
        %2521 = vst.msk [vmem:[#allocation3 + $0x3c] sm:$0xf] %vm1091, %v2506
        %vm2522 = vcmask 518528
        %2523 = vst.msk [vmem:[#allocation3 + $0x48] sm:$0x7] %vm2522, %v2508
        %v2524 = vld [vmem:[#allocation2 + $0x4] sm:$0xff]
        %v2525 = vld [vmem:[#allocation2 + $0xc] sm:$0xff]
        %v2526 = vld [vmem:[#allocation2 + $0x14] sm:$0xff]
        %v2527 = vld [vmem:[#allocation2 + $0x1c] sm:$0xff]
        %v2528 = vld [vmem:[#allocation2 + $0x24] sm:$0xff]
        %v2529 = vld [vmem:[#allocation2 + $0x2c] sm:$0xff]
        %v2530 = vld [vmem:[#allocation2 + $0x34] sm:$0x3f]
        %v2531 = vpack.c.bf16 %v2524, %v2524
        %v2532 = vpack.c.bf16 %v2525, %v2525
        %v2533 = vpack.c.bf16 %v2526, %v2526
        %v2534 = vpack.c.bf16 %v2527, %v2527
        %v2535 = vpack.c.bf16 %v2528, %v2528
        %v2536 = vpack.c.bf16 %v2529, %v2529
        %v2537 = vpack.c.bf16 %v2530, %v2530
        %2545 = vrot.lane.b32.xlu0 %v2531, 64
        %v2546 = vpop.permute.xlu0 %2545
        %2547 = vrot.lane.b32.xlu0 %v2532, 64
        %v2548 = vpop.permute.xlu0 %2547
        %2549 = vrot.lane.b32.xlu0 %v2533, 64
        %v2550 = vpop.permute.xlu0 %2549
        %2551 = vrot.lane.b32.xlu0 %v2534, 64
        %v2552 = vpop.permute.xlu0 %2551
        %2553 = vrot.lane.b32.xlu0 %v2535, 64
        %v2554 = vpop.permute.xlu0 %2553
        %2555 = vrot.lane.b32.xlu0 %v2536, 64
        %v2556 = vpop.permute.xlu0 %2555
        %2557 = vrot.lane.b32.xlu0 %v2537, 64
        %v2558 = vpop.permute.xlu0 %2557
        %2566 = vst.msk [vmem:[#allocation3] sm:$0xf] %vm1141, %v2546
        %2567 = vst.msk [vmem:[#allocation3 + $0xc] sm:$0xf] %vm1141, %v2548
        %2568 = vst.msk [vmem:[#allocation3 + $0x18] sm:$0xf] %vm1141, %v2550
        %2569 = vst.msk [vmem:[#allocation3 + $0x24] sm:$0xf] %vm1141, %v2552
        %2570 = vst.msk [vmem:[#allocation3 + $0x30] sm:$0xf] %vm1141, %v2554
        %2571 = vst.msk [vmem:[#allocation3 + $0x3c] sm:$0xf] %vm1141, %v2556
        %vm2572 = vcmask 649728
        %2573 = vst.msk [vmem:[#allocation3 + $0x48] sm:$0x7] %vm2572, %v2558
        %v2574 = vld [vmem:[#allocation3] sm:$0xf]
        %v2575 = vld [vmem:[#allocation3 + $0xc] sm:$0xf]
        %v2576 = vld [vmem:[#allocation3 + $0x18] sm:$0xf]
        %v2577 = vld [vmem:[#allocation3 + $0x24] sm:$0xf]
        %v2578 = vld [vmem:[#allocation3 + $0x30] sm:$0xf]
        %v2579 = vld [vmem:[#allocation3 + $0x3c] sm:$0xf]
        %v2580 = vld [vmem:[#allocation3 + $0x48] sm:$0x7]
        %v2588 = vunpack.c.l.b16 %v2574
        %v2589 = vunpack.c.l.b16 %v2575
        %v2590 = vunpack.c.l.b16 %v2576
        %v2591 = vunpack.c.l.b16 %v2577
        %v2592 = vunpack.c.l.b16 %v2578
        %v2593 = vunpack.c.l.b16 %v2579
        %v2594 = vunpack.c.l.b16 %v2580
        %v2595 = vpack.c.b16 %v2589, %v2588
        %v2596 = vpack.c.b16 %v2591, %v2590
        %v2597 = vpack.c.b16 %v2593, %v2592
        %v2598 = vpack.c.b16 %v2594, %v2594
        %v2609 = vunpack.c.l.b16 %v2334
        %v2610 = vunpack.c.l.b16 %v2335
        %v2611 = vunpack.c.l.b16 %v2336
        %v2612 = vunpack.c.l.b16 %v2337
        %v2613 = vunpack.c.l.b16 %v2338
        %v2614 = vunpack.c.l.b16 %v2339
        %v2615 = vunpack.c.l.b16 %v2340
        %v2616 = vunpack.c.l.b16 %v2341
        %v2617 = vunpack.c.l.b16 %v2342
        %v2618 = vunpack.c.l.b16 %v2343
        %v2619 = vpack.c.b16 %v2610, %v2609
        %v2620 = vpack.c.b16 %v2612, %v2611
        %v2621 = vpack.c.b16 %v2614, %v2613
        %v2622 = vpack.c.b16 %v2616, %v2615
        %v2623 = vpack.c.b16 %v2618, %v2617
        %vm2629 = vcmask 654336
        %v2631 = vsel %vm2629, %v2595, 0
        %v2634 = vsel %vm2629, %v2596, 0
        %v2637 = vsel %vm2629, %v2597, 0
        %v2640 = vsel %vm2629, %v2598, 0
        %2642 = vmatpush.bf16.msra.mxu0 0
        %2643 = vmatpush.bf16.msra.mxu0 0
        %2644 = vmatpush.bf16.msra.mxu0 0
        %2645 = vmatpush.bf16.msra.mxu0 %v2623
        %2646 = vmatpush.bf16.msra.mxu0 %v2622
        %2647 = vmatpush.bf16.msra.mxu0 %v2621
        %2648 = vmatpush.bf16.msra.mxu0 %v2620
        %2649 = vmatpush.bf16.msra.mxu0 %v2619
        %2650 = vmatmul.bf16.gmra.mxu0 %v2631
        %v2651 = vpop.f32.mrf.mxu0
        %v2652 = vadd.f32 0.0, %v2651
        %v2653 = vpop.f32.mrf.mxu0
        %v2654 = vadd.f32 0.0, %v2653
        %2655 = vmatmul.bf16.gmra.mxu0 %v2634
        %v2656 = vpop.f32.mrf.mxu0
        %v2657 = vadd.f32 0.0, %v2656
        %v2658 = vpop.f32.mrf.mxu0
        %v2659 = vadd.f32 0.0, %v2658
        %2660 = vmatmul.bf16.gmra.mxu0 %v2637
        %v2661 = vpop.f32.mrf.mxu0
        %v2662 = vadd.f32 0.0, %v2661
        %v2663 = vpop.f32.mrf.mxu0
        %v2664 = vadd.f32 0.0, %v2663
        %2665 = vmatmul.bf16.gmra.mxu0 %v2640
        %v2666 = vpop.f32.mrf.mxu0
        %v2667 = vadd.f32 0.0, %v2666
        %v2668 = vpop.f32.mrf.mxu0
        %2669 = vdwg.mxu0
        %v2670 = vld [vmem:[#allocation9 + $0xa] sm:$0x1]
        %v2671 = vld [vmem:[#allocation9 + $0xb] sm:$0x1]
        %v2672 = vperm.slane %v2670, 0
        %v2673 = vmul.f32 %v2652, %v2672
        %v2674 = vmul.f32 %v2654, %v2672
        %v2675 = vmul.f32 %v2657, %v2672
        %v2676 = vmul.f32 %v2659, %v2672
        %v2677 = vmul.f32 %v2662, %v2672
        %v2678 = vmul.f32 %v2664, %v2672
        %v2679 = vmul.f32 %v2667, %v2672
        %v2680 = vperm.slane %v2671, 0
        %v2681 = vadd.f32 %v2673, %v2680
        %v2682 = vadd.f32 %v2674, %v2680
        %v2683 = vadd.f32 %v2675, %v2680
        %v2684 = vadd.f32 %v2676, %v2680
        %v2685 = vadd.f32 %v2677, %v2680
        %v2686 = vadd.f32 %v2678, %v2680
        %v2687 = vadd.f32 %v2679, %v2680
        %v2688 = vmax.f32 %v2681, 0.0
        %v2689 = vmax.f32 %v2682, 0.0
        %v2690 = vmax.f32 %v2683, 0.0
        %v2691 = vmax.f32 %v2684, 0.0
        %v2692 = vmax.f32 %v2685, 0.0
        %v2693 = vmax.f32 %v2686, 0.0
        %v2694 = vmax.f32 %v2687, 0.0
        %v2695 = vld [vmem:[#allocation4 + $0xc0] sm:$0xff]
        %v2696 = vld [vmem:[#allocation4 + $0xc8] sm:$0xff]
        %v2697 = vld [vmem:[#allocation4 + $0xd0] sm:$0xff]
        %v2698 = vld [vmem:[#allocation4 + $0xd8] sm:$0xff]
        %v2699 = vld [vmem:[#allocation4 + $0xe0] sm:$0xff]
        %v2700 = vld [vmem:[#allocation4 + $0xe8] sm:$0xff]
        %v2701 = vld [vmem:[#allocation4 + $0xf0] sm:$0xff]
        %v2702 = vld [vmem:[#allocation4 + $0xf8] sm:$0xff]
        %v2703 = vld [vmem:[#allocation4 + $0x100] sm:$0xff]
        %v2704 = vld [vmem:[#allocation4 + $0x108] sm:$0xff]
        %v2705 = vld [vmem:[#allocation4 + $0x110] sm:$0xff]
        %v2706 = vld [vmem:[#allocation4 + $0x118] sm:$0xff]
        %v2707 = vld [vmem:[#allocation4 + $0x120] sm:$0xff]
        %v2708 = vld [vmem:[#allocation4 + $0x128] sm:$0xff]
        %v2709 = vld [vmem:[#allocation4 + $0x130] sm:$0xff]
        %v2710 = vld [vmem:[#allocation4 + $0x138] sm:$0xff]
        %v2711 = vld [vmem:[#allocation4 + $0x140] sm:$0xff]
        %v2712 = vld [vmem:[#allocation4 + $0x148] sm:$0xff]
        %v2713 = vld [vmem:[#allocation4 + $0x150] sm:$0xff]
        %v2714 = vld [vmem:[#allocation4 + $0x158] sm:$0xff]
        %v2715 = vld [vmem:[#allocation4 + $0x160] sm:$0xff]
        %v2716 = vld [vmem:[#allocation4 + $0x168] sm:$0xff]
        %v2717 = vld [vmem:[#allocation4 + $0x170] sm:$0xff]
        %v2718 = vld [vmem:[#allocation4 + $0x178] sm:$0xff]
        %v2719 = vld [vmem:[#allocation4 + $0x180] sm:$0xff]
        %v2720 = vld [vmem:[#allocation4 + $0x188] sm:$0xff]
        %v2721 = vld [vmem:[#allocation4 + $0x190] sm:$0xff]
        %v2722 = vld [vmem:[#allocation4 + $0x198] sm:$0xff]
        %v2723 = vld [vmem:[#allocation4 + $0x1a0] sm:$0xff]
        %v2724 = vld [vmem:[#allocation4 + $0x1a8] sm:$0xff]
        %v2725 = vld [vmem:[#allocation4 + $0x1b0] sm:$0xff]
        %v2726 = vld [vmem:[#allocation4 + $0x1b8] sm:$0xff]
        %v2727 = vld [vmem:[#allocation4 + $0x1c0] sm:$0xff]
        %v2728 = vld [vmem:[#allocation4 + $0x1c8] sm:$0xff]
        %v2729 = vld [vmem:[#allocation4 + $0x1d0] sm:$0xff]
        %v2730 = vld [vmem:[#allocation4 + $0x1d8] sm:$0xff]
        %v2731 = vld [vmem:[#allocation4 + $0x1e0] sm:$0xff]
        %v2732 = vld [vmem:[#allocation4 + $0x1e8] sm:$0xff]
        %v2733 = vld [vmem:[#allocation4 + $0x1f0] sm:$0xff]
        %v2734 = vld [vmem:[#allocation4 + $0x1f8] sm:$0xff]
        %2735 = vst.msk [vmem:[#allocation2 + $0x1] sm:$0xff] %vm1648, %v2688
        %2736 = vst.msk [vmem:[#allocation2 + $0x9] sm:$0xff] %vm1648, %v2689
        %2737 = vst.msk [vmem:[#allocation2 + $0x11] sm:$0xff] %vm1648, %v2690
        %2738 = vst.msk [vmem:[#allocation2 + $0x19] sm:$0xff] %vm1648, %v2691
        %2739 = vst.msk [vmem:[#allocation2 + $0x21] sm:$0xff] %vm1648, %v2692
        %2740 = vst.msk [vmem:[#allocation2 + $0x29] sm:$0xff] %vm1648, %v2693
        %vm2741 = vcmask 521216
        %2742 = vst.msk [vmem:[#allocation2 + $0x31] sm:$0x3f] %vm2741, %v2694
        %2743 = vst.msk [vmem:[#allocation2 + $0x37] sm:$0x1] %vm1656, 0.0
        %v2744 = vld [vmem:[#allocation2] sm:$0xff]
        %v2745 = vld [vmem:[#allocation2 + $0x8] sm:$0xff]
        %v2746 = vld [vmem:[#allocation2 + $0x10] sm:$0xff]
        %v2747 = vld [vmem:[#allocation2 + $0x18] sm:$0xff]
        %v2748 = vld [vmem:[#allocation2 + $0x20] sm:$0xff]
        %v2749 = vld [vmem:[#allocation2 + $0x28] sm:$0xff]
        %v2750 = vld [vmem:[#allocation2 + $0x30] sm:$0xf]
        %v2751 = vpack.c.bf16 %v2744, %v2744
        %v2752 = vpack.c.bf16 %v2745, %v2745
        %v2753 = vpack.c.bf16 %v2746, %v2746
        %v2754 = vpack.c.bf16 %v2747, %v2747
        %v2755 = vpack.c.bf16 %v2748, %v2748
        %v2756 = vpack.c.bf16 %v2749, %v2749
        %v2757 = vpack.c.bf16 %v2750, %v2750
        %2758 = vst.msk [vmem:[#allocation3] sm:$0xf] %vm1672, %v2751
        %2759 = vst.msk [vmem:[#allocation3 + $0xc] sm:$0xf] %vm1672, %v2752
        %2760 = vst.msk [vmem:[#allocation3 + $0x18] sm:$0xf] %vm1672, %v2753
        %2761 = vst.msk [vmem:[#allocation3 + $0x24] sm:$0xf] %vm1672, %v2754
        %2762 = vst.msk [vmem:[#allocation3 + $0x30] sm:$0xf] %vm1672, %v2755
        %2763 = vst.msk [vmem:[#allocation3 + $0x3c] sm:$0xf] %vm1672, %v2756
        %vm2764 = vcmask 517120
        %2765 = vst.msk [vmem:[#allocation3 + $0x48] sm:$0x3] %vm2764, %v2757
        %v2766 = vld [vmem:[#allocation2 + $0x1] sm:$0xff]
        %v2767 = vld [vmem:[#allocation2 + $0x9] sm:$0xff]
        %v2768 = vld [vmem:[#allocation2 + $0x11] sm:$0xff]
        %v2769 = vld [vmem:[#allocation2 + $0x19] sm:$0xff]
        %v2770 = vld [vmem:[#allocation2 + $0x21] sm:$0xff]
        %v2771 = vld [vmem:[#allocation2 + $0x29] sm:$0xff]
        %v2772 = vld [vmem:[#allocation2 + $0x31] sm:$0xf]
        %v2773 = vpack.c.bf16 %v2766, %v2766
        %v2774 = vpack.c.bf16 %v2767, %v2767
        %v2775 = vpack.c.bf16 %v2768, %v2768
        %v2776 = vpack.c.bf16 %v2769, %v2769
        %v2777 = vpack.c.bf16 %v2770, %v2770
        %v2778 = vpack.c.bf16 %v2771, %v2771
        %v2779 = vpack.c.bf16 %v2772, %v2772
        %2787 = vrot.lane.b32.xlu0 %v2773, 64
        %v2788 = vpop.permute.xlu0 %2787
        %2789 = vrot.lane.b32.xlu0 %v2774, 64
        %v2790 = vpop.permute.xlu0 %2789
        %2791 = vrot.lane.b32.xlu0 %v2775, 64
        %v2792 = vpop.permute.xlu0 %2791
        %2793 = vrot.lane.b32.xlu0 %v2776, 64
        %v2794 = vpop.permute.xlu0 %2793
        %2795 = vrot.lane.b32.xlu0 %v2777, 64
        %v2796 = vpop.permute.xlu0 %2795
        %2797 = vrot.lane.b32.xlu0 %v2778, 64
        %v2798 = vpop.permute.xlu0 %2797
        %2799 = vrot.lane.b32.xlu0 %v2779, 64
        %v2800 = vpop.permute.xlu0 %2799
        %2808 = vst.msk [vmem:[#allocation3] sm:$0xf] %vm1722, %v2788
        %2809 = vst.msk [vmem:[#allocation3 + $0xc] sm:$0xf] %vm1722, %v2790
        %2810 = vst.msk [vmem:[#allocation3 + $0x18] sm:$0xf] %vm1722, %v2792
        %2811 = vst.msk [vmem:[#allocation3 + $0x24] sm:$0xf] %vm1722, %v2794
        %2812 = vst.msk [vmem:[#allocation3 + $0x30] sm:$0xf] %vm1722, %v2796
        %2813 = vst.msk [vmem:[#allocation3 + $0x3c] sm:$0xf] %vm1722, %v2798
        %vm2814 = vcmask 1041920
        %2815 = vst.msk [vmem:[#allocation3 + $0x48] sm:$0x3] %vm2814, %v2800
        %v2816 = vld [vmem:[#allocation2 + $0x2] sm:$0xff]
        %v2817 = vld [vmem:[#allocation2 + $0xa] sm:$0xff]
        %v2818 = vld [vmem:[#allocation2 + $0x12] sm:$0xff]
        %v2819 = vld [vmem:[#allocation2 + $0x1a] sm:$0xff]
        %v2820 = vld [vmem:[#allocation2 + $0x22] sm:$0xff]
        %v2821 = vld [vmem:[#allocation2 + $0x2a] sm:$0xff]
        %v2822 = vld [vmem:[#allocation2 + $0x32] sm:$0xf]
        %v2823 = vpack.c.bf16 %v2816, %v2816
        %v2824 = vpack.c.bf16 %v2817, %v2817
        %v2825 = vpack.c.bf16 %v2818, %v2818
        %v2826 = vpack.c.bf16 %v2819, %v2819
        %v2827 = vpack.c.bf16 %v2820, %v2820
        %v2828 = vpack.c.bf16 %v2821, %v2821
        %v2829 = vpack.c.bf16 %v2822, %v2822
        %2830 = vst.msk [vmem:[#allocation3 + $0x4] sm:$0xf] %vm1672, %v2823
        %2831 = vst.msk [vmem:[#allocation3 + $0x10] sm:$0xf] %vm1672, %v2824
        %2832 = vst.msk [vmem:[#allocation3 + $0x1c] sm:$0xf] %vm1672, %v2825
        %2833 = vst.msk [vmem:[#allocation3 + $0x28] sm:$0xf] %vm1672, %v2826
        %2834 = vst.msk [vmem:[#allocation3 + $0x34] sm:$0xf] %vm1672, %v2827
        %2835 = vst.msk [vmem:[#allocation3 + $0x40] sm:$0xf] %vm1672, %v2828
        %2836 = vst.msk [vmem:[#allocation3 + $0x4c] sm:$0x3] %vm2764, %v2829
        %v2837 = vld [vmem:[#allocation2 + $0x3] sm:$0xff]
        %v2838 = vld [vmem:[#allocation2 + $0xb] sm:$0xff]
        %v2839 = vld [vmem:[#allocation2 + $0x13] sm:$0xff]
        %v2840 = vld [vmem:[#allocation2 + $0x1b] sm:$0xff]
        %v2841 = vld [vmem:[#allocation2 + $0x23] sm:$0xff]
        %v2842 = vld [vmem:[#allocation2 + $0x2b] sm:$0xff]
        %v2843 = vld [vmem:[#allocation2 + $0x33] sm:$0xf]
        %v2844 = vpack.c.bf16 %v2837, %v2837
        %v2845 = vpack.c.bf16 %v2838, %v2838
        %v2846 = vpack.c.bf16 %v2839, %v2839
        %v2847 = vpack.c.bf16 %v2840, %v2840
        %v2848 = vpack.c.bf16 %v2841, %v2841
        %v2849 = vpack.c.bf16 %v2842, %v2842
        %v2850 = vpack.c.bf16 %v2843, %v2843
        %2858 = vrot.lane.b32.xlu0 %v2844, 64
        %v2859 = vpop.permute.xlu0 %2858
        %2860 = vrot.lane.b32.xlu0 %v2845, 64
        %v2861 = vpop.permute.xlu0 %2860
        %2862 = vrot.lane.b32.xlu0 %v2846, 64
        %v2863 = vpop.permute.xlu0 %2862
        %2864 = vrot.lane.b32.xlu0 %v2847, 64
        %v2865 = vpop.permute.xlu0 %2864
        %2866 = vrot.lane.b32.xlu0 %v2848, 64
        %v2867 = vpop.permute.xlu0 %2866
        %2868 = vrot.lane.b32.xlu0 %v2849, 64
        %v2869 = vpop.permute.xlu0 %2868
        %2870 = vrot.lane.b32.xlu0 %v2850, 64
        %v2871 = vpop.permute.xlu0 %2870
        %2879 = vst.msk [vmem:[#allocation3 + $0x4] sm:$0xf] %vm1722, %v2859
        %2880 = vst.msk [vmem:[#allocation3 + $0x10] sm:$0xf] %vm1722, %v2861
        %2881 = vst.msk [vmem:[#allocation3 + $0x1c] sm:$0xf] %vm1722, %v2863
        %2882 = vst.msk [vmem:[#allocation3 + $0x28] sm:$0xf] %vm1722, %v2865
        %2883 = vst.msk [vmem:[#allocation3 + $0x34] sm:$0xf] %vm1722, %v2867
        %2884 = vst.msk [vmem:[#allocation3 + $0x40] sm:$0xf] %vm1722, %v2869
        %2885 = vst.msk [vmem:[#allocation3 + $0x4c] sm:$0x3] %vm2814, %v2871
        %v2886 = vld [vmem:[#allocation2 + $0x4] sm:$0xff]
        %v2887 = vld [vmem:[#allocation2 + $0xc] sm:$0xff]
        %v2888 = vld [vmem:[#allocation2 + $0x14] sm:$0xff]
        %v2889 = vld [vmem:[#allocation2 + $0x1c] sm:$0xff]
        %v2890 = vld [vmem:[#allocation2 + $0x24] sm:$0xff]
        %v2891 = vld [vmem:[#allocation2 + $0x2c] sm:$0xff]
        %v2892 = vld [vmem:[#allocation2 + $0x34] sm:$0xf]
        %v2893 = vpack.c.bf16 %v2886, %v2886
        %v2894 = vpack.c.bf16 %v2887, %v2887
        %v2895 = vpack.c.bf16 %v2888, %v2888
        %v2896 = vpack.c.bf16 %v2889, %v2889
        %v2897 = vpack.c.bf16 %v2890, %v2890
        %v2898 = vpack.c.bf16 %v2891, %v2891
        %v2899 = vpack.c.bf16 %v2892, %v2892
        %2900 = vst.msk [vmem:[#allocation3 + $0x8] sm:$0xf] %vm1672, %v2893
        %2901 = vst.msk [vmem:[#allocation3 + $0x14] sm:$0xf] %vm1672, %v2894
        %2902 = vst.msk [vmem:[#allocation3 + $0x20] sm:$0xf] %vm1672, %v2895
        %2903 = vst.msk [vmem:[#allocation3 + $0x2c] sm:$0xf] %vm1672, %v2896
        %2904 = vst.msk [vmem:[#allocation3 + $0x38] sm:$0xf] %vm1672, %v2897
        %2905 = vst.msk [vmem:[#allocation3 + $0x44] sm:$0xf] %vm1672, %v2898
        %2906 = vst.msk [vmem:[#allocation3 + $0x50] sm:$0x3] %vm2764, %v2899
        %v2907 = vld [vmem:[#allocation3] sm:$0xff]
        %v2908 = vld [vmem:[#allocation3 + $0x8] sm:$0xf]
        %v2909 = vld [vmem:[#allocation3 + $0xc] sm:$0xff]
        %v2910 = vld [vmem:[#allocation3 + $0x14] sm:$0xf]
        %v2911 = vld [vmem:[#allocation3 + $0x18] sm:$0xff]
        %v2912 = vld [vmem:[#allocation3 + $0x20] sm:$0xf]
        %v2913 = vld [vmem:[#allocation3 + $0x24] sm:$0xff]
        %v2914 = vld [vmem:[#allocation3 + $0x2c] sm:$0xf]
        %v2915 = vld [vmem:[#allocation3 + $0x30] sm:$0xff]
        %v2916 = vld [vmem:[#allocation3 + $0x38] sm:$0xf]
        %v2917 = vld [vmem:[#allocation3 + $0x3c] sm:$0xff]
        %v2918 = vld [vmem:[#allocation3 + $0x44] sm:$0xf]
        %v2919 = vld [vmem:[#allocation3 + $0x48] sm:$0x33]
        %v2920 = vld [vmem:[#allocation3 + $0x50] sm:$0x3]
        %v2935 = vunpack.c.l.b16 %v2907
        %v2936 = vunpack.c.h.b16 %v2907
        %v2937 = vunpack.c.l.b16 %v2908
        %v2938 = vunpack.c.l.b16 %v2909
        %v2939 = vunpack.c.h.b16 %v2909
        %v2940 = vunpack.c.l.b16 %v2910
        %v2941 = vunpack.c.l.b16 %v2911
        %v2942 = vunpack.c.h.b16 %v2911
        %v2943 = vunpack.c.l.b16 %v2912
        %v2944 = vunpack.c.l.b16 %v2913
        %v2945 = vunpack.c.h.b16 %v2913
        %v2946 = vunpack.c.l.b16 %v2914
        %v2947 = vunpack.c.l.b16 %v2915
        %v2948 = vunpack.c.h.b16 %v2915
        %v2949 = vunpack.c.l.b16 %v2916
        %v2950 = vunpack.c.l.b16 %v2917
        %v2951 = vunpack.c.h.b16 %v2917
        %v2952 = vunpack.c.l.b16 %v2918
        %v2953 = vunpack.c.l.b16 %v2919
        %v2954 = vunpack.c.h.b16 %v2919
        %v2955 = vunpack.c.l.b16 %v2920
        %v2956 = vpack.c.b16 %v2938, %v2935
        %v2957 = vpack.c.b16 %v2939, %v2936
        %v2958 = vpack.c.b16 %v2940, %v2937
        %v2959 = vpack.c.b16 %v2944, %v2941
        %v2960 = vpack.c.b16 %v2945, %v2942
        %v2961 = vpack.c.b16 %v2946, %v2943
        %v2962 = vpack.c.b16 %v2950, %v2947
        %v2963 = vpack.c.b16 %v2951, %v2948
        %v2964 = vpack.c.b16 %v2952, %v2949
        %v2965 = vpack.c.b16 %v2953, %v2953
        %v2966 = vpack.c.b16 %v2954, %v2954
        %v2967 = vpack.c.b16 %v2955, %v2955
        %v3016 = vunpack.c.l.b16 %v2695
        %v3017 = vunpack.c.h.b16 %v2695
        %v3018 = vunpack.c.l.b16 %v2696
        %v3019 = vunpack.c.h.b16 %v2696
        %v3020 = vunpack.c.l.b16 %v2697
        %v3021 = vunpack.c.h.b16 %v2697
        %v3022 = vunpack.c.l.b16 %v2698
        %v3023 = vunpack.c.h.b16 %v2698
        %v3024 = vunpack.c.l.b16 %v2699
        %v3025 = vunpack.c.h.b16 %v2699
        %v3026 = vunpack.c.l.b16 %v2700
        %v3027 = vunpack.c.h.b16 %v2700
        %v3028 = vunpack.c.l.b16 %v2701
        %v3029 = vunpack.c.h.b16 %v2701
        %v3030 = vunpack.c.l.b16 %v2702
        %v3031 = vunpack.c.h.b16 %v2702
        %v3032 = vunpack.c.l.b16 %v2703
        %v3033 = vunpack.c.h.b16 %v2703
        %v3034 = vunpack.c.l.b16 %v2704
        %v3035 = vunpack.c.h.b16 %v2704
        %v3036 = vunpack.c.l.b16 %v2705
        %v3037 = vunpack.c.h.b16 %v2705
        %v3038 = vunpack.c.l.b16 %v2706
        %v3039 = vunpack.c.h.b16 %v2706
        %v3040 = vunpack.c.l.b16 %v2707
        %v3041 = vunpack.c.h.b16 %v2707
        %v3042 = vunpack.c.l.b16 %v2708
        %v3043 = vunpack.c.h.b16 %v2708
        %v3044 = vunpack.c.l.b16 %v2709
        %v3045 = vunpack.c.h.b16 %v2709
        %v3046 = vunpack.c.l.b16 %v2710
        %v3047 = vunpack.c.h.b16 %v2710
        %v3048 = vunpack.c.l.b16 %v2711
        %v3049 = vunpack.c.h.b16 %v2711
        %v3050 = vunpack.c.l.b16 %v2712
        %v3051 = vunpack.c.h.b16 %v2712
        %v3052 = vunpack.c.l.b16 %v2713
        %v3053 = vunpack.c.h.b16 %v2713
        %v3054 = vunpack.c.l.b16 %v2714
        %v3055 = vunpack.c.h.b16 %v2714
        %v3056 = vunpack.c.l.b16 %v2715
        %v3057 = vunpack.c.h.b16 %v2715
        %v3058 = vunpack.c.l.b16 %v2716
        %v3059 = vunpack.c.h.b16 %v2716
        %v3060 = vunpack.c.l.b16 %v2717
        %v3061 = vunpack.c.h.b16 %v2717
        %v3062 = vunpack.c.l.b16 %v2718
        %v3063 = vunpack.c.h.b16 %v2718
        %v3064 = vunpack.c.l.b16 %v2719
        %v3065 = vunpack.c.h.b16 %v2719
        %v3066 = vunpack.c.l.b16 %v2720
        %v3067 = vunpack.c.h.b16 %v2720
        %v3068 = vunpack.c.l.b16 %v2721
        %v3069 = vunpack.c.h.b16 %v2721
        %v3070 = vunpack.c.l.b16 %v2722
        %v3071 = vunpack.c.h.b16 %v2722
        %v3072 = vunpack.c.l.b16 %v2723
        %v3073 = vunpack.c.h.b16 %v2723
        %v3074 = vunpack.c.l.b16 %v2724
        %v3075 = vunpack.c.h.b16 %v2724
        %v3076 = vunpack.c.l.b16 %v2725
        %v3077 = vunpack.c.h.b16 %v2725
        %v3078 = vunpack.c.l.b16 %v2726
        %v3079 = vunpack.c.h.b16 %v2726
        %v3080 = vunpack.c.l.b16 %v2727
        %v3081 = vunpack.c.h.b16 %v2727
        %v3082 = vunpack.c.l.b16 %v2728
        %v3083 = vunpack.c.h.b16 %v2728
        %v3084 = vunpack.c.l.b16 %v2729
        %v3085 = vunpack.c.h.b16 %v2729
        %v3086 = vunpack.c.l.b16 %v2730
        %v3087 = vunpack.c.h.b16 %v2730
        %v3088 = vunpack.c.l.b16 %v2731
        %v3089 = vunpack.c.h.b16 %v2731
        %v3090 = vunpack.c.l.b16 %v2732
        %v3091 = vunpack.c.h.b16 %v2732
        %v3092 = vunpack.c.l.b16 %v2733
        %v3093 = vunpack.c.h.b16 %v2733
        %v3094 = vunpack.c.l.b16 %v2734
        %v3095 = vunpack.c.h.b16 %v2734
        %v3096 = vpack.c.b16 %v3018, %v3016
        %v3097 = vpack.c.b16 %v3019, %v3017
        %v3098 = vpack.c.b16 %v3022, %v3020
        %v3099 = vpack.c.b16 %v3023, %v3021
        %v3100 = vpack.c.b16 %v3026, %v3024
        %v3101 = vpack.c.b16 %v3027, %v3025
        %v3102 = vpack.c.b16 %v3030, %v3028
        %v3103 = vpack.c.b16 %v3031, %v3029
        %v3104 = vpack.c.b16 %v3034, %v3032
        %v3105 = vpack.c.b16 %v3035, %v3033
        %v3106 = vpack.c.b16 %v3038, %v3036
        %v3107 = vpack.c.b16 %v3039, %v3037
        %v3108 = vpack.c.b16 %v3042, %v3040
        %v3109 = vpack.c.b16 %v3043, %v3041
        %v3110 = vpack.c.b16 %v3046, %v3044
        %v3111 = vpack.c.b16 %v3047, %v3045
        %v3112 = vpack.c.b16 %v3050, %v3048
        %v3113 = vpack.c.b16 %v3051, %v3049
        %v3114 = vpack.c.b16 %v3054, %v3052
        %v3115 = vpack.c.b16 %v3055, %v3053
        %v3116 = vpack.c.b16 %v3058, %v3056
        %v3117 = vpack.c.b16 %v3059, %v3057
        %v3118 = vpack.c.b16 %v3062, %v3060
        %v3119 = vpack.c.b16 %v3063, %v3061
        %v3120 = vpack.c.b16 %v3066, %v3064
        %v3121 = vpack.c.b16 %v3067, %v3065
        %v3122 = vpack.c.b16 %v3070, %v3068
        %v3123 = vpack.c.b16 %v3071, %v3069
        %v3124 = vpack.c.b16 %v3074, %v3072
        %v3125 = vpack.c.b16 %v3075, %v3073
        %v3126 = vpack.c.b16 %v3078, %v3076
        %v3127 = vpack.c.b16 %v3079, %v3077
        %v3128 = vpack.c.b16 %v3082, %v3080
        %v3129 = vpack.c.b16 %v3083, %v3081
        %v3130 = vpack.c.b16 %v3086, %v3084
        %v3131 = vpack.c.b16 %v3087, %v3085
        %v3132 = vpack.c.b16 %v3090, %v3088
        %v3133 = vpack.c.b16 %v3091, %v3089
        %v3134 = vpack.c.b16 %v3094, %v3092
        %v3135 = vpack.c.b16 %v3095, %v3093
        %v3177 = vsel %vm1648, %v2958, 0
        %v3180 = vsel %vm1648, %v2961, 0
        %v3183 = vsel %vm1648, %v2964, 0
        %v3186 = vsel %vm1648, %v2967, 0
        %3188 = vmatpush.bf16.msra.mxu0 %v3110
        %3189 = vmatpush.bf16.msra.mxu0 %v3108
        %3190 = vmatpush.bf16.msra.mxu0 %v3106
        %3191 = vmatpush.bf16.msra.mxu0 %v3104
        %3192 = vmatpush.bf16.msra.mxu0 %v3102
        %3193 = vmatpush.bf16.msra.mxu0 %v3100
        %3194 = vmatpush.bf16.msra.mxu0 %v3098
        %3195 = vmatpush.bf16.msra.mxu0 %v3096
        %3196 = vmatmul.bf16.gmra.mxu0 %v2956
        %v3197 = vpop.f32.mrf.mxu0
        %v3198 = vadd.f32 0.0, %v3197
        %v3199 = vpop.f32.mrf.mxu0
        %v3200 = vadd.f32 0.0, %v3199
        %3201 = vmatmul.bf16.gmra.mxu0 %v2959
        %v3202 = vpop.f32.mrf.mxu0
        %v3203 = vadd.f32 0.0, %v3202
        %v3204 = vpop.f32.mrf.mxu0
        %v3205 = vadd.f32 0.0, %v3204
        %3206 = vmatmul.bf16.gmra.mxu0 %v2962
        %v3207 = vpop.f32.mrf.mxu0
        %v3208 = vadd.f32 0.0, %v3207
        %v3209 = vpop.f32.mrf.mxu0
        %v3210 = vadd.f32 0.0, %v3209
        %3211 = vmatmul.bf16.gmra.mxu0 %v2965
        %v3212 = vpop.f32.mrf.mxu0
        %v3213 = vadd.f32 0.0, %v3212
        %v3214 = vpop.f32.mrf.mxu0
        %3215 = vdwg.mxu0
        %3216 = vmatpush.bf16.msra.mxu0 %v3126
        %3217 = vmatpush.bf16.msra.mxu0 %v3124
        %3218 = vmatpush.bf16.msra.mxu0 %v3122
        %3219 = vmatpush.bf16.msra.mxu0 %v3120
        %3220 = vmatpush.bf16.msra.mxu0 %v3118
        %3221 = vmatpush.bf16.msra.mxu0 %v3116
        %3222 = vmatpush.bf16.msra.mxu0 %v3114
        %3223 = vmatpush.bf16.msra.mxu0 %v3112
        %3224 = vmatmul.bf16.gmra.mxu0 %v2957
        %v3225 = vpop.f32.mrf.mxu0
        %v3226 = vadd.f32 %v3198, %v3225
        %v3227 = vpop.f32.mrf.mxu0
        %v3228 = vadd.f32 %v3200, %v3227
        %3229 = vmatmul.bf16.gmra.mxu0 %v2960
        %v3230 = vpop.f32.mrf.mxu0
        %v3231 = vadd.f32 %v3203, %v3230
        %v3232 = vpop.f32.mrf.mxu0
        %v3233 = vadd.f32 %v3205, %v3232
        %3234 = vmatmul.bf16.gmra.mxu0 %v2963
        %v3235 = vpop.f32.mrf.mxu0
        %v3236 = vadd.f32 %v3208, %v3235
        %v3237 = vpop.f32.mrf.mxu0
        %v3238 = vadd.f32 %v3210, %v3237
        %3239 = vmatmul.bf16.gmra.mxu0 %v2966
        %v3240 = vpop.f32.mrf.mxu0
        %v3241 = vadd.f32 %v3213, %v3240
        %v3242 = vpop.f32.mrf.mxu0
        %3243 = vdwg.mxu0
        %3244 = vmatpush.bf16.msra.mxu0 0
        %3245 = vmatpush.bf16.msra.mxu0 0
        %3246 = vmatpush.bf16.msra.mxu0 0
        %3247 = vmatpush.bf16.msra.mxu0 0
        %3248 = vmatpush.bf16.msra.mxu0 %v3134
        %3249 = vmatpush.bf16.msra.mxu0 %v3132
        %3250 = vmatpush.bf16.msra.mxu0 %v3130
        %3251 = vmatpush.bf16.msra.mxu0 %v3128
        %3252 = vmatmul.bf16.gmra.mxu0 %v3177
        %v3253 = vpop.f32.mrf.mxu0
        %v3254 = vadd.f32 %v3226, %v3253
        %v3255 = vpop.f32.mrf.mxu0
        %v3256 = vadd.f32 %v3228, %v3255
        %3257 = vmatmul.bf16.gmra.mxu0 %v3180
        %v3258 = vpop.f32.mrf.mxu0
        %v3259 = vadd.f32 %v3231, %v3258
        %v3260 = vpop.f32.mrf.mxu0
        %v3261 = vadd.f32 %v3233, %v3260
        %3262 = vmatmul.bf16.gmra.mxu0 %v3183
        %v3263 = vpop.f32.mrf.mxu0
        %v3264 = vadd.f32 %v3236, %v3263
        %v3265 = vpop.f32.mrf.mxu0
        %v3266 = vadd.f32 %v3238, %v3265
        %3267 = vmatmul.bf16.gmra.mxu0 %v3186
        %v3268 = vpop.f32.mrf.mxu0
        %v3269 = vadd.f32 %v3241, %v3268
        %v3270 = vpop.f32.mrf.mxu0
        %3271 = vdwg.mxu0
        %3272 = vmatpush.bf16.msra.mxu0 %v3111
        %3273 = vmatpush.bf16.msra.mxu0 %v3109
        %3274 = vmatpush.bf16.msra.mxu0 %v3107
        %3275 = vmatpush.bf16.msra.mxu0 %v3105
        %3276 = vmatpush.bf16.msra.mxu0 %v3103
        %3277 = vmatpush.bf16.msra.mxu0 %v3101
        %3278 = vmatpush.bf16.msra.mxu0 %v3099
        %3279 = vmatpush.bf16.msra.mxu0 %v3097
        %3280 = vmatmul.bf16.gmra.mxu0 %v2956
        %v3281 = vpop.f32.mrf.mxu0
        %v3282 = vadd.f32 0.0, %v3281
        %v3283 = vpop.f32.mrf.mxu0
        %v3284 = vadd.f32 0.0, %v3283
        %3285 = vmatmul.bf16.gmra.mxu0 %v2959
        %v3286 = vpop.f32.mrf.mxu0
        %v3287 = vadd.f32 0.0, %v3286
        %v3288 = vpop.f32.mrf.mxu0
        %v3289 = vadd.f32 0.0, %v3288
        %3290 = vmatmul.bf16.gmra.mxu0 %v2962
        %v3291 = vpop.f32.mrf.mxu0
        %v3292 = vadd.f32 0.0, %v3291
        %v3293 = vpop.f32.mrf.mxu0
        %v3294 = vadd.f32 0.0, %v3293
        %3295 = vmatmul.bf16.gmra.mxu0 %v2965
        %v3296 = vpop.f32.mrf.mxu0
        %v3297 = vadd.f32 0.0, %v3296
        %v3298 = vpop.f32.mrf.mxu0
        %3299 = vdwg.mxu0
        %3300 = vmatpush.bf16.msra.mxu0 %v3127
        %3301 = vmatpush.bf16.msra.mxu0 %v3125
        %3302 = vmatpush.bf16.msra.mxu0 %v3123
        %3303 = vmatpush.bf16.msra.mxu0 %v3121
        %3304 = vmatpush.bf16.msra.mxu0 %v3119
        %3305 = vmatpush.bf16.msra.mxu0 %v3117
        %3306 = vmatpush.bf16.msra.mxu0 %v3115
        %3307 = vmatpush.bf16.msra.mxu0 %v3113
        %3308 = vmatmul.bf16.gmra.mxu0 %v2957
        %v3309 = vpop.f32.mrf.mxu0
        %v3310 = vadd.f32 %v3282, %v3309
        %v3311 = vpop.f32.mrf.mxu0
        %v3312 = vadd.f32 %v3284, %v3311
        %3313 = vmatmul.bf16.gmra.mxu0 %v2960
        %v3314 = vpop.f32.mrf.mxu0
        %v3315 = vadd.f32 %v3287, %v3314
        %v3316 = vpop.f32.mrf.mxu0
        %v3317 = vadd.f32 %v3289, %v3316
        %3318 = vmatmul.bf16.gmra.mxu0 %v2963
        %v3319 = vpop.f32.mrf.mxu0
        %v3320 = vadd.f32 %v3292, %v3319
        %v3321 = vpop.f32.mrf.mxu0
        %v3322 = vadd.f32 %v3294, %v3321
        %3323 = vmatmul.bf16.gmra.mxu0 %v2966
        %v3324 = vpop.f32.mrf.mxu0
        %v3325 = vadd.f32 %v3297, %v3324
        %v3326 = vpop.f32.mrf.mxu0
        %3327 = vdwg.mxu0
        %3328 = vmatpush.bf16.msra.mxu0 0
        %3329 = vmatpush.bf16.msra.mxu0 0
        %3330 = vmatpush.bf16.msra.mxu0 0
        %3331 = vmatpush.bf16.msra.mxu0 0
        %3332 = vmatpush.bf16.msra.mxu0 %v3135
        %3333 = vmatpush.bf16.msra.mxu0 %v3133
        %3334 = vmatpush.bf16.msra.mxu0 %v3131
        %3335 = vmatpush.bf16.msra.mxu0 %v3129
        %3336 = vmatmul.bf16.gmra.mxu0 %v3177
        %v3337 = vpop.f32.mrf.mxu0
        %v3338 = vadd.f32 %v3310, %v3337
        %v3339 = vpop.f32.mrf.mxu0
        %v3340 = vadd.f32 %v3312, %v3339
        %3341 = vmatmul.bf16.gmra.mxu0 %v3180
        %v3342 = vpop.f32.mrf.mxu0
        %v3343 = vadd.f32 %v3315, %v3342
        %v3344 = vpop.f32.mrf.mxu0
        %v3345 = vadd.f32 %v3317, %v3344
        %3346 = vmatmul.bf16.gmra.mxu0 %v3183
        %v3347 = vpop.f32.mrf.mxu0
        %v3348 = vadd.f32 %v3320, %v3347
        %v3349 = vpop.f32.mrf.mxu0
        %v3350 = vadd.f32 %v3322, %v3349
        %3351 = vmatmul.bf16.gmra.mxu0 %v3186
        %v3352 = vpop.f32.mrf.mxu0
        %v3353 = vadd.f32 %v3325, %v3352
        %v3354 = vpop.f32.mrf.mxu0
        %3355 = vdwg.mxu0
        %s3356 = scalar_lea.vmem [#allocation9], 12
        %v3357 = vld [vmem:[%s3356] ss:$2 sm:$0x3]
        %s3358 = scalar_lea.vmem [#allocation9], 13
        %v3359 = vld [vmem:[%s3358] ss:$2 sm:$0x3]
        %v3361 = vperm.slane %v3357, 0
        %v3362 = vperm.slane %v3357, 1
        %v3365 = vmul.f32 %v3254, %v3361
        %v3366 = vmul.f32 %v3338, %v3362
        %v3367 = vmul.f32 %v3256, %v3361
        %v3368 = vmul.f32 %v3340, %v3362
        %v3369 = vmul.f32 %v3259, %v3361
        %v3370 = vmul.f32 %v3343, %v3362
        %v3371 = vmul.f32 %v3261, %v3361
        %v3372 = vmul.f32 %v3345, %v3362
        %v3373 = vmul.f32 %v3264, %v3361
        %v3374 = vmul.f32 %v3348, %v3362
        %v3375 = vmul.f32 %v3266, %v3361
        %v3376 = vmul.f32 %v3350, %v3362
        %v3377 = vmul.f32 %v3269, %v3361
        %v3378 = vmul.f32 %v3353, %v3362
        %v3380 = vperm.slane %v3359, 0
        %v3381 = vperm.slane %v3359, 1
        %v3384 = vadd.f32 %v3365, %v3380
        %v3385 = vadd.f32 %v3366, %v3381
        %v3386 = vadd.f32 %v3367, %v3380
        %v3387 = vadd.f32 %v3368, %v3381
        %v3388 = vadd.f32 %v3369, %v3380
        %v3389 = vadd.f32 %v3370, %v3381
        %v3390 = vadd.f32 %v3371, %v3380
        %v3391 = vadd.f32 %v3372, %v3381
        %v3392 = vadd.f32 %v3373, %v3380
        %v3393 = vadd.f32 %v3374, %v3381
        %v3394 = vadd.f32 %v3375, %v3380
        %v3395 = vadd.f32 %v3376, %v3381
        %v3396 = vadd.f32 %v3377, %v3380
        %v3397 = vadd.f32 %v3378, %v3381
        %v3398 = vmax.f32 %v3384, 0.0
        %v3399 = vmax.f32 %v3385, 0.0
        %v3400 = vmax.f32 %v3386, 0.0
        %v3401 = vmax.f32 %v3387, 0.0
        %v3402 = vmax.f32 %v3388, 0.0
        %v3403 = vmax.f32 %v3389, 0.0
        %v3404 = vmax.f32 %v3390, 0.0
        %v3405 = vmax.f32 %v3391, 0.0
        %v3406 = vmax.f32 %v3392, 0.0
        %v3407 = vmax.f32 %v3393, 0.0
        %v3408 = vmax.f32 %v3394, 0.0
        %v3409 = vmax.f32 %v3395, 0.0
        %v3410 = vmax.f32 %v3396, 0.0
        %v3411 = vmax.f32 %v3397, 0.0
        %v3412 = vld [vmem:[%s6] sm:$0xff]
        %v3413 = vld [vmem:[%s6 + $0x8] sm:$0xff]
        %v3414 = vld [vmem:[%s6 + $0x10] sm:$0xff]
        %v3415 = vld [vmem:[%s6 + $0x18] sm:$0xff]
        %v3416 = vld [vmem:[%s6 + $0x20] sm:$0xff]
        %v3417 = vld [vmem:[%s6 + $0x28] sm:$0xff]
        %v3418 = vld [vmem:[%s6 + $0x30] sm:$0xff]
        %v3419 = vld [vmem:[%s6 + $0x38] sm:$0xff]
        %v3420 = vld [vmem:[%s6 + $0x40] sm:$0xff]
        %v3421 = vld [vmem:[%s6 + $0x48] sm:$0xff]
        %v3422 = vld [vmem:[%s6 + $0x50] sm:$0xff]
        %v3423 = vld [vmem:[%s6 + $0x58] sm:$0xff]
        %v3424 = vld [vmem:[%s6 + $0x60] sm:$0xff]
        %v3425 = vld [vmem:[%s6 + $0x68] sm:$0xff]
        %v3426 = vld [vmem:[%s6 + $0x70] sm:$0xff]
        %v3427 = vld [vmem:[%s6 + $0x78] sm:$0xff]
        %v3428 = vld [vmem:[%s6 + $0x80] sm:$0xff]
        %v3429 = vld [vmem:[%s6 + $0x88] sm:$0xff]
        %v3430 = vld [vmem:[%s6 + $0x90] sm:$0xff]
        %v3431 = vld [vmem:[%s6 + $0x98] sm:$0xff]
        %v3432 = vld [vmem:[%s6 + $0xa0] sm:$0xff]
        %v3433 = vld [vmem:[%s6 + $0xa8] sm:$0xff]
        %v3434 = vld [vmem:[%s6 + $0xb0] sm:$0xff]
        %v3435 = vld [vmem:[%s6 + $0xb8] sm:$0xff]
        %v3436 = vld [vmem:[%s6 + $0xc0] sm:$0xff]
        %v3437 = vld [vmem:[%s6 + $0xc8] sm:$0xff]
        %v3438 = vld [vmem:[%s6 + $0xd0] sm:$0xff]
        %v3439 = vld [vmem:[%s6 + $0xd8] sm:$0xff]
        %v3440 = vld [vmem:[%s6 + $0xe0] sm:$0xff]
        %v3441 = vld [vmem:[%s6 + $0xe8] sm:$0xff]
        %v3442 = vld [vmem:[%s6 + $0xf0] sm:$0xff]
        %v3443 = vld [vmem:[%s6 + $0xf8] sm:$0xff]
        %v3444 = vld [vmem:[#allocation9 + $0x17] sm:$0x1]
        %v3445 = vld [vmem:[#allocation8] sm:$0xff]
        %v3446 = vld [vmem:[#allocation8 + $0x8] sm:$0xff]
        %v3447 = vld [vmem:[#allocation8 + $0x10] sm:$0xff]
        %v3448 = vld [vmem:[#allocation8 + $0x18] sm:$0xff]
        %s3449 = scalar_lea.vmem [#allocation9], 25
        %v3450 = vld [vmem:[%s3449] ss:$2 sm:$0x3]
        %v3451 = vadd.f32 %v3398, %v3400
        %v3452 = vadd.f32 %v3451, %v3402
        %v3453 = vadd.f32 %v3452, %v3404
        %v3454 = vadd.f32 %v3453, %v3406
        %v3455 = vadd.f32 %v3454, %v3408
        %vm3456 = vcmask 1043456
        %v3457 = vsel %vm3456, %v3410, 0.0
        %v3458 = vadd.f32 %v3455, %v3457
        %v3459 = vrot.slane %v3458, 4
        %v3460 = vadd.f32 %v3458, %v3459
        %v3461 = vrot.slane %v3460, 2
        %v3462 = vadd.f32 %v3460, %v3461
        %v3463 = vrot.slane %v3462, 1
        %v3464 = vadd.f32 %v3462, %v3463
        %v3465 = vadd.f32 %v3399, %v3401
        %v3466 = vadd.f32 %v3465, %v3403
        %v3467 = vadd.f32 %v3466, %v3405
        %v3468 = vadd.f32 %v3467, %v3407
        %v3469 = vadd.f32 %v3468, %v3409
        %v3470 = vsel %vm3456, %v3411, 0.0
        %v3471 = vadd.f32 %v3469, %v3470
        %v3472 = vrot.slane %v3471, 4
        %v3473 = vadd.f32 %v3471, %v3472
        %v3474 = vrot.slane %v3473, 2
        %v3475 = vadd.f32 %v3473, %v3474
        %v3476 = vrot.slane %v3475, 1
        %v3477 = vadd.f32 %v3475, %v3476
        %v3478 = vmul.f32 %v3464, 0.01923077
        %v3479 = vmul.f32 %v3477, 0.01923077
        %3480 = vmatpush.msra.mxu0 %v3427
        %3481 = vmatpush.msra.mxu0 %v3426
        %3482 = vmatpush.msra.mxu0 %v3425
        %3483 = vmatpush.msra.mxu0 %v3424
        %3484 = vmatpush.msra.mxu0 %v3423
        %3485 = vmatpush.msra.mxu0 %v3422
        %3486 = vmatpush.msra.mxu0 %v3421
        %3487 = vmatpush.msra.mxu0 %v3420
        %3488 = vmatpush.msra.mxu0 %v3419
        %3489 = vmatpush.msra.mxu0 %v3418
        %3490 = vmatpush.msra.mxu0 %v3417
        %3491 = vmatpush.msra.mxu0 %v3416
        %3492 = vmatpush.msra.mxu0 %v3415
        %3493 = vmatpush.msra.mxu0 %v3414
        %3494 = vmatpush.msra.mxu0 %v3413
        %3495 = vmatpush.msra.mxu0 %v3412
        %3496 = vmatmul.f32.gmra.mxu0 %v3478
        %v3497 = vpop.f32.mrf.mxu0
        %v3498 = vadd.f32 %v3444, %v3497
        %3499 = vdwg.mxu0
        %3500 = vmatpush.msra.mxu0 %v3443
        %3501 = vmatpush.msra.mxu0 %v3442
        %3502 = vmatpush.msra.mxu0 %v3441
        %3503 = vmatpush.msra.mxu0 %v3440
        %3504 = vmatpush.msra.mxu0 %v3439
        %3505 = vmatpush.msra.mxu0 %v3438
        %3506 = vmatpush.msra.mxu0 %v3437
        %3507 = vmatpush.msra.mxu0 %v3436
        %3508 = vmatpush.msra.mxu0 %v3435
        %3509 = vmatpush.msra.mxu0 %v3434
        %3510 = vmatpush.msra.mxu0 %v3433
        %3511 = vmatpush.msra.mxu0 %v3432
        %3512 = vmatpush.msra.mxu0 %v3431
        %3513 = vmatpush.msra.mxu0 %v3430
        %3514 = vmatpush.msra.mxu0 %v3429
        %3515 = vmatpush.msra.mxu0 %v3428
        %3516 = vmatmul.f32.gmra.mxu0 %v3479
        %v3517 = vpop.f32.mrf.mxu0
        %v3518 = vadd.f32 %v3498, %v3517
        %3519 = vdwg.mxu0
        %v3520 = vmax.f32 %v3518, 0.0
        %v3522 = vperm.slane %v3450, 0
        %v3523 = vperm.slane %v3450, 1
        %v3527 = vsel %vm916, %v3520, 0
        %3529 = vmatpush.msra.mxu0 0.0
        %3530 = vmatpush.msra.mxu0 0.0
        %3531 = vmatpush.msra.mxu0 0.0
        %3532 = vmatpush.msra.mxu0 0.0
        %3533 = vmatpush.msra.mxu0 0.0
        %3534 = vmatpush.msra.mxu0 0.0
        %3535 = vmatpush.msra.mxu0 0.0
        %3536 = vmatpush.msra.mxu0 0.0
        %3537 = vmatpush.msra.mxu0 0.0
        %3538 = vmatpush.msra.mxu0 0.0
        %3539 = vmatpush.msra.mxu0 0.0
        %3540 = vmatpush.msra.mxu0 0.0
        %3541 = vmatpush.msra.mxu0 0.0
        %3542 = vmatpush.msra.mxu0 0.0
        %3543 = vmatpush.msra.mxu0 %v3447
        %3544 = vmatpush.msra.mxu0 %v3445
        %3545 = vmatmul.f32.gmra.mxu0 %v3527
        %v3546 = vpop.f32.mrf.mxu0
        %v3547 = vadd.f32 %v3522, %v3546
        %3548 = vdwg.mxu0
        %3549 = vmatpush.msra.mxu0 0.0
        %3550 = vmatpush.msra.mxu0 0.0
        %3551 = vmatpush.msra.mxu0 0.0
        %3552 = vmatpush.msra.mxu0 0.0
        %3553 = vmatpush.msra.mxu0 0.0
        %3554 = vmatpush.msra.mxu0 0.0
        %3555 = vmatpush.msra.mxu0 0.0
        %3556 = vmatpush.msra.mxu0 0.0
        %3557 = vmatpush.msra.mxu0 0.0
        %3558 = vmatpush.msra.mxu0 0.0
        %3559 = vmatpush.msra.mxu0 0.0
        %3560 = vmatpush.msra.mxu0 0.0
        %3561 = vmatpush.msra.mxu0 0.0
        %3562 = vmatpush.msra.mxu0 0.0
        %3563 = vmatpush.msra.mxu0 %v3448
        %3564 = vmatpush.msra.mxu0 %v3446
        %3565 = vmatmul.f32.gmra.mxu0 %v3527
        %v3566 = vpop.f32.mrf.mxu0
        %v3567 = vadd.f32 %v3523, %v3566
        %3568 = vdwg.mxu0
        %v3569 = vxor.u32 %v3547, 2147483648
        %v3570 = vxor.u32 %v3567, 2147483648
        %v3571 = vmul.f32 %v3569, 1.442695
        %v3572 = vpow.pop %v3571
        %v3573 = vmul.f32 %v3570, 1.442695
        %v3574 = vpow.pop %v3573
        %v3575 = vadd.f32 %v3572, 1.0
        %v3576 = vadd.f32 %v3574, 1.0
        %v3577 = vrcp.pop %v3575
        %v3578 = vmul.f32 %v3575, %v3577
        %v3579 = vsub.f32 1.0, %v3578
        %v3580 = vmul.f32 %v3577, %v3579
        %v3581 = vadd.f32 %v3577, %v3580
        %vm3582 = vweird.f32 %v3575
        %vm3583 = vweird.f32 %v3577
        %vm3584 = vmor %vm3582, %vm3583
        %v3585 = vsel %vm3584, %v3577, %v3581
        %v3586 = vand.u32 2147483647, %v3575
        %vm3587 = vcmp.eq.f32.partialorder %v3586, 8.507059e+37
        %v3588 = vand.u32 %v3575, 2147483648
        %v3589 = vor.u32 1.1754944e-38, %v3588
        %v3590 = vsel %vm3587, %v3589, %v3585
        %v3591 = vmul.f32 1.0, %v3590
        %v3592 = vrcp.pop %v3576
        %v3593 = vmul.f32 %v3576, %v3592
        %v3594 = vsub.f32 1.0, %v3593
        %v3595 = vmul.f32 %v3592, %v3594
        %v3596 = vadd.f32 %v3592, %v3595
        %vm3597 = vweird.f32 %v3576
        %vm3598 = vweird.f32 %v3592
        %vm3599 = vmor %vm3597, %vm3598
        %v3600 = vsel %vm3599, %v3592, %v3596
        %v3601 = vand.u32 2147483647, %v3576
        %vm3602 = vcmp.eq.f32.partialorder %v3601, 8.507059e+37
        %v3603 = vand.u32 %v3576, 2147483648
        %v3604 = vor.u32 1.1754944e-38, %v3603
        %v3605 = vsel %vm3602, %v3604, %v3600
        %v3606 = vmul.f32 1.0, %v3605
        %v3607 = vperm.slane %v3591, 0
        %v3608 = vperm.slane %v3606, 0
        %v3609 = vmul.f32 %v3398, %v3607
        %v3610 = vmul.f32 %v3399, %v3608
        %v3611 = vmul.f32 %v3400, %v3607
        %v3612 = vmul.f32 %v3401, %v3608
        %v3613 = vmul.f32 %v3402, %v3607
        %v3614 = vmul.f32 %v3403, %v3608
        %v3615 = vmul.f32 %v3404, %v3607
        %v3616 = vmul.f32 %v3405, %v3608
        %v3617 = vmul.f32 %v3406, %v3607
        %v3618 = vmul.f32 %v3407, %v3608
        %v3619 = vmul.f32 %v3408, %v3607
        %v3620 = vmul.f32 %v3409, %v3608
        %v3621 = vmul.f32 %v3410, %v3607
        %v3622 = vmul.f32 %v3411, %v3608
        %v3623 = vmax.f32 %v3609, %v3613
        %v3624 = vmax.f32 %v3611, %v3615
        %v3625 = vmax.f32 %v3623, %v3617
        %v3626 = vmax.f32 %v3624, %v3619
        %v3627 = vsel %vm3456, %v3621, -inf
        %v3628 = vmax.f32 %v3625, %v3627
        %v3629 = vmax.f32 %v3628, %v3626
        %v3630 = vrot.slane %v3629, 4
        %v3631 = vmax.f32 %v3629, %v3630
        %v3632 = vrot.slane %v3631, 2
        %v3633 = vmax.f32 %v3631, %v3632
        %v3634 = vrot.slane %v3633, 1
        %v3635 = vmax.f32 %v3633, %v3634
        %v3636 = vmax.f32 %v3610, %v3614
        %v3637 = vmax.f32 %v3612, %v3616
        %v3638 = vmax.f32 %v3636, %v3618
        %v3639 = vmax.f32 %v3637, %v3620
        %v3640 = vsel %vm3456, %v3622, -inf
        %v3641 = vmax.f32 %v3638, %v3640
        %v3642 = vmax.f32 %v3641, %v3639
        %v3643 = vrot.slane %v3642, 4
        %v3644 = vmax.f32 %v3642, %v3643
        %v3645 = vrot.slane %v3644, 2
        %v3646 = vmax.f32 %v3644, %v3645
        %v3647 = vrot.slane %v3646, 1
        %v3648 = vmax.f32 %v3646, %v3647
        %v3651 = vrot.slane %v3648, 7
        %v3652 = vsel %vm2326, %v3635, %v3651
        %3654 = vst.msk [vmem:[%s395 + $0x2] sm:$0x3] %vm2332, %v3652
        %p3655 = scmp.lt.s32.totalorder %s23, 1
        %s3656 = scalar_select %p3655, %s23, 1
        %s3657 = smul.addr %s3656, 4
        %s3658 = scalar_lea.vmem %s9, %s3657
        // Predicated region
        $region73: #{blnet_forward.2} parent=55 // pred_check
          %p3659 = pneg %p235
        $region74: #{blnet_forward.2} parent=55 // pred_check_branch
          %3661 = sbr.rel (%p3659) target = $region76
        $region75: #{blnet_forward.2} parent=55 // pred_region
          _
        $region76: #{blnet_forward.2} parent=55 // pred_fallthru
          _
      $region56: #{blnet_forward.2} parent=5 // pred_fallthru
        _
      %p3662 = scmp.le.s32.totalorder 2, %s18
      // Predicated region
      $region77: #{blnet_forward.2} parent=5 // pred_check
        %p3663 = pneg %p3662
      $region78: #{blnet_forward.2} parent=5 // pred_check_branch
        %3665 = sbr.rel (%p3663) target = $region80
      $region79: #{blnet_forward.2} parent=5 // pred_region
        %s3666 = ssub.s32 %s18, 2
        // Predicated region
        $region81: #{blnet_forward.2} parent=79 // pred_check
          %p3667 = pneg %p241
        $region82: #{blnet_forward.2} parent=79 // pred_check_branch
          %3669 = sbr.rel (%p3667) target = $region84
        $region83: #{blnet_forward.2} parent=79 // pred_region
          %p3670 = scmp.lt.s32.totalorder %s24, 1
          %s3671 = scalar_select %p3670, %s24, 1
          %s3672 = smul.addr %s3671, 4
          %s3673 = scalar_lea.vmem %s9, %s3672
        $region84: #{blnet_forward.2} parent=79 // pred_fallthru
          _
      $region80: #{blnet_forward.2} parent=5 // pred_fallthru
        _
    $region6: #{blnet_forward.2} parent=1 // loop_footer
      %s22 = sadd.s32 1, %s18
    $region7: #{blnet_forward.2} parent=1 // loop_footer_branch
      %17 = sbr.rel target = $region3
    $region8: #{blnet_forward.2} parent=1 // loop_exit
      _
    %3674 = vsyncpa [#allocation5], 1
    %s3675 = scalar_lea.sflag [#allocation5], 1
    %3676 = vsyncpa %s3675, 1
    %3677 = vsyncpa [#allocation7], 1
    %3678 = vsyncpa [#allocation10], 1

// kernel: blnet_forward.3
$region0: #{blnet_forward.3}
  #allocation0 [shape = 'u32[]', space=smem, size = 0x4, offset = 0x4, fixed_abs, tag = 'smem constant byte address 0x4 - core index']
  #allocation1 [shape = 'u32[72,128]{1,0:T(1,128)}', space=vmem, size = 0x9000, scoped, tag = 'internal scratch']
  #allocation2 [shape = 'f32[2,1024]{1,0:T(2,128)}', space=vmem, size = 0x2000, scoped, tag = 'scratch operand']
  %s0 = inlined_call_operand.vmem [shape: f32[2,512], index: 0, kind: input, shape index: {}]
  %s1 = inlined_call_operand.hbm [shape: bf16[512,4096], index: 1, kind: input, shape index: {}]
  %s2 = inlined_call_operand.hbm [shape: f32[1,4096], index: 2, kind: input, shape index: {}]
  %s3 = inlined_call_operand.hbm [shape: bf16[4096,1024], index: 3, kind: input, shape index: {}]
  %s4 = inlined_call_operand.vmem [shape: bf16[1024,6], index: 4, kind: input, shape index: {}]
  %s5 = inlined_call_operand.hbm [shape: f32[1,1024], index: 5, kind: input, shape index: {}]
  %s6 = inlined_call_operand.hbm [shape: f32[1,6], index: 6, kind: input, shape index: {}]
  %s7 = inlined_call_operand.hbm [shape: f32[2,6], index: 7, kind: output, shape index: {}]
  %s8 = sld [smem:[#allocation0]]
  $region89: #{blnet_forward.3} parent=0
    _
  %s10 = ssub.s32 1, %s8
  %s11 = scalar_select 0, %s10, %s8
  $region1: #{blnet_forward.3} parent=0
    #allocation3 [shape = 'u8[1048576]{0}', space=vmem, size = 0x100000, scoped, tag = 'input window, operand 1']
    #allocation4 [shape = 's32[2]{0}', space=sflag, size = 0x8, scoped, tag = 'scoped memory for blnet_forward.3']
    #allocation5 [shape = 's32[2]{0}', space=sflag, size = 0x8, scoped, tag = 'scoped memory for blnet_forward.3']
    #allocation6 [shape = 'u8[4096]{0}', space=vmem, size = 0x1000, scoped, tag = 'input window, operand 2']
    #allocation7 [shape = 's32[2]{0}', space=sflag, size = 0x8, scoped, tag = 'scoped memory for blnet_forward.3']
    #allocation8 [shape = 'u8[2097152]{0}', space=vmem, size = 0x200000, scoped, tag = 'input window, operand 3']
    #allocation9 [shape = 'u8[4096]{0}', space=vmem, size = 0x1000, scoped, tag = 'input window, operand 5, single buffered']
    #allocation10 [shape = 's32[1]{0}', space=sflag, size = 0x4, scoped, tag = 'scoped memory for blnet_forward.3']
    #allocation11 [shape = 'u8[512]{0}', space=vmem, size = 0x400, scoped, tag = 'input window, operand 6, single buffered']
    #allocation12 [shape = 'u8[1024]{0}', space=vmem, size = 0x400, scoped, tag = 'output window, operand 0, single buffered']
    %12 = vsyncpa [#allocation4], 0
    %s13 = scalar_lea.sflag [#allocation4], 1
    %14 = vsyncpa %s13, 0
    %15 = vsyncpa [#allocation7], 0
    %s16 = scalar_lea.sflag [#allocation7], 1
    %17 = vsyncpa %s16, 0
    %18 = vsyncpa [#allocation10], 0
    %19 = vsyncpa [#allocation5], 0
    loop: start=0, step=1, limit=10
    $region2: #{blnet_forward.3} parent=1 // loop_pre_header
      _
    $region3: #{blnet_forward.3} parent=1 // loop_header
      %s21 = sphi 0, %s25
      %p22 = scmp.ge.s32.totalorder %s21, 10
      %s29 = sphi 0, %s29
      %s31 = sphi 0, %s29
      %s32 = sphi 0, %s31
      %s46 = sphi 0, %s32
      %s52 = sphi 0, %s54
      %s55 = sphi 0, %s52
      %s56 = sphi 0, %s55
      %s72 = sphi 0, %s56
      %s78 = sphi 0, %s80
      %s81 = sphi 0, %s78
      %s82 = sphi 0, %s81
      %s98 = sphi 0, %s82
      %s104 = sphi 0, %s106
      %s107 = sphi 0, %s104
      %s108 = sphi 0, %s107
      %s124 = sphi 0, %s108
      %s128 = sphi 0, %s128
      %s130 = sphi 0, %s128
      %s131 = sphi 0, %s130
      %s145 = sphi 0, %s131
      %s149 = sphi 0, %s149
      %s151 = sphi 0, %s149
      %s152 = sphi 0, %s151
      %s166 = sphi 0, %s152
      %s170 = sphi 0, %s170
      %s172 = sphi 0, %s170
      %s173 = sphi 0, %s172
      %s187 = sphi 0, %s173
      %s191 = sphi 0, %s191
      %s193 = sphi 0, %s191
      %s194 = sphi 0, %s193
      %s208 = sphi 0, %s194
    $region4: #{blnet_forward.3} parent=1 // loop_header_branch
      %24 = sbr.rel (%p22) target = $region8
    $region5: #{blnet_forward.3} parent=1 // loop_body
      %s26 = ssub.s32 %s21, 1
      %s27 = ssub.s32 %s21, 2
      %s28 = sadd.s32 %s21, 1
      %s30 = sadd.s32 %s29, 1
      %p33 = scmp.eq.s32.totalorder %s21, 7
      %p34 = scmp.ne.s32.totalorder %s29, %s31
      %p35 = scmp.eq.s32.totalorder %s21, 0
      %p36 = por %p34, %p35
      %p37 = scmp.ne.s32.totalorder %s29, %s31
      %p38 = scmp.eq.s32.totalorder %s26, 7
      %p39 = por %p37, %p38
      %p40 = scmp.ne.s32.totalorder %s31, %s32
      %p41 = scmp.eq.s32.totalorder %s26, 0
      %p42 = por %p40, %p41
      %p43 = scmp.ne.s32.totalorder %s31, %s32
      %p44 = scmp.eq.s32.totalorder %s27, 7
      %p45 = por %p43, %p44
      %p47 = scmp.ne.s32.totalorder %s32, %s46
      %p48 = scmp.eq.s32.totalorder %s27, 0
      %p49 = por %p47, %p48
      %s50 = ssub.s32 %s21, %s28
      %p51 = scmp.eq.s32.totalorder %s50, 0
      %s53 = sadd.s32 %s52, 1
      %s54 = scalar_select %p51, %s52, %s53
      %p57 = pneg %p51
      %p58 = scmp.eq.s32.totalorder %s21, 7
      %p59 = por %p57, %p58
      %p60 = scmp.ne.s32.totalorder %s52, %s55
      %p61 = scmp.eq.s32.totalorder %s21, 0
      %p62 = por %p60, %p61
      %p63 = scmp.ne.s32.totalorder %s52, %s55
      %p64 = scmp.eq.s32.totalorder %s26, 7
      %p65 = por %p63, %p64
      %p66 = scmp.ne.s32.totalorder %s55, %s56
      %p67 = scmp.eq.s32.totalorder %s26, 0
      %p68 = por %p66, %p67
      %p69 = scmp.ne.s32.totalorder %s55, %s56
      %p70 = scmp.eq.s32.totalorder %s27, 7
      %p71 = por %p69, %p70
      %p73 = scmp.ne.s32.totalorder %s56, %s72
      %p74 = scmp.eq.s32.totalorder %s27, 0
      %p75 = por %p73, %p74
      %s76 = ssub.s32 %s21, %s28
      %p77 = scmp.eq.s32.totalorder %s76, 0
      %s79 = sadd.s32 %s78, 1
      %s80 = scalar_select %p77, %s78, %s79
      %p83 = pneg %p77
      %p84 = scmp.eq.s32.totalorder %s21, 7
      %p85 = por %p83, %p84
      %p86 = scmp.ne.s32.totalorder %s78, %s81
      %p87 = scmp.eq.s32.totalorder %s21, 0
      %p88 = por %p86, %p87
      %p89 = scmp.ne.s32.totalorder %s78, %s81
      %p90 = scmp.eq.s32.totalorder %s26, 7
      %p91 = por %p89, %p90
      %p92 = scmp.ne.s32.totalorder %s81, %s82
      %p93 = scmp.eq.s32.totalorder %s26, 0
      %p94 = por %p92, %p93
      %p95 = scmp.ne.s32.totalorder %s81, %s82
      %p96 = scmp.eq.s32.totalorder %s27, 7
      %p97 = por %p95, %p96
      %p99 = scmp.ne.s32.totalorder %s82, %s98
      %p100 = scmp.eq.s32.totalorder %s27, 0
      %p101 = por %p99, %p100
      %s102 = ssub.s32 %s21, %s28
      %p103 = scmp.eq.s32.totalorder %s102, 0
      %s105 = sadd.s32 %s104, 1
      %s106 = scalar_select %p103, %s104, %s105
      %p109 = pneg %p103
      %p110 = scmp.eq.s32.totalorder %s21, 7
      %p111 = por %p109, %p110
      %p112 = scmp.ne.s32.totalorder %s104, %s107
      %p113 = scmp.eq.s32.totalorder %s21, 0
      %p114 = por %p112, %p113
      %p115 = scmp.ne.s32.totalorder %s104, %s107
      %p116 = scmp.eq.s32.totalorder %s26, 7
      %p117 = por %p115, %p116
      %p118 = scmp.ne.s32.totalorder %s107, %s108
      %p119 = scmp.eq.s32.totalorder %s26, 0
      %p120 = por %p118, %p119
      %p121 = scmp.ne.s32.totalorder %s107, %s108
      %p122 = scmp.eq.s32.totalorder %s27, 7
      %p123 = por %p121, %p122
      %p125 = scmp.ne.s32.totalorder %s108, %s124
      %p126 = scmp.eq.s32.totalorder %s27, 0
      %p127 = por %p125, %p126
      %s129 = sadd.s32 %s128, 1
      %p132 = scmp.eq.s32.totalorder %s21, 7
      %p133 = scmp.ne.s32.totalorder %s128, %s130
      %p134 = scmp.eq.s32.totalorder %s21, 0
      %p135 = por %p133, %p134
      %p136 = scmp.ne.s32.totalorder %s128, %s130
      %p137 = scmp.eq.s32.totalorder %s26, 7
      %p138 = por %p136, %p137
      %p139 = scmp.ne.s32.totalorder %s130, %s131
      %p140 = scmp.eq.s32.totalorder %s26, 0
      %p141 = por %p139, %p140
      %p142 = scmp.ne.s32.totalorder %s130, %s131
      %p143 = scmp.eq.s32.totalorder %s27, 7
      %p144 = por %p142, %p143
      %p146 = scmp.ne.s32.totalorder %s131, %s145
      %p147 = scmp.eq.s32.totalorder %s27, 0
      %p148 = por %p146, %p147
      %s150 = sadd.s32 %s149, 1
      %p153 = scmp.eq.s32.totalorder %s21, 7
      %p154 = scmp.ne.s32.totalorder %s149, %s151
      %p155 = scmp.eq.s32.totalorder %s21, 0
      %p156 = por %p154, %p155
      %p157 = scmp.ne.s32.totalorder %s149, %s151
      %p158 = scmp.eq.s32.totalorder %s26, 7
      %p159 = por %p157, %p158
      %p160 = scmp.ne.s32.totalorder %s151, %s152
      %p161 = scmp.eq.s32.totalorder %s26, 0
      %p162 = por %p160, %p161
      %p163 = scmp.ne.s32.totalorder %s151, %s152
      %p164 = scmp.eq.s32.totalorder %s27, 7
      %p165 = por %p163, %p164
      %p167 = scmp.ne.s32.totalorder %s152, %s166
      %p168 = scmp.eq.s32.totalorder %s27, 0
      %p169 = por %p167, %p168
      %s171 = sadd.s32 %s170, 1
      %p174 = scmp.eq.s32.totalorder %s21, 7
      %p175 = scmp.ne.s32.totalorder %s170, %s172
      %p176 = scmp.eq.s32.totalorder %s21, 0
      %p177 = por %p175, %p176
      %p178 = scmp.ne.s32.totalorder %s170, %s172
      %p179 = scmp.eq.s32.totalorder %s26, 7
      %p180 = por %p178, %p179
      %p181 = scmp.ne.s32.totalorder %s172, %s173
      %p182 = scmp.eq.s32.totalorder %s26, 0
      %p183 = por %p181, %p182
      %p184 = scmp.ne.s32.totalorder %s172, %s173
      %p185 = scmp.eq.s32.totalorder %s27, 7
      %p186 = por %p184, %p185
      %p188 = scmp.ne.s32.totalorder %s173, %s187
      %p189 = scmp.eq.s32.totalorder %s27, 0
      %p190 = por %p188, %p189
      %s192 = sadd.s32 %s191, 1
      %p195 = scmp.eq.s32.totalorder %s21, 7
      %p196 = scmp.ne.s32.totalorder %s191, %s193
      %p197 = scmp.eq.s32.totalorder %s21, 0
      %p198 = por %p196, %p197
      %p199 = scmp.ne.s32.totalorder %s191, %s193
      %p200 = scmp.eq.s32.totalorder %s26, 7
      %p201 = por %p199, %p200
      %p202 = scmp.ne.s32.totalorder %s193, %s194
      %p203 = scmp.eq.s32.totalorder %s26, 0
      %p204 = por %p202, %p203
      %p205 = scmp.ne.s32.totalorder %s193, %s194
      %p206 = scmp.eq.s32.totalorder %s27, 7
      %p207 = por %p205, %p206
      %p209 = scmp.ne.s32.totalorder %s194, %s208
      %p210 = scmp.eq.s32.totalorder %s27, 0
      %p211 = por %p209, %p210
      %p212 = scmp.le.s32.totalorder 1, %s21
      %p213 = scmp.lt.s32.totalorder %s21, 9
      %p214 = pnand %p212, %p213
      %p215 = pneg %p214
      // Predicated region
      $region9: #{blnet_forward.3} parent=5 // pred_check
        _
      $region10: #{blnet_forward.3} parent=5 // pred_check_branch
        %217 = sbr.rel (%p214) target = $region12
      $region11: #{blnet_forward.3} parent=5 // pred_region
        %s218 = ssub.s32 %s21, 1
        // Predicated region
        $region13: #{blnet_forward.3} parent=11 // pred_check
          %p219 = pneg %p42
        $region14: #{blnet_forward.3} parent=11 // pred_check_branch
          %221 = sbr.rel (%p219) target = $region16
        $region15: #{blnet_forward.3} parent=11 // pred_region
          _
        $region16: #{blnet_forward.3} parent=11 // pred_fallthru
          _
        // Predicated region
        $region17: #{blnet_forward.3} parent=11 // pred_check
          %p222 = pneg %p141
        $region18: #{blnet_forward.3} parent=11 // pred_check_branch
          %224 = sbr.rel (%p222) target = $region20
        $region19: #{blnet_forward.3} parent=11 // pred_region
          _
        $region20: #{blnet_forward.3} parent=11 // pred_fallthru
          _
        // Predicated region
        $region21: #{blnet_forward.3} parent=11 // pred_check
          %p225 = pneg %p162
        $region22: #{blnet_forward.3} parent=11 // pred_check_branch
          %227 = sbr.rel (%p225) target = $region24
        $region23: #{blnet_forward.3} parent=11 // pred_region
          %229 = vsyncadd [#allocation10], 0
          %s231 = sshll.u32 %s5, 4
          %s232 = int_to_ptr.hbm [resolvable:$true] %s231
          %s233 = sshll.u32 [#allocation9], 4
          %s234 = int_to_ptr.vmem [resolvable:$true] %s233
          %236 = dma.hbm_to_vmem [thread:$0]  %s232, 128, %s234, [#allocation10]
        $region24: #{blnet_forward.3} parent=11 // pred_fallthru
          _
        // Predicated region
        $region25: #{blnet_forward.3} parent=11 // pred_check
          %p237 = pneg %p183
        $region26: #{blnet_forward.3} parent=11 // pred_check_branch
          %239 = sbr.rel (%p237) target = $region28
        $region27: #{blnet_forward.3} parent=11 // pred_region
          %241 = vsyncadd [#allocation10], 0
          %s243 = sshll.u32 %s6, 4
          %s244 = int_to_ptr.hbm [resolvable:$true] %s243
          %s245 = sshll.u32 [#allocation11], 4
          %s246 = int_to_ptr.vmem [resolvable:$true] %s245
          %248 = dma.hbm_to_vmem [thread:$0]  %s244, 16, %s246, [#allocation10]
        $region28: #{blnet_forward.3} parent=11 // pred_fallthru
          _
      $region12: #{blnet_forward.3} parent=5 // pred_fallthru
        _
      %p249 = scmp.lt.s32.totalorder %s21, 8
      // Predicated region
      $region29: #{blnet_forward.3} parent=5 // pred_check
        %p250 = pneg %p249
      $region30: #{blnet_forward.3} parent=5 // pred_check_branch
        %252 = sbr.rel (%p250) target = $region32
      $region31: #{blnet_forward.3} parent=5 // pred_region
        // Predicated region
        $region33: #{blnet_forward.3} parent=31 // pred_check
          %p253 = pneg %p62
        $region34: #{blnet_forward.3} parent=31 // pred_check_branch
          %255 = sbr.rel (%p253) target = $region36
        $region35: #{blnet_forward.3} parent=31 // pred_region
          %s256 = sand.u32 %s52, 1
          %s257 = scalar_lea.sflag [#allocation4], %s256
          %s258 = sand.u32 %s52, 1
          %s259 = smul.addr %s258, 1024
          %s260 = scalar_lea.vmem [#allocation3], %s259
          %s261 = smul.u32 4, %s21
          %263 = vsyncadd %s257, 0
          %s264 = smul.addr %s261, 4
          %s265 = scalar_lea.hbm %s1, %s264
          %s266 = sshll.u32 %s265, 4
          %s267 = int_to_ptr.hbm [resolvable:$true] %s266
          %s268 = sshll.u32 %s260, 4
          %s269 = int_to_ptr.vmem [resolvable:$true] %s268
          %274 = dma.hbm_to_vmem [thread:$0]  %s267, 16384, %s269, %s257, 2048, 256, 16
        $region36: #{blnet_forward.3} parent=31 // pred_fallthru
          _
        // Predicated region
        $region37: #{blnet_forward.3} parent=31 // pred_check
          %p275 = pneg %p88
        $region38: #{blnet_forward.3} parent=31 // pred_check_branch
          %277 = sbr.rel (%p275) target = $region40
        $region39: #{blnet_forward.3} parent=31 // pred_region
          %s278 = sand.u32 %s21, 1
          %s279 = scalar_lea.sflag [#allocation7], %s278
          %s280 = sand.u32 %s78, 1
          %s281 = smul.addr %s280, 4
          %s282 = scalar_lea.vmem [#allocation6], %s281
          %s283 = smul.u32 4, %s21
          %285 = vsyncadd %s279, 0
          %s286 = scalar_lea.hbm %s2, %s283
          %s288 = sshll.u32 %s286, 4
          %s289 = int_to_ptr.hbm [resolvable:$true] %s288
          %s290 = sshll.u32 %s282, 4
          %s291 = int_to_ptr.vmem [resolvable:$true] %s290
          %293 = dma.hbm_to_vmem [thread:$0]  %s289, 64, %s291, %s279
        $region40: #{blnet_forward.3} parent=31 // pred_fallthru
          _
        // Predicated region
        $region41: #{blnet_forward.3} parent=31 // pred_check
          %p294 = pneg %p114
        $region42: #{blnet_forward.3} parent=31 // pred_check_branch
          %296 = sbr.rel (%p294) target = $region44
        $region43: #{blnet_forward.3} parent=31 // pred_region
          %s297 = sand.u32 %s21, 1
          %s298 = scalar_lea.sflag [#allocation7], %s297
          %s299 = sand.u32 %s104, 1
          %s300 = smul.addr %s299, 2048
          %s301 = scalar_lea.vmem [#allocation8], %s300
          %s302 = smul.u32 64, %s21
          %304 = vsyncadd %s298, 0
          %s305 = smul.addr %s302, 8
          %s306 = smul.addr %s305, 4
          %s307 = scalar_lea.hbm %s3, %s306
          %s308 = sshll.u32 %s307, 4
          %s309 = int_to_ptr.hbm [resolvable:$true] %s308
          %s310 = sshll.u32 %s301, 4
          %s311 = int_to_ptr.vmem [resolvable:$true] %s310
          %316 = dma.hbm_to_vmem [thread:$0]  %s309, 32768, %s311, %s298, 512, 512, 32
        $region44: #{blnet_forward.3} parent=31 // pred_fallthru
          _
      $region32: #{blnet_forward.3} parent=5 // pred_fallthru
        _
      %p317 = scmp.le.s32.totalorder 1, %s21
      %p318 = scmp.lt.s32.totalorder %s21, 9
      %p319 = pnand %p317, %p318
      %p320 = pneg %p319
      // Predicated region
      $region45: #{blnet_forward.3} parent=5 // pred_check
        _
      $region46: #{blnet_forward.3} parent=5 // pred_check_branch
        %322 = sbr.rel (%p319) target = $region48
      $region47: #{blnet_forward.3} parent=5 // pred_region
        %s323 = ssub.s32 %s21, 1
        %s324 = sand.u32 %s55, 1
        %s325 = scalar_lea.sflag [#allocation4], %s324
        %s326 = sand.u32 %s55, 1
        %s327 = smul.addr %s326, 1024
        %s328 = scalar_lea.vmem [#allocation3], %s327
        // Predicated region
        $region49: #{blnet_forward.3} parent=47 // pred_check
          %p329 = pneg %p68
        $region50: #{blnet_forward.3} parent=47 // pred_check_branch
          %331 = sbr.rel (%p329) target = $region52
        $region51: #{blnet_forward.3} parent=47 // pred_region
          %333 = dma.done %s325, 16384
        $region52: #{blnet_forward.3} parent=47 // pred_fallthru
          _
        %s334 = sand.u32 %s26, 1
        %s335 = scalar_lea.sflag [#allocation7], %s334
        %s336 = sand.u32 %s81, 1
        %s337 = smul.addr %s336, 4
        %s338 = scalar_lea.vmem [#allocation6], %s337
        // Predicated region
        $region53: #{blnet_forward.3} parent=47 // pred_check
          %p339 = pneg %p94
        $region54: #{blnet_forward.3} parent=47 // pred_check_branch
          %341 = sbr.rel (%p339) target = $region56
        $region55: #{blnet_forward.3} parent=47 // pred_region
          %343 = dma.done %s335, 64
        $region56: #{blnet_forward.3} parent=47 // pred_fallthru
          _
        %s344 = sand.u32 %s26, 1
        %s345 = scalar_lea.sflag [#allocation7], %s344
        %s346 = sand.u32 %s107, 1
        %s347 = smul.addr %s346, 2048
        %s348 = scalar_lea.vmem [#allocation8], %s347
        // Predicated region
        $region57: #{blnet_forward.3} parent=47 // pred_check
          %p349 = pneg %p120
        $region58: #{blnet_forward.3} parent=47 // pred_check_branch
          %351 = sbr.rel (%p349) target = $region60
        $region59: #{blnet_forward.3} parent=47 // pred_region
          %353 = dma.done %s345, 32768
        $region60: #{blnet_forward.3} parent=47 // pred_fallthru
          _
        // Predicated region
        $region61: #{blnet_forward.3} parent=47 // pred_check
          %p354 = pneg %p162
        $region62: #{blnet_forward.3} parent=47 // pred_check_branch
          %356 = sbr.rel (%p354) target = $region64
        $region63: #{blnet_forward.3} parent=47 // pred_region
          %358 = dma.done [#allocation10], 128
        $region64: #{blnet_forward.3} parent=47 // pred_fallthru
          _
        // Predicated region
        $region65: #{blnet_forward.3} parent=47 // pred_check
          %p359 = pneg %p183
        $region66: #{blnet_forward.3} parent=47 // pred_check_branch
          %361 = sbr.rel (%p359) target = $region68
        $region67: #{blnet_forward.3} parent=47 // pred_region
          %363 = dma.done [#allocation10], 16
        $region68: #{blnet_forward.3} parent=47 // pred_fallthru
          _
        %p364 = pneg %p42
        %p365 = pneg %p39
        %s366 = sand.u32 %s55, 1
        %s367 = scalar_lea.sflag [#allocation4], %s366
        %s368 = sand.u32 %s55, 1
        %s369 = smul.addr %s368, 1024
        %s370 = scalar_lea.vmem [#allocation3], %s369
        %p371 = pneg %p68
        %p372 = pneg %p65
        %s373 = sand.u32 %s26, 1
        %s374 = scalar_lea.sflag [#allocation7], %s373
        %s375 = sand.u32 %s81, 1
        %s376 = smul.addr %s375, 4
        %s377 = scalar_lea.vmem [#allocation6], %s376
        %p378 = pneg %p94
        %p379 = pneg %p91
        %s380 = sand.u32 %s26, 1
        %s381 = scalar_lea.sflag [#allocation7], %s380
        %s382 = sand.u32 %s107, 1
        %s383 = smul.addr %s382, 2048
        %s384 = scalar_lea.vmem [#allocation8], %s383
        %p385 = pneg %p120
        %p386 = pneg %p117
        %p387 = pneg %p141
        %p388 = pneg %p138
        %p389 = pneg %p162
        %p390 = pneg %p159
        %p391 = pneg %p183
        %p392 = pneg %p180
        %p393 = pneg %p204
        %p394 = pneg %p201
        %s395 = smul.u32 4, %s26
        %s396 = smul.u32 4, %s26
        %s397 = smul.u32 64, %s26
        %p398 = scmp.eq.s32.totalorder %s26, 0
        // Predicated region
        $region69: #{blnet_forward.3} parent=47 // pred_check
          %p399 = pneg %p398
        $region70: #{blnet_forward.3} parent=47 // pred_check_branch
          %401 = sbr.rel (%p399) target = $region72
        $region71: #{blnet_forward.3} parent=47 // pred_region
          %402 = vst [vmem:[#allocation2] sm:$0xff] 0.0
          %403 = vst [vmem:[#allocation2 + $0x8] sm:$0xff] 0.0
        $region72: #{blnet_forward.3} parent=47 // pred_fallthru
          _
        %v404 = vld [vmem:[%s0] sm:$0xff]
        %406 = vst [vmem:[#allocation1] ss:$4 sm:$0xff] %v404
        %v407 = vld.sshfl [vmem:[#allocation1] sm:$0xff pattern:$0x73625140]
        %v408 = vld.sshfl [vmem:[#allocation1 + $0x8] sm:$0xff pattern:$0x73625140]
        %v409 = vld.sshfl [vmem:[#allocation1 + $0x10] sm:$0xff pattern:$0x73625140]
        %v410 = vld.sshfl [vmem:[#allocation1 + $0x18] sm:$0xff pattern:$0x73625140]
        %v415 = vpack.c.bf16 %v407, %v407
        %v416 = vpack.c.bf16 %v408, %v408
        %v417 = vpack.c.bf16 %v409, %v409
        %v418 = vpack.c.bf16 %v410, %v410
        %v419 = vld [vmem:[%s328] sm:$0xff]
        %v420 = vld [vmem:[%s328 + $0x8] sm:$0xff]
        %v421 = vld [vmem:[%s328 + $0x10] sm:$0xff]
        %v422 = vld [vmem:[%s328 + $0x18] sm:$0xff]
        %v423 = vld [vmem:[%s328 + $0x20] sm:$0xff]
        %v424 = vld [vmem:[%s328 + $0x28] sm:$0xff]
        %v425 = vld [vmem:[%s328 + $0x30] sm:$0xff]
        %v426 = vld [vmem:[%s328 + $0x38] sm:$0xff]
        %v427 = vld [vmem:[%s328 + $0x40] sm:$0xff]
        %v428 = vld [vmem:[%s328 + $0x48] sm:$0xff]
        %v429 = vld [vmem:[%s328 + $0x50] sm:$0xff]
        %v430 = vld [vmem:[%s328 + $0x58] sm:$0xff]
        %v431 = vld [vmem:[%s328 + $0x60] sm:$0xff]
        %v432 = vld [vmem:[%s328 + $0x68] sm:$0xff]
        %v433 = vld [vmem:[%s328 + $0x70] sm:$0xff]
        %v434 = vld [vmem:[%s328 + $0x78] sm:$0xff]
        %v435 = vld [vmem:[%s328 + $0x80] sm:$0xff]
        %v436 = vld [vmem:[%s328 + $0x88] sm:$0xff]
        %v437 = vld [vmem:[%s328 + $0x90] sm:$0xff]
        %v438 = vld [vmem:[%s328 + $0x98] sm:$0xff]
        %v439 = vld [vmem:[%s328 + $0xa0] sm:$0xff]
        %v440 = vld [vmem:[%s328 + $0xa8] sm:$0xff]
        %v441 = vld [vmem:[%s328 + $0xb0] sm:$0xff]
        %v442 = vld [vmem:[%s328 + $0xb8] sm:$0xff]
        %v443 = vld [vmem:[%s328 + $0xc0] sm:$0xff]
        %v444 = vld [vmem:[%s328 + $0xc8] sm:$0xff]
        %v445 = vld [vmem:[%s328 + $0xd0] sm:$0xff]
        %v446 = vld [vmem:[%s328 + $0xd8] sm:$0xff]
        %v447 = vld [vmem:[%s328 + $0xe0] sm:$0xff]
        %v448 = vld [vmem:[%s328 + $0xe8] sm:$0xff]
        %v449 = vld [vmem:[%s328 + $0xf0] sm:$0xff]
        %v450 = vld [vmem:[%s328 + $0xf8] sm:$0xff]
        %v451 = vld [vmem:[%s328 + $0x100] sm:$0xff]
        %v452 = vld [vmem:[%s328 + $0x108] sm:$0xff]
        %v453 = vld [vmem:[%s328 + $0x110] sm:$0xff]
        %v454 = vld [vmem:[%s328 + $0x118] sm:$0xff]
        %v455 = vld [vmem:[%s328 + $0x120] sm:$0xff]
        %v456 = vld [vmem:[%s328 + $0x128] sm:$0xff]
        %v457 = vld [vmem:[%s328 + $0x130] sm:$0xff]
        %v458 = vld [vmem:[%s328 + $0x138] sm:$0xff]
        %v459 = vld [vmem:[%s328 + $0x140] sm:$0xff]
        %v460 = vld [vmem:[%s328 + $0x148] sm:$0xff]
        %v461 = vld [vmem:[%s328 + $0x150] sm:$0xff]
        %v462 = vld [vmem:[%s328 + $0x158] sm:$0xff]
        %v463 = vld [vmem:[%s328 + $0x160] sm:$0xff]
        %v464 = vld [vmem:[%s328 + $0x168] sm:$0xff]
        %v465 = vld [vmem:[%s328 + $0x170] sm:$0xff]
        %v466 = vld [vmem:[%s328 + $0x178] sm:$0xff]
        %v467 = vld [vmem:[%s328 + $0x180] sm:$0xff]
        %v468 = vld [vmem:[%s328 + $0x188] sm:$0xff]
        %v469 = vld [vmem:[%s328 + $0x190] sm:$0xff]
        %v470 = vld [vmem:[%s328 + $0x198] sm:$0xff]
        %v471 = vld [vmem:[%s328 + $0x1a0] sm:$0xff]
        %v472 = vld [vmem:[%s328 + $0x1a8] sm:$0xff]
        %v473 = vld [vmem:[%s328 + $0x1b0] sm:$0xff]
        %v474 = vld [vmem:[%s328 + $0x1b8] sm:$0xff]
        %v475 = vld [vmem:[%s328 + $0x1c0] sm:$0xff]
        %v476 = vld [vmem:[%s328 + $0x1c8] sm:$0xff]
        %v477 = vld [vmem:[%s328 + $0x1d0] sm:$0xff]
        %v478 = vld [vmem:[%s328 + $0x1d8] sm:$0xff]
        %v479 = vld [vmem:[%s328 + $0x1e0] sm:$0xff]
        %v480 = vld [vmem:[%s328 + $0x1e8] sm:$0xff]
        %v481 = vld [vmem:[%s328 + $0x1f0] sm:$0xff]
        %v482 = vld [vmem:[%s328 + $0x1f8] sm:$0xff]
        %v483 = vld [vmem:[%s328 + $0x200] sm:$0xff]
        %v484 = vld [vmem:[%s328 + $0x208] sm:$0xff]
        %v485 = vld [vmem:[%s328 + $0x210] sm:$0xff]
        %v486 = vld [vmem:[%s328 + $0x218] sm:$0xff]
        %v487 = vld [vmem:[%s328 + $0x220] sm:$0xff]
        %v488 = vld [vmem:[%s328 + $0x228] sm:$0xff]
        %v489 = vld [vmem:[%s328 + $0x230] sm:$0xff]
        %v490 = vld [vmem:[%s328 + $0x238] sm:$0xff]
        %v491 = vld [vmem:[%s328 + $0x240] sm:$0xff]
        %v492 = vld [vmem:[%s328 + $0x248] sm:$0xff]
        %v493 = vld [vmem:[%s328 + $0x250] sm:$0xff]
        %v494 = vld [vmem:[%s328 + $0x258] sm:$0xff]
        %v495 = vld [vmem:[%s328 + $0x260] sm:$0xff]
        %v496 = vld [vmem:[%s328 + $0x268] sm:$0xff]
        %v497 = vld [vmem:[%s328 + $0x270] sm:$0xff]
        %v498 = vld [vmem:[%s328 + $0x278] sm:$0xff]
        %v499 = vld [vmem:[%s328 + $0x280] sm:$0xff]
        %v500 = vld [vmem:[%s328 + $0x288] sm:$0xff]
        %v501 = vld [vmem:[%s328 + $0x290] sm:$0xff]
        %v502 = vld [vmem:[%s328 + $0x298] sm:$0xff]
        %v503 = vld [vmem:[%s328 + $0x2a0] sm:$0xff]
        %v504 = vld [vmem:[%s328 + $0x2a8] sm:$0xff]
        %v505 = vld [vmem:[%s328 + $0x2b0] sm:$0xff]
        %v506 = vld [vmem:[%s328 + $0x2b8] sm:$0xff]
        %v507 = vld [vmem:[%s328 + $0x2c0] sm:$0xff]
        %v508 = vld [vmem:[%s328 + $0x2c8] sm:$0xff]
        %v509 = vld [vmem:[%s328 + $0x2d0] sm:$0xff]
        %v510 = vld [vmem:[%s328 + $0x2d8] sm:$0xff]
        %v511 = vld [vmem:[%s328 + $0x2e0] sm:$0xff]
        %v512 = vld [vmem:[%s328 + $0x2e8] sm:$0xff]
        %v513 = vld [vmem:[%s328 + $0x2f0] sm:$0xff]
        %v514 = vld [vmem:[%s328 + $0x2f8] sm:$0xff]
        %v515 = vld [vmem:[%s328 + $0x300] sm:$0xff]
        %v516 = vld [vmem:[%s328 + $0x308] sm:$0xff]
        %v517 = vld [vmem:[%s328 + $0x310] sm:$0xff]
        %v518 = vld [vmem:[%s328 + $0x318] sm:$0xff]
        %v519 = vld [vmem:[%s328 + $0x320] sm:$0xff]
        %v520 = vld [vmem:[%s328 + $0x328] sm:$0xff]
        %v521 = vld [vmem:[%s328 + $0x330] sm:$0xff]
        %v522 = vld [vmem:[%s328 + $0x338] sm:$0xff]
        %v523 = vld [vmem:[%s328 + $0x340] sm:$0xff]
        %v524 = vld [vmem:[%s328 + $0x348] sm:$0xff]
        %v525 = vld [vmem:[%s328 + $0x350] sm:$0xff]
        %v526 = vld [vmem:[%s328 + $0x358] sm:$0xff]
        %v527 = vld [vmem:[%s328 + $0x360] sm:$0xff]
        %v528 = vld [vmem:[%s328 + $0x368] sm:$0xff]
        %v529 = vld [vmem:[%s328 + $0x370] sm:$0xff]
        %v530 = vld [vmem:[%s328 + $0x378] sm:$0xff]
        %v531 = vld [vmem:[%s328 + $0x380] sm:$0xff]
        %v532 = vld [vmem:[%s328 + $0x388] sm:$0xff]
        %v533 = vld [vmem:[%s328 + $0x390] sm:$0xff]
        %v534 = vld [vmem:[%s328 + $0x398] sm:$0xff]
        %v535 = vld [vmem:[%s328 + $0x3a0] sm:$0xff]
        %v536 = vld [vmem:[%s328 + $0x3a8] sm:$0xff]
        %v537 = vld [vmem:[%s328 + $0x3b0] sm:$0xff]
        %v538 = vld [vmem:[%s328 + $0x3b8] sm:$0xff]
        %v539 = vld [vmem:[%s328 + $0x3c0] sm:$0xff]
        %v540 = vld [vmem:[%s328 + $0x3c8] sm:$0xff]
        %v541 = vld [vmem:[%s328 + $0x3d0] sm:$0xff]
        %v542 = vld [vmem:[%s328 + $0x3d8] sm:$0xff]
        %v543 = vld [vmem:[%s328 + $0x3e0] sm:$0xff]
        %v544 = vld [vmem:[%s328 + $0x3e8] sm:$0xff]
        %v545 = vld [vmem:[%s328 + $0x3f0] sm:$0xff]
        %v546 = vld [vmem:[%s328 + $0x3f8] sm:$0xff]
        %v547 = vld [vmem:[%s338] sm:$0xf]
        %v549 = vperm.slane %v547, 0
        %v550 = vperm.slane %v547, 1
        %v551 = vperm.slane %v547, 2
        %v552 = vperm.slane %v547, 3
        %v685 = vunpack.c.l.b16 %v419
        %v686 = vunpack.c.h.b16 %v419
        %v687 = vunpack.c.l.b16 %v420
        %v688 = vunpack.c.h.b16 %v420
        %v689 = vunpack.c.l.b16 %v421
        %v690 = vunpack.c.h.b16 %v421
        %v691 = vunpack.c.l.b16 %v422
        %v692 = vunpack.c.h.b16 %v422
        %v693 = vunpack.c.l.b16 %v423
        %v694 = vunpack.c.h.b16 %v423
        %v695 = vunpack.c.l.b16 %v424
        %v696 = vunpack.c.h.b16 %v424
        %v697 = vunpack.c.l.b16 %v425
        %v698 = vunpack.c.h.b16 %v425
        %v699 = vunpack.c.l.b16 %v426
        %v700 = vunpack.c.h.b16 %v426
        %v701 = vunpack.c.l.b16 %v427
        %v702 = vunpack.c.h.b16 %v427
        %v703 = vunpack.c.l.b16 %v428
        %v704 = vunpack.c.h.b16 %v428
        %v705 = vunpack.c.l.b16 %v429
        %v706 = vunpack.c.h.b16 %v429
        %v707 = vunpack.c.l.b16 %v430
        %v708 = vunpack.c.h.b16 %v430
        %v709 = vunpack.c.l.b16 %v431
        %v710 = vunpack.c.h.b16 %v431
        %v711 = vunpack.c.l.b16 %v432
        %v712 = vunpack.c.h.b16 %v432
        %v713 = vunpack.c.l.b16 %v433
        %v714 = vunpack.c.h.b16 %v433
        %v715 = vunpack.c.l.b16 %v434
        %v716 = vunpack.c.h.b16 %v434
        %v717 = vunpack.c.l.b16 %v435
        %v718 = vunpack.c.h.b16 %v435
        %v719 = vunpack.c.l.b16 %v436
        %v720 = vunpack.c.h.b16 %v436
        %v721 = vunpack.c.l.b16 %v437
        %v722 = vunpack.c.h.b16 %v437
        %v723 = vunpack.c.l.b16 %v438
        %v724 = vunpack.c.h.b16 %v438
        %v725 = vunpack.c.l.b16 %v439
        %v726 = vunpack.c.h.b16 %v439
        %v727 = vunpack.c.l.b16 %v440
        %v728 = vunpack.c.h.b16 %v440
        %v729 = vunpack.c.l.b16 %v441
        %v730 = vunpack.c.h.b16 %v441
        %v731 = vunpack.c.l.b16 %v442
        %v732 = vunpack.c.h.b16 %v442
        %v733 = vunpack.c.l.b16 %v443
        %v734 = vunpack.c.h.b16 %v443
        %v735 = vunpack.c.l.b16 %v444
        %v736 = vunpack.c.h.b16 %v444
        %v737 = vunpack.c.l.b16 %v445
        %v738 = vunpack.c.h.b16 %v445
        %v739 = vunpack.c.l.b16 %v446
        %v740 = vunpack.c.h.b16 %v446
        %v741 = vunpack.c.l.b16 %v447
        %v742 = vunpack.c.h.b16 %v447
        %v743 = vunpack.c.l.b16 %v448
        %v744 = vunpack.c.h.b16 %v448
        %v745 = vunpack.c.l.b16 %v449
        %v746 = vunpack.c.h.b16 %v449
        %v747 = vunpack.c.l.b16 %v450
        %v748 = vunpack.c.h.b16 %v450
        %v749 = vunpack.c.l.b16 %v451
        %v750 = vunpack.c.h.b16 %v451
        %v751 = vunpack.c.l.b16 %v452
        %v752 = vunpack.c.h.b16 %v452
        %v753 = vunpack.c.l.b16 %v453
        %v754 = vunpack.c.h.b16 %v453
        %v755 = vunpack.c.l.b16 %v454
        %v756 = vunpack.c.h.b16 %v454
        %v757 = vunpack.c.l.b16 %v455
        %v758 = vunpack.c.h.b16 %v455
        %v759 = vunpack.c.l.b16 %v456
        %v760 = vunpack.c.h.b16 %v456
        %v761 = vunpack.c.l.b16 %v457
        %v762 = vunpack.c.h.b16 %v457
        %v763 = vunpack.c.l.b16 %v458
        %v764 = vunpack.c.h.b16 %v458
        %v765 = vunpack.c.l.b16 %v459
        %v766 = vunpack.c.h.b16 %v459
        %v767 = vunpack.c.l.b16 %v460
        %v768 = vunpack.c.h.b16 %v460
        %v769 = vunpack.c.l.b16 %v461
        %v770 = vunpack.c.h.b16 %v461
        %v771 = vunpack.c.l.b16 %v462
        %v772 = vunpack.c.h.b16 %v462
        %v773 = vunpack.c.l.b16 %v463
        %v774 = vunpack.c.h.b16 %v463
        %v775 = vunpack.c.l.b16 %v464
        %v776 = vunpack.c.h.b16 %v464
        %v777 = vunpack.c.l.b16 %v465
        %v778 = vunpack.c.h.b16 %v465
        %v779 = vunpack.c.l.b16 %v466
        %v780 = vunpack.c.h.b16 %v466
        %v781 = vunpack.c.l.b16 %v467
        %v782 = vunpack.c.h.b16 %v467
        %v783 = vunpack.c.l.b16 %v468
        %v784 = vunpack.c.h.b16 %v468
        %v785 = vunpack.c.l.b16 %v469
        %v786 = vunpack.c.h.b16 %v469
        %v787 = vunpack.c.l.b16 %v470
        %v788 = vunpack.c.h.b16 %v470
        %v789 = vunpack.c.l.b16 %v471
        %v790 = vunpack.c.h.b16 %v471
        %v791 = vunpack.c.l.b16 %v472
        %v792 = vunpack.c.h.b16 %v472
        %v793 = vunpack.c.l.b16 %v473
        %v794 = vunpack.c.h.b16 %v473
        %v795 = vunpack.c.l.b16 %v474
        %v796 = vunpack.c.h.b16 %v474
        %v797 = vunpack.c.l.b16 %v475
        %v798 = vunpack.c.h.b16 %v475
        %v799 = vunpack.c.l.b16 %v476
        %v800 = vunpack.c.h.b16 %v476
        %v801 = vunpack.c.l.b16 %v477
        %v802 = vunpack.c.h.b16 %v477
        %v803 = vunpack.c.l.b16 %v478
        %v804 = vunpack.c.h.b16 %v478
        %v805 = vunpack.c.l.b16 %v479
        %v806 = vunpack.c.h.b16 %v479
        %v807 = vunpack.c.l.b16 %v480
        %v808 = vunpack.c.h.b16 %v480
        %v809 = vunpack.c.l.b16 %v481
        %v810 = vunpack.c.h.b16 %v481
        %v811 = vunpack.c.l.b16 %v482
        %v812 = vunpack.c.h.b16 %v482
        %v813 = vunpack.c.l.b16 %v483
        %v814 = vunpack.c.h.b16 %v483
        %v815 = vunpack.c.l.b16 %v484
        %v816 = vunpack.c.h.b16 %v484
        %v817 = vunpack.c.l.b16 %v485
        %v818 = vunpack.c.h.b16 %v485
        %v819 = vunpack.c.l.b16 %v486
        %v820 = vunpack.c.h.b16 %v486
        %v821 = vunpack.c.l.b16 %v487
        %v822 = vunpack.c.h.b16 %v487
        %v823 = vunpack.c.l.b16 %v488
        %v824 = vunpack.c.h.b16 %v488
        %v825 = vunpack.c.l.b16 %v489
        %v826 = vunpack.c.h.b16 %v489
        %v827 = vunpack.c.l.b16 %v490
        %v828 = vunpack.c.h.b16 %v490
        %v829 = vunpack.c.l.b16 %v491
        %v830 = vunpack.c.h.b16 %v491
        %v831 = vunpack.c.l.b16 %v492
        %v832 = vunpack.c.h.b16 %v492
        %v833 = vunpack.c.l.b16 %v493
        %v834 = vunpack.c.h.b16 %v493
        %v835 = vunpack.c.l.b16 %v494
        %v836 = vunpack.c.h.b16 %v494
        %v837 = vunpack.c.l.b16 %v495
        %v838 = vunpack.c.h.b16 %v495
        %v839 = vunpack.c.l.b16 %v496
        %v840 = vunpack.c.h.b16 %v496
        %v841 = vunpack.c.l.b16 %v497
        %v842 = vunpack.c.h.b16 %v497
        %v843 = vunpack.c.l.b16 %v498
        %v844 = vunpack.c.h.b16 %v498
        %v845 = vunpack.c.l.b16 %v499
        %v846 = vunpack.c.h.b16 %v499
        %v847 = vunpack.c.l.b16 %v500
        %v848 = vunpack.c.h.b16 %v500
        %v849 = vunpack.c.l.b16 %v501
        %v850 = vunpack.c.h.b16 %v501
        %v851 = vunpack.c.l.b16 %v502
        %v852 = vunpack.c.h.b16 %v502
        %v853 = vunpack.c.l.b16 %v503
        %v854 = vunpack.c.h.b16 %v503
        %v855 = vunpack.c.l.b16 %v504
        %v856 = vunpack.c.h.b16 %v504
        %v857 = vunpack.c.l.b16 %v505
        %v858 = vunpack.c.h.b16 %v505
        %v859 = vunpack.c.l.b16 %v506
        %v860 = vunpack.c.h.b16 %v506
        %v861 = vunpack.c.l.b16 %v507
        %v862 = vunpack.c.h.b16 %v507
        %v863 = vunpack.c.l.b16 %v508
        %v864 = vunpack.c.h.b16 %v508
        %v865 = vunpack.c.l.b16 %v509
        %v866 = vunpack.c.h.b16 %v509
        %v867 = vunpack.c.l.b16 %v510
        %v868 = vunpack.c.h.b16 %v510
        %v869 = vunpack.c.l.b16 %v511
        %v870 = vunpack.c.h.b16 %v511
        %v871 = vunpack.c.l.b16 %v512
        %v872 = vunpack.c.h.b16 %v512
        %v873 = vunpack.c.l.b16 %v513
        %v874 = vunpack.c.h.b16 %v513
        %v875 = vunpack.c.l.b16 %v514
        %v876 = vunpack.c.h.b16 %v514
        %v877 = vunpack.c.l.b16 %v515
        %v878 = vunpack.c.h.b16 %v515
        %v879 = vunpack.c.l.b16 %v516
        %v880 = vunpack.c.h.b16 %v516
        %v881 = vunpack.c.l.b16 %v517
        %v882 = vunpack.c.h.b16 %v517
        %v883 = vunpack.c.l.b16 %v518
        %v884 = vunpack.c.h.b16 %v518
        %v885 = vunpack.c.l.b16 %v519
        %v886 = vunpack.c.h.b16 %v519
        %v887 = vunpack.c.l.b16 %v520
        %v888 = vunpack.c.h.b16 %v520
        %v889 = vunpack.c.l.b16 %v521
        %v890 = vunpack.c.h.b16 %v521
        %v891 = vunpack.c.l.b16 %v522
        %v892 = vunpack.c.h.b16 %v522
        %v893 = vunpack.c.l.b16 %v523
        %v894 = vunpack.c.h.b16 %v523
        %v895 = vunpack.c.l.b16 %v524
        %v896 = vunpack.c.h.b16 %v524
        %v897 = vunpack.c.l.b16 %v525
        %v898 = vunpack.c.h.b16 %v525
        %v899 = vunpack.c.l.b16 %v526
        %v900 = vunpack.c.h.b16 %v526
        %v901 = vunpack.c.l.b16 %v527
        %v902 = vunpack.c.h.b16 %v527
        %v903 = vunpack.c.l.b16 %v528
        %v904 = vunpack.c.h.b16 %v528
        %v905 = vunpack.c.l.b16 %v529
        %v906 = vunpack.c.h.b16 %v529
        %v907 = vunpack.c.l.b16 %v530
        %v908 = vunpack.c.h.b16 %v530
        %v909 = vunpack.c.l.b16 %v531
        %v910 = vunpack.c.h.b16 %v531
        %v911 = vunpack.c.l.b16 %v532
        %v912 = vunpack.c.h.b16 %v532
        %v913 = vunpack.c.l.b16 %v533
        %v914 = vunpack.c.h.b16 %v533
        %v915 = vunpack.c.l.b16 %v534
        %v916 = vunpack.c.h.b16 %v534
        %v917 = vunpack.c.l.b16 %v535
        %v918 = vunpack.c.h.b16 %v535
        %v919 = vunpack.c.l.b16 %v536
        %v920 = vunpack.c.h.b16 %v536
        %v921 = vunpack.c.l.b16 %v537
        %v922 = vunpack.c.h.b16 %v537
        %v923 = vunpack.c.l.b16 %v538
        %v924 = vunpack.c.h.b16 %v538
        %v925 = vunpack.c.l.b16 %v539
        %v926 = vunpack.c.h.b16 %v539
        %v927 = vunpack.c.l.b16 %v540
        %v928 = vunpack.c.h.b16 %v540
        %v929 = vunpack.c.l.b16 %v541
        %v930 = vunpack.c.h.b16 %v541
        %v931 = vunpack.c.l.b16 %v542
        %v932 = vunpack.c.h.b16 %v542
        %v933 = vunpack.c.l.b16 %v543
        %v934 = vunpack.c.h.b16 %v543
        %v935 = vunpack.c.l.b16 %v544
        %v936 = vunpack.c.h.b16 %v544
        %v937 = vunpack.c.l.b16 %v545
        %v938 = vunpack.c.h.b16 %v545
        %v939 = vunpack.c.l.b16 %v546
        %v940 = vunpack.c.h.b16 %v546
        %v941 = vpack.c.b16 %v689, %v685
        %v942 = vpack.c.b16 %v690, %v686
        %v943 = vpack.c.b16 %v691, %v687
        %v944 = vpack.c.b16 %v692, %v688
        %v945 = vpack.c.b16 %v697, %v693
        %v946 = vpack.c.b16 %v698, %v694
        %v947 = vpack.c.b16 %v699, %v695
        %v948 = vpack.c.b16 %v700, %v696
        %v949 = vpack.c.b16 %v705, %v701
        %v950 = vpack.c.b16 %v706, %v702
        %v951 = vpack.c.b16 %v707, %v703
        %v952 = vpack.c.b16 %v708, %v704
        %v953 = vpack.c.b16 %v713, %v709
        %v954 = vpack.c.b16 %v714, %v710
        %v955 = vpack.c.b16 %v715, %v711
        %v956 = vpack.c.b16 %v716, %v712
        %v957 = vpack.c.b16 %v721, %v717
        %v958 = vpack.c.b16 %v722, %v718
        %v959 = vpack.c.b16 %v723, %v719
        %v960 = vpack.c.b16 %v724, %v720
        %v961 = vpack.c.b16 %v729, %v725
        %v962 = vpack.c.b16 %v730, %v726
        %v963 = vpack.c.b16 %v731, %v727
        %v964 = vpack.c.b16 %v732, %v728
        %v965 = vpack.c.b16 %v737, %v733
        %v966 = vpack.c.b16 %v738, %v734
        %v967 = vpack.c.b16 %v739, %v735
        %v968 = vpack.c.b16 %v740, %v736
        %v969 = vpack.c.b16 %v745, %v741
        %v970 = vpack.c.b16 %v746, %v742
        %v971 = vpack.c.b16 %v747, %v743
        %v972 = vpack.c.b16 %v748, %v744
        %v973 = vpack.c.b16 %v753, %v749
        %v974 = vpack.c.b16 %v754, %v750
        %v975 = vpack.c.b16 %v755, %v751
        %v976 = vpack.c.b16 %v756, %v752
        %v977 = vpack.c.b16 %v761, %v757
        %v978 = vpack.c.b16 %v762, %v758
        %v979 = vpack.c.b16 %v763, %v759
        %v980 = vpack.c.b16 %v764, %v760
        %v981 = vpack.c.b16 %v769, %v765
        %v982 = vpack.c.b16 %v770, %v766
        %v983 = vpack.c.b16 %v771, %v767
        %v984 = vpack.c.b16 %v772, %v768
        %v985 = vpack.c.b16 %v777, %v773
        %v986 = vpack.c.b16 %v778, %v774
        %v987 = vpack.c.b16 %v779, %v775
        %v988 = vpack.c.b16 %v780, %v776
        %v989 = vpack.c.b16 %v785, %v781
        %v990 = vpack.c.b16 %v786, %v782
        %v991 = vpack.c.b16 %v787, %v783
        %v992 = vpack.c.b16 %v788, %v784
        %v993 = vpack.c.b16 %v793, %v789
        %v994 = vpack.c.b16 %v794, %v790
        %v995 = vpack.c.b16 %v795, %v791
        %v996 = vpack.c.b16 %v796, %v792
        %v997 = vpack.c.b16 %v801, %v797
        %v998 = vpack.c.b16 %v802, %v798
        %v999 = vpack.c.b16 %v803, %v799
        %v1000 = vpack.c.b16 %v804, %v800
        %v1001 = vpack.c.b16 %v809, %v805
        %v1002 = vpack.c.b16 %v810, %v806
        %v1003 = vpack.c.b16 %v811, %v807
        %v1004 = vpack.c.b16 %v812, %v808
        %v1005 = vpack.c.b16 %v817, %v813
        %v1006 = vpack.c.b16 %v818, %v814
        %v1007 = vpack.c.b16 %v819, %v815
        %v1008 = vpack.c.b16 %v820, %v816
        %v1009 = vpack.c.b16 %v825, %v821
        %v1010 = vpack.c.b16 %v826, %v822
        %v1011 = vpack.c.b16 %v827, %v823
        %v1012 = vpack.c.b16 %v828, %v824
        %v1013 = vpack.c.b16 %v833, %v829
        %v1014 = vpack.c.b16 %v834, %v830
        %v1015 = vpack.c.b16 %v835, %v831
        %v1016 = vpack.c.b16 %v836, %v832
        %v1017 = vpack.c.b16 %v841, %v837
        %v1018 = vpack.c.b16 %v842, %v838
        %v1019 = vpack.c.b16 %v843, %v839
        %v1020 = vpack.c.b16 %v844, %v840
        %v1021 = vpack.c.b16 %v849, %v845
        %v1022 = vpack.c.b16 %v850, %v846
        %v1023 = vpack.c.b16 %v851, %v847
        %v1024 = vpack.c.b16 %v852, %v848
        %v1025 = vpack.c.b16 %v857, %v853
        %v1026 = vpack.c.b16 %v858, %v854
        %v1027 = vpack.c.b16 %v859, %v855
        %v1028 = vpack.c.b16 %v860, %v856
        %v1029 = vpack.c.b16 %v865, %v861
        %v1030 = vpack.c.b16 %v866, %v862
        %v1031 = vpack.c.b16 %v867, %v863
        %v1032 = vpack.c.b16 %v868, %v864
        %v1033 = vpack.c.b16 %v873, %v869
        %v1034 = vpack.c.b16 %v874, %v870
        %v1035 = vpack.c.b16 %v875, %v871
        %v1036 = vpack.c.b16 %v876, %v872
        %v1037 = vpack.c.b16 %v881, %v877
        %v1038 = vpack.c.b16 %v882, %v878
        %v1039 = vpack.c.b16 %v883, %v879
        %v1040 = vpack.c.b16 %v884, %v880
        %v1041 = vpack.c.b16 %v889, %v885
        %v1042 = vpack.c.b16 %v890, %v886
        %v1043 = vpack.c.b16 %v891, %v887
        %v1044 = vpack.c.b16 %v892, %v888
        %v1045 = vpack.c.b16 %v897, %v893
        %v1046 = vpack.c.b16 %v898, %v894
        %v1047 = vpack.c.b16 %v899, %v895
        %v1048 = vpack.c.b16 %v900, %v896
        %v1049 = vpack.c.b16 %v905, %v901
        %v1050 = vpack.c.b16 %v906, %v902
        %v1051 = vpack.c.b16 %v907, %v903
        %v1052 = vpack.c.b16 %v908, %v904
        %v1053 = vpack.c.b16 %v913, %v909
        %v1054 = vpack.c.b16 %v914, %v910
        %v1055 = vpack.c.b16 %v915, %v911
        %v1056 = vpack.c.b16 %v916, %v912
        %v1057 = vpack.c.b16 %v921, %v917
        %v1058 = vpack.c.b16 %v922, %v918
        %v1059 = vpack.c.b16 %v923, %v919
        %v1060 = vpack.c.b16 %v924, %v920
        %v1061 = vpack.c.b16 %v929, %v925
        %v1062 = vpack.c.b16 %v930, %v926
        %v1063 = vpack.c.b16 %v931, %v927
        %v1064 = vpack.c.b16 %v932, %v928
        %v1065 = vpack.c.b16 %v937, %v933
        %v1066 = vpack.c.b16 %v938, %v934
        %v1067 = vpack.c.b16 %v939, %v935
        %v1068 = vpack.c.b16 %v940, %v936
        %1197 = vmatpush.bf16.msra.mxu0 %v969
        %1198 = vmatpush.bf16.msra.mxu0 %v965
        %1199 = vmatpush.bf16.msra.mxu0 %v961
        %1200 = vmatpush.bf16.msra.mxu0 %v957
        %1201 = vmatpush.bf16.msra.mxu0 %v953
        %1202 = vmatpush.bf16.msra.mxu0 %v949
        %1203 = vmatpush.bf16.msra.mxu0 %v945
        %1204 = vmatpush.bf16.msra.mxu0 %v941
        %1205 = vmatmul.bf16.gmra.mxu0 %v415
        %v1206 = vpop.f32.mrf.mxu0
        %v1207 = vadd.f32 %v549, %v1206
        %v1208 = vpop.f32.mrf.mxu0
        %1209 = vdwg.mxu0
        %1210 = vmatpush.bf16.msra.mxu0 %v1001
        %1211 = vmatpush.bf16.msra.mxu0 %v997
        %1212 = vmatpush.bf16.msra.mxu0 %v993
        %1213 = vmatpush.bf16.msra.mxu0 %v989
        %1214 = vmatpush.bf16.msra.mxu0 %v985
        %1215 = vmatpush.bf16.msra.mxu0 %v981
        %1216 = vmatpush.bf16.msra.mxu0 %v977
        %1217 = vmatpush.bf16.msra.mxu0 %v973
        %1218 = vmatmul.bf16.gmra.mxu0 %v416
        %v1219 = vpop.f32.mrf.mxu0
        %v1220 = vadd.f32 %v1207, %v1219
        %v1221 = vpop.f32.mrf.mxu0
        %1222 = vdwg.mxu0
        %1223 = vmatpush.bf16.msra.mxu0 %v1033
        %1224 = vmatpush.bf16.msra.mxu0 %v1029
        %1225 = vmatpush.bf16.msra.mxu0 %v1025
        %1226 = vmatpush.bf16.msra.mxu0 %v1021
        %1227 = vmatpush.bf16.msra.mxu0 %v1017
        %1228 = vmatpush.bf16.msra.mxu0 %v1013
        %1229 = vmatpush.bf16.msra.mxu0 %v1009
        %1230 = vmatpush.bf16.msra.mxu0 %v1005
        %1231 = vmatmul.bf16.gmra.mxu0 %v417
        %v1232 = vpop.f32.mrf.mxu0
        %v1233 = vadd.f32 %v1220, %v1232
        %v1234 = vpop.f32.mrf.mxu0
        %1235 = vdwg.mxu0
        %1236 = vmatpush.bf16.msra.mxu0 %v1065
        %1237 = vmatpush.bf16.msra.mxu0 %v1061
        %1238 = vmatpush.bf16.msra.mxu0 %v1057
        %1239 = vmatpush.bf16.msra.mxu0 %v1053
        %1240 = vmatpush.bf16.msra.mxu0 %v1049
        %1241 = vmatpush.bf16.msra.mxu0 %v1045
        %1242 = vmatpush.bf16.msra.mxu0 %v1041
        %1243 = vmatpush.bf16.msra.mxu0 %v1037
        %1244 = vmatmul.bf16.gmra.mxu0 %v418
        %v1245 = vpop.f32.mrf.mxu0
        %v1246 = vadd.f32 %v1233, %v1245
        %v1247 = vpop.f32.mrf.mxu0
        %1248 = vdwg.mxu0
        %1249 = vmatpush.bf16.msra.mxu0 %v970
        %1250 = vmatpush.bf16.msra.mxu0 %v966
        %1251 = vmatpush.bf16.msra.mxu0 %v962
        %1252 = vmatpush.bf16.msra.mxu0 %v958
        %1253 = vmatpush.bf16.msra.mxu0 %v954
        %1254 = vmatpush.bf16.msra.mxu0 %v950
        %1255 = vmatpush.bf16.msra.mxu0 %v946
        %1256 = vmatpush.bf16.msra.mxu0 %v942
        %1257 = vmatmul.bf16.gmra.mxu0 %v415
        %v1258 = vpop.f32.mrf.mxu0
        %v1259 = vadd.f32 %v550, %v1258
        %v1260 = vpop.f32.mrf.mxu0
        %1261 = vdwg.mxu0
        %1262 = vmatpush.bf16.msra.mxu0 %v1002
        %1263 = vmatpush.bf16.msra.mxu0 %v998
        %1264 = vmatpush.bf16.msra.mxu0 %v994
        %1265 = vmatpush.bf16.msra.mxu0 %v990
        %1266 = vmatpush.bf16.msra.mxu0 %v986
        %1267 = vmatpush.bf16.msra.mxu0 %v982
        %1268 = vmatpush.bf16.msra.mxu0 %v978
        %1269 = vmatpush.bf16.msra.mxu0 %v974
        %1270 = vmatmul.bf16.gmra.mxu0 %v416
        %v1271 = vpop.f32.mrf.mxu0
        %v1272 = vadd.f32 %v1259, %v1271
        %v1273 = vpop.f32.mrf.mxu0
        %1274 = vdwg.mxu0
        %1275 = vmatpush.bf16.msra.mxu0 %v1034
        %1276 = vmatpush.bf16.msra.mxu0 %v1030
        %1277 = vmatpush.bf16.msra.mxu0 %v1026
        %1278 = vmatpush.bf16.msra.mxu0 %v1022
        %1279 = vmatpush.bf16.msra.mxu0 %v1018
        %1280 = vmatpush.bf16.msra.mxu0 %v1014
        %1281 = vmatpush.bf16.msra.mxu0 %v1010
        %1282 = vmatpush.bf16.msra.mxu0 %v1006
        %1283 = vmatmul.bf16.gmra.mxu0 %v417
        %v1284 = vpop.f32.mrf.mxu0
        %v1285 = vadd.f32 %v1272, %v1284
        %v1286 = vpop.f32.mrf.mxu0
        %1287 = vdwg.mxu0
        %1288 = vmatpush.bf16.msra.mxu0 %v1066
        %1289 = vmatpush.bf16.msra.mxu0 %v1062
        %1290 = vmatpush.bf16.msra.mxu0 %v1058
        %1291 = vmatpush.bf16.msra.mxu0 %v1054
        %1292 = vmatpush.bf16.msra.mxu0 %v1050
        %1293 = vmatpush.bf16.msra.mxu0 %v1046
        %1294 = vmatpush.bf16.msra.mxu0 %v1042
        %1295 = vmatpush.bf16.msra.mxu0 %v1038
        %1296 = vmatmul.bf16.gmra.mxu0 %v418
        %v1297 = vpop.f32.mrf.mxu0
        %v1298 = vadd.f32 %v1285, %v1297
        %v1299 = vpop.f32.mrf.mxu0
        %1300 = vdwg.mxu0
        %1301 = vmatpush.bf16.msra.mxu0 %v971
        %1302 = vmatpush.bf16.msra.mxu0 %v967
        %1303 = vmatpush.bf16.msra.mxu0 %v963
        %1304 = vmatpush.bf16.msra.mxu0 %v959
        %1305 = vmatpush.bf16.msra.mxu0 %v955
        %1306 = vmatpush.bf16.msra.mxu0 %v951
        %1307 = vmatpush.bf16.msra.mxu0 %v947
        %1308 = vmatpush.bf16.msra.mxu0 %v943
        %1309 = vmatmul.bf16.gmra.mxu0 %v415
        %v1310 = vpop.f32.mrf.mxu0
        %v1311 = vadd.f32 %v551, %v1310
        %v1312 = vpop.f32.mrf.mxu0
        %1313 = vdwg.mxu0
        %1314 = vmatpush.bf16.msra.mxu0 %v1003
        %1315 = vmatpush.bf16.msra.mxu0 %v999
        %1316 = vmatpush.bf16.msra.mxu0 %v995
        %1317 = vmatpush.bf16.msra.mxu0 %v991
        %1318 = vmatpush.bf16.msra.mxu0 %v987
        %1319 = vmatpush.bf16.msra.mxu0 %v983
        %1320 = vmatpush.bf16.msra.mxu0 %v979
        %1321 = vmatpush.bf16.msra.mxu0 %v975
        %1322 = vmatmul.bf16.gmra.mxu0 %v416
        %v1323 = vpop.f32.mrf.mxu0
        %v1324 = vadd.f32 %v1311, %v1323
        %v1325 = vpop.f32.mrf.mxu0
        %1326 = vdwg.mxu0
        %1327 = vmatpush.bf16.msra.mxu0 %v1035
        %1328 = vmatpush.bf16.msra.mxu0 %v1031
        %1329 = vmatpush.bf16.msra.mxu0 %v1027
        %1330 = vmatpush.bf16.msra.mxu0 %v1023
        %1331 = vmatpush.bf16.msra.mxu0 %v1019
        %1332 = vmatpush.bf16.msra.mxu0 %v1015
        %1333 = vmatpush.bf16.msra.mxu0 %v1011
        %1334 = vmatpush.bf16.msra.mxu0 %v1007
        %1335 = vmatmul.bf16.gmra.mxu0 %v417
        %v1336 = vpop.f32.mrf.mxu0
        %v1337 = vadd.f32 %v1324, %v1336
        %v1338 = vpop.f32.mrf.mxu0
        %1339 = vdwg.mxu0
        %1340 = vmatpush.bf16.msra.mxu0 %v1067
        %1341 = vmatpush.bf16.msra.mxu0 %v1063
        %1342 = vmatpush.bf16.msra.mxu0 %v1059
        %1343 = vmatpush.bf16.msra.mxu0 %v1055
        %1344 = vmatpush.bf16.msra.mxu0 %v1051
        %1345 = vmatpush.bf16.msra.mxu0 %v1047
        %1346 = vmatpush.bf16.msra.mxu0 %v1043
        %1347 = vmatpush.bf16.msra.mxu0 %v1039
        %1348 = vmatmul.bf16.gmra.mxu0 %v418
        %v1349 = vpop.f32.mrf.mxu0
        %v1350 = vadd.f32 %v1337, %v1349
        %v1351 = vpop.f32.mrf.mxu0
        %1352 = vdwg.mxu0
        %1353 = vmatpush.bf16.msra.mxu0 %v972
        %1354 = vmatpush.bf16.msra.mxu0 %v968
        %1355 = vmatpush.bf16.msra.mxu0 %v964
        %1356 = vmatpush.bf16.msra.mxu0 %v960
        %1357 = vmatpush.bf16.msra.mxu0 %v956
        %1358 = vmatpush.bf16.msra.mxu0 %v952
        %1359 = vmatpush.bf16.msra.mxu0 %v948
        %1360 = vmatpush.bf16.msra.mxu0 %v944
        %1361 = vmatmul.bf16.gmra.mxu0 %v415
        %v1362 = vpop.f32.mrf.mxu0
        %v1363 = vadd.f32 %v552, %v1362
        %v1364 = vpop.f32.mrf.mxu0
        %1365 = vdwg.mxu0
        %1366 = vmatpush.bf16.msra.mxu0 %v1004
        %1367 = vmatpush.bf16.msra.mxu0 %v1000
        %1368 = vmatpush.bf16.msra.mxu0 %v996
        %1369 = vmatpush.bf16.msra.mxu0 %v992
        %1370 = vmatpush.bf16.msra.mxu0 %v988
        %1371 = vmatpush.bf16.msra.mxu0 %v984
        %1372 = vmatpush.bf16.msra.mxu0 %v980
        %1373 = vmatpush.bf16.msra.mxu0 %v976
        %1374 = vmatmul.bf16.gmra.mxu0 %v416
        %v1375 = vpop.f32.mrf.mxu0
        %v1376 = vadd.f32 %v1363, %v1375
        %v1377 = vpop.f32.mrf.mxu0
        %1378 = vdwg.mxu0
        %1379 = vmatpush.bf16.msra.mxu0 %v1036
        %1380 = vmatpush.bf16.msra.mxu0 %v1032
        %1381 = vmatpush.bf16.msra.mxu0 %v1028
        %1382 = vmatpush.bf16.msra.mxu0 %v1024
        %1383 = vmatpush.bf16.msra.mxu0 %v1020
        %1384 = vmatpush.bf16.msra.mxu0 %v1016
        %1385 = vmatpush.bf16.msra.mxu0 %v1012
        %1386 = vmatpush.bf16.msra.mxu0 %v1008
        %1387 = vmatmul.bf16.gmra.mxu0 %v417
        %v1388 = vpop.f32.mrf.mxu0
        %v1389 = vadd.f32 %v1376, %v1388
        %v1390 = vpop.f32.mrf.mxu0
        %1391 = vdwg.mxu0
        %1392 = vmatpush.bf16.msra.mxu0 %v1068
        %1393 = vmatpush.bf16.msra.mxu0 %v1064
        %1394 = vmatpush.bf16.msra.mxu0 %v1060
        %1395 = vmatpush.bf16.msra.mxu0 %v1056
        %1396 = vmatpush.bf16.msra.mxu0 %v1052
        %1397 = vmatpush.bf16.msra.mxu0 %v1048
        %1398 = vmatpush.bf16.msra.mxu0 %v1044
        %1399 = vmatpush.bf16.msra.mxu0 %v1040
        %1400 = vmatmul.bf16.gmra.mxu0 %v418
        %v1401 = vpop.f32.mrf.mxu0
        %v1402 = vadd.f32 %v1389, %v1401
        %v1403 = vpop.f32.mrf.mxu0
        %1404 = vdwg.mxu0
        %v1405 = vld [vmem:[#allocation2] sm:$0xff]
        %v1406 = vld [vmem:[#allocation2 + $0x8] sm:$0xff]
        %v1407 = vpack.c.bf16 %v1246, %v1246
        %v1408 = vpack.c.bf16 %v1298, %v1298
        %v1409 = vpack.c.bf16 %v1350, %v1350
        %v1410 = vpack.c.bf16 %v1402, %v1402
        %v1411 = vld [vmem:[%s348] sm:$0xff]
        %v1412 = vld [vmem:[%s348 + $0x8] sm:$0xff]
        %v1413 = vld [vmem:[%s348 + $0x10] sm:$0xff]
        %v1414 = vld [vmem:[%s348 + $0x18] sm:$0xff]
        %v1415 = vld [vmem:[%s348 + $0x20] sm:$0xff]
        %v1416 = vld [vmem:[%s348 + $0x28] sm:$0xff]
        %v1417 = vld [vmem:[%s348 + $0x30] sm:$0xff]
        %v1418 = vld [vmem:[%s348 + $0x38] sm:$0xff]
        %v1419 = vld [vmem:[%s348 + $0x40] sm:$0xff]
        %v1420 = vld [vmem:[%s348 + $0x48] sm:$0xff]
        %v1421 = vld [vmem:[%s348 + $0x50] sm:$0xff]
        %v1422 = vld [vmem:[%s348 + $0x58] sm:$0xff]
        %v1423 = vld [vmem:[%s348 + $0x60] sm:$0xff]
        %v1424 = vld [vmem:[%s348 + $0x68] sm:$0xff]
        %v1425 = vld [vmem:[%s348 + $0x70] sm:$0xff]
        %v1426 = vld [vmem:[%s348 + $0x78] sm:$0xff]
        %v1427 = vld [vmem:[%s348 + $0x80] sm:$0xff]
        %v1428 = vld [vmem:[%s348 + $0x88] sm:$0xff]
        %v1429 = vld [vmem:[%s348 + $0x90] sm:$0xff]
        %v1430 = vld [vmem:[%s348 + $0x98] sm:$0xff]
        %v1431 = vld [vmem:[%s348 + $0xa0] sm:$0xff]
        %v1432 = vld [vmem:[%s348 + $0xa8] sm:$0xff]
        %v1433 = vld [vmem:[%s348 + $0xb0] sm:$0xff]
        %v1434 = vld [vmem:[%s348 + $0xb8] sm:$0xff]
        %v1435 = vld [vmem:[%s348 + $0xc0] sm:$0xff]
        %v1436 = vld [vmem:[%s348 + $0xc8] sm:$0xff]
        %v1437 = vld [vmem:[%s348 + $0xd0] sm:$0xff]
        %v1438 = vld [vmem:[%s348 + $0xd8] sm:$0xff]
        %v1439 = vld [vmem:[%s348 + $0xe0] sm:$0xff]
        %v1440 = vld [vmem:[%s348 + $0xe8] sm:$0xff]
        %v1441 = vld [vmem:[%s348 + $0xf0] sm:$0xff]
        %v1442 = vld [vmem:[%s348 + $0xf8] sm:$0xff]
        %v1443 = vld [vmem:[%s348 + $0x100] sm:$0xff]
        %v1444 = vld [vmem:[%s348 + $0x108] sm:$0xff]
        %v1445 = vld [vmem:[%s348 + $0x110] sm:$0xff]
        %v1446 = vld [vmem:[%s348 + $0x118] sm:$0xff]
        %v1447 = vld [vmem:[%s348 + $0x120] sm:$0xff]
        %v1448 = vld [vmem:[%s348 + $0x128] sm:$0xff]
        %v1449 = vld [vmem:[%s348 + $0x130] sm:$0xff]
        %v1450 = vld [vmem:[%s348 + $0x138] sm:$0xff]
        %v1451 = vld [vmem:[%s348 + $0x140] sm:$0xff]
        %v1452 = vld [vmem:[%s348 + $0x148] sm:$0xff]
        %v1453 = vld [vmem:[%s348 + $0x150] sm:$0xff]
        %v1454 = vld [vmem:[%s348 + $0x158] sm:$0xff]
        %v1455 = vld [vmem:[%s348 + $0x160] sm:$0xff]
        %v1456 = vld [vmem:[%s348 + $0x168] sm:$0xff]
        %v1457 = vld [vmem:[%s348 + $0x170] sm:$0xff]
        %v1458 = vld [vmem:[%s348 + $0x178] sm:$0xff]
        %v1459 = vld [vmem:[%s348 + $0x180] sm:$0xff]
        %v1460 = vld [vmem:[%s348 + $0x188] sm:$0xff]
        %v1461 = vld [vmem:[%s348 + $0x190] sm:$0xff]
        %v1462 = vld [vmem:[%s348 + $0x198] sm:$0xff]
        %v1463 = vld [vmem:[%s348 + $0x1a0] sm:$0xff]
        %v1464 = vld [vmem:[%s348 + $0x1a8] sm:$0xff]
        %v1465 = vld [vmem:[%s348 + $0x1b0] sm:$0xff]
        %v1466 = vld [vmem:[%s348 + $0x1b8] sm:$0xff]
        %v1467 = vld [vmem:[%s348 + $0x1c0] sm:$0xff]
        %v1468 = vld [vmem:[%s348 + $0x1c8] sm:$0xff]
        %v1469 = vld [vmem:[%s348 + $0x1d0] sm:$0xff]
        %v1470 = vld [vmem:[%s348 + $0x1d8] sm:$0xff]
        %v1471 = vld [vmem:[%s348 + $0x1e0] sm:$0xff]
        %v1472 = vld [vmem:[%s348 + $0x1e8] sm:$0xff]
        %v1473 = vld [vmem:[%s348 + $0x1f0] sm:$0xff]
        %v1474 = vld [vmem:[%s348 + $0x1f8] sm:$0xff]
        %v1475 = vld [vmem:[%s348 + $0x200] sm:$0xff]
        %v1476 = vld [vmem:[%s348 + $0x208] sm:$0xff]
        %v1477 = vld [vmem:[%s348 + $0x210] sm:$0xff]
        %v1478 = vld [vmem:[%s348 + $0x218] sm:$0xff]
        %v1479 = vld [vmem:[%s348 + $0x220] sm:$0xff]
        %v1480 = vld [vmem:[%s348 + $0x228] sm:$0xff]
        %v1481 = vld [vmem:[%s348 + $0x230] sm:$0xff]
        %v1482 = vld [vmem:[%s348 + $0x238] sm:$0xff]
        %v1483 = vld [vmem:[%s348 + $0x240] sm:$0xff]
        %v1484 = vld [vmem:[%s348 + $0x248] sm:$0xff]
        %v1485 = vld [vmem:[%s348 + $0x250] sm:$0xff]
        %v1486 = vld [vmem:[%s348 + $0x258] sm:$0xff]
        %v1487 = vld [vmem:[%s348 + $0x260] sm:$0xff]
        %v1488 = vld [vmem:[%s348 + $0x268] sm:$0xff]
        %v1489 = vld [vmem:[%s348 + $0x270] sm:$0xff]
        %v1490 = vld [vmem:[%s348 + $0x278] sm:$0xff]
        %v1491 = vld [vmem:[%s348 + $0x280] sm:$0xff]
        %v1492 = vld [vmem:[%s348 + $0x288] sm:$0xff]
        %v1493 = vld [vmem:[%s348 + $0x290] sm:$0xff]
        %v1494 = vld [vmem:[%s348 + $0x298] sm:$0xff]
        %v1495 = vld [vmem:[%s348 + $0x2a0] sm:$0xff]
        %v1496 = vld [vmem:[%s348 + $0x2a8] sm:$0xff]
        %v1497 = vld [vmem:[%s348 + $0x2b0] sm:$0xff]
        %v1498 = vld [vmem:[%s348 + $0x2b8] sm:$0xff]
        %v1499 = vld [vmem:[%s348 + $0x2c0] sm:$0xff]
        %v1500 = vld [vmem:[%s348 + $0x2c8] sm:$0xff]
        %v1501 = vld [vmem:[%s348 + $0x2d0] sm:$0xff]
        %v1502 = vld [vmem:[%s348 + $0x2d8] sm:$0xff]
        %v1503 = vld [vmem:[%s348 + $0x2e0] sm:$0xff]
        %v1504 = vld [vmem:[%s348 + $0x2e8] sm:$0xff]
        %v1505 = vld [vmem:[%s348 + $0x2f0] sm:$0xff]
        %v1506 = vld [vmem:[%s348 + $0x2f8] sm:$0xff]
        %v1507 = vld [vmem:[%s348 + $0x300] sm:$0xff]
        %v1508 = vld [vmem:[%s348 + $0x308] sm:$0xff]
        %v1509 = vld [vmem:[%s348 + $0x310] sm:$0xff]
        %v1510 = vld [vmem:[%s348 + $0x318] sm:$0xff]
        %v1511 = vld [vmem:[%s348 + $0x320] sm:$0xff]
        %v1512 = vld [vmem:[%s348 + $0x328] sm:$0xff]
        %v1513 = vld [vmem:[%s348 + $0x330] sm:$0xff]
        %v1514 = vld [vmem:[%s348 + $0x338] sm:$0xff]
        %v1515 = vld [vmem:[%s348 + $0x340] sm:$0xff]
        %v1516 = vld [vmem:[%s348 + $0x348] sm:$0xff]
        %v1517 = vld [vmem:[%s348 + $0x350] sm:$0xff]
        %v1518 = vld [vmem:[%s348 + $0x358] sm:$0xff]
        %v1519 = vld [vmem:[%s348 + $0x360] sm:$0xff]
        %v1520 = vld [vmem:[%s348 + $0x368] sm:$0xff]
        %v1521 = vld [vmem:[%s348 + $0x370] sm:$0xff]
        %v1522 = vld [vmem:[%s348 + $0x378] sm:$0xff]
        %v1523 = vld [vmem:[%s348 + $0x380] sm:$0xff]
        %v1524 = vld [vmem:[%s348 + $0x388] sm:$0xff]
        %v1525 = vld [vmem:[%s348 + $0x390] sm:$0xff]
        %v1526 = vld [vmem:[%s348 + $0x398] sm:$0xff]
        %v1527 = vld [vmem:[%s348 + $0x3a0] sm:$0xff]
        %v1528 = vld [vmem:[%s348 + $0x3a8] sm:$0xff]
        %v1529 = vld [vmem:[%s348 + $0x3b0] sm:$0xff]
        %v1530 = vld [vmem:[%s348 + $0x3b8] sm:$0xff]
        %v1531 = vld [vmem:[%s348 + $0x3c0] sm:$0xff]
        %v1532 = vld [vmem:[%s348 + $0x3c8] sm:$0xff]
        %v1533 = vld [vmem:[%s348 + $0x3d0] sm:$0xff]
        %v1534 = vld [vmem:[%s348 + $0x3d8] sm:$0xff]
        %v1535 = vld [vmem:[%s348 + $0x3e0] sm:$0xff]
        %v1536 = vld [vmem:[%s348 + $0x3e8] sm:$0xff]
        %v1537 = vld [vmem:[%s348 + $0x3f0] sm:$0xff]
        %v1538 = vld [vmem:[%s348 + $0x3f8] sm:$0xff]
        %v1539 = vld [vmem:[%s348 + $0x400] sm:$0xff]
        %v1540 = vld [vmem:[%s348 + $0x408] sm:$0xff]
        %v1541 = vld [vmem:[%s348 + $0x410] sm:$0xff]
        %v1542 = vld [vmem:[%s348 + $0x418] sm:$0xff]
        %v1543 = vld [vmem:[%s348 + $0x420] sm:$0xff]
        %v1544 = vld [vmem:[%s348 + $0x428] sm:$0xff]
        %v1545 = vld [vmem:[%s348 + $0x430] sm:$0xff]
        %v1546 = vld [vmem:[%s348 + $0x438] sm:$0xff]
        %v1547 = vld [vmem:[%s348 + $0x440] sm:$0xff]
        %v1548 = vld [vmem:[%s348 + $0x448] sm:$0xff]
        %v1549 = vld [vmem:[%s348 + $0x450] sm:$0xff]
        %v1550 = vld [vmem:[%s348 + $0x458] sm:$0xff]
        %v1551 = vld [vmem:[%s348 + $0x460] sm:$0xff]
        %v1552 = vld [vmem:[%s348 + $0x468] sm:$0xff]
        %v1553 = vld [vmem:[%s348 + $0x470] sm:$0xff]
        %v1554 = vld [vmem:[%s348 + $0x478] sm:$0xff]
        %v1555 = vld [vmem:[%s348 + $0x480] sm:$0xff]
        %v1556 = vld [vmem:[%s348 + $0x488] sm:$0xff]
        %v1557 = vld [vmem:[%s348 + $0x490] sm:$0xff]
        %v1558 = vld [vmem:[%s348 + $0x498] sm:$0xff]
        %v1559 = vld [vmem:[%s348 + $0x4a0] sm:$0xff]
        %v1560 = vld [vmem:[%s348 + $0x4a8] sm:$0xff]
        %v1561 = vld [vmem:[%s348 + $0x4b0] sm:$0xff]
        %v1562 = vld [vmem:[%s348 + $0x4b8] sm:$0xff]
        %v1563 = vld [vmem:[%s348 + $0x4c0] sm:$0xff]
        %v1564 = vld [vmem:[%s348 + $0x4c8] sm:$0xff]
        %v1565 = vld [vmem:[%s348 + $0x4d0] sm:$0xff]
        %v1566 = vld [vmem:[%s348 + $0x4d8] sm:$0xff]
        %v1567 = vld [vmem:[%s348 + $0x4e0] sm:$0xff]
        %v1568 = vld [vmem:[%s348 + $0x4e8] sm:$0xff]
        %v1569 = vld [vmem:[%s348 + $0x4f0] sm:$0xff]
        %v1570 = vld [vmem:[%s348 + $0x4f8] sm:$0xff]
        %v1571 = vld [vmem:[%s348 + $0x500] sm:$0xff]
        %v1572 = vld [vmem:[%s348 + $0x508] sm:$0xff]
        %v1573 = vld [vmem:[%s348 + $0x510] sm:$0xff]
        %v1574 = vld [vmem:[%s348 + $0x518] sm:$0xff]
        %v1575 = vld [vmem:[%s348 + $0x520] sm:$0xff]
        %v1576 = vld [vmem:[%s348 + $0x528] sm:$0xff]
        %v1577 = vld [vmem:[%s348 + $0x530] sm:$0xff]
        %v1578 = vld [vmem:[%s348 + $0x538] sm:$0xff]
        %v1579 = vld [vmem:[%s348 + $0x540] sm:$0xff]
        %v1580 = vld [vmem:[%s348 + $0x548] sm:$0xff]
        %v1581 = vld [vmem:[%s348 + $0x550] sm:$0xff]
        %v1582 = vld [vmem:[%s348 + $0x558] sm:$0xff]
        %v1583 = vld [vmem:[%s348 + $0x560] sm:$0xff]
        %v1584 = vld [vmem:[%s348 + $0x568] sm:$0xff]
        %v1585 = vld [vmem:[%s348 + $0x570] sm:$0xff]
        %v1586 = vld [vmem:[%s348 + $0x578] sm:$0xff]
        %v1587 = vld [vmem:[%s348 + $0x580] sm:$0xff]
        %v1588 = vld [vmem:[%s348 + $0x588] sm:$0xff]
        %v1589 = vld [vmem:[%s348 + $0x590] sm:$0xff]
        %v1590 = vld [vmem:[%s348 + $0x598] sm:$0xff]
        %v1591 = vld [vmem:[%s348 + $0x5a0] sm:$0xff]
        %v1592 = vld [vmem:[%s348 + $0x5a8] sm:$0xff]
        %v1593 = vld [vmem:[%s348 + $0x5b0] sm:$0xff]
        %v1594 = vld [vmem:[%s348 + $0x5b8] sm:$0xff]
        %v1595 = vld [vmem:[%s348 + $0x5c0] sm:$0xff]
        %v1596 = vld [vmem:[%s348 + $0x5c8] sm:$0xff]
        %v1597 = vld [vmem:[%s348 + $0x5d0] sm:$0xff]
        %v1598 = vld [vmem:[%s348 + $0x5d8] sm:$0xff]
        %v1599 = vld [vmem:[%s348 + $0x5e0] sm:$0xff]
        %v1600 = vld [vmem:[%s348 + $0x5e8] sm:$0xff]
        %v1601 = vld [vmem:[%s348 + $0x5f0] sm:$0xff]
        %v1602 = vld [vmem:[%s348 + $0x5f8] sm:$0xff]
        %v1603 = vld [vmem:[%s348 + $0x600] sm:$0xff]
        %v1604 = vld [vmem:[%s348 + $0x608] sm:$0xff]
        %v1605 = vld [vmem:[%s348 + $0x610] sm:$0xff]
        %v1606 = vld [vmem:[%s348 + $0x618] sm:$0xff]
        %v1607 = vld [vmem:[%s348 + $0x620] sm:$0xff]
        %v1608 = vld [vmem:[%s348 + $0x628] sm:$0xff]
        %v1609 = vld [vmem:[%s348 + $0x630] sm:$0xff]
        %v1610 = vld [vmem:[%s348 + $0x638] sm:$0xff]
        %v1611 = vld [vmem:[%s348 + $0x640] sm:$0xff]
        %v1612 = vld [vmem:[%s348 + $0x648] sm:$0xff]
        %v1613 = vld [vmem:[%s348 + $0x650] sm:$0xff]
        %v1614 = vld [vmem:[%s348 + $0x658] sm:$0xff]
        %v1615 = vld [vmem:[%s348 + $0x660] sm:$0xff]
        %v1616 = vld [vmem:[%s348 + $0x668] sm:$0xff]
        %v1617 = vld [vmem:[%s348 + $0x670] sm:$0xff]
        %v1618 = vld [vmem:[%s348 + $0x678] sm:$0xff]
        %v1619 = vld [vmem:[%s348 + $0x680] sm:$0xff]
        %v1620 = vld [vmem:[%s348 + $0x688] sm:$0xff]
        %v1621 = vld [vmem:[%s348 + $0x690] sm:$0xff]
        %v1622 = vld [vmem:[%s348 + $0x698] sm:$0xff]
        %v1623 = vld [vmem:[%s348 + $0x6a0] sm:$0xff]
        %v1624 = vld [vmem:[%s348 + $0x6a8] sm:$0xff]
        %v1625 = vld [vmem:[%s348 + $0x6b0] sm:$0xff]
        %v1626 = vld [vmem:[%s348 + $0x6b8] sm:$0xff]
        %v1627 = vld [vmem:[%s348 + $0x6c0] sm:$0xff]
        %v1628 = vld [vmem:[%s348 + $0x6c8] sm:$0xff]
        %v1629 = vld [vmem:[%s348 + $0x6d0] sm:$0xff]
        %v1630 = vld [vmem:[%s348 + $0x6d8] sm:$0xff]
        %v1631 = vld [vmem:[%s348 + $0x6e0] sm:$0xff]
        %v1632 = vld [vmem:[%s348 + $0x6e8] sm:$0xff]
        %v1633 = vld [vmem:[%s348 + $0x6f0] sm:$0xff]
        %v1634 = vld [vmem:[%s348 + $0x6f8] sm:$0xff]
        %v1635 = vld [vmem:[%s348 + $0x700] sm:$0xff]
        %v1636 = vld [vmem:[%s348 + $0x708] sm:$0xff]
        %v1637 = vld [vmem:[%s348 + $0x710] sm:$0xff]
        %v1638 = vld [vmem:[%s348 + $0x718] sm:$0xff]
        %v1639 = vld [vmem:[%s348 + $0x720] sm:$0xff]
        %v1640 = vld [vmem:[%s348 + $0x728] sm:$0xff]
        %v1641 = vld [vmem:[%s348 + $0x730] sm:$0xff]
        %v1642 = vld [vmem:[%s348 + $0x738] sm:$0xff]
        %v1643 = vld [vmem:[%s348 + $0x740] sm:$0xff]
        %v1644 = vld [vmem:[%s348 + $0x748] sm:$0xff]
        %v1645 = vld [vmem:[%s348 + $0x750] sm:$0xff]
        %v1646 = vld [vmem:[%s348 + $0x758] sm:$0xff]
        %v1647 = vld [vmem:[%s348 + $0x760] sm:$0xff]
        %v1648 = vld [vmem:[%s348 + $0x768] sm:$0xff]
        %v1649 = vld [vmem:[%s348 + $0x770] sm:$0xff]
        %v1650 = vld [vmem:[%s348 + $0x778] sm:$0xff]
        %v1651 = vld [vmem:[%s348 + $0x780] sm:$0xff]
        %v1652 = vld [vmem:[%s348 + $0x788] sm:$0xff]
        %v1653 = vld [vmem:[%s348 + $0x790] sm:$0xff]
        %v1654 = vld [vmem:[%s348 + $0x798] sm:$0xff]
        %v1655 = vld [vmem:[%s348 + $0x7a0] sm:$0xff]
        %v1656 = vld [vmem:[%s348 + $0x7a8] sm:$0xff]
        %v1657 = vld [vmem:[%s348 + $0x7b0] sm:$0xff]
        %v1658 = vld [vmem:[%s348 + $0x7b8] sm:$0xff]
        %v1659 = vld [vmem:[%s348 + $0x7c0] sm:$0xff]
        %v1660 = vld [vmem:[%s348 + $0x7c8] sm:$0xff]
        %v1661 = vld [vmem:[%s348 + $0x7d0] sm:$0xff]
        %v1662 = vld [vmem:[%s348 + $0x7d8] sm:$0xff]
        %v1663 = vld [vmem:[%s348 + $0x7e0] sm:$0xff]
        %v1664 = vld [vmem:[%s348 + $0x7e8] sm:$0xff]
        %v1665 = vld [vmem:[%s348 + $0x7f0] sm:$0xff]
        %v1666 = vld [vmem:[%s348 + $0x7f8] sm:$0xff]
        %v1923 = vunpack.c.l.b16 %v1411
        %v1924 = vunpack.c.h.b16 %v1411
        %v1925 = vunpack.c.l.b16 %v1412
        %v1926 = vunpack.c.h.b16 %v1412
        %v1927 = vunpack.c.l.b16 %v1413
        %v1928 = vunpack.c.h.b16 %v1413
        %v1929 = vunpack.c.l.b16 %v1414
        %v1930 = vunpack.c.h.b16 %v1414
        %v1931 = vunpack.c.l.b16 %v1415
        %v1932 = vunpack.c.h.b16 %v1415
        %v1933 = vunpack.c.l.b16 %v1416
        %v1934 = vunpack.c.h.b16 %v1416
        %v1935 = vunpack.c.l.b16 %v1417
        %v1936 = vunpack.c.h.b16 %v1417
        %v1937 = vunpack.c.l.b16 %v1418
        %v1938 = vunpack.c.h.b16 %v1418
        %v1939 = vunpack.c.l.b16 %v1419
        %v1940 = vunpack.c.h.b16 %v1419
        %v1941 = vunpack.c.l.b16 %v1420
        %v1942 = vunpack.c.h.b16 %v1420
        %v1943 = vunpack.c.l.b16 %v1421
        %v1944 = vunpack.c.h.b16 %v1421
        %v1945 = vunpack.c.l.b16 %v1422
        %v1946 = vunpack.c.h.b16 %v1422
        %v1947 = vunpack.c.l.b16 %v1423
        %v1948 = vunpack.c.h.b16 %v1423
        %v1949 = vunpack.c.l.b16 %v1424
        %v1950 = vunpack.c.h.b16 %v1424
        %v1951 = vunpack.c.l.b16 %v1425
        %v1952 = vunpack.c.h.b16 %v1425
        %v1953 = vunpack.c.l.b16 %v1426
        %v1954 = vunpack.c.h.b16 %v1426
        %v1955 = vunpack.c.l.b16 %v1427
        %v1956 = vunpack.c.h.b16 %v1427
        %v1957 = vunpack.c.l.b16 %v1428
        %v1958 = vunpack.c.h.b16 %v1428
        %v1959 = vunpack.c.l.b16 %v1429
        %v1960 = vunpack.c.h.b16 %v1429
        %v1961 = vunpack.c.l.b16 %v1430
        %v1962 = vunpack.c.h.b16 %v1430
        %v1963 = vunpack.c.l.b16 %v1431
        %v1964 = vunpack.c.h.b16 %v1431
        %v1965 = vunpack.c.l.b16 %v1432
        %v1966 = vunpack.c.h.b16 %v1432
        %v1967 = vunpack.c.l.b16 %v1433
        %v1968 = vunpack.c.h.b16 %v1433
        %v1969 = vunpack.c.l.b16 %v1434
        %v1970 = vunpack.c.h.b16 %v1434
        %v1971 = vunpack.c.l.b16 %v1435
        %v1972 = vunpack.c.h.b16 %v1435
        %v1973 = vunpack.c.l.b16 %v1436
        %v1974 = vunpack.c.h.b16 %v1436
        %v1975 = vunpack.c.l.b16 %v1437
        %v1976 = vunpack.c.h.b16 %v1437
        %v1977 = vunpack.c.l.b16 %v1438
        %v1978 = vunpack.c.h.b16 %v1438
        %v1979 = vunpack.c.l.b16 %v1439
        %v1980 = vunpack.c.h.b16 %v1439
        %v1981 = vunpack.c.l.b16 %v1440
        %v1982 = vunpack.c.h.b16 %v1440
        %v1983 = vunpack.c.l.b16 %v1441
        %v1984 = vunpack.c.h.b16 %v1441
        %v1985 = vunpack.c.l.b16 %v1442
        %v1986 = vunpack.c.h.b16 %v1442
        %v1987 = vunpack.c.l.b16 %v1443
        %v1988 = vunpack.c.h.b16 %v1443
        %v1989 = vunpack.c.l.b16 %v1444
        %v1990 = vunpack.c.h.b16 %v1444
        %v1991 = vunpack.c.l.b16 %v1445
        %v1992 = vunpack.c.h.b16 %v1445
        %v1993 = vunpack.c.l.b16 %v1446
        %v1994 = vunpack.c.h.b16 %v1446
        %v1995 = vunpack.c.l.b16 %v1447
        %v1996 = vunpack.c.h.b16 %v1447
        %v1997 = vunpack.c.l.b16 %v1448
        %v1998 = vunpack.c.h.b16 %v1448
        %v1999 = vunpack.c.l.b16 %v1449
        %v2000 = vunpack.c.h.b16 %v1449
        %v2001 = vunpack.c.l.b16 %v1450
        %v2002 = vunpack.c.h.b16 %v1450
        %v2003 = vunpack.c.l.b16 %v1451
        %v2004 = vunpack.c.h.b16 %v1451
        %v2005 = vunpack.c.l.b16 %v1452
        %v2006 = vunpack.c.h.b16 %v1452
        %v2007 = vunpack.c.l.b16 %v1453
        %v2008 = vunpack.c.h.b16 %v1453
        %v2009 = vunpack.c.l.b16 %v1454
        %v2010 = vunpack.c.h.b16 %v1454
        %v2011 = vunpack.c.l.b16 %v1455
        %v2012 = vunpack.c.h.b16 %v1455
        %v2013 = vunpack.c.l.b16 %v1456
        %v2014 = vunpack.c.h.b16 %v1456
        %v2015 = vunpack.c.l.b16 %v1457
        %v2016 = vunpack.c.h.b16 %v1457
        %v2017 = vunpack.c.l.b16 %v1458
        %v2018 = vunpack.c.h.b16 %v1458
        %v2019 = vunpack.c.l.b16 %v1459
        %v2020 = vunpack.c.h.b16 %v1459
        %v2021 = vunpack.c.l.b16 %v1460
        %v2022 = vunpack.c.h.b16 %v1460
        %v2023 = vunpack.c.l.b16 %v1461
        %v2024 = vunpack.c.h.b16 %v1461
        %v2025 = vunpack.c.l.b16 %v1462
        %v2026 = vunpack.c.h.b16 %v1462
        %v2027 = vunpack.c.l.b16 %v1463
        %v2028 = vunpack.c.h.b16 %v1463
        %v2029 = vunpack.c.l.b16 %v1464
        %v2030 = vunpack.c.h.b16 %v1464
        %v2031 = vunpack.c.l.b16 %v1465
        %v2032 = vunpack.c.h.b16 %v1465
        %v2033 = vunpack.c.l.b16 %v1466
        %v2034 = vunpack.c.h.b16 %v1466
        %v2035 = vunpack.c.l.b16 %v1467
        %v2036 = vunpack.c.h.b16 %v1467
        %v2037 = vunpack.c.l.b16 %v1468
        %v2038 = vunpack.c.h.b16 %v1468
        %v2039 = vunpack.c.l.b16 %v1469
        %v2040 = vunpack.c.h.b16 %v1469
        %v2041 = vunpack.c.l.b16 %v1470
        %v2042 = vunpack.c.h.b16 %v1470
        %v2043 = vunpack.c.l.b16 %v1471
        %v2044 = vunpack.c.h.b16 %v1471
        %v2045 = vunpack.c.l.b16 %v1472
        %v2046 = vunpack.c.h.b16 %v1472
        %v2047 = vunpack.c.l.b16 %v1473
        %v2048 = vunpack.c.h.b16 %v1473
        %v2049 = vunpack.c.l.b16 %v1474
        %v2050 = vunpack.c.h.b16 %v1474
        %v2051 = vunpack.c.l.b16 %v1475
        %v2052 = vunpack.c.h.b16 %v1475
        %v2053 = vunpack.c.l.b16 %v1476
        %v2054 = vunpack.c.h.b16 %v1476
        %v2055 = vunpack.c.l.b16 %v1477
        %v2056 = vunpack.c.h.b16 %v1477
        %v2057 = vunpack.c.l.b16 %v1478
        %v2058 = vunpack.c.h.b16 %v1478
        %v2059 = vunpack.c.l.b16 %v1479
        %v2060 = vunpack.c.h.b16 %v1479
        %v2061 = vunpack.c.l.b16 %v1480
        %v2062 = vunpack.c.h.b16 %v1480
        %v2063 = vunpack.c.l.b16 %v1481
        %v2064 = vunpack.c.h.b16 %v1481
        %v2065 = vunpack.c.l.b16 %v1482
        %v2066 = vunpack.c.h.b16 %v1482
        %v2067 = vunpack.c.l.b16 %v1483
        %v2068 = vunpack.c.h.b16 %v1483
        %v2069 = vunpack.c.l.b16 %v1484
        %v2070 = vunpack.c.h.b16 %v1484
        %v2071 = vunpack.c.l.b16 %v1485
        %v2072 = vunpack.c.h.b16 %v1485
        %v2073 = vunpack.c.l.b16 %v1486
        %v2074 = vunpack.c.h.b16 %v1486
        %v2075 = vunpack.c.l.b16 %v1487
        %v2076 = vunpack.c.h.b16 %v1487
        %v2077 = vunpack.c.l.b16 %v1488
        %v2078 = vunpack.c.h.b16 %v1488
        %v2079 = vunpack.c.l.b16 %v1489
        %v2080 = vunpack.c.h.b16 %v1489
        %v2081 = vunpack.c.l.b16 %v1490
        %v2082 = vunpack.c.h.b16 %v1490
        %v2083 = vunpack.c.l.b16 %v1491
        %v2084 = vunpack.c.h.b16 %v1491
        %v2085 = vunpack.c.l.b16 %v1492
        %v2086 = vunpack.c.h.b16 %v1492
        %v2087 = vunpack.c.l.b16 %v1493
        %v2088 = vunpack.c.h.b16 %v1493
        %v2089 = vunpack.c.l.b16 %v1494
        %v2090 = vunpack.c.h.b16 %v1494
        %v2091 = vunpack.c.l.b16 %v1495
        %v2092 = vunpack.c.h.b16 %v1495
        %v2093 = vunpack.c.l.b16 %v1496
        %v2094 = vunpack.c.h.b16 %v1496
        %v2095 = vunpack.c.l.b16 %v1497
        %v2096 = vunpack.c.h.b16 %v1497
        %v2097 = vunpack.c.l.b16 %v1498
        %v2098 = vunpack.c.h.b16 %v1498
        %v2099 = vunpack.c.l.b16 %v1499
        %v2100 = vunpack.c.h.b16 %v1499
        %v2101 = vunpack.c.l.b16 %v1500
        %v2102 = vunpack.c.h.b16 %v1500
        %v2103 = vunpack.c.l.b16 %v1501
        %v2104 = vunpack.c.h.b16 %v1501
        %v2105 = vunpack.c.l.b16 %v1502
        %v2106 = vunpack.c.h.b16 %v1502
        %v2107 = vunpack.c.l.b16 %v1503
        %v2108 = vunpack.c.h.b16 %v1503
        %v2109 = vunpack.c.l.b16 %v1504
        %v2110 = vunpack.c.h.b16 %v1504
        %v2111 = vunpack.c.l.b16 %v1505
        %v2112 = vunpack.c.h.b16 %v1505
        %v2113 = vunpack.c.l.b16 %v1506
        %v2114 = vunpack.c.h.b16 %v1506
        %v2115 = vunpack.c.l.b16 %v1507
        %v2116 = vunpack.c.h.b16 %v1507
        %v2117 = vunpack.c.l.b16 %v1508
        %v2118 = vunpack.c.h.b16 %v1508
        %v2119 = vunpack.c.l.b16 %v1509
        %v2120 = vunpack.c.h.b16 %v1509
        %v2121 = vunpack.c.l.b16 %v1510
        %v2122 = vunpack.c.h.b16 %v1510
        %v2123 = vunpack.c.l.b16 %v1511
        %v2124 = vunpack.c.h.b16 %v1511
        %v2125 = vunpack.c.l.b16 %v1512
        %v2126 = vunpack.c.h.b16 %v1512
        %v2127 = vunpack.c.l.b16 %v1513
        %v2128 = vunpack.c.h.b16 %v1513
        %v2129 = vunpack.c.l.b16 %v1514
        %v2130 = vunpack.c.h.b16 %v1514
        %v2131 = vunpack.c.l.b16 %v1515
        %v2132 = vunpack.c.h.b16 %v1515
        %v2133 = vunpack.c.l.b16 %v1516
        %v2134 = vunpack.c.h.b16 %v1516
        %v2135 = vunpack.c.l.b16 %v1517
        %v2136 = vunpack.c.h.b16 %v1517
        %v2137 = vunpack.c.l.b16 %v1518
        %v2138 = vunpack.c.h.b16 %v1518
        %v2139 = vunpack.c.l.b16 %v1519
        %v2140 = vunpack.c.h.b16 %v1519
        %v2141 = vunpack.c.l.b16 %v1520
        %v2142 = vunpack.c.h.b16 %v1520
        %v2143 = vunpack.c.l.b16 %v1521
        %v2144 = vunpack.c.h.b16 %v1521
        %v2145 = vunpack.c.l.b16 %v1522
        %v2146 = vunpack.c.h.b16 %v1522
        %v2147 = vunpack.c.l.b16 %v1523
        %v2148 = vunpack.c.h.b16 %v1523
        %v2149 = vunpack.c.l.b16 %v1524
        %v2150 = vunpack.c.h.b16 %v1524
        %v2151 = vunpack.c.l.b16 %v1525
        %v2152 = vunpack.c.h.b16 %v1525
        %v2153 = vunpack.c.l.b16 %v1526
        %v2154 = vunpack.c.h.b16 %v1526
        %v2155 = vunpack.c.l.b16 %v1527
        %v2156 = vunpack.c.h.b16 %v1527
        %v2157 = vunpack.c.l.b16 %v1528
        %v2158 = vunpack.c.h.b16 %v1528
        %v2159 = vunpack.c.l.b16 %v1529
        %v2160 = vunpack.c.h.b16 %v1529
        %v2161 = vunpack.c.l.b16 %v1530
        %v2162 = vunpack.c.h.b16 %v1530
        %v2163 = vunpack.c.l.b16 %v1531
        %v2164 = vunpack.c.h.b16 %v1531
        %v2165 = vunpack.c.l.b16 %v1532
        %v2166 = vunpack.c.h.b16 %v1532
        %v2167 = vunpack.c.l.b16 %v1533
        %v2168 = vunpack.c.h.b16 %v1533
        %v2169 = vunpack.c.l.b16 %v1534
        %v2170 = vunpack.c.h.b16 %v1534
        %v2171 = vunpack.c.l.b16 %v1535
        %v2172 = vunpack.c.h.b16 %v1535
        %v2173 = vunpack.c.l.b16 %v1536
        %v2174 = vunpack.c.h.b16 %v1536
        %v2175 = vunpack.c.l.b16 %v1537
        %v2176 = vunpack.c.h.b16 %v1537
        %v2177 = vunpack.c.l.b16 %v1538
        %v2178 = vunpack.c.h.b16 %v1538
        %v2179 = vunpack.c.l.b16 %v1539
        %v2180 = vunpack.c.h.b16 %v1539
        %v2181 = vunpack.c.l.b16 %v1540
        %v2182 = vunpack.c.h.b16 %v1540
        %v2183 = vunpack.c.l.b16 %v1541
        %v2184 = vunpack.c.h.b16 %v1541
        %v2185 = vunpack.c.l.b16 %v1542
        %v2186 = vunpack.c.h.b16 %v1542
        %v2187 = vunpack.c.l.b16 %v1543
        %v2188 = vunpack.c.h.b16 %v1543
        %v2189 = vunpack.c.l.b16 %v1544
        %v2190 = vunpack.c.h.b16 %v1544
        %v2191 = vunpack.c.l.b16 %v1545
        %v2192 = vunpack.c.h.b16 %v1545
        %v2193 = vunpack.c.l.b16 %v1546
        %v2194 = vunpack.c.h.b16 %v1546
        %v2195 = vunpack.c.l.b16 %v1547
        %v2196 = vunpack.c.h.b16 %v1547
        %v2197 = vunpack.c.l.b16 %v1548
        %v2198 = vunpack.c.h.b16 %v1548
        %v2199 = vunpack.c.l.b16 %v1549
        %v2200 = vunpack.c.h.b16 %v1549
        %v2201 = vunpack.c.l.b16 %v1550
        %v2202 = vunpack.c.h.b16 %v1550
        %v2203 = vunpack.c.l.b16 %v1551
        %v2204 = vunpack.c.h.b16 %v1551
        %v2205 = vunpack.c.l.b16 %v1552
        %v2206 = vunpack.c.h.b16 %v1552
        %v2207 = vunpack.c.l.b16 %v1553
        %v2208 = vunpack.c.h.b16 %v1553
        %v2209 = vunpack.c.l.b16 %v1554
        %v2210 = vunpack.c.h.b16 %v1554
        %v2211 = vunpack.c.l.b16 %v1555
        %v2212 = vunpack.c.h.b16 %v1555
        %v2213 = vunpack.c.l.b16 %v1556
        %v2214 = vunpack.c.h.b16 %v1556
        %v2215 = vunpack.c.l.b16 %v1557
        %v2216 = vunpack.c.h.b16 %v1557
        %v2217 = vunpack.c.l.b16 %v1558
        %v2218 = vunpack.c.h.b16 %v1558
        %v2219 = vunpack.c.l.b16 %v1559
        %v2220 = vunpack.c.h.b16 %v1559
        %v2221 = vunpack.c.l.b16 %v1560
        %v2222 = vunpack.c.h.b16 %v1560
        %v2223 = vunpack.c.l.b16 %v1561
        %v2224 = vunpack.c.h.b16 %v1561
        %v2225 = vunpack.c.l.b16 %v1562
        %v2226 = vunpack.c.h.b16 %v1562
        %v2227 = vunpack.c.l.b16 %v1563
        %v2228 = vunpack.c.h.b16 %v1563
        %v2229 = vunpack.c.l.b16 %v1564
        %v2230 = vunpack.c.h.b16 %v1564
        %v2231 = vunpack.c.l.b16 %v1565
        %v2232 = vunpack.c.h.b16 %v1565
        %v2233 = vunpack.c.l.b16 %v1566
        %v2234 = vunpack.c.h.b16 %v1566
        %v2235 = vunpack.c.l.b16 %v1567
        %v2236 = vunpack.c.h.b16 %v1567
        %v2237 = vunpack.c.l.b16 %v1568
        %v2238 = vunpack.c.h.b16 %v1568
        %v2239 = vunpack.c.l.b16 %v1569
        %v2240 = vunpack.c.h.b16 %v1569
        %v2241 = vunpack.c.l.b16 %v1570
        %v2242 = vunpack.c.h.b16 %v1570
        %v2243 = vunpack.c.l.b16 %v1571
        %v2244 = vunpack.c.h.b16 %v1571
        %v2245 = vunpack.c.l.b16 %v1572
        %v2246 = vunpack.c.h.b16 %v1572
        %v2247 = vunpack.c.l.b16 %v1573
        %v2248 = vunpack.c.h.b16 %v1573
        %v2249 = vunpack.c.l.b16 %v1574
        %v2250 = vunpack.c.h.b16 %v1574
        %v2251 = vunpack.c.l.b16 %v1575
        %v2252 = vunpack.c.h.b16 %v1575
        %v2253 = vunpack.c.l.b16 %v1576
        %v2254 = vunpack.c.h.b16 %v1576
        %v2255 = vunpack.c.l.b16 %v1577
        %v2256 = vunpack.c.h.b16 %v1577
        %v2257 = vunpack.c.l.b16 %v1578
        %v2258 = vunpack.c.h.b16 %v1578
        %v2259 = vunpack.c.l.b16 %v1579
        %v2260 = vunpack.c.h.b16 %v1579
        %v2261 = vunpack.c.l.b16 %v1580
        %v2262 = vunpack.c.h.b16 %v1580
        %v2263 = vunpack.c.l.b16 %v1581
        %v2264 = vunpack.c.h.b16 %v1581
        %v2265 = vunpack.c.l.b16 %v1582
        %v2266 = vunpack.c.h.b16 %v1582
        %v2267 = vunpack.c.l.b16 %v1583
        %v2268 = vunpack.c.h.b16 %v1583
        %v2269 = vunpack.c.l.b16 %v1584
        %v2270 = vunpack.c.h.b16 %v1584
        %v2271 = vunpack.c.l.b16 %v1585
        %v2272 = vunpack.c.h.b16 %v1585
        %v2273 = vunpack.c.l.b16 %v1586
        %v2274 = vunpack.c.h.b16 %v1586
        %v2275 = vunpack.c.l.b16 %v1587
        %v2276 = vunpack.c.h.b16 %v1587
        %v2277 = vunpack.c.l.b16 %v1588
        %v2278 = vunpack.c.h.b16 %v1588
        %v2279 = vunpack.c.l.b16 %v1589
        %v2280 = vunpack.c.h.b16 %v1589
        %v2281 = vunpack.c.l.b16 %v1590
        %v2282 = vunpack.c.h.b16 %v1590
        %v2283 = vunpack.c.l.b16 %v1591
        %v2284 = vunpack.c.h.b16 %v1591
        %v2285 = vunpack.c.l.b16 %v1592
        %v2286 = vunpack.c.h.b16 %v1592
        %v2287 = vunpack.c.l.b16 %v1593
        %v2288 = vunpack.c.h.b16 %v1593
        %v2289 = vunpack.c.l.b16 %v1594
        %v2290 = vunpack.c.h.b16 %v1594
        %v2291 = vunpack.c.l.b16 %v1595
        %v2292 = vunpack.c.h.b16 %v1595
        %v2293 = vunpack.c.l.b16 %v1596
        %v2294 = vunpack.c.h.b16 %v1596
        %v2295 = vunpack.c.l.b16 %v1597
        %v2296 = vunpack.c.h.b16 %v1597
        %v2297 = vunpack.c.l.b16 %v1598
        %v2298 = vunpack.c.h.b16 %v1598
        %v2299 = vunpack.c.l.b16 %v1599
        %v2300 = vunpack.c.h.b16 %v1599
        %v2301 = vunpack.c.l.b16 %v1600
        %v2302 = vunpack.c.h.b16 %v1600
        %v2303 = vunpack.c.l.b16 %v1601
        %v2304 = vunpack.c.h.b16 %v1601
        %v2305 = vunpack.c.l.b16 %v1602
        %v2306 = vunpack.c.h.b16 %v1602
        %v2307 = vunpack.c.l.b16 %v1603
        %v2308 = vunpack.c.h.b16 %v1603
        %v2309 = vunpack.c.l.b16 %v1604
        %v2310 = vunpack.c.h.b16 %v1604
        %v2311 = vunpack.c.l.b16 %v1605
        %v2312 = vunpack.c.h.b16 %v1605
        %v2313 = vunpack.c.l.b16 %v1606
        %v2314 = vunpack.c.h.b16 %v1606
        %v2315 = vunpack.c.l.b16 %v1607
        %v2316 = vunpack.c.h.b16 %v1607
        %v2317 = vunpack.c.l.b16 %v1608
        %v2318 = vunpack.c.h.b16 %v1608
        %v2319 = vunpack.c.l.b16 %v1609
        %v2320 = vunpack.c.h.b16 %v1609
        %v2321 = vunpack.c.l.b16 %v1610
        %v2322 = vunpack.c.h.b16 %v1610
        %v2323 = vunpack.c.l.b16 %v1611
        %v2324 = vunpack.c.h.b16 %v1611
        %v2325 = vunpack.c.l.b16 %v1612
        %v2326 = vunpack.c.h.b16 %v1612
        %v2327 = vunpack.c.l.b16 %v1613
        %v2328 = vunpack.c.h.b16 %v1613
        %v2329 = vunpack.c.l.b16 %v1614
        %v2330 = vunpack.c.h.b16 %v1614
        %v2331 = vunpack.c.l.b16 %v1615
        %v2332 = vunpack.c.h.b16 %v1615
        %v2333 = vunpack.c.l.b16 %v1616
        %v2334 = vunpack.c.h.b16 %v1616
        %v2335 = vunpack.c.l.b16 %v1617
        %v2336 = vunpack.c.h.b16 %v1617
        %v2337 = vunpack.c.l.b16 %v1618
        %v2338 = vunpack.c.h.b16 %v1618
        %v2339 = vunpack.c.l.b16 %v1619
        %v2340 = vunpack.c.h.b16 %v1619
        %v2341 = vunpack.c.l.b16 %v1620
        %v2342 = vunpack.c.h.b16 %v1620
        %v2343 = vunpack.c.l.b16 %v1621
        %v2344 = vunpack.c.h.b16 %v1621
        %v2345 = vunpack.c.l.b16 %v1622
        %v2346 = vunpack.c.h.b16 %v1622
        %v2347 = vunpack.c.l.b16 %v1623
        %v2348 = vunpack.c.h.b16 %v1623
        %v2349 = vunpack.c.l.b16 %v1624
        %v2350 = vunpack.c.h.b16 %v1624
        %v2351 = vunpack.c.l.b16 %v1625
        %v2352 = vunpack.c.h.b16 %v1625
        %v2353 = vunpack.c.l.b16 %v1626
        %v2354 = vunpack.c.h.b16 %v1626
        %v2355 = vunpack.c.l.b16 %v1627
        %v2356 = vunpack.c.h.b16 %v1627
        %v2357 = vunpack.c.l.b16 %v1628
        %v2358 = vunpack.c.h.b16 %v1628
        %v2359 = vunpack.c.l.b16 %v1629
        %v2360 = vunpack.c.h.b16 %v1629
        %v2361 = vunpack.c.l.b16 %v1630
        %v2362 = vunpack.c.h.b16 %v1630
        %v2363 = vunpack.c.l.b16 %v1631
        %v2364 = vunpack.c.h.b16 %v1631
        %v2365 = vunpack.c.l.b16 %v1632
        %v2366 = vunpack.c.h.b16 %v1632
        %v2367 = vunpack.c.l.b16 %v1633
        %v2368 = vunpack.c.h.b16 %v1633
        %v2369 = vunpack.c.l.b16 %v1634
        %v2370 = vunpack.c.h.b16 %v1634
        %v2371 = vunpack.c.l.b16 %v1635
        %v2372 = vunpack.c.h.b16 %v1635
        %v2373 = vunpack.c.l.b16 %v1636
        %v2374 = vunpack.c.h.b16 %v1636
        %v2375 = vunpack.c.l.b16 %v1637
        %v2376 = vunpack.c.h.b16 %v1637
        %v2377 = vunpack.c.l.b16 %v1638
        %v2378 = vunpack.c.h.b16 %v1638
        %v2379 = vunpack.c.l.b16 %v1639
        %v2380 = vunpack.c.h.b16 %v1639
        %v2381 = vunpack.c.l.b16 %v1640
        %v2382 = vunpack.c.h.b16 %v1640
        %v2383 = vunpack.c.l.b16 %v1641
        %v2384 = vunpack.c.h.b16 %v1641
        %v2385 = vunpack.c.l.b16 %v1642
        %v2386 = vunpack.c.h.b16 %v1642
        %v2387 = vunpack.c.l.b16 %v1643
        %v2388 = vunpack.c.h.b16 %v1643
        %v2389 = vunpack.c.l.b16 %v1644
        %v2390 = vunpack.c.h.b16 %v1644
        %v2391 = vunpack.c.l.b16 %v1645
        %v2392 = vunpack.c.h.b16 %v1645
        %v2393 = vunpack.c.l.b16 %v1646
        %v2394 = vunpack.c.h.b16 %v1646
        %v2395 = vunpack.c.l.b16 %v1647
        %v2396 = vunpack.c.h.b16 %v1647
        %v2397 = vunpack.c.l.b16 %v1648
        %v2398 = vunpack.c.h.b16 %v1648
        %v2399 = vunpack.c.l.b16 %v1649
        %v2400 = vunpack.c.h.b16 %v1649
        %v2401 = vunpack.c.l.b16 %v1650
        %v2402 = vunpack.c.h.b16 %v1650
        %v2403 = vunpack.c.l.b16 %v1651
        %v2404 = vunpack.c.h.b16 %v1651
        %v2405 = vunpack.c.l.b16 %v1652
        %v2406 = vunpack.c.h.b16 %v1652
        %v2407 = vunpack.c.l.b16 %v1653
        %v2408 = vunpack.c.h.b16 %v1653
        %v2409 = vunpack.c.l.b16 %v1654
        %v2410 = vunpack.c.h.b16 %v1654
        %v2411 = vunpack.c.l.b16 %v1655
        %v2412 = vunpack.c.h.b16 %v1655
        %v2413 = vunpack.c.l.b16 %v1656
        %v2414 = vunpack.c.h.b16 %v1656
        %v2415 = vunpack.c.l.b16 %v1657
        %v2416 = vunpack.c.h.b16 %v1657
        %v2417 = vunpack.c.l.b16 %v1658
        %v2418 = vunpack.c.h.b16 %v1658
        %v2419 = vunpack.c.l.b16 %v1659
        %v2420 = vunpack.c.h.b16 %v1659
        %v2421 = vunpack.c.l.b16 %v1660
        %v2422 = vunpack.c.h.b16 %v1660
        %v2423 = vunpack.c.l.b16 %v1661
        %v2424 = vunpack.c.h.b16 %v1661
        %v2425 = vunpack.c.l.b16 %v1662
        %v2426 = vunpack.c.h.b16 %v1662
        %v2427 = vunpack.c.l.b16 %v1663
        %v2428 = vunpack.c.h.b16 %v1663
        %v2429 = vunpack.c.l.b16 %v1664
        %v2430 = vunpack.c.h.b16 %v1664
        %v2431 = vunpack.c.l.b16 %v1665
        %v2432 = vunpack.c.h.b16 %v1665
        %v2433 = vunpack.c.l.b16 %v1666
        %v2434 = vunpack.c.h.b16 %v1666
        %v2435 = vpack.c.b16 %v1931, %v1923
        %v2436 = vpack.c.b16 %v1932, %v1924
        %v2437 = vpack.c.b16 %v1933, %v1925
        %v2438 = vpack.c.b16 %v1934, %v1926
        %v2439 = vpack.c.b16 %v1935, %v1927
        %v2440 = vpack.c.b16 %v1936, %v1928
        %v2441 = vpack.c.b16 %v1937, %v1929
        %v2442 = vpack.c.b16 %v1938, %v1930
        %v2443 = vpack.c.b16 %v1947, %v1939
        %v2444 = vpack.c.b16 %v1948, %v1940
        %v2445 = vpack.c.b16 %v1949, %v1941
        %v2446 = vpack.c.b16 %v1950, %v1942
        %v2447 = vpack.c.b16 %v1951, %v1943
        %v2448 = vpack.c.b16 %v1952, %v1944
        %v2449 = vpack.c.b16 %v1953, %v1945
        %v2450 = vpack.c.b16 %v1954, %v1946
        %v2451 = vpack.c.b16 %v1963, %v1955
        %v2452 = vpack.c.b16 %v1964, %v1956
        %v2453 = vpack.c.b16 %v1965, %v1957
        %v2454 = vpack.c.b16 %v1966, %v1958
        %v2455 = vpack.c.b16 %v1967, %v1959
        %v2456 = vpack.c.b16 %v1968, %v1960
        %v2457 = vpack.c.b16 %v1969, %v1961
        %v2458 = vpack.c.b16 %v1970, %v1962
        %v2459 = vpack.c.b16 %v1979, %v1971
        %v2460 = vpack.c.b16 %v1980, %v1972
        %v2461 = vpack.c.b16 %v1981, %v1973
        %v2462 = vpack.c.b16 %v1982, %v1974
        %v2463 = vpack.c.b16 %v1983, %v1975
        %v2464 = vpack.c.b16 %v1984, %v1976
        %v2465 = vpack.c.b16 %v1985, %v1977
        %v2466 = vpack.c.b16 %v1986, %v1978
        %v2467 = vpack.c.b16 %v1995, %v1987
        %v2468 = vpack.c.b16 %v1996, %v1988
        %v2469 = vpack.c.b16 %v1997, %v1989
        %v2470 = vpack.c.b16 %v1998, %v1990
        %v2471 = vpack.c.b16 %v1999, %v1991
        %v2472 = vpack.c.b16 %v2000, %v1992
        %v2473 = vpack.c.b16 %v2001, %v1993
        %v2474 = vpack.c.b16 %v2002, %v1994
        %v2475 = vpack.c.b16 %v2011, %v2003
        %v2476 = vpack.c.b16 %v2012, %v2004
        %v2477 = vpack.c.b16 %v2013, %v2005
        %v2478 = vpack.c.b16 %v2014, %v2006
        %v2479 = vpack.c.b16 %v2015, %v2007
        %v2480 = vpack.c.b16 %v2016, %v2008
        %v2481 = vpack.c.b16 %v2017, %v2009
        %v2482 = vpack.c.b16 %v2018, %v2010
        %v2483 = vpack.c.b16 %v2027, %v2019
        %v2484 = vpack.c.b16 %v2028, %v2020
        %v2485 = vpack.c.b16 %v2029, %v2021
        %v2486 = vpack.c.b16 %v2030, %v2022
        %v2487 = vpack.c.b16 %v2031, %v2023
        %v2488 = vpack.c.b16 %v2032, %v2024
        %v2489 = vpack.c.b16 %v2033, %v2025
        %v2490 = vpack.c.b16 %v2034, %v2026
        %v2491 = vpack.c.b16 %v2043, %v2035
        %v2492 = vpack.c.b16 %v2044, %v2036
        %v2493 = vpack.c.b16 %v2045, %v2037
        %v2494 = vpack.c.b16 %v2046, %v2038
        %v2495 = vpack.c.b16 %v2047, %v2039
        %v2496 = vpack.c.b16 %v2048, %v2040
        %v2497 = vpack.c.b16 %v2049, %v2041
        %v2498 = vpack.c.b16 %v2050, %v2042
        %v2499 = vpack.c.b16 %v2059, %v2051
        %v2500 = vpack.c.b16 %v2060, %v2052
        %v2501 = vpack.c.b16 %v2061, %v2053
        %v2502 = vpack.c.b16 %v2062, %v2054
        %v2503 = vpack.c.b16 %v2063, %v2055
        %v2504 = vpack.c.b16 %v2064, %v2056
        %v2505 = vpack.c.b16 %v2065, %v2057
        %v2506 = vpack.c.b16 %v2066, %v2058
        %v2507 = vpack.c.b16 %v2075, %v2067
        %v2508 = vpack.c.b16 %v2076, %v2068
        %v2509 = vpack.c.b16 %v2077, %v2069
        %v2510 = vpack.c.b16 %v2078, %v2070
        %v2511 = vpack.c.b16 %v2079, %v2071
        %v2512 = vpack.c.b16 %v2080, %v2072
        %v2513 = vpack.c.b16 %v2081, %v2073
        %v2514 = vpack.c.b16 %v2082, %v2074
        %v2515 = vpack.c.b16 %v2091, %v2083
        %v2516 = vpack.c.b16 %v2092, %v2084
        %v2517 = vpack.c.b16 %v2093, %v2085
        %v2518 = vpack.c.b16 %v2094, %v2086
        %v2519 = vpack.c.b16 %v2095, %v2087
        %v2520 = vpack.c.b16 %v2096, %v2088
        %v2521 = vpack.c.b16 %v2097, %v2089
        %v2522 = vpack.c.b16 %v2098, %v2090
        %v2523 = vpack.c.b16 %v2107, %v2099
        %v2524 = vpack.c.b16 %v2108, %v2100
        %v2525 = vpack.c.b16 %v2109, %v2101
        %v2526 = vpack.c.b16 %v2110, %v2102
        %v2527 = vpack.c.b16 %v2111, %v2103
        %v2528 = vpack.c.b16 %v2112, %v2104
        %v2529 = vpack.c.b16 %v2113, %v2105
        %v2530 = vpack.c.b16 %v2114, %v2106
        %v2531 = vpack.c.b16 %v2123, %v2115
        %v2532 = vpack.c.b16 %v2124, %v2116
        %v2533 = vpack.c.b16 %v2125, %v2117
        %v2534 = vpack.c.b16 %v2126, %v2118
        %v2535 = vpack.c.b16 %v2127, %v2119
        %v2536 = vpack.c.b16 %v2128, %v2120
        %v2537 = vpack.c.b16 %v2129, %v2121
        %v2538 = vpack.c.b16 %v2130, %v2122
        %v2539 = vpack.c.b16 %v2139, %v2131
        %v2540 = vpack.c.b16 %v2140, %v2132
        %v2541 = vpack.c.b16 %v2141, %v2133
        %v2542 = vpack.c.b16 %v2142, %v2134
        %v2543 = vpack.c.b16 %v2143, %v2135
        %v2544 = vpack.c.b16 %v2144, %v2136
        %v2545 = vpack.c.b16 %v2145, %v2137
        %v2546 = vpack.c.b16 %v2146, %v2138
        %v2547 = vpack.c.b16 %v2155, %v2147
        %v2548 = vpack.c.b16 %v2156, %v2148
        %v2549 = vpack.c.b16 %v2157, %v2149
        %v2550 = vpack.c.b16 %v2158, %v2150
        %v2551 = vpack.c.b16 %v2159, %v2151
        %v2552 = vpack.c.b16 %v2160, %v2152
        %v2553 = vpack.c.b16 %v2161, %v2153
        %v2554 = vpack.c.b16 %v2162, %v2154
        %v2555 = vpack.c.b16 %v2171, %v2163
        %v2556 = vpack.c.b16 %v2172, %v2164
        %v2557 = vpack.c.b16 %v2173, %v2165
        %v2558 = vpack.c.b16 %v2174, %v2166
        %v2559 = vpack.c.b16 %v2175, %v2167
        %v2560 = vpack.c.b16 %v2176, %v2168
        %v2561 = vpack.c.b16 %v2177, %v2169
        %v2562 = vpack.c.b16 %v2178, %v2170
        %v2563 = vpack.c.b16 %v2187, %v2179
        %v2564 = vpack.c.b16 %v2188, %v2180
        %v2565 = vpack.c.b16 %v2189, %v2181
        %v2566 = vpack.c.b16 %v2190, %v2182
        %v2567 = vpack.c.b16 %v2191, %v2183
        %v2568 = vpack.c.b16 %v2192, %v2184
        %v2569 = vpack.c.b16 %v2193, %v2185
        %v2570 = vpack.c.b16 %v2194, %v2186
        %v2571 = vpack.c.b16 %v2203, %v2195
        %v2572 = vpack.c.b16 %v2204, %v2196
        %v2573 = vpack.c.b16 %v2205, %v2197
        %v2574 = vpack.c.b16 %v2206, %v2198
        %v2575 = vpack.c.b16 %v2207, %v2199
        %v2576 = vpack.c.b16 %v2208, %v2200
        %v2577 = vpack.c.b16 %v2209, %v2201
        %v2578 = vpack.c.b16 %v2210, %v2202
        %v2579 = vpack.c.b16 %v2219, %v2211
        %v2580 = vpack.c.b16 %v2220, %v2212
        %v2581 = vpack.c.b16 %v2221, %v2213
        %v2582 = vpack.c.b16 %v2222, %v2214
        %v2583 = vpack.c.b16 %v2223, %v2215
        %v2584 = vpack.c.b16 %v2224, %v2216
        %v2585 = vpack.c.b16 %v2225, %v2217
        %v2586 = vpack.c.b16 %v2226, %v2218
        %v2587 = vpack.c.b16 %v2235, %v2227
        %v2588 = vpack.c.b16 %v2236, %v2228
        %v2589 = vpack.c.b16 %v2237, %v2229
        %v2590 = vpack.c.b16 %v2238, %v2230
        %v2591 = vpack.c.b16 %v2239, %v2231
        %v2592 = vpack.c.b16 %v2240, %v2232
        %v2593 = vpack.c.b16 %v2241, %v2233
        %v2594 = vpack.c.b16 %v2242, %v2234
        %v2595 = vpack.c.b16 %v2251, %v2243
        %v2596 = vpack.c.b16 %v2252, %v2244
        %v2597 = vpack.c.b16 %v2253, %v2245
        %v2598 = vpack.c.b16 %v2254, %v2246
        %v2599 = vpack.c.b16 %v2255, %v2247
        %v2600 = vpack.c.b16 %v2256, %v2248
        %v2601 = vpack.c.b16 %v2257, %v2249
        %v2602 = vpack.c.b16 %v2258, %v2250
        %v2603 = vpack.c.b16 %v2267, %v2259
        %v2604 = vpack.c.b16 %v2268, %v2260
        %v2605 = vpack.c.b16 %v2269, %v2261
        %v2606 = vpack.c.b16 %v2270, %v2262
        %v2607 = vpack.c.b16 %v2271, %v2263
        %v2608 = vpack.c.b16 %v2272, %v2264
        %v2609 = vpack.c.b16 %v2273, %v2265
        %v2610 = vpack.c.b16 %v2274, %v2266
        %v2611 = vpack.c.b16 %v2283, %v2275
        %v2612 = vpack.c.b16 %v2284, %v2276
        %v2613 = vpack.c.b16 %v2285, %v2277
        %v2614 = vpack.c.b16 %v2286, %v2278
        %v2615 = vpack.c.b16 %v2287, %v2279
        %v2616 = vpack.c.b16 %v2288, %v2280
        %v2617 = vpack.c.b16 %v2289, %v2281
        %v2618 = vpack.c.b16 %v2290, %v2282
        %v2619 = vpack.c.b16 %v2299, %v2291
        %v2620 = vpack.c.b16 %v2300, %v2292
        %v2621 = vpack.c.b16 %v2301, %v2293
        %v2622 = vpack.c.b16 %v2302, %v2294
        %v2623 = vpack.c.b16 %v2303, %v2295
        %v2624 = vpack.c.b16 %v2304, %v2296
        %v2625 = vpack.c.b16 %v2305, %v2297
        %v2626 = vpack.c.b16 %v2306, %v2298
        %v2627 = vpack.c.b16 %v2315, %v2307
        %v2628 = vpack.c.b16 %v2316, %v2308
        %v2629 = vpack.c.b16 %v2317, %v2309
        %v2630 = vpack.c.b16 %v2318, %v2310
        %v2631 = vpack.c.b16 %v2319, %v2311
        %v2632 = vpack.c.b16 %v2320, %v2312
        %v2633 = vpack.c.b16 %v2321, %v2313
        %v2634 = vpack.c.b16 %v2322, %v2314
        %v2635 = vpack.c.b16 %v2331, %v2323
        %v2636 = vpack.c.b16 %v2332, %v2324
        %v2637 = vpack.c.b16 %v2333, %v2325
        %v2638 = vpack.c.b16 %v2334, %v2326
        %v2639 = vpack.c.b16 %v2335, %v2327
        %v2640 = vpack.c.b16 %v2336, %v2328
        %v2641 = vpack.c.b16 %v2337, %v2329
        %v2642 = vpack.c.b16 %v2338, %v2330
        %v2643 = vpack.c.b16 %v2347, %v2339
        %v2644 = vpack.c.b16 %v2348, %v2340
        %v2645 = vpack.c.b16 %v2349, %v2341
        %v2646 = vpack.c.b16 %v2350, %v2342
        %v2647 = vpack.c.b16 %v2351, %v2343
        %v2648 = vpack.c.b16 %v2352, %v2344
        %v2649 = vpack.c.b16 %v2353, %v2345
        %v2650 = vpack.c.b16 %v2354, %v2346
        %v2651 = vpack.c.b16 %v2363, %v2355
        %v2652 = vpack.c.b16 %v2364, %v2356
        %v2653 = vpack.c.b16 %v2365, %v2357
        %v2654 = vpack.c.b16 %v2366, %v2358
        %v2655 = vpack.c.b16 %v2367, %v2359
        %v2656 = vpack.c.b16 %v2368, %v2360
        %v2657 = vpack.c.b16 %v2369, %v2361
        %v2658 = vpack.c.b16 %v2370, %v2362
        %v2659 = vpack.c.b16 %v2379, %v2371
        %v2660 = vpack.c.b16 %v2380, %v2372
        %v2661 = vpack.c.b16 %v2381, %v2373
        %v2662 = vpack.c.b16 %v2382, %v2374
        %v2663 = vpack.c.b16 %v2383, %v2375
        %v2664 = vpack.c.b16 %v2384, %v2376
        %v2665 = vpack.c.b16 %v2385, %v2377
        %v2666 = vpack.c.b16 %v2386, %v2378
        %v2667 = vpack.c.b16 %v2395, %v2387
        %v2668 = vpack.c.b16 %v2396, %v2388
        %v2669 = vpack.c.b16 %v2397, %v2389
        %v2670 = vpack.c.b16 %v2398, %v2390
        %v2671 = vpack.c.b16 %v2399, %v2391
        %v2672 = vpack.c.b16 %v2400, %v2392
        %v2673 = vpack.c.b16 %v2401, %v2393
        %v2674 = vpack.c.b16 %v2402, %v2394
        %v2675 = vpack.c.b16 %v2411, %v2403
        %v2676 = vpack.c.b16 %v2412, %v2404
        %v2677 = vpack.c.b16 %v2413, %v2405
        %v2678 = vpack.c.b16 %v2414, %v2406
        %v2679 = vpack.c.b16 %v2415, %v2407
        %v2680 = vpack.c.b16 %v2416, %v2408
        %v2681 = vpack.c.b16 %v2417, %v2409
        %v2682 = vpack.c.b16 %v2418, %v2410
        %v2683 = vpack.c.b16 %v2427, %v2419
        %v2684 = vpack.c.b16 %v2428, %v2420
        %v2685 = vpack.c.b16 %v2429, %v2421
        %v2686 = vpack.c.b16 %v2430, %v2422
        %v2687 = vpack.c.b16 %v2431, %v2423
        %v2688 = vpack.c.b16 %v2432, %v2424
        %v2689 = vpack.c.b16 %v2433, %v2425
        %v2690 = vpack.c.b16 %v2434, %v2426
        %2947 = vmatpush.bf16.msra.mxu0 %v2491
        %2948 = vmatpush.bf16.msra.mxu0 %v2483
        %2949 = vmatpush.bf16.msra.mxu0 %v2475
        %2950 = vmatpush.bf16.msra.mxu0 %v2467
        %2951 = vmatpush.bf16.msra.mxu0 %v2459
        %2952 = vmatpush.bf16.msra.mxu0 %v2451
        %2953 = vmatpush.bf16.msra.mxu0 %v2443
        %2954 = vmatpush.bf16.msra.mxu0 %v2435
        %2955 = vmatmul.bf16.gmra.mxu0 %v1407
        %v2956 = vpop.f32.mrf.mxu0
        %v2957 = vadd.f32 0.0, %v2956
        %v2958 = vpop.f32.mrf.mxu0
        %2959 = vdwg.mxu0
        %2960 = vmatpush.bf16.msra.mxu0 %v2555
        %2961 = vmatpush.bf16.msra.mxu0 %v2547
        %2962 = vmatpush.bf16.msra.mxu0 %v2539
        %2963 = vmatpush.bf16.msra.mxu0 %v2531
        %2964 = vmatpush.bf16.msra.mxu0 %v2523
        %2965 = vmatpush.bf16.msra.mxu0 %v2515
        %2966 = vmatpush.bf16.msra.mxu0 %v2507
        %2967 = vmatpush.bf16.msra.mxu0 %v2499
        %2968 = vmatmul.bf16.gmra.mxu0 %v1408
        %v2969 = vpop.f32.mrf.mxu0
        %v2970 = vadd.f32 %v2957, %v2969
        %v2971 = vpop.f32.mrf.mxu0
        %2972 = vdwg.mxu0
        %2973 = vmatpush.bf16.msra.mxu0 %v2619
        %2974 = vmatpush.bf16.msra.mxu0 %v2611
        %2975 = vmatpush.bf16.msra.mxu0 %v2603
        %2976 = vmatpush.bf16.msra.mxu0 %v2595
        %2977 = vmatpush.bf16.msra.mxu0 %v2587
        %2978 = vmatpush.bf16.msra.mxu0 %v2579
        %2979 = vmatpush.bf16.msra.mxu0 %v2571
        %2980 = vmatpush.bf16.msra.mxu0 %v2563
        %2981 = vmatmul.bf16.gmra.mxu0 %v1409
        %v2982 = vpop.f32.mrf.mxu0
        %v2983 = vadd.f32 %v2970, %v2982
        %v2984 = vpop.f32.mrf.mxu0
        %2985 = vdwg.mxu0
        %2986 = vmatpush.bf16.msra.mxu0 %v2683
        %2987 = vmatpush.bf16.msra.mxu0 %v2675
        %2988 = vmatpush.bf16.msra.mxu0 %v2667
        %2989 = vmatpush.bf16.msra.mxu0 %v2659
        %2990 = vmatpush.bf16.msra.mxu0 %v2651
        %2991 = vmatpush.bf16.msra.mxu0 %v2643
        %2992 = vmatpush.bf16.msra.mxu0 %v2635
        %2993 = vmatpush.bf16.msra.mxu0 %v2627
        %2994 = vmatmul.bf16.gmra.mxu0 %v1410
        %v2995 = vpop.f32.mrf.mxu0
        %v2996 = vadd.f32 %v2983, %v2995
        %v2997 = vpop.f32.mrf.mxu0
        %2998 = vdwg.mxu0
        %2999 = vmatpush.bf16.msra.mxu0 %v2492
        %3000 = vmatpush.bf16.msra.mxu0 %v2484
        %3001 = vmatpush.bf16.msra.mxu0 %v2476
        %3002 = vmatpush.bf16.msra.mxu0 %v2468
        %3003 = vmatpush.bf16.msra.mxu0 %v2460
        %3004 = vmatpush.bf16.msra.mxu0 %v2452
        %3005 = vmatpush.bf16.msra.mxu0 %v2444
        %3006 = vmatpush.bf16.msra.mxu0 %v2436
        %3007 = vmatmul.bf16.gmra.mxu0 %v1407
        %v3008 = vpop.f32.mrf.mxu0
        %v3009 = vadd.f32 0.0, %v3008
        %v3010 = vpop.f32.mrf.mxu0
        %3011 = vdwg.mxu0
        %3012 = vmatpush.bf16.msra.mxu0 %v2556
        %3013 = vmatpush.bf16.msra.mxu0 %v2548
        %3014 = vmatpush.bf16.msra.mxu0 %v2540
        %3015 = vmatpush.bf16.msra.mxu0 %v2532
        %3016 = vmatpush.bf16.msra.mxu0 %v2524
        %3017 = vmatpush.bf16.msra.mxu0 %v2516
        %3018 = vmatpush.bf16.msra.mxu0 %v2508
        %3019 = vmatpush.bf16.msra.mxu0 %v2500
        %3020 = vmatmul.bf16.gmra.mxu0 %v1408
        %v3021 = vpop.f32.mrf.mxu0
        %v3022 = vadd.f32 %v3009, %v3021
        %v3023 = vpop.f32.mrf.mxu0
        %3024 = vdwg.mxu0
        %3025 = vmatpush.bf16.msra.mxu0 %v2620
        %3026 = vmatpush.bf16.msra.mxu0 %v2612
        %3027 = vmatpush.bf16.msra.mxu0 %v2604
        %3028 = vmatpush.bf16.msra.mxu0 %v2596
        %3029 = vmatpush.bf16.msra.mxu0 %v2588
        %3030 = vmatpush.bf16.msra.mxu0 %v2580
        %3031 = vmatpush.bf16.msra.mxu0 %v2572
        %3032 = vmatpush.bf16.msra.mxu0 %v2564
        %3033 = vmatmul.bf16.gmra.mxu0 %v1409
        %v3034 = vpop.f32.mrf.mxu0
        %v3035 = vadd.f32 %v3022, %v3034
        %v3036 = vpop.f32.mrf.mxu0
        %3037 = vdwg.mxu0
        %3038 = vmatpush.bf16.msra.mxu0 %v2684
        %3039 = vmatpush.bf16.msra.mxu0 %v2676
        %3040 = vmatpush.bf16.msra.mxu0 %v2668
        %3041 = vmatpush.bf16.msra.mxu0 %v2660
        %3042 = vmatpush.bf16.msra.mxu0 %v2652
        %3043 = vmatpush.bf16.msra.mxu0 %v2644
        %3044 = vmatpush.bf16.msra.mxu0 %v2636
        %3045 = vmatpush.bf16.msra.mxu0 %v2628
        %3046 = vmatmul.bf16.gmra.mxu0 %v1410
        %v3047 = vpop.f32.mrf.mxu0
        %v3048 = vadd.f32 %v3035, %v3047
        %v3049 = vpop.f32.mrf.mxu0
        %3050 = vdwg.mxu0
        %3051 = vmatpush.bf16.msra.mxu0 %v2493
        %3052 = vmatpush.bf16.msra.mxu0 %v2485
        %3053 = vmatpush.bf16.msra.mxu0 %v2477
        %3054 = vmatpush.bf16.msra.mxu0 %v2469
        %3055 = vmatpush.bf16.msra.mxu0 %v2461
        %3056 = vmatpush.bf16.msra.mxu0 %v2453
        %3057 = vmatpush.bf16.msra.mxu0 %v2445
        %3058 = vmatpush.bf16.msra.mxu0 %v2437
        %3059 = vmatmul.bf16.gmra.mxu0 %v1407
        %v3060 = vpop.f32.mrf.mxu0
        %v3061 = vadd.f32 0.0, %v3060
        %v3062 = vpop.f32.mrf.mxu0
        %3063 = vdwg.mxu0
        %3064 = vmatpush.bf16.msra.mxu0 %v2557
        %3065 = vmatpush.bf16.msra.mxu0 %v2549
        %3066 = vmatpush.bf16.msra.mxu0 %v2541
        %3067 = vmatpush.bf16.msra.mxu0 %v2533
        %3068 = vmatpush.bf16.msra.mxu0 %v2525
        %3069 = vmatpush.bf16.msra.mxu0 %v2517
        %3070 = vmatpush.bf16.msra.mxu0 %v2509
        %3071 = vmatpush.bf16.msra.mxu0 %v2501
        %3072 = vmatmul.bf16.gmra.mxu0 %v1408
        %v3073 = vpop.f32.mrf.mxu0
        %v3074 = vadd.f32 %v3061, %v3073
        %v3075 = vpop.f32.mrf.mxu0
        %3076 = vdwg.mxu0
        %3077 = vmatpush.bf16.msra.mxu0 %v2621
        %3078 = vmatpush.bf16.msra.mxu0 %v2613
        %3079 = vmatpush.bf16.msra.mxu0 %v2605
        %3080 = vmatpush.bf16.msra.mxu0 %v2597
        %3081 = vmatpush.bf16.msra.mxu0 %v2589
        %3082 = vmatpush.bf16.msra.mxu0 %v2581
        %3083 = vmatpush.bf16.msra.mxu0 %v2573
        %3084 = vmatpush.bf16.msra.mxu0 %v2565
        %3085 = vmatmul.bf16.gmra.mxu0 %v1409
        %v3086 = vpop.f32.mrf.mxu0
        %v3087 = vadd.f32 %v3074, %v3086
        %v3088 = vpop.f32.mrf.mxu0
        %3089 = vdwg.mxu0
        %3090 = vmatpush.bf16.msra.mxu0 %v2685
        %3091 = vmatpush.bf16.msra.mxu0 %v2677
        %3092 = vmatpush.bf16.msra.mxu0 %v2669
        %3093 = vmatpush.bf16.msra.mxu0 %v2661
        %3094 = vmatpush.bf16.msra.mxu0 %v2653
        %3095 = vmatpush.bf16.msra.mxu0 %v2645
        %3096 = vmatpush.bf16.msra.mxu0 %v2637
        %3097 = vmatpush.bf16.msra.mxu0 %v2629
        %3098 = vmatmul.bf16.gmra.mxu0 %v1410
        %v3099 = vpop.f32.mrf.mxu0
        %v3100 = vadd.f32 %v3087, %v3099
        %v3101 = vpop.f32.mrf.mxu0
        %3102 = vdwg.mxu0
        %3103 = vmatpush.bf16.msra.mxu0 %v2494
        %3104 = vmatpush.bf16.msra.mxu0 %v2486
        %3105 = vmatpush.bf16.msra.mxu0 %v2478
        %3106 = vmatpush.bf16.msra.mxu0 %v2470
        %3107 = vmatpush.bf16.msra.mxu0 %v2462
        %3108 = vmatpush.bf16.msra.mxu0 %v2454
        %3109 = vmatpush.bf16.msra.mxu0 %v2446
        %3110 = vmatpush.bf16.msra.mxu0 %v2438
        %3111 = vmatmul.bf16.gmra.mxu0 %v1407
        %v3112 = vpop.f32.mrf.mxu0
        %v3113 = vadd.f32 0.0, %v3112
        %v3114 = vpop.f32.mrf.mxu0
        %3115 = vdwg.mxu0
        %3116 = vmatpush.bf16.msra.mxu0 %v2558
        %3117 = vmatpush.bf16.msra.mxu0 %v2550
        %3118 = vmatpush.bf16.msra.mxu0 %v2542
        %3119 = vmatpush.bf16.msra.mxu0 %v2534
        %3120 = vmatpush.bf16.msra.mxu0 %v2526
        %3121 = vmatpush.bf16.msra.mxu0 %v2518
        %3122 = vmatpush.bf16.msra.mxu0 %v2510
        %3123 = vmatpush.bf16.msra.mxu0 %v2502
        %3124 = vmatmul.bf16.gmra.mxu0 %v1408
        %v3125 = vpop.f32.mrf.mxu0
        %v3126 = vadd.f32 %v3113, %v3125
        %v3127 = vpop.f32.mrf.mxu0
        %3128 = vdwg.mxu0
        %3129 = vmatpush.bf16.msra.mxu0 %v2622
        %3130 = vmatpush.bf16.msra.mxu0 %v2614
        %3131 = vmatpush.bf16.msra.mxu0 %v2606
        %3132 = vmatpush.bf16.msra.mxu0 %v2598
        %3133 = vmatpush.bf16.msra.mxu0 %v2590
        %3134 = vmatpush.bf16.msra.mxu0 %v2582
        %3135 = vmatpush.bf16.msra.mxu0 %v2574
        %3136 = vmatpush.bf16.msra.mxu0 %v2566
        %3137 = vmatmul.bf16.gmra.mxu0 %v1409
        %v3138 = vpop.f32.mrf.mxu0
        %v3139 = vadd.f32 %v3126, %v3138
        %v3140 = vpop.f32.mrf.mxu0
        %3141 = vdwg.mxu0
        %3142 = vmatpush.bf16.msra.mxu0 %v2686
        %3143 = vmatpush.bf16.msra.mxu0 %v2678
        %3144 = vmatpush.bf16.msra.mxu0 %v2670
        %3145 = vmatpush.bf16.msra.mxu0 %v2662
        %3146 = vmatpush.bf16.msra.mxu0 %v2654
        %3147 = vmatpush.bf16.msra.mxu0 %v2646
        %3148 = vmatpush.bf16.msra.mxu0 %v2638
        %3149 = vmatpush.bf16.msra.mxu0 %v2630
        %3150 = vmatmul.bf16.gmra.mxu0 %v1410
        %v3151 = vpop.f32.mrf.mxu0
        %v3152 = vadd.f32 %v3139, %v3151
        %v3153 = vpop.f32.mrf.mxu0
        %3154 = vdwg.mxu0
        %3155 = vmatpush.bf16.msra.mxu0 %v2495
        %3156 = vmatpush.bf16.msra.mxu0 %v2487
        %3157 = vmatpush.bf16.msra.mxu0 %v2479
        %3158 = vmatpush.bf16.msra.mxu0 %v2471
        %3159 = vmatpush.bf16.msra.mxu0 %v2463
        %3160 = vmatpush.bf16.msra.mxu0 %v2455
        %3161 = vmatpush.bf16.msra.mxu0 %v2447
        %3162 = vmatpush.bf16.msra.mxu0 %v2439
        %3163 = vmatmul.bf16.gmra.mxu0 %v1407
        %v3164 = vpop.f32.mrf.mxu0
        %v3165 = vadd.f32 0.0, %v3164
        %v3166 = vpop.f32.mrf.mxu0
        %3167 = vdwg.mxu0
        %3168 = vmatpush.bf16.msra.mxu0 %v2559
        %3169 = vmatpush.bf16.msra.mxu0 %v2551
        %3170 = vmatpush.bf16.msra.mxu0 %v2543
        %3171 = vmatpush.bf16.msra.mxu0 %v2535
        %3172 = vmatpush.bf16.msra.mxu0 %v2527
        %3173 = vmatpush.bf16.msra.mxu0 %v2519
        %3174 = vmatpush.bf16.msra.mxu0 %v2511
        %3175 = vmatpush.bf16.msra.mxu0 %v2503
        %3176 = vmatmul.bf16.gmra.mxu0 %v1408
        %v3177 = vpop.f32.mrf.mxu0
        %v3178 = vadd.f32 %v3165, %v3177
        %v3179 = vpop.f32.mrf.mxu0
        %3180 = vdwg.mxu0
        %3181 = vmatpush.bf16.msra.mxu0 %v2623
        %3182 = vmatpush.bf16.msra.mxu0 %v2615
        %3183 = vmatpush.bf16.msra.mxu0 %v2607
        %3184 = vmatpush.bf16.msra.mxu0 %v2599
        %3185 = vmatpush.bf16.msra.mxu0 %v2591
        %3186 = vmatpush.bf16.msra.mxu0 %v2583
        %3187 = vmatpush.bf16.msra.mxu0 %v2575
        %3188 = vmatpush.bf16.msra.mxu0 %v2567
        %3189 = vmatmul.bf16.gmra.mxu0 %v1409
        %v3190 = vpop.f32.mrf.mxu0
        %v3191 = vadd.f32 %v3178, %v3190
        %v3192 = vpop.f32.mrf.mxu0
        %3193 = vdwg.mxu0
        %3194 = vmatpush.bf16.msra.mxu0 %v2687
        %3195 = vmatpush.bf16.msra.mxu0 %v2679
        %3196 = vmatpush.bf16.msra.mxu0 %v2671
        %3197 = vmatpush.bf16.msra.mxu0 %v2663
        %3198 = vmatpush.bf16.msra.mxu0 %v2655
        %3199 = vmatpush.bf16.msra.mxu0 %v2647
        %3200 = vmatpush.bf16.msra.mxu0 %v2639
        %3201 = vmatpush.bf16.msra.mxu0 %v2631
        %3202 = vmatmul.bf16.gmra.mxu0 %v1410
        %v3203 = vpop.f32.mrf.mxu0
        %v3204 = vadd.f32 %v3191, %v3203
        %v3205 = vpop.f32.mrf.mxu0
        %3206 = vdwg.mxu0
        %3207 = vmatpush.bf16.msra.mxu0 %v2496
        %3208 = vmatpush.bf16.msra.mxu0 %v2488
        %3209 = vmatpush.bf16.msra.mxu0 %v2480
        %3210 = vmatpush.bf16.msra.mxu0 %v2472
        %3211 = vmatpush.bf16.msra.mxu0 %v2464
        %3212 = vmatpush.bf16.msra.mxu0 %v2456
        %3213 = vmatpush.bf16.msra.mxu0 %v2448
        %3214 = vmatpush.bf16.msra.mxu0 %v2440
        %3215 = vmatmul.bf16.gmra.mxu0 %v1407
        %v3216 = vpop.f32.mrf.mxu0
        %v3217 = vadd.f32 0.0, %v3216
        %v3218 = vpop.f32.mrf.mxu0
        %3219 = vdwg.mxu0
        %3220 = vmatpush.bf16.msra.mxu0 %v2560
        %3221 = vmatpush.bf16.msra.mxu0 %v2552
        %3222 = vmatpush.bf16.msra.mxu0 %v2544
        %3223 = vmatpush.bf16.msra.mxu0 %v2536
        %3224 = vmatpush.bf16.msra.mxu0 %v2528
        %3225 = vmatpush.bf16.msra.mxu0 %v2520
        %3226 = vmatpush.bf16.msra.mxu0 %v2512
        %3227 = vmatpush.bf16.msra.mxu0 %v2504
        %3228 = vmatmul.bf16.gmra.mxu0 %v1408
        %v3229 = vpop.f32.mrf.mxu0
        %v3230 = vadd.f32 %v3217, %v3229
        %v3231 = vpop.f32.mrf.mxu0
        %3232 = vdwg.mxu0
        %3233 = vmatpush.bf16.msra.mxu0 %v2624
        %3234 = vmatpush.bf16.msra.mxu0 %v2616
        %3235 = vmatpush.bf16.msra.mxu0 %v2608
        %3236 = vmatpush.bf16.msra.mxu0 %v2600
        %3237 = vmatpush.bf16.msra.mxu0 %v2592
        %3238 = vmatpush.bf16.msra.mxu0 %v2584
        %3239 = vmatpush.bf16.msra.mxu0 %v2576
        %3240 = vmatpush.bf16.msra.mxu0 %v2568
        %3241 = vmatmul.bf16.gmra.mxu0 %v1409
        %v3242 = vpop.f32.mrf.mxu0
        %v3243 = vadd.f32 %v3230, %v3242
        %v3244 = vpop.f32.mrf.mxu0
        %3245 = vdwg.mxu0
        %3246 = vmatpush.bf16.msra.mxu0 %v2688
        %3247 = vmatpush.bf16.msra.mxu0 %v2680
        %3248 = vmatpush.bf16.msra.mxu0 %v2672
        %3249 = vmatpush.bf16.msra.mxu0 %v2664
        %3250 = vmatpush.bf16.msra.mxu0 %v2656
        %3251 = vmatpush.bf16.msra.mxu0 %v2648
        %3252 = vmatpush.bf16.msra.mxu0 %v2640
        %3253 = vmatpush.bf16.msra.mxu0 %v2632
        %3254 = vmatmul.bf16.gmra.mxu0 %v1410
        %v3255 = vpop.f32.mrf.mxu0
        %v3256 = vadd.f32 %v3243, %v3255
        %v3257 = vpop.f32.mrf.mxu0
        %3258 = vdwg.mxu0
        %3259 = vmatpush.bf16.msra.mxu0 %v2497
        %3260 = vmatpush.bf16.msra.mxu0 %v2489
        %3261 = vmatpush.bf16.msra.mxu0 %v2481
        %3262 = vmatpush.bf16.msra.mxu0 %v2473
        %3263 = vmatpush.bf16.msra.mxu0 %v2465
        %3264 = vmatpush.bf16.msra.mxu0 %v2457
        %3265 = vmatpush.bf16.msra.mxu0 %v2449
        %3266 = vmatpush.bf16.msra.mxu0 %v2441
        %3267 = vmatmul.bf16.gmra.mxu0 %v1407
        %v3268 = vpop.f32.mrf.mxu0
        %v3269 = vadd.f32 0.0, %v3268
        %v3270 = vpop.f32.mrf.mxu0
        %3271 = vdwg.mxu0
        %3272 = vmatpush.bf16.msra.mxu0 %v2561
        %3273 = vmatpush.bf16.msra.mxu0 %v2553
        %3274 = vmatpush.bf16.msra.mxu0 %v2545
        %3275 = vmatpush.bf16.msra.mxu0 %v2537
        %3276 = vmatpush.bf16.msra.mxu0 %v2529
        %3277 = vmatpush.bf16.msra.mxu0 %v2521
        %3278 = vmatpush.bf16.msra.mxu0 %v2513
        %3279 = vmatpush.bf16.msra.mxu0 %v2505
        %3280 = vmatmul.bf16.gmra.mxu0 %v1408
        %v3281 = vpop.f32.mrf.mxu0
        %v3282 = vadd.f32 %v3269, %v3281
        %v3283 = vpop.f32.mrf.mxu0
        %3284 = vdwg.mxu0
        %3285 = vmatpush.bf16.msra.mxu0 %v2625
        %3286 = vmatpush.bf16.msra.mxu0 %v2617
        %3287 = vmatpush.bf16.msra.mxu0 %v2609
        %3288 = vmatpush.bf16.msra.mxu0 %v2601
        %3289 = vmatpush.bf16.msra.mxu0 %v2593
        %3290 = vmatpush.bf16.msra.mxu0 %v2585
        %3291 = vmatpush.bf16.msra.mxu0 %v2577
        %3292 = vmatpush.bf16.msra.mxu0 %v2569
        %3293 = vmatmul.bf16.gmra.mxu0 %v1409
        %v3294 = vpop.f32.mrf.mxu0
        %v3295 = vadd.f32 %v3282, %v3294
        %v3296 = vpop.f32.mrf.mxu0
        %3297 = vdwg.mxu0
        %3298 = vmatpush.bf16.msra.mxu0 %v2689
        %3299 = vmatpush.bf16.msra.mxu0 %v2681
        %3300 = vmatpush.bf16.msra.mxu0 %v2673
        %3301 = vmatpush.bf16.msra.mxu0 %v2665
        %3302 = vmatpush.bf16.msra.mxu0 %v2657
        %3303 = vmatpush.bf16.msra.mxu0 %v2649
        %3304 = vmatpush.bf16.msra.mxu0 %v2641
        %3305 = vmatpush.bf16.msra.mxu0 %v2633
        %3306 = vmatmul.bf16.gmra.mxu0 %v1410
        %v3307 = vpop.f32.mrf.mxu0
        %v3308 = vadd.f32 %v3295, %v3307
        %v3309 = vpop.f32.mrf.mxu0
        %3310 = vdwg.mxu0
        %3311 = vmatpush.bf16.msra.mxu0 %v2498
        %3312 = vmatpush.bf16.msra.mxu0 %v2490
        %3313 = vmatpush.bf16.msra.mxu0 %v2482
        %3314 = vmatpush.bf16.msra.mxu0 %v2474
        %3315 = vmatpush.bf16.msra.mxu0 %v2466
        %3316 = vmatpush.bf16.msra.mxu0 %v2458
        %3317 = vmatpush.bf16.msra.mxu0 %v2450
        %3318 = vmatpush.bf16.msra.mxu0 %v2442
        %3319 = vmatmul.bf16.gmra.mxu0 %v1407
        %v3320 = vpop.f32.mrf.mxu0
        %v3321 = vadd.f32 0.0, %v3320
        %v3322 = vpop.f32.mrf.mxu0
        %3323 = vdwg.mxu0
        %3324 = vmatpush.bf16.msra.mxu0 %v2562
        %3325 = vmatpush.bf16.msra.mxu0 %v2554
        %3326 = vmatpush.bf16.msra.mxu0 %v2546
        %3327 = vmatpush.bf16.msra.mxu0 %v2538
        %3328 = vmatpush.bf16.msra.mxu0 %v2530
        %3329 = vmatpush.bf16.msra.mxu0 %v2522
        %3330 = vmatpush.bf16.msra.mxu0 %v2514
        %3331 = vmatpush.bf16.msra.mxu0 %v2506
        %3332 = vmatmul.bf16.gmra.mxu0 %v1408
        %v3333 = vpop.f32.mrf.mxu0
        %v3334 = vadd.f32 %v3321, %v3333
        %v3335 = vpop.f32.mrf.mxu0
        %3336 = vdwg.mxu0
        %3337 = vmatpush.bf16.msra.mxu0 %v2626
        %3338 = vmatpush.bf16.msra.mxu0 %v2618
        %3339 = vmatpush.bf16.msra.mxu0 %v2610
        %3340 = vmatpush.bf16.msra.mxu0 %v2602
        %3341 = vmatpush.bf16.msra.mxu0 %v2594
        %3342 = vmatpush.bf16.msra.mxu0 %v2586
        %3343 = vmatpush.bf16.msra.mxu0 %v2578
        %3344 = vmatpush.bf16.msra.mxu0 %v2570
        %3345 = vmatmul.bf16.gmra.mxu0 %v1409
        %v3346 = vpop.f32.mrf.mxu0
        %v3347 = vadd.f32 %v3334, %v3346
        %v3348 = vpop.f32.mrf.mxu0
        %3349 = vdwg.mxu0
        %3350 = vmatpush.bf16.msra.mxu0 %v2690
        %3351 = vmatpush.bf16.msra.mxu0 %v2682
        %3352 = vmatpush.bf16.msra.mxu0 %v2674
        %3353 = vmatpush.bf16.msra.mxu0 %v2666
        %3354 = vmatpush.bf16.msra.mxu0 %v2658
        %3355 = vmatpush.bf16.msra.mxu0 %v2650
        %3356 = vmatpush.bf16.msra.mxu0 %v2642
        %3357 = vmatpush.bf16.msra.mxu0 %v2634
        %3358 = vmatmul.bf16.gmra.mxu0 %v1410
        %v3359 = vpop.f32.mrf.mxu0
        %v3360 = vadd.f32 %v3347, %v3359
        %v3361 = vpop.f32.mrf.mxu0
        %3362 = vdwg.mxu0
        %v3371 = vrot.slane %v3048, 6
        %v3372 = vrot.slane %v3100, 4
        %v3373 = vrot.slane %v3152, 2
        %v3374 = vrot.slane %v3256, 6
        %v3375 = vrot.slane %v3308, 4
        %v3376 = vrot.slane %v3360, 2
        %vm3377 = vcmask 1041408
        %v3378 = vsel %vm3377, %v2996, %v3371
        %vm3379 = vcmask 1045508
        %v3380 = vsel %vm3379, %v3372, %v3373
        %vm3381 = vcmask 1043456
        %v3382 = vsel %vm3381, %v3378, %v3380
        %v3383 = vsel %vm3377, %v3204, %v3374
        %v3384 = vsel %vm3379, %v3375, %v3376
        %v3385 = vsel %vm3381, %v3383, %v3384
        %v3388 = vadd.f32 %v1405, %v3382
        %v3389 = vadd.f32 %v1406, %v3385
        %3390 = vst [vmem:[#allocation2] sm:$0xff] %v3388
        %3391 = vst [vmem:[#allocation2 + $0x8] sm:$0xff] %v3389
        %p3392 = scmp.eq.s32.totalorder %s26, 7
        // Predicated region
        $region73: #{blnet_forward.3} parent=47 // pred_check
          %p3393 = pneg %p3392
        $region74: #{blnet_forward.3} parent=47 // pred_check_branch
          %3395 = sbr.rel (%p3393) target = $region76
        $region75: #{blnet_forward.3} parent=47 // pred_region
          %v3396 = vld [vmem:[#allocation2] sm:$0xff]
          %v3397 = vld [vmem:[#allocation2 + $0x8] sm:$0xff]
          %v3398 = vld [vmem:[#allocation9] sm:$0xff]
          %v3400 = vperm.slane %v3398, 0
          %v3401 = vperm.slane %v3398, 1
          %v3402 = vperm.slane %v3398, 2
          %v3403 = vperm.slane %v3398, 3
          %v3404 = vperm.slane %v3398, 4
          %v3405 = vperm.slane %v3398, 5
          %v3406 = vperm.slane %v3398, 6
          %v3407 = vperm.slane %v3398, 7
          %v3408 = vrot.slane %v3401, 6
          %v3409 = vrot.slane %v3402, 4
          %v3410 = vrot.slane %v3403, 2
          %v3411 = vrot.slane %v3405, 6
          %v3412 = vrot.slane %v3406, 4
          %v3413 = vrot.slane %v3407, 2
          %v3414 = vsel %vm3377, %v3400, %v3408
          %v3415 = vsel %vm3379, %v3409, %v3410
          %v3416 = vsel %vm3381, %v3414, %v3415
          %v3417 = vsel %vm3377, %v3404, %v3411
          %v3418 = vsel %vm3379, %v3412, %v3413
          %v3419 = vsel %vm3381, %v3417, %v3418
          %v3422 = vadd.f32 %v3396, %v3416
          %v3423 = vadd.f32 %v3397, %v3419
          %3426 = vst [vmem:[#allocation1] ss:$4 sm:$0xff] %v3422
          %s3427 = scalar_lea.vmem [#allocation1], 32
          %3428 = vst [vmem:[%s3427] ss:$4 sm:$0xff] %v3423
          %v3429 = vld.sshfl [vmem:[#allocation1] sm:$0xff pattern:$0x73625140]
          %v3430 = vld.sshfl [vmem:[#allocation1 + $0x8] sm:$0xff pattern:$0x73625140]
          %v3431 = vld.sshfl [vmem:[#allocation1 + $0x10] sm:$0xff pattern:$0x73625140]
          %v3432 = vld.sshfl [vmem:[#allocation1 + $0x18] sm:$0xff pattern:$0x73625140]
          %v3433 = vld.sshfl [vmem:[#allocation1 + $0x20] sm:$0xff pattern:$0x73625140]
          %v3434 = vld.sshfl [vmem:[#allocation1 + $0x28] sm:$0xff pattern:$0x73625140]
          %v3435 = vld.sshfl [vmem:[#allocation1 + $0x30] sm:$0xff pattern:$0x73625140]
          %v3436 = vld.sshfl [vmem:[#allocation1 + $0x38] sm:$0xff pattern:$0x73625140]
          %v3445 = vpack.c.bf16 %v3429, %v3429
          %v3446 = vpack.c.bf16 %v3430, %v3430
          %v3447 = vpack.c.bf16 %v3431, %v3431
          %v3448 = vpack.c.bf16 %v3432, %v3432
          %v3449 = vpack.c.bf16 %v3433, %v3433
          %v3450 = vpack.c.bf16 %v3434, %v3434
          %v3451 = vpack.c.bf16 %v3435, %v3435
          %v3452 = vpack.c.bf16 %v3436, %v3436
          %v3453 = vld [vmem:[%s4] sm:$0xf]
          %v3454 = vld [vmem:[%s4 + $0x4] sm:$0xf]
          %v3455 = vld [vmem:[%s4 + $0x8] sm:$0xf]
          %v3456 = vld [vmem:[%s4 + $0xc] sm:$0xf]
          %v3457 = vld [vmem:[%s4 + $0x10] sm:$0xf]
          %v3458 = vld [vmem:[%s4 + $0x14] sm:$0xf]
          %v3459 = vld [vmem:[%s4 + $0x18] sm:$0xf]
          %v3460 = vld [vmem:[%s4 + $0x1c] sm:$0xf]
          %v3461 = vld [vmem:[%s4 + $0x20] sm:$0xf]
          %v3462 = vld [vmem:[%s4 + $0x24] sm:$0xf]
          %v3463 = vld [vmem:[%s4 + $0x28] sm:$0xf]
          %v3464 = vld [vmem:[%s4 + $0x2c] sm:$0xf]
          %v3465 = vld [vmem:[%s4 + $0x30] sm:$0xf]
          %v3466 = vld [vmem:[%s4 + $0x34] sm:$0xf]
          %v3467 = vld [vmem:[%s4 + $0x38] sm:$0xf]
          %v3468 = vld [vmem:[%s4 + $0x3c] sm:$0xf]
          %v3469 = vld [vmem:[%s4 + $0x40] sm:$0xf]
          %v3470 = vld [vmem:[%s4 + $0x44] sm:$0xf]
          %v3471 = vld [vmem:[%s4 + $0x48] sm:$0xf]
          %v3472 = vld [vmem:[%s4 + $0x4c] sm:$0xf]
          %v3473 = vld [vmem:[%s4 + $0x50] sm:$0xf]
          %v3474 = vld [vmem:[%s4 + $0x54] sm:$0xf]
          %v3475 = vld [vmem:[%s4 + $0x58] sm:$0xf]
          %v3476 = vld [vmem:[%s4 + $0x5c] sm:$0xf]
          %v3477 = vld [vmem:[%s4 + $0x60] sm:$0xf]
          %v3478 = vld [vmem:[%s4 + $0x64] sm:$0xf]
          %v3479 = vld [vmem:[%s4 + $0x68] sm:$0xf]
          %v3480 = vld [vmem:[%s4 + $0x6c] sm:$0xf]
          %v3481 = vld [vmem:[%s4 + $0x70] sm:$0xf]
          %v3482 = vld [vmem:[%s4 + $0x74] sm:$0xf]
          %v3483 = vld [vmem:[%s4 + $0x78] sm:$0xf]
          %v3484 = vld [vmem:[%s4 + $0x7c] sm:$0xf]
          %v3485 = vld [vmem:[%s4 + $0x80] sm:$0xf]
          %v3486 = vld [vmem:[%s4 + $0x84] sm:$0xf]
          %v3487 = vld [vmem:[%s4 + $0x88] sm:$0xf]
          %v3488 = vld [vmem:[%s4 + $0x8c] sm:$0xf]
          %v3489 = vld [vmem:[%s4 + $0x90] sm:$0xf]
          %v3490 = vld [vmem:[%s4 + $0x94] sm:$0xf]
          %v3491 = vld [vmem:[%s4 + $0x98] sm:$0xf]
          %v3492 = vld [vmem:[%s4 + $0x9c] sm:$0xf]
          %v3493 = vld [vmem:[%s4 + $0xa0] sm:$0xf]
          %v3494 = vld [vmem:[%s4 + $0xa4] sm:$0xf]
          %v3495 = vld [vmem:[%s4 + $0xa8] sm:$0xf]
          %v3496 = vld [vmem:[%s4 + $0xac] sm:$0xf]
          %v3497 = vld [vmem:[%s4 + $0xb0] sm:$0xf]
          %v3498 = vld [vmem:[%s4 + $0xb4] sm:$0xf]
          %v3499 = vld [vmem:[%s4 + $0xb8] sm:$0xf]
          %v3500 = vld [vmem:[%s4 + $0xbc] sm:$0xf]
          %v3501 = vld [vmem:[%s4 + $0xc0] sm:$0xf]
          %v3502 = vld [vmem:[%s4 + $0xc4] sm:$0xf]
          %v3503 = vld [vmem:[%s4 + $0xc8] sm:$0xf]
          %v3504 = vld [vmem:[%s4 + $0xcc] sm:$0xf]
          %v3505 = vld [vmem:[%s4 + $0xd0] sm:$0xf]
          %v3506 = vld [vmem:[%s4 + $0xd4] sm:$0xf]
          %v3507 = vld [vmem:[%s4 + $0xd8] sm:$0xf]
          %v3508 = vld [vmem:[%s4 + $0xdc] sm:$0xf]
          %v3509 = vld [vmem:[%s4 + $0xe0] sm:$0xf]
          %v3510 = vld [vmem:[%s4 + $0xe4] sm:$0xf]
          %v3511 = vld [vmem:[%s4 + $0xe8] sm:$0xf]
          %v3512 = vld [vmem:[%s4 + $0xec] sm:$0xf]
          %v3513 = vld [vmem:[%s4 + $0xf0] sm:$0xf]
          %v3514 = vld [vmem:[%s4 + $0xf4] sm:$0xf]
          %v3515 = vld [vmem:[%s4 + $0xf8] sm:$0xf]
          %v3516 = vld [vmem:[%s4 + $0xfc] sm:$0xf]
          %v3517 = vld [vmem:[%s4 + $0x100] sm:$0xf]
          %v3518 = vld [vmem:[%s4 + $0x104] sm:$0xf]
          %v3519 = vld [vmem:[%s4 + $0x108] sm:$0xf]
          %v3520 = vld [vmem:[%s4 + $0x10c] sm:$0xf]
          %v3521 = vld [vmem:[%s4 + $0x110] sm:$0xf]
          %v3522 = vld [vmem:[%s4 + $0x114] sm:$0xf]
          %v3523 = vld [vmem:[%s4 + $0x118] sm:$0xf]
          %v3524 = vld [vmem:[%s4 + $0x11c] sm:$0xf]
          %v3525 = vld [vmem:[%s4 + $0x120] sm:$0xf]
          %v3526 = vld [vmem:[%s4 + $0x124] sm:$0xf]
          %v3527 = vld [vmem:[%s4 + $0x128] sm:$0xf]
          %v3528 = vld [vmem:[%s4 + $0x12c] sm:$0xf]
          %v3529 = vld [vmem:[%s4 + $0x130] sm:$0xf]
          %v3530 = vld [vmem:[%s4 + $0x134] sm:$0xf]
          %v3531 = vld [vmem:[%s4 + $0x138] sm:$0xf]
          %v3532 = vld [vmem:[%s4 + $0x13c] sm:$0xf]
          %v3533 = vld [vmem:[%s4 + $0x140] sm:$0xf]
          %v3534 = vld [vmem:[%s4 + $0x144] sm:$0xf]
          %v3535 = vld [vmem:[%s4 + $0x148] sm:$0xf]
          %v3536 = vld [vmem:[%s4 + $0x14c] sm:$0xf]
          %v3537 = vld [vmem:[%s4 + $0x150] sm:$0xf]
          %v3538 = vld [vmem:[%s4 + $0x154] sm:$0xf]
          %v3539 = vld [vmem:[%s4 + $0x158] sm:$0xf]
          %v3540 = vld [vmem:[%s4 + $0x15c] sm:$0xf]
          %v3541 = vld [vmem:[%s4 + $0x160] sm:$0xf]
          %v3542 = vld [vmem:[%s4 + $0x164] sm:$0xf]
          %v3543 = vld [vmem:[%s4 + $0x168] sm:$0xf]
          %v3544 = vld [vmem:[%s4 + $0x16c] sm:$0xf]
          %v3545 = vld [vmem:[%s4 + $0x170] sm:$0xf]
          %v3546 = vld [vmem:[%s4 + $0x174] sm:$0xf]
          %v3547 = vld [vmem:[%s4 + $0x178] sm:$0xf]
          %v3548 = vld [vmem:[%s4 + $0x17c] sm:$0xf]
          %v3549 = vld [vmem:[%s4 + $0x180] sm:$0xf]
          %v3550 = vld [vmem:[%s4 + $0x184] sm:$0xf]
          %v3551 = vld [vmem:[%s4 + $0x188] sm:$0xf]
          %v3552 = vld [vmem:[%s4 + $0x18c] sm:$0xf]
          %v3553 = vld [vmem:[%s4 + $0x190] sm:$0xf]
          %v3554 = vld [vmem:[%s4 + $0x194] sm:$0xf]
          %v3555 = vld [vmem:[%s4 + $0x198] sm:$0xf]
          %v3556 = vld [vmem:[%s4 + $0x19c] sm:$0xf]
          %v3557 = vld [vmem:[%s4 + $0x1a0] sm:$0xf]
          %v3558 = vld [vmem:[%s4 + $0x1a4] sm:$0xf]
          %v3559 = vld [vmem:[%s4 + $0x1a8] sm:$0xf]
          %v3560 = vld [vmem:[%s4 + $0x1ac] sm:$0xf]
          %v3561 = vld [vmem:[%s4 + $0x1b0] sm:$0xf]
          %v3562 = vld [vmem:[%s4 + $0x1b4] sm:$0xf]
          %v3563 = vld [vmem:[%s4 + $0x1b8] sm:$0xf]
          %v3564 = vld [vmem:[%s4 + $0x1bc] sm:$0xf]
          %v3565 = vld [vmem:[%s4 + $0x1c0] sm:$0xf]
          %v3566 = vld [vmem:[%s4 + $0x1c4] sm:$0xf]
          %v3567 = vld [vmem:[%s4 + $0x1c8] sm:$0xf]
          %v3568 = vld [vmem:[%s4 + $0x1cc] sm:$0xf]
          %v3569 = vld [vmem:[%s4 + $0x1d0] sm:$0xf]
          %v3570 = vld [vmem:[%s4 + $0x1d4] sm:$0xf]
          %v3571 = vld [vmem:[%s4 + $0x1d8] sm:$0xf]
          %v3572 = vld [vmem:[%s4 + $0x1dc] sm:$0xf]
          %v3573 = vld [vmem:[%s4 + $0x1e0] sm:$0xf]
          %v3574 = vld [vmem:[%s4 + $0x1e4] sm:$0xf]
          %v3575 = vld [vmem:[%s4 + $0x1e8] sm:$0xf]
          %v3576 = vld [vmem:[%s4 + $0x1ec] sm:$0xf]
          %v3577 = vld [vmem:[%s4 + $0x1f0] sm:$0xf]
          %v3578 = vld [vmem:[%s4 + $0x1f4] sm:$0xf]
          %v3579 = vld [vmem:[%s4 + $0x1f8] sm:$0xf]
          %v3580 = vld [vmem:[%s4 + $0x1fc] sm:$0xf]
          %v3581 = vld [vmem:[#allocation11] sm:$0x1]
          %v3583 = vperm.slane %v3581, 0
          %v3713 = vunpack.c.l.b16 %v3453
          %v3714 = vunpack.c.l.b16 %v3454
          %v3715 = vunpack.c.l.b16 %v3455
          %v3716 = vunpack.c.l.b16 %v3456
          %v3717 = vunpack.c.l.b16 %v3457
          %v3718 = vunpack.c.l.b16 %v3458
          %v3719 = vunpack.c.l.b16 %v3459
          %v3720 = vunpack.c.l.b16 %v3460
          %v3721 = vunpack.c.l.b16 %v3461
          %v3722 = vunpack.c.l.b16 %v3462
          %v3723 = vunpack.c.l.b16 %v3463
          %v3724 = vunpack.c.l.b16 %v3464
          %v3725 = vunpack.c.l.b16 %v3465
          %v3726 = vunpack.c.l.b16 %v3466
          %v3727 = vunpack.c.l.b16 %v3467
          %v3728 = vunpack.c.l.b16 %v3468
          %v3729 = vunpack.c.l.b16 %v3469
          %v3730 = vunpack.c.l.b16 %v3470
          %v3731 = vunpack.c.l.b16 %v3471
          %v3732 = vunpack.c.l.b16 %v3472
          %v3733 = vunpack.c.l.b16 %v3473
          %v3734 = vunpack.c.l.b16 %v3474
          %v3735 = vunpack.c.l.b16 %v3475
          %v3736 = vunpack.c.l.b16 %v3476
          %v3737 = vunpack.c.l.b16 %v3477
          %v3738 = vunpack.c.l.b16 %v3478
          %v3739 = vunpack.c.l.b16 %v3479
          %v3740 = vunpack.c.l.b16 %v3480
          %v3741 = vunpack.c.l.b16 %v3481
          %v3742 = vunpack.c.l.b16 %v3482
          %v3743 = vunpack.c.l.b16 %v3483
          %v3744 = vunpack.c.l.b16 %v3484
          %v3745 = vunpack.c.l.b16 %v3485
          %v3746 = vunpack.c.l.b16 %v3486
          %v3747 = vunpack.c.l.b16 %v3487
          %v3748 = vunpack.c.l.b16 %v3488
          %v3749 = vunpack.c.l.b16 %v3489
          %v3750 = vunpack.c.l.b16 %v3490
          %v3751 = vunpack.c.l.b16 %v3491
          %v3752 = vunpack.c.l.b16 %v3492
          %v3753 = vunpack.c.l.b16 %v3493
          %v3754 = vunpack.c.l.b16 %v3494
          %v3755 = vunpack.c.l.b16 %v3495
          %v3756 = vunpack.c.l.b16 %v3496
          %v3757 = vunpack.c.l.b16 %v3497
          %v3758 = vunpack.c.l.b16 %v3498
          %v3759 = vunpack.c.l.b16 %v3499
          %v3760 = vunpack.c.l.b16 %v3500
          %v3761 = vunpack.c.l.b16 %v3501
          %v3762 = vunpack.c.l.b16 %v3502
          %v3763 = vunpack.c.l.b16 %v3503
          %v3764 = vunpack.c.l.b16 %v3504
          %v3765 = vunpack.c.l.b16 %v3505
          %v3766 = vunpack.c.l.b16 %v3506
          %v3767 = vunpack.c.l.b16 %v3507
          %v3768 = vunpack.c.l.b16 %v3508
          %v3769 = vunpack.c.l.b16 %v3509
          %v3770 = vunpack.c.l.b16 %v3510
          %v3771 = vunpack.c.l.b16 %v3511
          %v3772 = vunpack.c.l.b16 %v3512
          %v3773 = vunpack.c.l.b16 %v3513
          %v3774 = vunpack.c.l.b16 %v3514
          %v3775 = vunpack.c.l.b16 %v3515
          %v3776 = vunpack.c.l.b16 %v3516
          %v3777 = vunpack.c.l.b16 %v3517
          %v3778 = vunpack.c.l.b16 %v3518
          %v3779 = vunpack.c.l.b16 %v3519
          %v3780 = vunpack.c.l.b16 %v3520
          %v3781 = vunpack.c.l.b16 %v3521
          %v3782 = vunpack.c.l.b16 %v3522
          %v3783 = vunpack.c.l.b16 %v3523
          %v3784 = vunpack.c.l.b16 %v3524
          %v3785 = vunpack.c.l.b16 %v3525
          %v3786 = vunpack.c.l.b16 %v3526
          %v3787 = vunpack.c.l.b16 %v3527
          %v3788 = vunpack.c.l.b16 %v3528
          %v3789 = vunpack.c.l.b16 %v3529
          %v3790 = vunpack.c.l.b16 %v3530
          %v3791 = vunpack.c.l.b16 %v3531
          %v3792 = vunpack.c.l.b16 %v3532
          %v3793 = vunpack.c.l.b16 %v3533
          %v3794 = vunpack.c.l.b16 %v3534
          %v3795 = vunpack.c.l.b16 %v3535
          %v3796 = vunpack.c.l.b16 %v3536
          %v3797 = vunpack.c.l.b16 %v3537
          %v3798 = vunpack.c.l.b16 %v3538
          %v3799 = vunpack.c.l.b16 %v3539
          %v3800 = vunpack.c.l.b16 %v3540
          %v3801 = vunpack.c.l.b16 %v3541
          %v3802 = vunpack.c.l.b16 %v3542
          %v3803 = vunpack.c.l.b16 %v3543
          %v3804 = vunpack.c.l.b16 %v3544
          %v3805 = vunpack.c.l.b16 %v3545
          %v3806 = vunpack.c.l.b16 %v3546
          %v3807 = vunpack.c.l.b16 %v3547
          %v3808 = vunpack.c.l.b16 %v3548
          %v3809 = vunpack.c.l.b16 %v3549
          %v3810 = vunpack.c.l.b16 %v3550
          %v3811 = vunpack.c.l.b16 %v3551
          %v3812 = vunpack.c.l.b16 %v3552
          %v3813 = vunpack.c.l.b16 %v3553
          %v3814 = vunpack.c.l.b16 %v3554
          %v3815 = vunpack.c.l.b16 %v3555
          %v3816 = vunpack.c.l.b16 %v3556
          %v3817 = vunpack.c.l.b16 %v3557
          %v3818 = vunpack.c.l.b16 %v3558
          %v3819 = vunpack.c.l.b16 %v3559
          %v3820 = vunpack.c.l.b16 %v3560
          %v3821 = vunpack.c.l.b16 %v3561
          %v3822 = vunpack.c.l.b16 %v3562
          %v3823 = vunpack.c.l.b16 %v3563
          %v3824 = vunpack.c.l.b16 %v3564
          %v3825 = vunpack.c.l.b16 %v3565
          %v3826 = vunpack.c.l.b16 %v3566
          %v3827 = vunpack.c.l.b16 %v3567
          %v3828 = vunpack.c.l.b16 %v3568
          %v3829 = vunpack.c.l.b16 %v3569
          %v3830 = vunpack.c.l.b16 %v3570
          %v3831 = vunpack.c.l.b16 %v3571
          %v3832 = vunpack.c.l.b16 %v3572
          %v3833 = vunpack.c.l.b16 %v3573
          %v3834 = vunpack.c.l.b16 %v3574
          %v3835 = vunpack.c.l.b16 %v3575
          %v3836 = vunpack.c.l.b16 %v3576
          %v3837 = vunpack.c.l.b16 %v3577
          %v3838 = vunpack.c.l.b16 %v3578
          %v3839 = vunpack.c.l.b16 %v3579
          %v3840 = vunpack.c.l.b16 %v3580
          %v3841 = vpack.c.b16 %v3714, %v3713
          %v3842 = vpack.c.b16 %v3716, %v3715
          %v3843 = vpack.c.b16 %v3718, %v3717
          %v3844 = vpack.c.b16 %v3720, %v3719
          %v3845 = vpack.c.b16 %v3722, %v3721
          %v3846 = vpack.c.b16 %v3724, %v3723
          %v3847 = vpack.c.b16 %v3726, %v3725
          %v3848 = vpack.c.b16 %v3728, %v3727
          %v3849 = vpack.c.b16 %v3730, %v3729
          %v3850 = vpack.c.b16 %v3732, %v3731
          %v3851 = vpack.c.b16 %v3734, %v3733
          %v3852 = vpack.c.b16 %v3736, %v3735
          %v3853 = vpack.c.b16 %v3738, %v3737
          %v3854 = vpack.c.b16 %v3740, %v3739
          %v3855 = vpack.c.b16 %v3742, %v3741
          %v3856 = vpack.c.b16 %v3744, %v3743
          %v3857 = vpack.c.b16 %v3746, %v3745
          %v3858 = vpack.c.b16 %v3748, %v3747
          %v3859 = vpack.c.b16 %v3750, %v3749
          %v3860 = vpack.c.b16 %v3752, %v3751
          %v3861 = vpack.c.b16 %v3754, %v3753
          %v3862 = vpack.c.b16 %v3756, %v3755
          %v3863 = vpack.c.b16 %v3758, %v3757
          %v3864 = vpack.c.b16 %v3760, %v3759
          %v3865 = vpack.c.b16 %v3762, %v3761
          %v3866 = vpack.c.b16 %v3764, %v3763
          %v3867 = vpack.c.b16 %v3766, %v3765
          %v3868 = vpack.c.b16 %v3768, %v3767
          %v3869 = vpack.c.b16 %v3770, %v3769
          %v3870 = vpack.c.b16 %v3772, %v3771
          %v3871 = vpack.c.b16 %v3774, %v3773
          %v3872 = vpack.c.b16 %v3776, %v3775
          %v3873 = vpack.c.b16 %v3778, %v3777
          %v3874 = vpack.c.b16 %v3780, %v3779
          %v3875 = vpack.c.b16 %v3782, %v3781
          %v3876 = vpack.c.b16 %v3784, %v3783
          %v3877 = vpack.c.b16 %v3786, %v3785
          %v3878 = vpack.c.b16 %v3788, %v3787
          %v3879 = vpack.c.b16 %v3790, %v3789
          %v3880 = vpack.c.b16 %v3792, %v3791
          %v3881 = vpack.c.b16 %v3794, %v3793
          %v3882 = vpack.c.b16 %v3796, %v3795
          %v3883 = vpack.c.b16 %v3798, %v3797
          %v3884 = vpack.c.b16 %v3800, %v3799
          %v3885 = vpack.c.b16 %v3802, %v3801
          %v3886 = vpack.c.b16 %v3804, %v3803
          %v3887 = vpack.c.b16 %v3806, %v3805
          %v3888 = vpack.c.b16 %v3808, %v3807
          %v3889 = vpack.c.b16 %v3810, %v3809
          %v3890 = vpack.c.b16 %v3812, %v3811
          %v3891 = vpack.c.b16 %v3814, %v3813
          %v3892 = vpack.c.b16 %v3816, %v3815
          %v3893 = vpack.c.b16 %v3818, %v3817
          %v3894 = vpack.c.b16 %v3820, %v3819
          %v3895 = vpack.c.b16 %v3822, %v3821
          %v3896 = vpack.c.b16 %v3824, %v3823
          %v3897 = vpack.c.b16 %v3826, %v3825
          %v3898 = vpack.c.b16 %v3828, %v3827
          %v3899 = vpack.c.b16 %v3830, %v3829
          %v3900 = vpack.c.b16 %v3832, %v3831
          %v3901 = vpack.c.b16 %v3834, %v3833
          %v3902 = vpack.c.b16 %v3836, %v3835
          %v3903 = vpack.c.b16 %v3838, %v3837
          %v3904 = vpack.c.b16 %v3840, %v3839
          %3969 = vmatpush.bf16.msra.mxu0 %v3848
          %3970 = vmatpush.bf16.msra.mxu0 %v3847
          %3971 = vmatpush.bf16.msra.mxu0 %v3846
          %3972 = vmatpush.bf16.msra.mxu0 %v3845
          %3973 = vmatpush.bf16.msra.mxu0 %v3844
          %3974 = vmatpush.bf16.msra.mxu0 %v3843
          %3975 = vmatpush.bf16.msra.mxu0 %v3842
          %3976 = vmatpush.bf16.msra.mxu0 %v3841
          %3977 = vmatmul.bf16.gmra.mxu0 %v3445
          %v3978 = vpop.f32.mrf.mxu0
          %v3979 = vadd.f32 %v3583, %v3978
          %v3980 = vpop.f32.mrf.mxu0
          %3981 = vdwg.mxu0
          %3982 = vmatpush.bf16.msra.mxu0 %v3856
          %3983 = vmatpush.bf16.msra.mxu0 %v3855
          %3984 = vmatpush.bf16.msra.mxu0 %v3854
          %3985 = vmatpush.bf16.msra.mxu0 %v3853
          %3986 = vmatpush.bf16.msra.mxu0 %v3852
          %3987 = vmatpush.bf16.msra.mxu0 %v3851
          %3988 = vmatpush.bf16.msra.mxu0 %v3850
          %3989 = vmatpush.bf16.msra.mxu0 %v3849
          %3990 = vmatmul.bf16.gmra.mxu0 %v3446
          %v3991 = vpop.f32.mrf.mxu0
          %v3992 = vadd.f32 %v3979, %v3991
          %v3993 = vpop.f32.mrf.mxu0
          %3994 = vdwg.mxu0
          %3995 = vmatpush.bf16.msra.mxu0 %v3864
          %3996 = vmatpush.bf16.msra.mxu0 %v3863
          %3997 = vmatpush.bf16.msra.mxu0 %v3862
          %3998 = vmatpush.bf16.msra.mxu0 %v3861
          %3999 = vmatpush.bf16.msra.mxu0 %v3860
          %4000 = vmatpush.bf16.msra.mxu0 %v3859
          %4001 = vmatpush.bf16.msra.mxu0 %v3858
          %4002 = vmatpush.bf16.msra.mxu0 %v3857
          %4003 = vmatmul.bf16.gmra.mxu0 %v3447
          %v4004 = vpop.f32.mrf.mxu0
          %v4005 = vadd.f32 %v3992, %v4004
          %v4006 = vpop.f32.mrf.mxu0
          %4007 = vdwg.mxu0
          %4008 = vmatpush.bf16.msra.mxu0 %v3872
          %4009 = vmatpush.bf16.msra.mxu0 %v3871
          %4010 = vmatpush.bf16.msra.mxu0 %v3870
          %4011 = vmatpush.bf16.msra.mxu0 %v3869
          %4012 = vmatpush.bf16.msra.mxu0 %v3868
          %4013 = vmatpush.bf16.msra.mxu0 %v3867
          %4014 = vmatpush.bf16.msra.mxu0 %v3866
          %4015 = vmatpush.bf16.msra.mxu0 %v3865
          %4016 = vmatmul.bf16.gmra.mxu0 %v3448
          %v4017 = vpop.f32.mrf.mxu0
          %v4018 = vadd.f32 %v4005, %v4017
          %v4019 = vpop.f32.mrf.mxu0
          %4020 = vdwg.mxu0
          %4021 = vmatpush.bf16.msra.mxu0 %v3880
          %4022 = vmatpush.bf16.msra.mxu0 %v3879
          %4023 = vmatpush.bf16.msra.mxu0 %v3878
          %4024 = vmatpush.bf16.msra.mxu0 %v3877
          %4025 = vmatpush.bf16.msra.mxu0 %v3876
          %4026 = vmatpush.bf16.msra.mxu0 %v3875
          %4027 = vmatpush.bf16.msra.mxu0 %v3874
          %4028 = vmatpush.bf16.msra.mxu0 %v3873
          %4029 = vmatmul.bf16.gmra.mxu0 %v3449
          %v4030 = vpop.f32.mrf.mxu0
          %v4031 = vadd.f32 %v4018, %v4030
          %v4032 = vpop.f32.mrf.mxu0
          %4033 = vdwg.mxu0
          %4034 = vmatpush.bf16.msra.mxu0 %v3888
          %4035 = vmatpush.bf16.msra.mxu0 %v3887
          %4036 = vmatpush.bf16.msra.mxu0 %v3886
          %4037 = vmatpush.bf16.msra.mxu0 %v3885
          %4038 = vmatpush.bf16.msra.mxu0 %v3884
          %4039 = vmatpush.bf16.msra.mxu0 %v3883
          %4040 = vmatpush.bf16.msra.mxu0 %v3882
          %4041 = vmatpush.bf16.msra.mxu0 %v3881
          %4042 = vmatmul.bf16.gmra.mxu0 %v3450
          %v4043 = vpop.f32.mrf.mxu0
          %v4044 = vadd.f32 %v4031, %v4043
          %v4045 = vpop.f32.mrf.mxu0
          %4046 = vdwg.mxu0
          %4047 = vmatpush.bf16.msra.mxu0 %v3896
          %4048 = vmatpush.bf16.msra.mxu0 %v3895
          %4049 = vmatpush.bf16.msra.mxu0 %v3894
          %4050 = vmatpush.bf16.msra.mxu0 %v3893
          %4051 = vmatpush.bf16.msra.mxu0 %v3892
          %4052 = vmatpush.bf16.msra.mxu0 %v3891
          %4053 = vmatpush.bf16.msra.mxu0 %v3890
          %4054 = vmatpush.bf16.msra.mxu0 %v3889
          %4055 = vmatmul.bf16.gmra.mxu0 %v3451
          %v4056 = vpop.f32.mrf.mxu0
          %v4057 = vadd.f32 %v4044, %v4056
          %v4058 = vpop.f32.mrf.mxu0
          %4059 = vdwg.mxu0
          %4060 = vmatpush.bf16.msra.mxu0 %v3904
          %4061 = vmatpush.bf16.msra.mxu0 %v3903
          %4062 = vmatpush.bf16.msra.mxu0 %v3902
          %4063 = vmatpush.bf16.msra.mxu0 %v3901
          %4064 = vmatpush.bf16.msra.mxu0 %v3900
          %4065 = vmatpush.bf16.msra.mxu0 %v3899
          %4066 = vmatpush.bf16.msra.mxu0 %v3898
          %4067 = vmatpush.bf16.msra.mxu0 %v3897
          %4068 = vmatmul.bf16.gmra.mxu0 %v3452
          %v4069 = vpop.f32.mrf.mxu0
          %v4070 = vadd.f32 %v4057, %v4069
          %v4071 = vpop.f32.mrf.mxu0
          %4072 = vdwg.mxu0
          %vm4073 = vcmask 41984
          %4074 = vst.msk [vmem:[#allocation12] sm:$0x3] %vm4073, %v4070
        $region76: #{blnet_forward.3} parent=47 // pred_fallthru
          _
        // Predicated region
        $region77: #{blnet_forward.3} parent=47 // pred_check
          %p4075 = pneg %p201
        $region78: #{blnet_forward.3} parent=47 // pred_check_branch
          %4077 = sbr.rel (%p4075) target = $region80
        $region79: #{blnet_forward.3} parent=47 // pred_region
          %4079 = vsyncadd [#allocation5], 0
          %s4081 = sshll.u32 [#allocation12], 4
          %s4082 = int_to_ptr.vmem [resolvable:$true] %s4081
          %s4083 = sshll.u32 %s7, 4
          %s4084 = int_to_ptr.hbm [resolvable:$true] %s4083
          %4086 = dma.vmem_to_hbm [thread:$0]  %s4082, 32, %s4084, [#allocation5]
        $region80: #{blnet_forward.3} parent=47 // pred_fallthru
          _
        // Predicated region
        $region81: #{blnet_forward.3} parent=47 // pred_check
          %p4087 = pneg %p201
        $region82: #{blnet_forward.3} parent=47 // pred_check_branch
          %4089 = sbr.rel (%p4087) target = $region84
        $region83: #{blnet_forward.3} parent=47 // pred_region
          %4091 = dma.done [#allocation5], 32
        $region84: #{blnet_forward.3} parent=47 // pred_fallthru
          _
      $region48: #{blnet_forward.3} parent=5 // pred_fallthru
        _
      %p4092 = scmp.le.s32.totalorder 2, %s21
      // Predicated region
      $region85: #{blnet_forward.3} parent=5 // pred_check
        %p4093 = pneg %p4092
      $region86: #{blnet_forward.3} parent=5 // pred_check_branch
        %4095 = sbr.rel (%p4093) target = $region88
      $region87: #{blnet_forward.3} parent=5 // pred_region
        %s4096 = ssub.s32 %s21, 2
      $region88: #{blnet_forward.3} parent=5 // pred_fallthru
        _
    $region6: #{blnet_forward.3} parent=1 // loop_footer
      %s25 = sadd.s32 1, %s21
    $region7: #{blnet_forward.3} parent=1 // loop_footer_branch
      %20 = sbr.rel target = $region3
    $region8: #{blnet_forward.3} parent=1 // loop_exit
      _
    %4097 = vsyncpa [#allocation4], 1
    %s4098 = scalar_lea.sflag [#allocation4], 1
    %4099 = vsyncpa %s4098, 1
    %4100 = vsyncpa [#allocation7], 1
    %s4101 = scalar_lea.sflag [#allocation7], 1
    %4102 = vsyncpa %s4101, 1
    %4103 = vsyncpa [#allocation10], 1
    %4104 = vsyncpa [#allocation5], 1
    %s4105 = scalar_lea.sflag [#allocation5], 1
    %4106 = vsyncpa %s4105, 1

</llo_original>
